<compile_context>
chip_gen: v5e
topology: v5e:2x2
jax: 0.10.0
libtpu: 0.0.40
codegen_flags: <defaults>
</compile_context>

<pallas_src>
import jax
import jax.numpy as jnp
from jax.experimental import pallas as pl
from jax.experimental.pallas import tpu as pltpu


PLAN = ((16, 16), (16, 16), (16, 32), (32, 32), (32, 64), (64, 64))
C_STEM_IN = 36       # 4 input channels x 9 height rows merged by the stem conv
C_STEM_PAD = 40      # padded to a multiple of 8 so tap stacking stays sublane-aligned
NUM_CLASSES = 4


# ---------------------------------------------------------------------------
# Fused forward kernel (stem + 6 residual blocks + fc in a single pallas_call)
# ---------------------------------------------------------------------------
def _make_kernel(w_sample, plan):
    """w_sample: per-sample width at the stem; plan: (c_in, c_out) per block."""

    def _taps(x, w_s):
        # Stack the 3 taps of a (1,3)/pad-1 width conv along the channel dim.
        # Samples are concatenated on lanes, so the shifted copies are zeroed
        # at every per-sample boundary column, not just the array edges.
        m = x.shape[1]
        col = jax.lax.broadcasted_iota(jnp.int32, (1, m), 1) % w_s
        prv = pltpu.roll(x, 1, 1) * (col != 0).astype(x.dtype)              # x[:, j-1]
        nxt = pltpu.roll(x, m - 1, 1) * (col != (w_s - 1)).astype(x.dtype)  # x[:, j+1]
        return jnp.concatenate([prv, x, nxt], axis=0)                       # (3C, m)

    def _conv3(x, w_ref, b_ref, w_s):
        # (1,3) conv + folded BN as ONE K = 3*C_in matmul (scale pre-folded).
        t = _taps(x, w_s)
        return jnp.dot(w_ref[...], t, preferred_element_type=jnp.float32) + b_ref[...]

    def kernel(*refs):
        out_ref = refs[-1]
        x_ref, dec_ref, dmask_ref, rsel_ref, csel_ref = refs[:5]
        p = refs[5:-1]

        # --- stem: Conv2d(4,16,(9,3),(1,1),(0,1)) + BN, (C,H) merged to 36ch ---
        w_s = w_sample
        h = _conv3(x_ref[...], p[0], p[1], w_s)
        idx = 2

        # --- six residual blocks, all width-stride 2 ---------------------------
        for c_in, c_out in plan:
            wa, ba, wb, bb, wsc, bsc = p[idx:idx + 6]
            idx += 6
            m = h.shape[1]
            # conv_a at full width, then apply the stride-2 decimation to the
            # conv_a output and the shortcut input with one shared matmul.
            a_full = _conv3(h, wa, ba, w_s)                       # (c_out, m)
            both = jnp.concatenate([a_full, h], axis=0)           # (c_out+c_in, m)
            dec = jnp.dot(both, dec_ref[0:m, 0:m // 2],
                          preferred_element_type=jnp.float32)     # (c_out+c_in, m/2)
            w_s //= 2
            ha = dec[:c_out, :]                                   # BN1(conv_a(x))[::2]
            xs = dec[c_out:, :]                                   # x[:, ::2] (shortcut)
            g = _conv3(ha, wb, bb, w_s)                           # BN2(conv_b(.))
            s = jnp.dot(wsc[...], xs, preferred_element_type=jnp.float32) + bsc[...]
            z = g + s
            h = jnp.where(z > 0.0, z, jnp.exp(jnp.minimum(z, 0.0)) - 1.0)   # ELU(1)

        # --- fc on torch.flatten(C, H=1, W) order, batch still folded in lanes ---
        #   out^T[k, n] = sum_w (Wperm @ h)[k*W_l + w, n*W_l + w] + b[k]
        wfc, bfc = p[idx], p[idx + 1]
        u = jnp.dot(wfc[...], h, preferred_element_type=jnp.float32) * dmask_ref[...]
        out_t = jnp.dot(jnp.dot(rsel_ref[...], u, preferred_element_type=jnp.float32),
                        csel_ref[...], preferred_element_type=jnp.float32)
        out_ref[...] = out_t + bfc[...]

    return kernel


# ---------------------------------------------------------------------------
# Wrapper: layout prep, selection-matrix constants, single pallas_call
# ---------------------------------------------------------------------------
def resnet_forward(x, params):
    n, c, hgt, w = x.shape
    assert c * hgt == C_STEM_IN and w % (1 << len(PLAN)) == 0
    m = n * w
    wl = w >> len(PLAN)                       # per-sample width after the 6 blocks

    # layout prep (plain XLA, once per call): NCHW -> (C*H, N*W), pad channels
    xm = x.reshape(n, c * hgt, w).transpose(1, 0, 2).reshape(c * hgt, m)
    xm = jnp.pad(xm, ((0, C_STEM_PAD - c * hgt), (0, 0)))

    # constant 0/1 selection matrices (trace-time constants)
    dec = (jnp.arange(m)[:, None] == 2 * jnp.arange(m // 2)[None, :]).astype(jnp.float32)
    kk = jnp.arange(NUM_CLASSES * wl)
    bcols = jnp.arange(n * wl)
    dmask = ((kk[:, None] % wl) == (bcols[None, :] % wl)).astype(jnp.float32)
    rsel = (jnp.arange(NUM_CLASSES)[:, None] == (kk[None, :] // wl)).astype(jnp.float32)
    csel = ((bcols[:, None] // wl) == jnp.arange(n)[None, :]).astype(jnp.float32)

    flat = [xm, dec, dmask, rsel, csel, params["stem_w"], params["stem_b"]]
    for blk in params["blocks"]:
        flat += [blk["wa"], blk["ba"], blk["wb"], blk["bb"], blk["ws"], blk["bs"]]
    flat += [params["fc_w"], params["fc_b"]]

    # advisory cost estimate for the single fused call
    flops, trans, mm = 2 * 16 * 3 * C_STEM_PAD * m, 0, m
    for c_in, c_out in PLAN:
        flops += 2 * c_out * 3 * c_in * mm            # conv_a (full width)
        flops += 2 * (c_out + c_in) * mm * (mm // 2)  # stride-2 decimation matmul
        mm //= 2
        flops += 2 * c_out * 3 * c_out * mm           # conv_b
        flops += 2 * c_out * c_in * mm                # 1x1 shortcut
        trans += c_out * mm                           # ELU exp
    flops += 2 * NUM_CLASSES * wl * 64 * mm
    bytes_accessed = sum(int(a.size) * 4 for a in flat) + NUM_CLASSES * n * 4

    vmem = pl.BlockSpec(memory_space=pltpu.MemorySpace.VMEM)
    out_t = pl.pallas_call(
        _make_kernel(w, PLAN),
        out_shape=jax.ShapeDtypeStruct((NUM_CLASSES, n), jnp.float32),
        in_specs=[vmem] * len(flat),
        out_specs=vmem,
        cost_estimate=pl.CostEstimate(flops=flops, transcendentals=trans,
                                      bytes_accessed=bytes_accessed),
    )(*flat)
    return out_t.T                                    # (N, num_classes)


# ---------------------------------------------------------------------------
# Parameter init: random weights + eval-mode BN stats, BN folded into weights
# ---------------------------------------------------------------------------
def _fold_bn(conv_bias, gamma, beta, mean, var, eps=1e-5):
    scale = gamma / jnp.sqrt(var + eps)
    bias = beta + scale * (conv_bias - mean)
    return scale, bias


def _init_bn(key, c):
    k1, k2, k3, k4 = jax.random.split(key, 4)
    gamma = 1.0 + 0.1 * jax.random.normal(k1, (c,), jnp.float32)
    beta = 0.1 * jax.random.normal(k2, (c,), jnp.float32)
    mean = 0.1 * jax.random.normal(k3, (c,), jnp.float32)
    var = 1.0 + 0.1 * jax.random.uniform(k4, (c,), jnp.float32)
    return gamma, beta, mean, var


def _prep_conv3(w, conv_bias, bn):
    # w: torch layout (C_out, C_in, 1, 3) -> (C_out, 3*C_in) with BN scale folded in
    scale, bias = _fold_bn(conv_bias, *bn)
    taps = [w[:, :, 0, k] for k in range(3)]
    wcat = jnp.concatenate(taps, axis=1) * scale[:, None]
    return wcat, bias[:, None]


def _prep_stem(w, conv_bias, bn, pad_to):
    # w: (16, 4, 9, 3); merged input-channel index = c*9 + h (matches x reshape)
    scale, bias = _fold_bn(conv_bias, *bn)
    taps = [w[:, :, :, k].reshape(w.shape[0], -1) for k in range(3)]
    taps = [jnp.pad(t, ((0, 0), (0, pad_to - t.shape[1]))) for t in taps]
    wcat = jnp.concatenate(taps, axis=1) * scale[:, None]
    return wcat, bias[:, None]


def _init_block(key, c_in, c_out):
    ks = jax.random.split(key, 9)
    wa = jax.random.normal(ks[0], (c_out, c_in, 1, 3), jnp.float32) / jnp.sqrt(3.0 * c_in)
    ba_c = 0.01 * jax.random.normal(ks[1], (c_out,), jnp.float32)
    wa_cat, ba = _prep_conv3(wa, ba_c, _init_bn(ks[2], c_out))
    wb = jax.random.normal(ks[3], (c_out, c_out, 1, 3), jnp.float32) / jnp.sqrt(3.0 * c_out)
    bb_c = 0.01 * jax.random.normal(ks[4], (c_out,), jnp.float32)
    wb_cat, bb = _prep_conv3(wb, bb_c, _init_bn(ks[5], c_out))
    ws = jax.random.normal(ks[6], (c_out, c_in, 1, 1), jnp.float32) / jnp.sqrt(1.0 * c_in)
    bs_c = 0.01 * jax.random.normal(ks[7], (c_out,), jnp.float32)
    ss, bs = _fold_bn(bs_c, *_init_bn(ks[8], c_out))
    return dict(wa=wa_cat, ba=ba, wb=wb_cat, bb=bb,
                ws=ws.reshape(c_out, c_in) * ss[:, None], bs=bs[:, None])


def init_params(key):
    keys = jax.random.split(key, 6)
    # stem: Conv2d(4, 16, (9,3), (1,1), (0,1)) + BN(16)
    w1 = jax.random.normal(keys[0], (16, 4, 9, 3), jnp.float32) / jnp.sqrt(4.0 * 9.0 * 3.0)
    b1 = 0.01 * jax.random.normal(keys[1], (16,), jnp.float32)
    stem_w, stem_b = _prep_stem(w1, b1, _init_bn(keys[2], 16), C_STEM_PAD)
    bkeys = jax.random.split(keys[3], len(PLAN))
    blocks = [_init_block(bk, ci, co) for bk, (ci, co) in zip(bkeys, PLAN)]
    # fc: Linear(64*8 -> 4); pre-permute to (4*8, 64): row k*8+w holds W[k, c*8+w]
    wl = 8
    fw = jax.random.normal(keys[4], (NUM_CLASSES, 64 * wl), jnp.float32) / jnp.sqrt(64.0 * wl)
    fb = 0.01 * jax.random.normal(keys[5], (NUM_CLASSES,), jnp.float32)
    fc_w = fw.reshape(NUM_CLASSES, 64, wl).transpose(0, 2, 1).reshape(NUM_CLASSES * wl, 64)
    return dict(stem_w=stem_w, stem_b=stem_b, blocks=blocks, fc_w=fc_w, fc_b=fb[:, None])


if __name__ == "__main__":
    key = jax.random.PRNGKey(0)
    kx, kp = jax.random.split(key)
    # fc(64*8 -> 4) after six stride-2 width halvings and the (9,3) stem
    # collapsing H forces the input shape to (N, 4, 9, 512).
    N, C, H, W = 2, 4, 9, 512
    x = jax.random.normal(kx, (N, C, H, W), jnp.float32)
    params = init_params(kp)
    out = jax.jit(resnet_forward)(x, params)
    out = jax.block_until_ready(out)
    assert out.shape == (N, NUM_CLASSES) and out.dtype == jnp.float32
    print("KERNEL_OK")
</pallas_src>

<mosaic_0001>
module attributes {stable_mosaic.version = 11 : i64} {
  func.func @kernel(%arg0: memref<40x1024xf32, #tpu.memory_space<vmem>>, %arg1: memref<1024x512xf32, #tpu.memory_space<vmem>>, %arg2: memref<32x16xf32, #tpu.memory_space<vmem>>, %arg3: memref<4x32xf32, #tpu.memory_space<vmem>>, %arg4: memref<16x2xf32, #tpu.memory_space<vmem>>, %arg5: memref<16x120xf32, #tpu.memory_space<vmem>>, %arg6: memref<16x1xf32, #tpu.memory_space<vmem>>, %arg7: memref<16x48xf32, #tpu.memory_space<vmem>>, %arg8: memref<16x1xf32, #tpu.memory_space<vmem>>, %arg9: memref<16x48xf32, #tpu.memory_space<vmem>>, %arg10: memref<16x1xf32, #tpu.memory_space<vmem>>, %arg11: memref<16x16xf32, #tpu.memory_space<vmem>>, %arg12: memref<16x1xf32, #tpu.memory_space<vmem>>, %arg13: memref<16x48xf32, #tpu.memory_space<vmem>>, %arg14: memref<16x1xf32, #tpu.memory_space<vmem>>, %arg15: memref<16x48xf32, #tpu.memory_space<vmem>>, %arg16: memref<16x1xf32, #tpu.memory_space<vmem>>, %arg17: memref<16x16xf32, #tpu.memory_space<vmem>>, %arg18: memref<16x1xf32, #tpu.memory_space<vmem>>, %arg19: memref<32x48xf32, #tpu.memory_space<vmem>>, %arg20: memref<32x1xf32, #tpu.memory_space<vmem>>, %arg21: memref<32x96xf32, #tpu.memory_space<vmem>>, %arg22: memref<32x1xf32, #tpu.memory_space<vmem>>, %arg23: memref<32x16xf32, #tpu.memory_space<vmem>>, %arg24: memref<32x1xf32, #tpu.memory_space<vmem>>, %arg25: memref<32x96xf32, #tpu.memory_space<vmem>>, %arg26: memref<32x1xf32, #tpu.memory_space<vmem>>, %arg27: memref<32x96xf32, #tpu.memory_space<vmem>>, %arg28: memref<32x1xf32, #tpu.memory_space<vmem>>, %arg29: memref<32x32xf32, #tpu.memory_space<vmem>>, %arg30: memref<32x1xf32, #tpu.memory_space<vmem>>, %arg31: memref<64x96xf32, #tpu.memory_space<vmem>>, %arg32: memref<64x1xf32, #tpu.memory_space<vmem>>, %arg33: memref<64x192xf32, #tpu.memory_space<vmem>>, %arg34: memref<64x1xf32, #tpu.memory_space<vmem>>, %arg35: memref<64x32xf32, #tpu.memory_space<vmem>>, %arg36: memref<64x1xf32, #tpu.memory_space<vmem>>, %arg37: memref<64x192xf32, #tpu.memory_space<vmem>>, %arg38: memref<64x1xf32, #tpu.memory_space<vmem>>, %arg39: memref<64x192xf32, #tpu.memory_space<vmem>>, %arg40: memref<64x1xf32, #tpu.memory_space<vmem>>, %arg41: memref<64x64xf32, #tpu.memory_space<vmem>>, %arg42: memref<64x1xf32, #tpu.memory_space<vmem>>, %arg43: memref<32x64xf32, #tpu.memory_space<vmem>>, %arg44: memref<4x1xf32, #tpu.memory_space<vmem>>, %arg45: memref<4x2xf32, #tpu.memory_space<vmem>>) attributes {dimension_semantics = [], scalar_prefetch = 0 : i64, scratch_operands = 0 : i64, tpu.core_type = #tpu.core_type<tc>} {
    %c0 = arith.constant 0 : index
    %c0_0 = arith.constant 0 : index
    %0 = vector.load %arg0[%c0, %c0_0] : memref<40x1024xf32, #tpu.memory_space<vmem>>, vector<40x1024xf32>
    %1 = tpu.iota {dimensions = array<i32: 1>} : vector<1x1024xi32>
    %c512_i32 = arith.constant 512 : i32
    %c0_i32 = arith.constant 0 : i32
    %2 = arith.cmpi eq, %c512_i32, %c0_i32 : i32
    %c1_i32 = arith.constant 1 : i32
    %3 = arith.select %2, %c1_i32, %c512_i32 : i32
    %4 = vector.broadcast %3 : i32 to vector<1x1024xi32>
    %5 = arith.remsi %1, %4 : vector<1x1024xi32>
    %c0_i32_1 = arith.constant 0 : i32
    %6 = vector.broadcast %c0_i32_1 : i32 to vector<1x1024xi32>
    %7 = arith.cmpi ne, %5, %6 : vector<1x1024xi32>
    %c0_i32_2 = arith.constant 0 : i32
    %8 = vector.broadcast %c0_i32_2 : i32 to vector<1x1024xi32>
    %9 = arith.cmpi slt, %5, %8 : vector<1x1024xi32>
    %c0_i32_3 = arith.constant 0 : i32
    %10 = arith.cmpi slt, %3, %c0_i32_3 : i32
    %11 = vector.broadcast %10 : i1 to vector<1x1024xi1>
    %12 = vector.broadcast %11 : vector<1x1024xi1> to vector<1x1024xi1>
    %13 = arith.xori %9, %12 : vector<1x1024xi1>
    %14 = arith.andi %13, %7 : vector<1x1024xi1>
    %15 = vector.broadcast %3 : i32 to vector<1x1024xi32>
    %16 = arith.addi %5, %15 : vector<1x1024xi32>
    %17 = arith.select %14, %16, %5 : vector<1x1024xi1>, vector<1x1024xi32>
    %c1_i32_4 = arith.constant 1 : i32
    %18 = tpu.dynamic_rotate %0 by %c1_i32_4 dim 1 : vector<40x1024xf32>, i32 -> vector<40x1024xf32>
    %c0_i32_5 = arith.constant 0 : i32
    %19 = vector.broadcast %c0_i32_5 : i32 to vector<1x1024xi32>
    %20 = arith.cmpi ne, %17, %19 : vector<1x1024xi32>
    %21 = arith.extui %20 : vector<1x1024xi1> to vector<1x1024xi32>
    %22 = arith.sitofp %21 : vector<1x1024xi32> to vector<1x1024xf32>
    %23 = vector.broadcast %22 : vector<1x1024xf32> to vector<40x1024xf32>
    %24 = arith.mulf %18, %23 : vector<40x1024xf32>
    %c1023_i32 = arith.constant 1023 : i32
    %25 = tpu.dynamic_rotate %0 by %c1023_i32 dim 1 : vector<40x1024xf32>, i32 -> vector<40x1024xf32>
    %c511_i32 = arith.constant 511 : i32
    %26 = vector.broadcast %c511_i32 : i32 to vector<1x1024xi32>
    %27 = arith.cmpi ne, %17, %26 : vector<1x1024xi32>
    %28 = arith.extui %27 : vector<1x1024xi1> to vector<1x1024xi32>
    %29 = arith.sitofp %28 : vector<1x1024xi32> to vector<1x1024xf32>
    %30 = vector.broadcast %29 : vector<1x1024xf32> to vector<40x1024xf32>
    %31 = arith.mulf %25, %30 : vector<40x1024xf32>
    %32 = tpu.concatenate %24, %0, %31 in 0 : vector<40x1024xf32>, vector<40x1024xf32>, vector<40x1024xf32> -> vector<120x1024xf32>
    %c0_6 = arith.constant 0 : index
    %c0_7 = arith.constant 0 : index
    %33 = vector.load %arg5[%c0_6, %c0_7] : memref<16x120xf32, #tpu.memory_space<vmem>>, vector<16x120xf32>
    %cst = arith.constant dense<0.000000e+00> : vector<16x1024xf32>
    %34 = tpu.matmul %33, %32, %cst {dimension_numbers = #tpu.dot_dimension_numbers<[1], [0], [0], [1], [0, 0, 1, 1], [], []>} : vector<16x120xf32>, vector<120x1024xf32>, vector<16x1024xf32> -> vector<16x1024xf32>
    %c0_8 = arith.constant 0 : index
    %c0_9 = arith.constant 0 : index
    %35 = vector.load %arg6[%c0_8, %c0_9] : memref<16x1xf32, #tpu.memory_space<vmem>>, vector<16x1xf32>
    %36 = vector.broadcast %35 : vector<16x1xf32> to vector<16x1024xf32>
    %37 = arith.addf %34, %36 : vector<16x1024xf32>
    %38 = tpu.iota {dimensions = array<i32: 1>} : vector<1x1024xi32>
    %c512_i32_10 = arith.constant 512 : i32
    %c0_i32_11 = arith.constant 0 : i32
    %39 = arith.cmpi eq, %c512_i32_10, %c0_i32_11 : i32
    %c1_i32_12 = arith.constant 1 : i32
    %40 = arith.select %39, %c1_i32_12, %c512_i32_10 : i32
    %41 = vector.broadcast %40 : i32 to vector<1x1024xi32>
    %42 = arith.remsi %38, %41 : vector<1x1024xi32>
    %c0_i32_13 = arith.constant 0 : i32
    %43 = vector.broadcast %c0_i32_13 : i32 to vector<1x1024xi32>
    %44 = arith.cmpi ne, %42, %43 : vector<1x1024xi32>
    %c0_i32_14 = arith.constant 0 : i32
    %45 = vector.broadcast %c0_i32_14 : i32 to vector<1x1024xi32>
    %46 = arith.cmpi slt, %42, %45 : vector<1x1024xi32>
    %c0_i32_15 = arith.constant 0 : i32
    %47 = arith.cmpi slt, %40, %c0_i32_15 : i32
    %48 = vector.broadcast %47 : i1 to vector<1x1024xi1>
    %49 = vector.broadcast %48 : vector<1x1024xi1> to vector<1x1024xi1>
    %50 = arith.xori %46, %49 : vector<1x1024xi1>
    %51 = arith.andi %50, %44 : vector<1x1024xi1>
    %52 = vector.broadcast %40 : i32 to vector<1x1024xi32>
    %53 = arith.addi %42, %52 : vector<1x1024xi32>
    %54 = arith.select %51, %53, %42 : vector<1x1024xi1>, vector<1x1024xi32>
    %c1_i32_16 = arith.constant 1 : i32
    %55 = tpu.dynamic_rotate %37 by %c1_i32_16 dim 1 : vector<16x1024xf32>, i32 -> vector<16x1024xf32>
    %c0_i32_17 = arith.constant 0 : i32
    %56 = vector.broadcast %c0_i32_17 : i32 to vector<1x1024xi32>
    %57 = arith.cmpi ne, %54, %56 : vector<1x1024xi32>
    %58 = arith.extui %57 : vector<1x1024xi1> to vector<1x1024xi32>
    %59 = arith.sitofp %58 : vector<1x1024xi32> to vector<1x1024xf32>
    %60 = vector.broadcast %59 : vector<1x1024xf32> to vector<16x1024xf32>
    %61 = arith.mulf %55, %60 : vector<16x1024xf32>
    %c1023_i32_18 = arith.constant 1023 : i32
    %62 = tpu.dynamic_rotate %37 by %c1023_i32_18 dim 1 : vector<16x1024xf32>, i32 -> vector<16x1024xf32>
    %c511_i32_19 = arith.constant 511 : i32
    %63 = vector.broadcast %c511_i32_19 : i32 to vector<1x1024xi32>
    %64 = arith.cmpi ne, %54, %63 : vector<1x1024xi32>
    %65 = arith.extui %64 : vector<1x1024xi1> to vector<1x1024xi32>
    %66 = arith.sitofp %65 : vector<1x1024xi32> to vector<1x1024xf32>
    %67 = vector.broadcast %66 : vector<1x1024xf32> to vector<16x1024xf32>
    %68 = arith.mulf %62, %67 : vector<16x1024xf32>
    %69 = tpu.concatenate %61, %37, %68 in 0 : vector<16x1024xf32>, vector<16x1024xf32>, vector<16x1024xf32> -> vector<48x1024xf32>
    %c0_20 = arith.constant 0 : index
    %c0_21 = arith.constant 0 : index
    %70 = vector.load %arg7[%c0_20, %c0_21] : memref<16x48xf32, #tpu.memory_space<vmem>>, vector<16x48xf32>
    %cst_22 = arith.constant dense<0.000000e+00> : vector<16x1024xf32>
    %71 = tpu.matmul %70, %69, %cst_22 {dimension_numbers = #tpu.dot_dimension_numbers<[1], [0], [0], [1], [0, 0, 1, 1], [], []>} : vector<16x48xf32>, vector<48x1024xf32>, vector<16x1024xf32> -> vector<16x1024xf32>
    %c0_23 = arith.constant 0 : index
    %c0_24 = arith.constant 0 : index
    %72 = vector.load %arg8[%c0_23, %c0_24] : memref<16x1xf32, #tpu.memory_space<vmem>>, vector<16x1xf32>
    %73 = vector.broadcast %72 : vector<16x1xf32> to vector<16x1024xf32>
    %74 = arith.addf %71, %73 : vector<16x1024xf32>
    %75 = tpu.concatenate %74, %37 in 0 : vector<16x1024xf32>, vector<16x1024xf32> -> vector<32x1024xf32>
    %c0_25 = arith.constant 0 : index
    %c0_26 = arith.constant 0 : index
    %76 = vector.load %arg1[%c0_25, %c0_26] : memref<1024x512xf32, #tpu.memory_space<vmem>>, vector<1024x512xf32>
    %cst_27 = arith.constant dense<0.000000e+00> : vector<32x512xf32>
    %77 = tpu.matmul %75, %76, %cst_27 {dimension_numbers = #tpu.dot_dimension_numbers<[1], [0], [0], [1], [0, 0, 1, 1], [], []>} : vector<32x1024xf32>, vector<1024x512xf32>, vector<32x512xf32> -> vector<32x512xf32>
    %78 = vector.extract_strided_slice %77 {offsets = [0, 0], sizes = [16, 512], strides = [1, 1]} : vector<32x512xf32> to vector<16x512xf32>
    %79 = vector.extract_strided_slice %77 {offsets = [16, 0], sizes = [16, 512], strides = [1, 1]} : vector<32x512xf32> to vector<16x512xf32>
    %80 = tpu.iota {dimensions = array<i32: 1>} : vector<1x512xi32>
    %c256_i32 = arith.constant 256 : i32
    %c0_i32_28 = arith.constant 0 : i32
    %81 = arith.cmpi eq, %c256_i32, %c0_i32_28 : i32
    %c1_i32_29 = arith.constant 1 : i32
    %82 = arith.select %81, %c1_i32_29, %c256_i32 : i32
    %83 = vector.broadcast %82 : i32 to vector<1x512xi32>
    %84 = arith.remsi %80, %83 : vector<1x512xi32>
    %c0_i32_30 = arith.constant 0 : i32
    %85 = vector.broadcast %c0_i32_30 : i32 to vector<1x512xi32>
    %86 = arith.cmpi ne, %84, %85 : vector<1x512xi32>
    %c0_i32_31 = arith.constant 0 : i32
    %87 = vector.broadcast %c0_i32_31 : i32 to vector<1x512xi32>
    %88 = arith.cmpi slt, %84, %87 : vector<1x512xi32>
    %c0_i32_32 = arith.constant 0 : i32
    %89 = arith.cmpi slt, %82, %c0_i32_32 : i32
    %90 = vector.broadcast %89 : i1 to vector<1x512xi1>
    %91 = vector.broadcast %90 : vector<1x512xi1> to vector<1x512xi1>
    %92 = arith.xori %88, %91 : vector<1x512xi1>
    %93 = arith.andi %92, %86 : vector<1x512xi1>
    %94 = vector.broadcast %82 : i32 to vector<1x512xi32>
    %95 = arith.addi %84, %94 : vector<1x512xi32>
    %96 = arith.select %93, %95, %84 : vector<1x512xi1>, vector<1x512xi32>
    %c1_i32_33 = arith.constant 1 : i32
    %97 = tpu.dynamic_rotate %78 by %c1_i32_33 dim 1 : vector<16x512xf32>, i32 -> vector<16x512xf32>
    %c0_i32_34 = arith.constant 0 : i32
    %98 = vector.broadcast %c0_i32_34 : i32 to vector<1x512xi32>
    %99 = arith.cmpi ne, %96, %98 : vector<1x512xi32>
    %100 = arith.extui %99 : vector<1x512xi1> to vector<1x512xi32>
    %101 = arith.sitofp %100 : vector<1x512xi32> to vector<1x512xf32>
    %102 = vector.broadcast %101 : vector<1x512xf32> to vector<16x512xf32>
    %103 = arith.mulf %97, %102 : vector<16x512xf32>
    %c511_i32_35 = arith.constant 511 : i32
    %104 = tpu.dynamic_rotate %78 by %c511_i32_35 dim 1 : vector<16x512xf32>, i32 -> vector<16x512xf32>
    %c255_i32 = arith.constant 255 : i32
    %105 = vector.broadcast %c255_i32 : i32 to vector<1x512xi32>
    %106 = arith.cmpi ne, %96, %105 : vector<1x512xi32>
    %107 = arith.extui %106 : vector<1x512xi1> to vector<1x512xi32>
    %108 = arith.sitofp %107 : vector<1x512xi32> to vector<1x512xf32>
    %109 = vector.broadcast %108 : vector<1x512xf32> to vector<16x512xf32>
    %110 = arith.mulf %104, %109 : vector<16x512xf32>
    %111 = tpu.concatenate %103, %78, %110 in 0 : vector<16x512xf32>, vector<16x512xf32>, vector<16x512xf32> -> vector<48x512xf32>
    %c0_36 = arith.constant 0 : index
    %c0_37 = arith.constant 0 : index
    %112 = vector.load %arg9[%c0_36, %c0_37] : memref<16x48xf32, #tpu.memory_space<vmem>>, vector<16x48xf32>
    %cst_38 = arith.constant dense<0.000000e+00> : vector<16x512xf32>
    %113 = tpu.matmul %112, %111, %cst_38 {dimension_numbers = #tpu.dot_dimension_numbers<[1], [0], [0], [1], [0, 0, 1, 1], [], []>} : vector<16x48xf32>, vector<48x512xf32>, vector<16x512xf32> -> vector<16x512xf32>
    %c0_39 = arith.constant 0 : index
    %c0_40 = arith.constant 0 : index
    %114 = vector.load %arg10[%c0_39, %c0_40] : memref<16x1xf32, #tpu.memory_space<vmem>>, vector<16x1xf32>
    %115 = vector.broadcast %114 : vector<16x1xf32> to vector<16x512xf32>
    %116 = arith.addf %113, %115 : vector<16x512xf32>
    %c0_41 = arith.constant 0 : index
    %c0_42 = arith.constant 0 : index
    %117 = vector.load %arg11[%c0_41, %c0_42] : memref<16x16xf32, #tpu.memory_space<vmem>>, vector<16x16xf32>
    %cst_43 = arith.constant dense<0.000000e+00> : vector<16x512xf32>
    %118 = tpu.matmul %117, %79, %cst_43 {dimension_numbers = #tpu.dot_dimension_numbers<[1], [0], [0], [1], [0, 0, 1, 1], [], []>} : vector<16x16xf32>, vector<16x512xf32>, vector<16x512xf32> -> vector<16x512xf32>
    %c0_44 = arith.constant 0 : index
    %c0_45 = arith.constant 0 : index
    %119 = vector.load %arg12[%c0_44, %c0_45] : memref<16x1xf32, #tpu.memory_space<vmem>>, vector<16x1xf32>
    %120 = vector.broadcast %119 : vector<16x1xf32> to vector<16x512xf32>
    %121 = arith.addf %118, %120 : vector<16x512xf32>
    %122 = arith.addf %116, %121 : vector<16x512xf32>
    %cst_46 = arith.constant 0.000000e+00 : f32
    %123 = vector.broadcast %cst_46 : f32 to vector<16x512xf32>
    %124 = arith.cmpf ogt, %122, %123 : vector<16x512xf32>
    %cst_47 = arith.constant 0.000000e+00 : f32
    %125 = vector.broadcast %cst_47 : f32 to vector<16x512xf32>
    %126 = arith.minimumf %122, %125 : vector<16x512xf32>
    %127 = math.exp %126 : vector<16x512xf32>
    %cst_48 = arith.constant 1.000000e+00 : f32
    %128 = vector.broadcast %cst_48 : f32 to vector<16x512xf32>
    %129 = arith.subf %127, %128 : vector<16x512xf32>
    %130 = arith.select %124, %122, %129 : vector<16x512xi1>, vector<16x512xf32>
    %131 = tpu.iota {dimensions = array<i32: 1>} : vector<1x512xi32>
    %c256_i32_49 = arith.constant 256 : i32
    %c0_i32_50 = arith.constant 0 : i32
    %132 = arith.cmpi eq, %c256_i32_49, %c0_i32_50 : i32
    %c1_i32_51 = arith.constant 1 : i32
    %133 = arith.select %132, %c1_i32_51, %c256_i32_49 : i32
    %134 = vector.broadcast %133 : i32 to vector<1x512xi32>
    %135 = arith.remsi %131, %134 : vector<1x512xi32>
    %c0_i32_52 = arith.constant 0 : i32
    %136 = vector.broadcast %c0_i32_52 : i32 to vector<1x512xi32>
    %137 = arith.cmpi ne, %135, %136 : vector<1x512xi32>
    %c0_i32_53 = arith.constant 0 : i32
    %138 = vector.broadcast %c0_i32_53 : i32 to vector<1x512xi32>
    %139 = arith.cmpi slt, %135, %138 : vector<1x512xi32>
    %c0_i32_54 = arith.constant 0 : i32
    %140 = arith.cmpi slt, %133, %c0_i32_54 : i32
    %141 = vector.broadcast %140 : i1 to vector<1x512xi1>
    %142 = vector.broadcast %141 : vector<1x512xi1> to vector<1x512xi1>
    %143 = arith.xori %139, %142 : vector<1x512xi1>
    %144 = arith.andi %143, %137 : vector<1x512xi1>
    %145 = vector.broadcast %133 : i32 to vector<1x512xi32>
    %146 = arith.addi %135, %145 : vector<1x512xi32>
    %147 = arith.select %144, %146, %135 : vector<1x512xi1>, vector<1x512xi32>
    %c1_i32_55 = arith.constant 1 : i32
    %148 = tpu.dynamic_rotate %130 by %c1_i32_55 dim 1 : vector<16x512xf32>, i32 -> vector<16x512xf32>
    %c0_i32_56 = arith.constant 0 : i32
    %149 = vector.broadcast %c0_i32_56 : i32 to vector<1x512xi32>
    %150 = arith.cmpi ne, %147, %149 : vector<1x512xi32>
    %151 = arith.extui %150 : vector<1x512xi1> to vector<1x512xi32>
    %152 = arith.sitofp %151 : vector<1x512xi32> to vector<1x512xf32>
    %153 = vector.broadcast %152 : vector<1x512xf32> to vector<16x512xf32>
    %154 = arith.mulf %148, %153 : vector<16x512xf32>
    %c511_i32_57 = arith.constant 511 : i32
    %155 = tpu.dynamic_rotate %130 by %c511_i32_57 dim 1 : vector<16x512xf32>, i32 -> vector<16x512xf32>
    %c255_i32_58 = arith.constant 255 : i32
    %156 = vector.broadcast %c255_i32_58 : i32 to vector<1x512xi32>
    %157 = arith.cmpi ne, %147, %156 : vector<1x512xi32>
    %158 = arith.extui %157 : vector<1x512xi1> to vector<1x512xi32>
    %159 = arith.sitofp %158 : vector<1x512xi32> to vector<1x512xf32>
    %160 = vector.broadcast %159 : vector<1x512xf32> to vector<16x512xf32>
    %161 = arith.mulf %155, %160 : vector<16x512xf32>
    %162 = tpu.concatenate %154, %130, %161 in 0 : vector<16x512xf32>, vector<16x512xf32>, vector<16x512xf32> -> vector<48x512xf32>
    %c0_59 = arith.constant 0 : index
    %c0_60 = arith.constant 0 : index
    %163 = vector.load %arg13[%c0_59, %c0_60] : memref<16x48xf32, #tpu.memory_space<vmem>>, vector<16x48xf32>
    %cst_61 = arith.constant dense<0.000000e+00> : vector<16x512xf32>
    %164 = tpu.matmul %163, %162, %cst_61 {dimension_numbers = #tpu.dot_dimension_numbers<[1], [0], [0], [1], [0, 0, 1, 1], [], []>} : vector<16x48xf32>, vector<48x512xf32>, vector<16x512xf32> -> vector<16x512xf32>
    %c0_62 = arith.constant 0 : index
    %c0_63 = arith.constant 0 : index
    %165 = vector.load %arg14[%c0_62, %c0_63] : memref<16x1xf32, #tpu.memory_space<vmem>>, vector<16x1xf32>
    %166 = vector.broadcast %165 : vector<16x1xf32> to vector<16x512xf32>
    %167 = arith.addf %164, %166 : vector<16x512xf32>
    %168 = tpu.concatenate %167, %130 in 0 : vector<16x512xf32>, vector<16x512xf32> -> vector<32x512xf32>
    %c0_64 = arith.constant 0 : index
    %c0_65 = arith.constant 0 : index
    %169 = vector.load %arg1[%c0_64, %c0_65] : memref<1024x512xf32, #tpu.memory_space<vmem>>, vector<512x256xf32>
    %cst_66 = arith.constant dense<0.000000e+00> : vector<32x256xf32>
    %170 = tpu.matmul %168, %169, %cst_66 {dimension_numbers = #tpu.dot_dimension_numbers<[1], [0], [0], [1], [0, 0, 1, 1], [], []>} : vector<32x512xf32>, vector<512x256xf32>, vector<32x256xf32> -> vector<32x256xf32>
    %171 = vector.extract_strided_slice %170 {offsets = [0, 0], sizes = [16, 256], strides = [1, 1]} : vector<32x256xf32> to vector<16x256xf32>
    %172 = vector.extract_strided_slice %170 {offsets = [16, 0], sizes = [16, 256], strides = [1, 1]} : vector<32x256xf32> to vector<16x256xf32>
    %173 = tpu.iota {dimensions = array<i32: 1>} : vector<1x256xi32>
    %c128_i32 = arith.constant 128 : i32
    %c0_i32_67 = arith.constant 0 : i32
    %174 = arith.cmpi eq, %c128_i32, %c0_i32_67 : i32
    %c1_i32_68 = arith.constant 1 : i32
    %175 = arith.select %174, %c1_i32_68, %c128_i32 : i32
    %176 = vector.broadcast %175 : i32 to vector<1x256xi32>
    %177 = arith.remsi %173, %176 : vector<1x256xi32>
    %c0_i32_69 = arith.constant 0 : i32
    %178 = vector.broadcast %c0_i32_69 : i32 to vector<1x256xi32>
    %179 = arith.cmpi ne, %177, %178 : vector<1x256xi32>
    %c0_i32_70 = arith.constant 0 : i32
    %180 = vector.broadcast %c0_i32_70 : i32 to vector<1x256xi32>
    %181 = arith.cmpi slt, %177, %180 : vector<1x256xi32>
    %c0_i32_71 = arith.constant 0 : i32
    %182 = arith.cmpi slt, %175, %c0_i32_71 : i32
    %183 = vector.broadcast %182 : i1 to vector<1x256xi1>
    %184 = vector.broadcast %183 : vector<1x256xi1> to vector<1x256xi1>
    %185 = arith.xori %181, %184 : vector<1x256xi1>
    %186 = arith.andi %185, %179 : vector<1x256xi1>
    %187 = vector.broadcast %175 : i32 to vector<1x256xi32>
    %188 = arith.addi %177, %187 : vector<1x256xi32>
    %189 = arith.select %186, %188, %177 : vector<1x256xi1>, vector<1x256xi32>
    %c1_i32_72 = arith.constant 1 : i32
    %190 = tpu.dynamic_rotate %171 by %c1_i32_72 dim 1 : vector<16x256xf32>, i32 -> vector<16x256xf32>
    %c0_i32_73 = arith.constant 0 : i32
    %191 = vector.broadcast %c0_i32_73 : i32 to vector<1x256xi32>
    %192 = arith.cmpi ne, %189, %191 : vector<1x256xi32>
    %193 = arith.extui %192 : vector<1x256xi1> to vector<1x256xi32>
    %194 = arith.sitofp %193 : vector<1x256xi32> to vector<1x256xf32>
    %195 = vector.broadcast %194 : vector<1x256xf32> to vector<16x256xf32>
    %196 = arith.mulf %190, %195 : vector<16x256xf32>
    %c255_i32_74 = arith.constant 255 : i32
    %197 = tpu.dynamic_rotate %171 by %c255_i32_74 dim 1 : vector<16x256xf32>, i32 -> vector<16x256xf32>
    %c127_i32 = arith.constant 127 : i32
    %198 = vector.broadcast %c127_i32 : i32 to vector<1x256xi32>
    %199 = arith.cmpi ne, %189, %198 : vector<1x256xi32>
    %200 = arith.extui %199 : vector<1x256xi1> to vector<1x256xi32>
    %201 = arith.sitofp %200 : vector<1x256xi32> to vector<1x256xf32>
    %202 = vector.broadcast %201 : vector<1x256xf32> to vector<16x256xf32>
    %203 = arith.mulf %197, %202 : vector<16x256xf32>
    %204 = tpu.concatenate %196, %171, %203 in 0 : vector<16x256xf32>, vector<16x256xf32>, vector<16x256xf32> -> vector<48x256xf32>
    %c0_75 = arith.constant 0 : index
    %c0_76 = arith.constant 0 : index
    %205 = vector.load %arg15[%c0_75, %c0_76] : memref<16x48xf32, #tpu.memory_space<vmem>>, vector<16x48xf32>
    %cst_77 = arith.constant dense<0.000000e+00> : vector<16x256xf32>
    %206 = tpu.matmul %205, %204, %cst_77 {dimension_numbers = #tpu.dot_dimension_numbers<[1], [0], [0], [1], [0, 0, 1, 1], [], []>} : vector<16x48xf32>, vector<48x256xf32>, vector<16x256xf32> -> vector<16x256xf32>
    %c0_78 = arith.constant 0 : index
    %c0_79 = arith.constant 0 : index
    %207 = vector.load %arg16[%c0_78, %c0_79] : memref<16x1xf32, #tpu.memory_space<vmem>>, vector<16x1xf32>
    %208 = vector.broadcast %207 : vector<16x1xf32> to vector<16x256xf32>
    %209 = arith.addf %206, %208 : vector<16x256xf32>
    %c0_80 = arith.constant 0 : index
    %c0_81 = arith.constant 0 : index
    %210 = vector.load %arg17[%c0_80, %c0_81] : memref<16x16xf32, #tpu.memory_space<vmem>>, vector<16x16xf32>
    %cst_82 = arith.constant dense<0.000000e+00> : vector<16x256xf32>
    %211 = tpu.matmul %210, %172, %cst_82 {dimension_numbers = #tpu.dot_dimension_numbers<[1], [0], [0], [1], [0, 0, 1, 1], [], []>} : vector<16x16xf32>, vector<16x256xf32>, vector<16x256xf32> -> vector<16x256xf32>
    %c0_83 = arith.constant 0 : index
    %c0_84 = arith.constant 0 : index
    %212 = vector.load %arg18[%c0_83, %c0_84] : memref<16x1xf32, #tpu.memory_space<vmem>>, vector<16x1xf32>
    %213 = vector.broadcast %212 : vector<16x1xf32> to vector<16x256xf32>
    %214 = arith.addf %211, %213 : vector<16x256xf32>
    %215 = arith.addf %209, %214 : vector<16x256xf32>
    %cst_85 = arith.constant 0.000000e+00 : f32
    %216 = vector.broadcast %cst_85 : f32 to vector<16x256xf32>
    %217 = arith.cmpf ogt, %215, %216 : vector<16x256xf32>
    %cst_86 = arith.constant 0.000000e+00 : f32
    %218 = vector.broadcast %cst_86 : f32 to vector<16x256xf32>
    %219 = arith.minimumf %215, %218 : vector<16x256xf32>
    %220 = math.exp %219 : vector<16x256xf32>
    %cst_87 = arith.constant 1.000000e+00 : f32
    %221 = vector.broadcast %cst_87 : f32 to vector<16x256xf32>
    %222 = arith.subf %220, %221 : vector<16x256xf32>
    %223 = arith.select %217, %215, %222 : vector<16x256xi1>, vector<16x256xf32>
    %224 = tpu.iota {dimensions = array<i32: 1>} : vector<1x256xi32>
    %c128_i32_88 = arith.constant 128 : i32
    %c0_i32_89 = arith.constant 0 : i32
    %225 = arith.cmpi eq, %c128_i32_88, %c0_i32_89 : i32
    %c1_i32_90 = arith.constant 1 : i32
    %226 = arith.select %225, %c1_i32_90, %c128_i32_88 : i32
    %227 = vector.broadcast %226 : i32 to vector<1x256xi32>
    %228 = arith.remsi %224, %227 : vector<1x256xi32>
    %c0_i32_91 = arith.constant 0 : i32
    %229 = vector.broadcast %c0_i32_91 : i32 to vector<1x256xi32>
    %230 = arith.cmpi ne, %228, %229 : vector<1x256xi32>
    %c0_i32_92 = arith.constant 0 : i32
    %231 = vector.broadcast %c0_i32_92 : i32 to vector<1x256xi32>
    %232 = arith.cmpi slt, %228, %231 : vector<1x256xi32>
    %c0_i32_93 = arith.constant 0 : i32
    %233 = arith.cmpi slt, %226, %c0_i32_93 : i32
    %234 = vector.broadcast %233 : i1 to vector<1x256xi1>
    %235 = vector.broadcast %234 : vector<1x256xi1> to vector<1x256xi1>
    %236 = arith.xori %232, %235 : vector<1x256xi1>
    %237 = arith.andi %236, %230 : vector<1x256xi1>
    %238 = vector.broadcast %226 : i32 to vector<1x256xi32>
    %239 = arith.addi %228, %238 : vector<1x256xi32>
    %240 = arith.select %237, %239, %228 : vector<1x256xi1>, vector<1x256xi32>
    %c1_i32_94 = arith.constant 1 : i32
    %241 = tpu.dynamic_rotate %223 by %c1_i32_94 dim 1 : vector<16x256xf32>, i32 -> vector<16x256xf32>
    %c0_i32_95 = arith.constant 0 : i32
    %242 = vector.broadcast %c0_i32_95 : i32 to vector<1x256xi32>
    %243 = arith.cmpi ne, %240, %242 : vector<1x256xi32>
    %244 = arith.extui %243 : vector<1x256xi1> to vector<1x256xi32>
    %245 = arith.sitofp %244 : vector<1x256xi32> to vector<1x256xf32>
    %246 = vector.broadcast %245 : vector<1x256xf32> to vector<16x256xf32>
    %247 = arith.mulf %241, %246 : vector<16x256xf32>
    %c255_i32_96 = arith.constant 255 : i32
    %248 = tpu.dynamic_rotate %223 by %c255_i32_96 dim 1 : vector<16x256xf32>, i32 -> vector<16x256xf32>
    %c127_i32_97 = arith.constant 127 : i32
    %249 = vector.broadcast %c127_i32_97 : i32 to vector<1x256xi32>
    %250 = arith.cmpi ne, %240, %249 : vector<1x256xi32>
    %251 = arith.extui %250 : vector<1x256xi1> to vector<1x256xi32>
    %252 = arith.sitofp %251 : vector<1x256xi32> to vector<1x256xf32>
    %253 = vector.broadcast %252 : vector<1x256xf32> to vector<16x256xf32>
    %254 = arith.mulf %248, %253 : vector<16x256xf32>
    %255 = tpu.concatenate %247, %223, %254 in 0 : vector<16x256xf32>, vector<16x256xf32>, vector<16x256xf32> -> vector<48x256xf32>
    %c0_98 = arith.constant 0 : index
    %c0_99 = arith.constant 0 : index
    %256 = vector.load %arg19[%c0_98, %c0_99] : memref<32x48xf32, #tpu.memory_space<vmem>>, vector<32x48xf32>
    %cst_100 = arith.constant dense<0.000000e+00> : vector<32x256xf32>
    %257 = tpu.matmul %256, %255, %cst_100 {dimension_numbers = #tpu.dot_dimension_numbers<[1], [0], [0], [1], [0, 0, 1, 1], [], []>} : vector<32x48xf32>, vector<48x256xf32>, vector<32x256xf32> -> vector<32x256xf32>
    %c0_101 = arith.constant 0 : index
    %c0_102 = arith.constant 0 : index
    %258 = vector.load %arg20[%c0_101, %c0_102] : memref<32x1xf32, #tpu.memory_space<vmem>>, vector<32x1xf32>
    %259 = vector.broadcast %258 : vector<32x1xf32> to vector<32x256xf32>
    %260 = arith.addf %257, %259 : vector<32x256xf32>
    %261 = tpu.concatenate %260, %223 in 0 : vector<32x256xf32>, vector<16x256xf32> -> vector<48x256xf32>
    %c0_103 = arith.constant 0 : index
    %c0_104 = arith.constant 0 : index
    %262 = vector.load %arg1[%c0_103, %c0_104] : memref<1024x512xf32, #tpu.memory_space<vmem>>, vector<256x128xf32>
    %cst_105 = arith.constant dense<0.000000e+00> : vector<48x128xf32>
    %263 = tpu.matmul %261, %262, %cst_105 {dimension_numbers = #tpu.dot_dimension_numbers<[1], [0], [0], [1], [0, 0, 1, 1], [], []>} : vector<48x256xf32>, vector<256x128xf32>, vector<48x128xf32> -> vector<48x128xf32>
    %264 = vector.extract_strided_slice %263 {offsets = [0, 0], sizes = [32, 128], strides = [1, 1]} : vector<48x128xf32> to vector<32x128xf32>
    %265 = vector.extract_strided_slice %263 {offsets = [32, 0], sizes = [16, 128], strides = [1, 1]} : vector<48x128xf32> to vector<16x128xf32>
    %266 = tpu.iota {dimensions = array<i32: 1>} : vector<1x128xi32>
    %c64_i32 = arith.constant 64 : i32
    %c0_i32_106 = arith.constant 0 : i32
    %267 = arith.cmpi eq, %c64_i32, %c0_i32_106 : i32
    %c1_i32_107 = arith.constant 1 : i32
    %268 = arith.select %267, %c1_i32_107, %c64_i32 : i32
    %269 = vector.broadcast %268 : i32 to vector<1x128xi32>
    %270 = arith.remsi %266, %269 : vector<1x128xi32>
    %c0_i32_108 = arith.constant 0 : i32
    %271 = vector.broadcast %c0_i32_108 : i32 to vector<1x128xi32>
    %272 = arith.cmpi ne, %270, %271 : vector<1x128xi32>
    %c0_i32_109 = arith.constant 0 : i32
    %273 = vector.broadcast %c0_i32_109 : i32 to vector<1x128xi32>
    %274 = arith.cmpi slt, %270, %273 : vector<1x128xi32>
    %c0_i32_110 = arith.constant 0 : i32
    %275 = arith.cmpi slt, %268, %c0_i32_110 : i32
    %276 = vector.broadcast %275 : i1 to vector<1x128xi1>
    %277 = vector.broadcast %276 : vector<1x128xi1> to vector<1x128xi1>
    %278 = arith.xori %274, %277 : vector<1x128xi1>
    %279 = arith.andi %278, %272 : vector<1x128xi1>
    %280 = vector.broadcast %268 : i32 to vector<1x128xi32>
    %281 = arith.addi %270, %280 : vector<1x128xi32>
    %282 = arith.select %279, %281, %270 : vector<1x128xi1>, vector<1x128xi32>
    %c1_i32_111 = arith.constant 1 : i32
    %283 = tpu.dynamic_rotate %264 by %c1_i32_111 dim 1 : vector<32x128xf32>, i32 -> vector<32x128xf32>
    %c0_i32_112 = arith.constant 0 : i32
    %284 = vector.broadcast %c0_i32_112 : i32 to vector<1x128xi32>
    %285 = arith.cmpi ne, %282, %284 : vector<1x128xi32>
    %286 = arith.extui %285 : vector<1x128xi1> to vector<1x128xi32>
    %287 = arith.sitofp %286 : vector<1x128xi32> to vector<1x128xf32>
    %288 = vector.broadcast %287 : vector<1x128xf32> to vector<32x128xf32>
    %289 = arith.mulf %283, %288 : vector<32x128xf32>
    %c127_i32_113 = arith.constant 127 : i32
    %290 = tpu.dynamic_rotate %264 by %c127_i32_113 dim 1 : vector<32x128xf32>, i32 -> vector<32x128xf32>
    %c63_i32 = arith.constant 63 : i32
    %291 = vector.broadcast %c63_i32 : i32 to vector<1x128xi32>
    %292 = arith.cmpi ne, %282, %291 : vector<1x128xi32>
    %293 = arith.extui %292 : vector<1x128xi1> to vector<1x128xi32>
    %294 = arith.sitofp %293 : vector<1x128xi32> to vector<1x128xf32>
    %295 = vector.broadcast %294 : vector<1x128xf32> to vector<32x128xf32>
    %296 = arith.mulf %290, %295 : vector<32x128xf32>
    %297 = tpu.concatenate %289, %264, %296 in 0 : vector<32x128xf32>, vector<32x128xf32>, vector<32x128xf32> -> vector<96x128xf32>
    %c0_114 = arith.constant 0 : index
    %c0_115 = arith.constant 0 : index
    %298 = vector.load %arg21[%c0_114, %c0_115] : memref<32x96xf32, #tpu.memory_space<vmem>>, vector<32x96xf32>
    %cst_116 = arith.constant dense<0.000000e+00> : vector<32x128xf32>
    %299 = tpu.matmul %298, %297, %cst_116 {dimension_numbers = #tpu.dot_dimension_numbers<[1], [0], [0], [1], [0, 0, 1, 1], [], []>} : vector<32x96xf32>, vector<96x128xf32>, vector<32x128xf32> -> vector<32x128xf32>
    %c0_117 = arith.constant 0 : index
    %c0_118 = arith.constant 0 : index
    %300 = vector.load %arg22[%c0_117, %c0_118] : memref<32x1xf32, #tpu.memory_space<vmem>>, vector<32x1xf32>
    %301 = vector.broadcast %300 : vector<32x1xf32> to vector<32x128xf32>
    %302 = arith.addf %299, %301 : vector<32x128xf32>
    %c0_119 = arith.constant 0 : index
    %c0_120 = arith.constant 0 : index
    %303 = vector.load %arg23[%c0_119, %c0_120] : memref<32x16xf32, #tpu.memory_space<vmem>>, vector<32x16xf32>
    %cst_121 = arith.constant dense<0.000000e+00> : vector<32x128xf32>
    %304 = tpu.matmul %303, %265, %cst_121 {dimension_numbers = #tpu.dot_dimension_numbers<[1], [0], [0], [1], [0, 0, 1, 1], [], []>} : vector<32x16xf32>, vector<16x128xf32>, vector<32x128xf32> -> vector<32x128xf32>
    %c0_122 = arith.constant 0 : index
    %c0_123 = arith.constant 0 : index
    %305 = vector.load %arg24[%c0_122, %c0_123] : memref<32x1xf32, #tpu.memory_space<vmem>>, vector<32x1xf32>
    %306 = vector.broadcast %305 : vector<32x1xf32> to vector<32x128xf32>
    %307 = arith.addf %304, %306 : vector<32x128xf32>
    %308 = arith.addf %302, %307 : vector<32x128xf32>
    %cst_124 = arith.constant 0.000000e+00 : f32
    %309 = vector.broadcast %cst_124 : f32 to vector<32x128xf32>
    %310 = arith.cmpf ogt, %308, %309 : vector<32x128xf32>
    %cst_125 = arith.constant 0.000000e+00 : f32
    %311 = vector.broadcast %cst_125 : f32 to vector<32x128xf32>
    %312 = arith.minimumf %308, %311 : vector<32x128xf32>
    %313 = math.exp %312 : vector<32x128xf32>
    %cst_126 = arith.constant 1.000000e+00 : f32
    %314 = vector.broadcast %cst_126 : f32 to vector<32x128xf32>
    %315 = arith.subf %313, %314 : vector<32x128xf32>
    %316 = arith.select %310, %308, %315 : vector<32x128xi1>, vector<32x128xf32>
    %317 = tpu.iota {dimensions = array<i32: 1>} : vector<1x128xi32>
    %c64_i32_127 = arith.constant 64 : i32
    %c0_i32_128 = arith.constant 0 : i32
    %318 = arith.cmpi eq, %c64_i32_127, %c0_i32_128 : i32
    %c1_i32_129 = arith.constant 1 : i32
    %319 = arith.select %318, %c1_i32_129, %c64_i32_127 : i32
    %320 = vector.broadcast %319 : i32 to vector<1x128xi32>
    %321 = arith.remsi %317, %320 : vector<1x128xi32>
    %c0_i32_130 = arith.constant 0 : i32
    %322 = vector.broadcast %c0_i32_130 : i32 to vector<1x128xi32>
    %323 = arith.cmpi ne, %321, %322 : vector<1x128xi32>
    %c0_i32_131 = arith.constant 0 : i32
    %324 = vector.broadcast %c0_i32_131 : i32 to vector<1x128xi32>
    %325 = arith.cmpi slt, %321, %324 : vector<1x128xi32>
    %c0_i32_132 = arith.constant 0 : i32
    %326 = arith.cmpi slt, %319, %c0_i32_132 : i32
    %327 = vector.broadcast %326 : i1 to vector<1x128xi1>
    %328 = vector.broadcast %327 : vector<1x128xi1> to vector<1x128xi1>
    %329 = arith.xori %325, %328 : vector<1x128xi1>
    %330 = arith.andi %329, %323 : vector<1x128xi1>
    %331 = vector.broadcast %319 : i32 to vector<1x128xi32>
    %332 = arith.addi %321, %331 : vector<1x128xi32>
    %333 = arith.select %330, %332, %321 : vector<1x128xi1>, vector<1x128xi32>
    %c1_i32_133 = arith.constant 1 : i32
    %334 = tpu.dynamic_rotate %316 by %c1_i32_133 dim 1 : vector<32x128xf32>, i32 -> vector<32x128xf32>
    %c0_i32_134 = arith.constant 0 : i32
    %335 = vector.broadcast %c0_i32_134 : i32 to vector<1x128xi32>
    %336 = arith.cmpi ne, %333, %335 : vector<1x128xi32>
    %337 = arith.extui %336 : vector<1x128xi1> to vector<1x128xi32>
    %338 = arith.sitofp %337 : vector<1x128xi32> to vector<1x128xf32>
    %339 = vector.broadcast %338 : vector<1x128xf32> to vector<32x128xf32>
    %340 = arith.mulf %334, %339 : vector<32x128xf32>
    %c127_i32_135 = arith.constant 127 : i32
    %341 = tpu.dynamic_rotate %316 by %c127_i32_135 dim 1 : vector<32x128xf32>, i32 -> vector<32x128xf32>
    %c63_i32_136 = arith.constant 63 : i32
    %342 = vector.broadcast %c63_i32_136 : i32 to vector<1x128xi32>
    %343 = arith.cmpi ne, %333, %342 : vector<1x128xi32>
    %344 = arith.extui %343 : vector<1x128xi1> to vector<1x128xi32>
    %345 = arith.sitofp %344 : vector<1x128xi32> to vector<1x128xf32>
    %346 = vector.broadcast %345 : vector<1x128xf32> to vector<32x128xf32>
    %347 = arith.mulf %341, %346 : vector<32x128xf32>
    %348 = tpu.concatenate %340, %316, %347 in 0 : vector<32x128xf32>, vector<32x128xf32>, vector<32x128xf32> -> vector<96x128xf32>
    %c0_137 = arith.constant 0 : index
    %c0_138 = arith.constant 0 : index
    %349 = vector.load %arg25[%c0_137, %c0_138] : memref<32x96xf32, #tpu.memory_space<vmem>>, vector<32x96xf32>
    %cst_139 = arith.constant dense<0.000000e+00> : vector<32x128xf32>
    %350 = tpu.matmul %349, %348, %cst_139 {dimension_numbers = #tpu.dot_dimension_numbers<[1], [0], [0], [1], [0, 0, 1, 1], [], []>} : vector<32x96xf32>, vector<96x128xf32>, vector<32x128xf32> -> vector<32x128xf32>
    %c0_140 = arith.constant 0 : index
    %c0_141 = arith.constant 0 : index
    %351 = vector.load %arg26[%c0_140, %c0_141] : memref<32x1xf32, #tpu.memory_space<vmem>>, vector<32x1xf32>
    %352 = vector.broadcast %351 : vector<32x1xf32> to vector<32x128xf32>
    %353 = arith.addf %350, %352 : vector<32x128xf32>
    %354 = tpu.concatenate %353, %316 in 0 : vector<32x128xf32>, vector<32x128xf32> -> vector<64x128xf32>
    %c0_142 = arith.constant 0 : index
    %c0_143 = arith.constant 0 : index
    %355 = vector.load %arg1[%c0_142, %c0_143] : memref<1024x512xf32, #tpu.memory_space<vmem>>, vector<128x64xf32>
    %cst_144 = arith.constant dense<0.000000e+00> : vector<64x64xf32>
    %356 = tpu.matmul %354, %355, %cst_144 {dimension_numbers = #tpu.dot_dimension_numbers<[1], [0], [0], [1], [0, 0, 1, 1], [], []>} : vector<64x128xf32>, vector<128x64xf32>, vector<64x64xf32> -> vector<64x64xf32>
    %357 = vector.extract_strided_slice %356 {offsets = [0, 0], sizes = [32, 64], strides = [1, 1]} : vector<64x64xf32> to vector<32x64xf32>
    %358 = vector.extract_strided_slice %356 {offsets = [32, 0], sizes = [32, 64], strides = [1, 1]} : vector<64x64xf32> to vector<32x64xf32>
    %359 = tpu.iota {dimensions = array<i32: 1>} : vector<1x64xi32>
    %c32_i32 = arith.constant 32 : i32
    %c0_i32_145 = arith.constant 0 : i32
    %360 = arith.cmpi eq, %c32_i32, %c0_i32_145 : i32
    %c1_i32_146 = arith.constant 1 : i32
    %361 = arith.select %360, %c1_i32_146, %c32_i32 : i32
    %362 = vector.broadcast %361 : i32 to vector<1x64xi32>
    %363 = arith.remsi %359, %362 : vector<1x64xi32>
    %c0_i32_147 = arith.constant 0 : i32
    %364 = vector.broadcast %c0_i32_147 : i32 to vector<1x64xi32>
    %365 = arith.cmpi ne, %363, %364 : vector<1x64xi32>
    %c0_i32_148 = arith.constant 0 : i32
    %366 = vector.broadcast %c0_i32_148 : i32 to vector<1x64xi32>
    %367 = arith.cmpi slt, %363, %366 : vector<1x64xi32>
    %c0_i32_149 = arith.constant 0 : i32
    %368 = arith.cmpi slt, %361, %c0_i32_149 : i32
    %369 = vector.broadcast %368 : i1 to vector<1x64xi1>
    %370 = vector.broadcast %369 : vector<1x64xi1> to vector<1x64xi1>
    %371 = arith.xori %367, %370 : vector<1x64xi1>
    %372 = arith.andi %371, %365 : vector<1x64xi1>
    %373 = vector.broadcast %361 : i32 to vector<1x64xi32>
    %374 = arith.addi %363, %373 : vector<1x64xi32>
    %375 = arith.select %372, %374, %363 : vector<1x64xi1>, vector<1x64xi32>
    %c1_i32_150 = arith.constant 1 : i32
    %376 = tpu.dynamic_rotate %357 by %c1_i32_150 dim 1 : vector<32x64xf32>, i32 -> vector<32x64xf32>
    %c0_i32_151 = arith.constant 0 : i32
    %377 = vector.broadcast %c0_i32_151 : i32 to vector<1x64xi32>
    %378 = arith.cmpi ne, %375, %377 : vector<1x64xi32>
    %379 = arith.extui %378 : vector<1x64xi1> to vector<1x64xi32>
    %380 = arith.sitofp %379 : vector<1x64xi32> to vector<1x64xf32>
    %381 = vector.broadcast %380 : vector<1x64xf32> to vector<32x64xf32>
    %382 = arith.mulf %376, %381 : vector<32x64xf32>
    %c63_i32_152 = arith.constant 63 : i32
    %383 = tpu.dynamic_rotate %357 by %c63_i32_152 dim 1 : vector<32x64xf32>, i32 -> vector<32x64xf32>
    %c31_i32 = arith.constant 31 : i32
    %384 = vector.broadcast %c31_i32 : i32 to vector<1x64xi32>
    %385 = arith.cmpi ne, %375, %384 : vector<1x64xi32>
    %386 = arith.extui %385 : vector<1x64xi1> to vector<1x64xi32>
    %387 = arith.sitofp %386 : vector<1x64xi32> to vector<1x64xf32>
    %388 = vector.broadcast %387 : vector<1x64xf32> to vector<32x64xf32>
    %389 = arith.mulf %383, %388 : vector<32x64xf32>
    %390 = tpu.concatenate %382, %357, %389 in 0 : vector<32x64xf32>, vector<32x64xf32>, vector<32x64xf32> -> vector<96x64xf32>
    %c0_153 = arith.constant 0 : index
    %c0_154 = arith.constant 0 : index
    %391 = vector.load %arg27[%c0_153, %c0_154] : memref<32x96xf32, #tpu.memory_space<vmem>>, vector<32x96xf32>
    %cst_155 = arith.constant dense<0.000000e+00> : vector<32x64xf32>
    %392 = tpu.matmul %391, %390, %cst_155 {dimension_numbers = #tpu.dot_dimension_numbers<[1], [0], [0], [1], [0, 0, 1, 1], [], []>} : vector<32x96xf32>, vector<96x64xf32>, vector<32x64xf32> -> vector<32x64xf32>
    %c0_156 = arith.constant 0 : index
    %c0_157 = arith.constant 0 : index
    %393 = vector.load %arg28[%c0_156, %c0_157] : memref<32x1xf32, #tpu.memory_space<vmem>>, vector<32x1xf32>
    %394 = vector.broadcast %393 : vector<32x1xf32> to vector<32x64xf32>
    %395 = arith.addf %392, %394 : vector<32x64xf32>
    %c0_158 = arith.constant 0 : index
    %c0_159 = arith.constant 0 : index
    %396 = vector.load %arg29[%c0_158, %c0_159] : memref<32x32xf32, #tpu.memory_space<vmem>>, vector<32x32xf32>
    %cst_160 = arith.constant dense<0.000000e+00> : vector<32x64xf32>
    %397 = tpu.matmul %396, %358, %cst_160 {dimension_numbers = #tpu.dot_dimension_numbers<[1], [0], [0], [1], [0, 0, 1, 1], [], []>} : vector<32x32xf32>, vector<32x64xf32>, vector<32x64xf32> -> vector<32x64xf32>
    %c0_161 = arith.constant 0 : index
    %c0_162 = arith.constant 0 : index
    %398 = vector.load %arg30[%c0_161, %c0_162] : memref<32x1xf32, #tpu.memory_space<vmem>>, vector<32x1xf32>
    %399 = vector.broadcast %398 : vector<32x1xf32> to vector<32x64xf32>
    %400 = arith.addf %397, %399 : vector<32x64xf32>
    %401 = arith.addf %395, %400 : vector<32x64xf32>
    %cst_163 = arith.constant 0.000000e+00 : f32
    %402 = vector.broadcast %cst_163 : f32 to vector<32x64xf32>
    %403 = arith.cmpf ogt, %401, %402 : vector<32x64xf32>
    %cst_164 = arith.constant 0.000000e+00 : f32
    %404 = vector.broadcast %cst_164 : f32 to vector<32x64xf32>
    %405 = arith.minimumf %401, %404 : vector<32x64xf32>
    %406 = math.exp %405 : vector<32x64xf32>
    %cst_165 = arith.constant 1.000000e+00 : f32
    %407 = vector.broadcast %cst_165 : f32 to vector<32x64xf32>
    %408 = arith.subf %406, %407 : vector<32x64xf32>
    %409 = arith.select %403, %401, %408 : vector<32x64xi1>, vector<32x64xf32>
    %410 = tpu.iota {dimensions = array<i32: 1>} : vector<1x64xi32>
    %c32_i32_166 = arith.constant 32 : i32
    %c0_i32_167 = arith.constant 0 : i32
    %411 = arith.cmpi eq, %c32_i32_166, %c0_i32_167 : i32
    %c1_i32_168 = arith.constant 1 : i32
    %412 = arith.select %411, %c1_i32_168, %c32_i32_166 : i32
    %413 = vector.broadcast %412 : i32 to vector<1x64xi32>
    %414 = arith.remsi %410, %413 : vector<1x64xi32>
    %c0_i32_169 = arith.constant 0 : i32
    %415 = vector.broadcast %c0_i32_169 : i32 to vector<1x64xi32>
    %416 = arith.cmpi ne, %414, %415 : vector<1x64xi32>
    %c0_i32_170 = arith.constant 0 : i32
    %417 = vector.broadcast %c0_i32_170 : i32 to vector<1x64xi32>
    %418 = arith.cmpi slt, %414, %417 : vector<1x64xi32>
    %c0_i32_171 = arith.constant 0 : i32
    %419 = arith.cmpi slt, %412, %c0_i32_171 : i32
    %420 = vector.broadcast %419 : i1 to vector<1x64xi1>
    %421 = vector.broadcast %420 : vector<1x64xi1> to vector<1x64xi1>
    %422 = arith.xori %418, %421 : vector<1x64xi1>
    %423 = arith.andi %422, %416 : vector<1x64xi1>
    %424 = vector.broadcast %412 : i32 to vector<1x64xi32>
    %425 = arith.addi %414, %424 : vector<1x64xi32>
    %426 = arith.select %423, %425, %414 : vector<1x64xi1>, vector<1x64xi32>
    %c1_i32_172 = arith.constant 1 : i32
    %427 = tpu.dynamic_rotate %409 by %c1_i32_172 dim 1 : vector<32x64xf32>, i32 -> vector<32x64xf32>
    %c0_i32_173 = arith.constant 0 : i32
    %428 = vector.broadcast %c0_i32_173 : i32 to vector<1x64xi32>
    %429 = arith.cmpi ne, %426, %428 : vector<1x64xi32>
    %430 = arith.extui %429 : vector<1x64xi1> to vector<1x64xi32>
    %431 = arith.sitofp %430 : vector<1x64xi32> to vector<1x64xf32>
    %432 = vector.broadcast %431 : vector<1x64xf32> to vector<32x64xf32>
    %433 = arith.mulf %427, %432 : vector<32x64xf32>
    %c63_i32_174 = arith.constant 63 : i32
    %434 = tpu.dynamic_rotate %409 by %c63_i32_174 dim 1 : vector<32x64xf32>, i32 -> vector<32x64xf32>
    %c31_i32_175 = arith.constant 31 : i32
    %435 = vector.broadcast %c31_i32_175 : i32 to vector<1x64xi32>
    %436 = arith.cmpi ne, %426, %435 : vector<1x64xi32>
    %437 = arith.extui %436 : vector<1x64xi1> to vector<1x64xi32>
    %438 = arith.sitofp %437 : vector<1x64xi32> to vector<1x64xf32>
    %439 = vector.broadcast %438 : vector<1x64xf32> to vector<32x64xf32>
    %440 = arith.mulf %434, %439 : vector<32x64xf32>
    %441 = tpu.concatenate %433, %409, %440 in 0 : vector<32x64xf32>, vector<32x64xf32>, vector<32x64xf32> -> vector<96x64xf32>
    %c0_176 = arith.constant 0 : index
    %c0_177 = arith.constant 0 : index
    %442 = vector.load %arg31[%c0_176, %c0_177] : memref<64x96xf32, #tpu.memory_space<vmem>>, vector<64x96xf32>
    %cst_178 = arith.constant dense<0.000000e+00> : vector<64x64xf32>
    %443 = tpu.matmul %442, %441, %cst_178 {dimension_numbers = #tpu.dot_dimension_numbers<[1], [0], [0], [1], [0, 0, 1, 1], [], []>} : vector<64x96xf32>, vector<96x64xf32>, vector<64x64xf32> -> vector<64x64xf32>
    %c0_179 = arith.constant 0 : index
    %c0_180 = arith.constant 0 : index
    %444 = vector.load %arg32[%c0_179, %c0_180] : memref<64x1xf32, #tpu.memory_space<vmem>>, vector<64x1xf32>
    %445 = vector.broadcast %444 : vector<64x1xf32> to vector<64x64xf32>
    %446 = arith.addf %443, %445 : vector<64x64xf32>
    %447 = tpu.concatenate %446, %409 in 0 : vector<64x64xf32>, vector<32x64xf32> -> vector<96x64xf32>
    %c0_181 = arith.constant 0 : index
    %c0_182 = arith.constant 0 : index
    %448 = vector.load %arg1[%c0_181, %c0_182] : memref<1024x512xf32, #tpu.memory_space<vmem>>, vector<64x32xf32>
    %cst_183 = arith.constant dense<0.000000e+00> : vector<96x32xf32>
    %449 = tpu.matmul %447, %448, %cst_183 {dimension_numbers = #tpu.dot_dimension_numbers<[1], [0], [0], [1], [0, 0, 1, 1], [], []>} : vector<96x64xf32>, vector<64x32xf32>, vector<96x32xf32> -> vector<96x32xf32>
    %450 = vector.extract_strided_slice %449 {offsets = [0, 0], sizes = [64, 32], strides = [1, 1]} : vector<96x32xf32> to vector<64x32xf32>
    %451 = vector.extract_strided_slice %449 {offsets = [64, 0], sizes = [32, 32], strides = [1, 1]} : vector<96x32xf32> to vector<32x32xf32>
    %452 = tpu.iota {dimensions = array<i32: 1>} : vector<1x32xi32>
    %c16_i32 = arith.constant 16 : i32
    %c0_i32_184 = arith.constant 0 : i32
    %453 = arith.cmpi eq, %c16_i32, %c0_i32_184 : i32
    %c1_i32_185 = arith.constant 1 : i32
    %454 = arith.select %453, %c1_i32_185, %c16_i32 : i32
    %455 = vector.broadcast %454 : i32 to vector<1x32xi32>
    %456 = arith.remsi %452, %455 : vector<1x32xi32>
    %c0_i32_186 = arith.constant 0 : i32
    %457 = vector.broadcast %c0_i32_186 : i32 to vector<1x32xi32>
    %458 = arith.cmpi ne, %456, %457 : vector<1x32xi32>
    %c0_i32_187 = arith.constant 0 : i32
    %459 = vector.broadcast %c0_i32_187 : i32 to vector<1x32xi32>
    %460 = arith.cmpi slt, %456, %459 : vector<1x32xi32>
    %c0_i32_188 = arith.constant 0 : i32
    %461 = arith.cmpi slt, %454, %c0_i32_188 : i32
    %462 = vector.broadcast %461 : i1 to vector<1x32xi1>
    %463 = vector.broadcast %462 : vector<1x32xi1> to vector<1x32xi1>
    %464 = arith.xori %460, %463 : vector<1x32xi1>
    %465 = arith.andi %464, %458 : vector<1x32xi1>
    %466 = vector.broadcast %454 : i32 to vector<1x32xi32>
    %467 = arith.addi %456, %466 : vector<1x32xi32>
    %468 = arith.select %465, %467, %456 : vector<1x32xi1>, vector<1x32xi32>
    %c1_i32_189 = arith.constant 1 : i32
    %469 = tpu.dynamic_rotate %450 by %c1_i32_189 dim 1 : vector<64x32xf32>, i32 -> vector<64x32xf32>
    %c0_i32_190 = arith.constant 0 : i32
    %470 = vector.broadcast %c0_i32_190 : i32 to vector<1x32xi32>
    %471 = arith.cmpi ne, %468, %470 : vector<1x32xi32>
    %472 = arith.extui %471 : vector<1x32xi1> to vector<1x32xi32>
    %473 = arith.sitofp %472 : vector<1x32xi32> to vector<1x32xf32>
    %474 = vector.broadcast %473 : vector<1x32xf32> to vector<64x32xf32>
    %475 = arith.mulf %469, %474 : vector<64x32xf32>
    %c31_i32_191 = arith.constant 31 : i32
    %476 = tpu.dynamic_rotate %450 by %c31_i32_191 dim 1 : vector<64x32xf32>, i32 -> vector<64x32xf32>
    %c15_i32 = arith.constant 15 : i32
    %477 = vector.broadcast %c15_i32 : i32 to vector<1x32xi32>
    %478 = arith.cmpi ne, %468, %477 : vector<1x32xi32>
    %479 = arith.extui %478 : vector<1x32xi1> to vector<1x32xi32>
    %480 = arith.sitofp %479 : vector<1x32xi32> to vector<1x32xf32>
    %481 = vector.broadcast %480 : vector<1x32xf32> to vector<64x32xf32>
    %482 = arith.mulf %476, %481 : vector<64x32xf32>
    %483 = tpu.concatenate %475, %450, %482 in 0 : vector<64x32xf32>, vector<64x32xf32>, vector<64x32xf32> -> vector<192x32xf32>
    %c0_192 = arith.constant 0 : index
    %c0_193 = arith.constant 0 : index
    %484 = vector.load %arg33[%c0_192, %c0_193] : memref<64x192xf32, #tpu.memory_space<vmem>>, vector<64x192xf32>
    %cst_194 = arith.constant dense<0.000000e+00> : vector<64x32xf32>
    %485 = tpu.matmul %484, %483, %cst_194 {dimension_numbers = #tpu.dot_dimension_numbers<[1], [0], [0], [1], [0, 0, 1, 1], [], []>} : vector<64x192xf32>, vector<192x32xf32>, vector<64x32xf32> -> vector<64x32xf32>
    %c0_195 = arith.constant 0 : index
    %c0_196 = arith.constant 0 : index
    %486 = vector.load %arg34[%c0_195, %c0_196] : memref<64x1xf32, #tpu.memory_space<vmem>>, vector<64x1xf32>
    %487 = vector.broadcast %486 : vector<64x1xf32> to vector<64x32xf32>
    %488 = arith.addf %485, %487 : vector<64x32xf32>
    %c0_197 = arith.constant 0 : index
    %c0_198 = arith.constant 0 : index
    %489 = vector.load %arg35[%c0_197, %c0_198] : memref<64x32xf32, #tpu.memory_space<vmem>>, vector<64x32xf32>
    %cst_199 = arith.constant dense<0.000000e+00> : vector<64x32xf32>
    %490 = tpu.matmul %489, %451, %cst_199 {dimension_numbers = #tpu.dot_dimension_numbers<[1], [0], [0], [1], [0, 0, 1, 1], [], []>} : vector<64x32xf32>, vector<32x32xf32>, vector<64x32xf32> -> vector<64x32xf32>
    %c0_200 = arith.constant 0 : index
    %c0_201 = arith.constant 0 : index
    %491 = vector.load %arg36[%c0_200, %c0_201] : memref<64x1xf32, #tpu.memory_space<vmem>>, vector<64x1xf32>
    %492 = vector.broadcast %491 : vector<64x1xf32> to vector<64x32xf32>
    %493 = arith.addf %490, %492 : vector<64x32xf32>
    %494 = arith.addf %488, %493 : vector<64x32xf32>
    %cst_202 = arith.constant 0.000000e+00 : f32
    %495 = vector.broadcast %cst_202 : f32 to vector<64x32xf32>
    %496 = arith.cmpf ogt, %494, %495 : vector<64x32xf32>
    %cst_203 = arith.constant 0.000000e+00 : f32
    %497 = vector.broadcast %cst_203 : f32 to vector<64x32xf32>
    %498 = arith.minimumf %494, %497 : vector<64x32xf32>
    %499 = math.exp %498 : vector<64x32xf32>
    %cst_204 = arith.constant 1.000000e+00 : f32
    %500 = vector.broadcast %cst_204 : f32 to vector<64x32xf32>
    %501 = arith.subf %499, %500 : vector<64x32xf32>
    %502 = arith.select %496, %494, %501 : vector<64x32xi1>, vector<64x32xf32>
    %503 = tpu.iota {dimensions = array<i32: 1>} : vector<1x32xi32>
    %c16_i32_205 = arith.constant 16 : i32
    %c0_i32_206 = arith.constant 0 : i32
    %504 = arith.cmpi eq, %c16_i32_205, %c0_i32_206 : i32
    %c1_i32_207 = arith.constant 1 : i32
    %505 = arith.select %504, %c1_i32_207, %c16_i32_205 : i32
    %506 = vector.broadcast %505 : i32 to vector<1x32xi32>
    %507 = arith.remsi %503, %506 : vector<1x32xi32>
    %c0_i32_208 = arith.constant 0 : i32
    %508 = vector.broadcast %c0_i32_208 : i32 to vector<1x32xi32>
    %509 = arith.cmpi ne, %507, %508 : vector<1x32xi32>
    %c0_i32_209 = arith.constant 0 : i32
    %510 = vector.broadcast %c0_i32_209 : i32 to vector<1x32xi32>
    %511 = arith.cmpi slt, %507, %510 : vector<1x32xi32>
    %c0_i32_210 = arith.constant 0 : i32
    %512 = arith.cmpi slt, %505, %c0_i32_210 : i32
    %513 = vector.broadcast %512 : i1 to vector<1x32xi1>
    %514 = vector.broadcast %513 : vector<1x32xi1> to vector<1x32xi1>
    %515 = arith.xori %511, %514 : vector<1x32xi1>
    %516 = arith.andi %515, %509 : vector<1x32xi1>
    %517 = vector.broadcast %505 : i32 to vector<1x32xi32>
    %518 = arith.addi %507, %517 : vector<1x32xi32>
    %519 = arith.select %516, %518, %507 : vector<1x32xi1>, vector<1x32xi32>
    %c1_i32_211 = arith.constant 1 : i32
    %520 = tpu.dynamic_rotate %502 by %c1_i32_211 dim 1 : vector<64x32xf32>, i32 -> vector<64x32xf32>
    %c0_i32_212 = arith.constant 0 : i32
    %521 = vector.broadcast %c0_i32_212 : i32 to vector<1x32xi32>
    %522 = arith.cmpi ne, %519, %521 : vector<1x32xi32>
    %523 = arith.extui %522 : vector<1x32xi1> to vector<1x32xi32>
    %524 = arith.sitofp %523 : vector<1x32xi32> to vector<1x32xf32>
    %525 = vector.broadcast %524 : vector<1x32xf32> to vector<64x32xf32>
    %526 = arith.mulf %520, %525 : vector<64x32xf32>
    %c31_i32_213 = arith.constant 31 : i32
    %527 = tpu.dynamic_rotate %502 by %c31_i32_213 dim 1 : vector<64x32xf32>, i32 -> vector<64x32xf32>
    %c15_i32_214 = arith.constant 15 : i32
    %528 = vector.broadcast %c15_i32_214 : i32 to vector<1x32xi32>
    %529 = arith.cmpi ne, %519, %528 : vector<1x32xi32>
    %530 = arith.extui %529 : vector<1x32xi1> to vector<1x32xi32>
    %531 = arith.sitofp %530 : vector<1x32xi32> to vector<1x32xf32>
    %532 = vector.broadcast %531 : vector<1x32xf32> to vector<64x32xf32>
    %533 = arith.mulf %527, %532 : vector<64x32xf32>
    %534 = tpu.concatenate %526, %502, %533 in 0 : vector<64x32xf32>, vector<64x32xf32>, vector<64x32xf32> -> vector<192x32xf32>
    %c0_215 = arith.constant 0 : index
    %c0_216 = arith.constant 0 : index
    %535 = vector.load %arg37[%c0_215, %c0_216] : memref<64x192xf32, #tpu.memory_space<vmem>>, vector<64x192xf32>
    %cst_217 = arith.constant dense<0.000000e+00> : vector<64x32xf32>
    %536 = tpu.matmul %535, %534, %cst_217 {dimension_numbers = #tpu.dot_dimension_numbers<[1], [0], [0], [1], [0, 0, 1, 1], [], []>} : vector<64x192xf32>, vector<192x32xf32>, vector<64x32xf32> -> vector<64x32xf32>
    %c0_218 = arith.constant 0 : index
    %c0_219 = arith.constant 0 : index
    %537 = vector.load %arg38[%c0_218, %c0_219] : memref<64x1xf32, #tpu.memory_space<vmem>>, vector<64x1xf32>
    %538 = vector.broadcast %537 : vector<64x1xf32> to vector<64x32xf32>
    %539 = arith.addf %536, %538 : vector<64x32xf32>
    %540 = tpu.concatenate %539, %502 in 0 : vector<64x32xf32>, vector<64x32xf32> -> vector<128x32xf32>
    %c0_220 = arith.constant 0 : index
    %c0_221 = arith.constant 0 : index
    %541 = vector.load %arg1[%c0_220, %c0_221] : memref<1024x512xf32, #tpu.memory_space<vmem>>, vector<32x16xf32>
    %cst_222 = arith.constant dense<0.000000e+00> : vector<128x16xf32>
    %542 = tpu.matmul %540, %541, %cst_222 {dimension_numbers = #tpu.dot_dimension_numbers<[1], [0], [0], [1], [0, 0, 1, 1], [], []>} : vector<128x32xf32>, vector<32x16xf32>, vector<128x16xf32> -> vector<128x16xf32>
    %543 = vector.extract_strided_slice %542 {offsets = [0, 0], sizes = [64, 16], strides = [1, 1]} : vector<128x16xf32> to vector<64x16xf32>
    %544 = vector.extract_strided_slice %542 {offsets = [64, 0], sizes = [64, 16], strides = [1, 1]} : vector<128x16xf32> to vector<64x16xf32>
    %545 = tpu.iota {dimensions = array<i32: 1>} : vector<1x16xi32>
    %c8_i32 = arith.constant 8 : i32
    %c0_i32_223 = arith.constant 0 : i32
    %546 = arith.cmpi eq, %c8_i32, %c0_i32_223 : i32
    %c1_i32_224 = arith.constant 1 : i32
    %547 = arith.select %546, %c1_i32_224, %c8_i32 : i32
    %548 = vector.broadcast %547 : i32 to vector<1x16xi32>
    %549 = arith.remsi %545, %548 : vector<1x16xi32>
    %c0_i32_225 = arith.constant 0 : i32
    %550 = vector.broadcast %c0_i32_225 : i32 to vector<1x16xi32>
    %551 = arith.cmpi ne, %549, %550 : vector<1x16xi32>
    %c0_i32_226 = arith.constant 0 : i32
    %552 = vector.broadcast %c0_i32_226 : i32 to vector<1x16xi32>
    %553 = arith.cmpi slt, %549, %552 : vector<1x16xi32>
    %c0_i32_227 = arith.constant 0 : i32
    %554 = arith.cmpi slt, %547, %c0_i32_227 : i32
    %555 = vector.broadcast %554 : i1 to vector<1x16xi1>
    %556 = vector.broadcast %555 : vector<1x16xi1> to vector<1x16xi1>
    %557 = arith.xori %553, %556 : vector<1x16xi1>
    %558 = arith.andi %557, %551 : vector<1x16xi1>
    %559 = vector.broadcast %547 : i32 to vector<1x16xi32>
    %560 = arith.addi %549, %559 : vector<1x16xi32>
    %561 = arith.select %558, %560, %549 : vector<1x16xi1>, vector<1x16xi32>
    %c1_i32_228 = arith.constant 1 : i32
    %562 = tpu.dynamic_rotate %543 by %c1_i32_228 dim 1 : vector<64x16xf32>, i32 -> vector<64x16xf32>
    %c0_i32_229 = arith.constant 0 : i32
    %563 = vector.broadcast %c0_i32_229 : i32 to vector<1x16xi32>
    %564 = arith.cmpi ne, %561, %563 : vector<1x16xi32>
    %565 = arith.extui %564 : vector<1x16xi1> to vector<1x16xi32>
    %566 = arith.sitofp %565 : vector<1x16xi32> to vector<1x16xf32>
    %567 = vector.broadcast %566 : vector<1x16xf32> to vector<64x16xf32>
    %568 = arith.mulf %562, %567 : vector<64x16xf32>
    %c15_i32_230 = arith.constant 15 : i32
    %569 = tpu.dynamic_rotate %543 by %c15_i32_230 dim 1 : vector<64x16xf32>, i32 -> vector<64x16xf32>
    %c7_i32 = arith.constant 7 : i32
    %570 = vector.broadcast %c7_i32 : i32 to vector<1x16xi32>
    %571 = arith.cmpi ne, %561, %570 : vector<1x16xi32>
    %572 = arith.extui %571 : vector<1x16xi1> to vector<1x16xi32>
    %573 = arith.sitofp %572 : vector<1x16xi32> to vector<1x16xf32>
    %574 = vector.broadcast %573 : vector<1x16xf32> to vector<64x16xf32>
    %575 = arith.mulf %569, %574 : vector<64x16xf32>
    %576 = tpu.concatenate %568, %543, %575 in 0 : vector<64x16xf32>, vector<64x16xf32>, vector<64x16xf32> -> vector<192x16xf32>
    %c0_231 = arith.constant 0 : index
    %c0_232 = arith.constant 0 : index
    %577 = vector.load %arg39[%c0_231, %c0_232] : memref<64x192xf32, #tpu.memory_space<vmem>>, vector<64x192xf32>
    %cst_233 = arith.constant dense<0.000000e+00> : vector<64x16xf32>
    %578 = tpu.matmul %577, %576, %cst_233 {dimension_numbers = #tpu.dot_dimension_numbers<[1], [0], [0], [1], [0, 0, 1, 1], [], []>} : vector<64x192xf32>, vector<192x16xf32>, vector<64x16xf32> -> vector<64x16xf32>
    %c0_234 = arith.constant 0 : index
    %c0_235 = arith.constant 0 : index
    %579 = vector.load %arg40[%c0_234, %c0_235] : memref<64x1xf32, #tpu.memory_space<vmem>>, vector<64x1xf32>
    %580 = vector.broadcast %579 : vector<64x1xf32> to vector<64x16xf32>
    %581 = arith.addf %578, %580 : vector<64x16xf32>
    %c0_236 = arith.constant 0 : index
    %c0_237 = arith.constant 0 : index
    %582 = vector.load %arg41[%c0_236, %c0_237] : memref<64x64xf32, #tpu.memory_space<vmem>>, vector<64x64xf32>
    %cst_238 = arith.constant dense<0.000000e+00> : vector<64x16xf32>
    %583 = tpu.matmul %582, %544, %cst_238 {dimension_numbers = #tpu.dot_dimension_numbers<[1], [0], [0], [1], [0, 0, 1, 1], [], []>} : vector<64x64xf32>, vector<64x16xf32>, vector<64x16xf32> -> vector<64x16xf32>
    %c0_239 = arith.constant 0 : index
    %c0_240 = arith.constant 0 : index
    %584 = vector.load %arg42[%c0_239, %c0_240] : memref<64x1xf32, #tpu.memory_space<vmem>>, vector<64x1xf32>
    %585 = vector.broadcast %584 : vector<64x1xf32> to vector<64x16xf32>
    %586 = arith.addf %583, %585 : vector<64x16xf32>
    %587 = arith.addf %581, %586 : vector<64x16xf32>
    %cst_241 = arith.constant 0.000000e+00 : f32
    %588 = vector.broadcast %cst_241 : f32 to vector<64x16xf32>
    %589 = arith.cmpf ogt, %587, %588 : vector<64x16xf32>
    %cst_242 = arith.constant 0.000000e+00 : f32
    %590 = vector.broadcast %cst_242 : f32 to vector<64x16xf32>
    %591 = arith.minimumf %587, %590 : vector<64x16xf32>
    %592 = math.exp %591 : vector<64x16xf32>
    %cst_243 = arith.constant 1.000000e+00 : f32
    %593 = vector.broadcast %cst_243 : f32 to vector<64x16xf32>
    %594 = arith.subf %592, %593 : vector<64x16xf32>
    %595 = arith.select %589, %587, %594 : vector<64x16xi1>, vector<64x16xf32>
    %c0_244 = arith.constant 0 : index
    %c0_245 = arith.constant 0 : index
    %596 = vector.load %arg43[%c0_244, %c0_245] : memref<32x64xf32, #tpu.memory_space<vmem>>, vector<32x64xf32>
    %cst_246 = arith.constant dense<0.000000e+00> : vector<32x16xf32>
    %597 = tpu.matmul %596, %595, %cst_246 {dimension_numbers = #tpu.dot_dimension_numbers<[1], [0], [0], [1], [0, 0, 1, 1], [], []>} : vector<32x64xf32>, vector<64x16xf32>, vector<32x16xf32> -> vector<32x16xf32>
    %c0_247 = arith.constant 0 : index
    %c0_248 = arith.constant 0 : index
    %598 = vector.load %arg2[%c0_247, %c0_248] : memref<32x16xf32, #tpu.memory_space<vmem>>, vector<32x16xf32>
    %599 = arith.mulf %597, %598 : vector<32x16xf32>
    %c0_249 = arith.constant 0 : index
    %c0_250 = arith.constant 0 : index
    %600 = vector.load %arg3[%c0_249, %c0_250] : memref<4x32xf32, #tpu.memory_space<vmem>>, vector<4x32xf32>
    %cst_251 = arith.constant dense<0.000000e+00> : vector<4x16xf32>
    %601 = tpu.matmul %600, %599, %cst_251 {dimension_numbers = #tpu.dot_dimension_numbers<[1], [0], [0], [1], [0, 0, 1, 1], [], []>} : vector<4x32xf32>, vector<32x16xf32>, vector<4x16xf32> -> vector<4x16xf32>
    %c0_252 = arith.constant 0 : index
    %c0_253 = arith.constant 0 : index
    %602 = vector.load %arg4[%c0_252, %c0_253] : memref<16x2xf32, #tpu.memory_space<vmem>>, vector<16x2xf32>
    %cst_254 = arith.constant dense<0.000000e+00> : vector<4x2xf32>
    %603 = tpu.matmul %601, %602, %cst_254 {dimension_numbers = #tpu.dot_dimension_numbers<[1], [0], [0], [1], [0, 0, 1, 1], [], []>} : vector<4x16xf32>, vector<16x2xf32>, vector<4x2xf32> -> vector<4x2xf32>
    %c0_255 = arith.constant 0 : index
    %c0_256 = arith.constant 0 : index
    %604 = vector.load %arg44[%c0_255, %c0_256] : memref<4x1xf32, #tpu.memory_space<vmem>>, vector<4x1xf32>
    %605 = vector.broadcast %604 : vector<4x1xf32> to vector<4x2xf32>
    %606 = arith.addf %603, %605 : vector<4x2xf32>
    %c0_257 = arith.constant 0 : index
    %c0_258 = arith.constant 0 : index
    %607 = vector.load %arg45[%c0_257, %c0_258] : memref<4x2xf32, #tpu.memory_space<vmem>>, vector<4x2xf32>
    tpu.vector_store %arg45[%c0_257, %c0_258], %606 {strides = array<i32>} : memref<4x2xf32, #tpu.memory_space<vmem>>, vector<4x2xf32>,
    return
  }
}

</mosaic_0001>

<llo_original>
// kernel: resnet_forward.1
$region0: #{resnet_forward.1}
  #allocation0 [shape = 'u32[]', space=smem, size = 0x4, offset = 0x4, fixed_abs, tag = 'smem constant byte address 0x4 - core index']
  #allocation1 [shape = 'u32[72,128]{1,0:T(1,128)}', space=vmem, size = 0x9000, scoped, tag = 'internal scratch']
  %s0 = inlined_call_operand.smem [shape: u32[46], index: -1, kind: input, shape index: {}]
  %s1 = sld [smem:[%s0]]
  %s2 = scalar_lea.smem %s0, 1
  %s3 = sld [smem:[%s2]]
  %s4 = scalar_lea.smem %s0, 2
  %s5 = sld [smem:[%s4]]
  %s6 = scalar_lea.smem %s0, 3
  %s7 = sld [smem:[%s6]]
  %s8 = scalar_lea.smem %s0, 4
  %s9 = sld [smem:[%s8]]
  %s10 = scalar_lea.smem %s0, 5
  %s11 = sld [smem:[%s10]]
  %s12 = scalar_lea.smem %s0, 6
  %s13 = sld [smem:[%s12]]
  %s14 = scalar_lea.smem %s0, 7
  %s15 = sld [smem:[%s14]]
  %s16 = scalar_lea.smem %s0, 8
  %s17 = sld [smem:[%s16]]
  %s18 = scalar_lea.smem %s0, 9
  %s19 = sld [smem:[%s18]]
  %s20 = scalar_lea.smem %s0, 10
  %s21 = sld [smem:[%s20]]
  %s22 = scalar_lea.smem %s0, 11
  %s23 = sld [smem:[%s22]]
  %s24 = scalar_lea.smem %s0, 12
  %s25 = sld [smem:[%s24]]
  %s26 = scalar_lea.smem %s0, 13
  %s27 = sld [smem:[%s26]]
  %s28 = scalar_lea.smem %s0, 14
  %s29 = sld [smem:[%s28]]
  %s30 = scalar_lea.smem %s0, 15
  %s31 = sld [smem:[%s30]]
  %s32 = scalar_lea.smem %s0, 16
  %s33 = sld [smem:[%s32]]
  %s34 = scalar_lea.smem %s0, 17
  %s35 = sld [smem:[%s34]]
  %s36 = scalar_lea.smem %s0, 18
  %s37 = sld [smem:[%s36]]
  %s38 = scalar_lea.smem %s0, 19
  %s39 = sld [smem:[%s38]]
  %s40 = scalar_lea.smem %s0, 20
  %s41 = sld [smem:[%s40]]
  %s42 = scalar_lea.smem %s0, 21
  %s43 = sld [smem:[%s42]]
  %s44 = scalar_lea.smem %s0, 22
  %s45 = sld [smem:[%s44]]
  %s46 = scalar_lea.smem %s0, 23
  %s47 = sld [smem:[%s46]]
  %s48 = scalar_lea.smem %s0, 24
  %s49 = sld [smem:[%s48]]
  %s50 = scalar_lea.smem %s0, 25
  %s51 = sld [smem:[%s50]]
  %s52 = scalar_lea.smem %s0, 26
  %s53 = sld [smem:[%s52]]
  %s54 = scalar_lea.smem %s0, 27
  %s55 = sld [smem:[%s54]]
  %s56 = scalar_lea.smem %s0, 28
  %s57 = sld [smem:[%s56]]
  %s58 = scalar_lea.smem %s0, 29
  %s59 = sld [smem:[%s58]]
  %s60 = scalar_lea.smem %s0, 30
  %s61 = sld [smem:[%s60]]
  %s62 = scalar_lea.smem %s0, 31
  %s63 = sld [smem:[%s62]]
  %s64 = scalar_lea.smem %s0, 32
  %s65 = sld [smem:[%s64]]
  %s66 = scalar_lea.smem %s0, 33
  %s67 = sld [smem:[%s66]]
  %s68 = scalar_lea.smem %s0, 34
  %s69 = sld [smem:[%s68]]
  %s70 = scalar_lea.smem %s0, 35
  %s71 = sld [smem:[%s70]]
  %s72 = scalar_lea.smem %s0, 36
  %s73 = sld [smem:[%s72]]
  %s74 = scalar_lea.smem %s0, 37
  %s75 = sld [smem:[%s74]]
  %s76 = scalar_lea.smem %s0, 38
  %s77 = sld [smem:[%s76]]
  %s78 = scalar_lea.smem %s0, 39
  %s79 = sld [smem:[%s78]]
  %s80 = scalar_lea.smem %s0, 40
  %s81 = sld [smem:[%s80]]
  %s82 = scalar_lea.smem %s0, 41
  %s83 = sld [smem:[%s82]]
  %s84 = scalar_lea.smem %s0, 42
  %s85 = sld [smem:[%s84]]
  %s86 = scalar_lea.smem %s0, 43
  %s87 = sld [smem:[%s86]]
  %s88 = scalar_lea.smem %s0, 44
  %s89 = sld [smem:[%s88]]
  %s90 = scalar_lea.smem %s0, 45
  %s91 = sld [smem:[%s90]]
  %s92 = sld [smem:[#allocation0]]
  $region190: #{resnet_forward.1} parent=0
    _
  %s94 = ssub.s32 1, %s92
  %s95 = scalar_select 0, %s94, %s92
  // Predicated region
  $region2: #{resnet_forward.1} parent=0 // pred_check
    _
  $region3: #{resnet_forward.1} parent=0 // pred_check_branch
    %97 = sbr.rel (0) target = $region5
  $region4: #{resnet_forward.1} parent=0 // pred_region
    _
  $region5: #{resnet_forward.1} parent=0 // pred_fallthru
    _
  // Predicated region
  $region6: #{resnet_forward.1} parent=0 // pred_check
    _
  $region7: #{resnet_forward.1} parent=0 // pred_check_branch
    %99 = sbr.rel (0) target = $region9
  $region8: #{resnet_forward.1} parent=0 // pred_region
    _
  $region9: #{resnet_forward.1} parent=0 // pred_fallthru
    _
  // Predicated region
  $region10: #{resnet_forward.1} parent=0 // pred_check
    _
  $region11: #{resnet_forward.1} parent=0 // pred_check_branch
    %101 = sbr.rel (0) target = $region13
  $region12: #{resnet_forward.1} parent=0 // pred_region
    _
  $region13: #{resnet_forward.1} parent=0 // pred_fallthru
    _
  // Predicated region
  $region14: #{resnet_forward.1} parent=0 // pred_check
    _
  $region15: #{resnet_forward.1} parent=0 // pred_check_branch
    %103 = sbr.rel (0) target = $region17
  $region16: #{resnet_forward.1} parent=0 // pred_region
    _
  $region17: #{resnet_forward.1} parent=0 // pred_fallthru
    _
  // Predicated region
  $region18: #{resnet_forward.1} parent=0 // pred_check
    _
  $region19: #{resnet_forward.1} parent=0 // pred_check_branch
    %105 = sbr.rel (0) target = $region21
  $region20: #{resnet_forward.1} parent=0 // pred_region
    _
  $region21: #{resnet_forward.1} parent=0 // pred_fallthru
    _
  // Predicated region
  $region22: #{resnet_forward.1} parent=0 // pred_check
    _
  $region23: #{resnet_forward.1} parent=0 // pred_check_branch
    %107 = sbr.rel (0) target = $region25
  $region24: #{resnet_forward.1} parent=0 // pred_region
    _
  $region25: #{resnet_forward.1} parent=0 // pred_fallthru
    _
  // Predicated region
  $region26: #{resnet_forward.1} parent=0 // pred_check
    _
  $region27: #{resnet_forward.1} parent=0 // pred_check_branch
    %109 = sbr.rel (0) target = $region29
  $region28: #{resnet_forward.1} parent=0 // pred_region
    _
  $region29: #{resnet_forward.1} parent=0 // pred_fallthru
    _
  // Predicated region
  $region30: #{resnet_forward.1} parent=0 // pred_check
    _
  $region31: #{resnet_forward.1} parent=0 // pred_check_branch
    %111 = sbr.rel (0) target = $region33
  $region32: #{resnet_forward.1} parent=0 // pred_region
    _
  $region33: #{resnet_forward.1} parent=0 // pred_fallthru
    _
  // Predicated region
  $region34: #{resnet_forward.1} parent=0 // pred_check
    _
  $region35: #{resnet_forward.1} parent=0 // pred_check_branch
    %113 = sbr.rel (0) target = $region37
  $region36: #{resnet_forward.1} parent=0 // pred_region
    _
  $region37: #{resnet_forward.1} parent=0 // pred_fallthru
    _
  // Predicated region
  $region38: #{resnet_forward.1} parent=0 // pred_check
    _
  $region39: #{resnet_forward.1} parent=0 // pred_check_branch
    %115 = sbr.rel (0) target = $region41
  $region40: #{resnet_forward.1} parent=0 // pred_region
    _
  $region41: #{resnet_forward.1} parent=0 // pred_fallthru
    _
  // Predicated region
  $region42: #{resnet_forward.1} parent=0 // pred_check
    _
  $region43: #{resnet_forward.1} parent=0 // pred_check_branch
    %117 = sbr.rel (0) target = $region45
  $region44: #{resnet_forward.1} parent=0 // pred_region
    _
  $region45: #{resnet_forward.1} parent=0 // pred_fallthru
    _
  // Predicated region
  $region46: #{resnet_forward.1} parent=0 // pred_check
    _
  $region47: #{resnet_forward.1} parent=0 // pred_check_branch
    %119 = sbr.rel (0) target = $region49
  $region48: #{resnet_forward.1} parent=0 // pred_region
    _
  $region49: #{resnet_forward.1} parent=0 // pred_fallthru
    _
  // Predicated region
  $region50: #{resnet_forward.1} parent=0 // pred_check
    _
  $region51: #{resnet_forward.1} parent=0 // pred_check_branch
    %121 = sbr.rel (0) target = $region53
  $region52: #{resnet_forward.1} parent=0 // pred_region
    _
  $region53: #{resnet_forward.1} parent=0 // pred_fallthru
    _
  // Predicated region
  $region54: #{resnet_forward.1} parent=0 // pred_check
    _
  $region55: #{resnet_forward.1} parent=0 // pred_check_branch
    %123 = sbr.rel (0) target = $region57
  $region56: #{resnet_forward.1} parent=0 // pred_region
    _
  $region57: #{resnet_forward.1} parent=0 // pred_fallthru
    _
  // Predicated region
  $region58: #{resnet_forward.1} parent=0 // pred_check
    _
  $region59: #{resnet_forward.1} parent=0 // pred_check_branch
    %125 = sbr.rel (0) target = $region61
  $region60: #{resnet_forward.1} parent=0 // pred_region
    _
  $region61: #{resnet_forward.1} parent=0 // pred_fallthru
    _
  // Predicated region
  $region62: #{resnet_forward.1} parent=0 // pred_check
    _
  $region63: #{resnet_forward.1} parent=0 // pred_check_branch
    %127 = sbr.rel (0) target = $region65
  $region64: #{resnet_forward.1} parent=0 // pred_region
    _
  $region65: #{resnet_forward.1} parent=0 // pred_fallthru
    _
  // Predicated region
  $region66: #{resnet_forward.1} parent=0 // pred_check
    _
  $region67: #{resnet_forward.1} parent=0 // pred_check_branch
    %129 = sbr.rel (0) target = $region69
  $region68: #{resnet_forward.1} parent=0 // pred_region
    _
  $region69: #{resnet_forward.1} parent=0 // pred_fallthru
    _
  // Predicated region
  $region70: #{resnet_forward.1} parent=0 // pred_check
    _
  $region71: #{resnet_forward.1} parent=0 // pred_check_branch
    %131 = sbr.rel (0) target = $region73
  $region72: #{resnet_forward.1} parent=0 // pred_region
    _
  $region73: #{resnet_forward.1} parent=0 // pred_fallthru
    _
  // Predicated region
  $region74: #{resnet_forward.1} parent=0 // pred_check
    _
  $region75: #{resnet_forward.1} parent=0 // pred_check_branch
    %133 = sbr.rel (0) target = $region77
  $region76: #{resnet_forward.1} parent=0 // pred_region
    _
  $region77: #{resnet_forward.1} parent=0 // pred_fallthru
    _
  // Predicated region
  $region78: #{resnet_forward.1} parent=0 // pred_check
    _
  $region79: #{resnet_forward.1} parent=0 // pred_check_branch
    %135 = sbr.rel (0) target = $region81
  $region80: #{resnet_forward.1} parent=0 // pred_region
    _
  $region81: #{resnet_forward.1} parent=0 // pred_fallthru
    _
  // Predicated region
  $region82: #{resnet_forward.1} parent=0 // pred_check
    _
  $region83: #{resnet_forward.1} parent=0 // pred_check_branch
    %137 = sbr.rel (0) target = $region85
  $region84: #{resnet_forward.1} parent=0 // pred_region
    _
  $region85: #{resnet_forward.1} parent=0 // pred_fallthru
    _
  // Predicated region
  $region86: #{resnet_forward.1} parent=0 // pred_check
    _
  $region87: #{resnet_forward.1} parent=0 // pred_check_branch
    %139 = sbr.rel (0) target = $region89
  $region88: #{resnet_forward.1} parent=0 // pred_region
    _
  $region89: #{resnet_forward.1} parent=0 // pred_fallthru
    _
  // Predicated region
  $region90: #{resnet_forward.1} parent=0 // pred_check
    _
  $region91: #{resnet_forward.1} parent=0 // pred_check_branch
    %141 = sbr.rel (0) target = $region93
  $region92: #{resnet_forward.1} parent=0 // pred_region
    _
  $region93: #{resnet_forward.1} parent=0 // pred_fallthru
    _
  // Predicated region
  $region94: #{resnet_forward.1} parent=0 // pred_check
    _
  $region95: #{resnet_forward.1} parent=0 // pred_check_branch
    %143 = sbr.rel (0) target = $region97
  $region96: #{resnet_forward.1} parent=0 // pred_region
    _
  $region97: #{resnet_forward.1} parent=0 // pred_fallthru
    _
  // Predicated region
  $region98: #{resnet_forward.1} parent=0 // pred_check
    _
  $region99: #{resnet_forward.1} parent=0 // pred_check_branch
    %145 = sbr.rel (0) target = $region101
  $region100: #{resnet_forward.1} parent=0 // pred_region
    _
  $region101: #{resnet_forward.1} parent=0 // pred_fallthru
    _
  // Predicated region
  $region102: #{resnet_forward.1} parent=0 // pred_check
    _
  $region103: #{resnet_forward.1} parent=0 // pred_check_branch
    %147 = sbr.rel (0) target = $region105
  $region104: #{resnet_forward.1} parent=0 // pred_region
    _
  $region105: #{resnet_forward.1} parent=0 // pred_fallthru
    _
  // Predicated region
  $region106: #{resnet_forward.1} parent=0 // pred_check
    _
  $region107: #{resnet_forward.1} parent=0 // pred_check_branch
    %149 = sbr.rel (0) target = $region109
  $region108: #{resnet_forward.1} parent=0 // pred_region
    _
  $region109: #{resnet_forward.1} parent=0 // pred_fallthru
    _
  // Predicated region
  $region110: #{resnet_forward.1} parent=0 // pred_check
    _
  $region111: #{resnet_forward.1} parent=0 // pred_check_branch
    %151 = sbr.rel (0) target = $region113
  $region112: #{resnet_forward.1} parent=0 // pred_region
    _
  $region113: #{resnet_forward.1} parent=0 // pred_fallthru
    _
  // Predicated region
  $region114: #{resnet_forward.1} parent=0 // pred_check
    _
  $region115: #{resnet_forward.1} parent=0 // pred_check_branch
    %153 = sbr.rel (0) target = $region117
  $region116: #{resnet_forward.1} parent=0 // pred_region
    _
  $region117: #{resnet_forward.1} parent=0 // pred_fallthru
    _
  // Predicated region
  $region118: #{resnet_forward.1} parent=0 // pred_check
    _
  $region119: #{resnet_forward.1} parent=0 // pred_check_branch
    %155 = sbr.rel (0) target = $region121
  $region120: #{resnet_forward.1} parent=0 // pred_region
    _
  $region121: #{resnet_forward.1} parent=0 // pred_fallthru
    _
  // Predicated region
  $region122: #{resnet_forward.1} parent=0 // pred_check
    _
  $region123: #{resnet_forward.1} parent=0 // pred_check_branch
    %157 = sbr.rel (0) target = $region125
  $region124: #{resnet_forward.1} parent=0 // pred_region
    _
  $region125: #{resnet_forward.1} parent=0 // pred_fallthru
    _
  // Predicated region
  $region126: #{resnet_forward.1} parent=0 // pred_check
    _
  $region127: #{resnet_forward.1} parent=0 // pred_check_branch
    %159 = sbr.rel (0) target = $region129
  $region128: #{resnet_forward.1} parent=0 // pred_region
    _
  $region129: #{resnet_forward.1} parent=0 // pred_fallthru
    _
  // Predicated region
  $region130: #{resnet_forward.1} parent=0 // pred_check
    _
  $region131: #{resnet_forward.1} parent=0 // pred_check_branch
    %161 = sbr.rel (0) target = $region133
  $region132: #{resnet_forward.1} parent=0 // pred_region
    _
  $region133: #{resnet_forward.1} parent=0 // pred_fallthru
    _
  // Predicated region
  $region134: #{resnet_forward.1} parent=0 // pred_check
    _
  $region135: #{resnet_forward.1} parent=0 // pred_check_branch
    %163 = sbr.rel (0) target = $region137
  $region136: #{resnet_forward.1} parent=0 // pred_region
    _
  $region137: #{resnet_forward.1} parent=0 // pred_fallthru
    _
  // Predicated region
  $region138: #{resnet_forward.1} parent=0 // pred_check
    _
  $region139: #{resnet_forward.1} parent=0 // pred_check_branch
    %165 = sbr.rel (0) target = $region141
  $region140: #{resnet_forward.1} parent=0 // pred_region
    _
  $region141: #{resnet_forward.1} parent=0 // pred_fallthru
    _
  // Predicated region
  $region142: #{resnet_forward.1} parent=0 // pred_check
    _
  $region143: #{resnet_forward.1} parent=0 // pred_check_branch
    %167 = sbr.rel (0) target = $region145
  $region144: #{resnet_forward.1} parent=0 // pred_region
    _
  $region145: #{resnet_forward.1} parent=0 // pred_fallthru
    _
  // Predicated region
  $region146: #{resnet_forward.1} parent=0 // pred_check
    _
  $region147: #{resnet_forward.1} parent=0 // pred_check_branch
    %169 = sbr.rel (0) target = $region149
  $region148: #{resnet_forward.1} parent=0 // pred_region
    _
  $region149: #{resnet_forward.1} parent=0 // pred_fallthru
    _
  // Predicated region
  $region150: #{resnet_forward.1} parent=0 // pred_check
    _
  $region151: #{resnet_forward.1} parent=0 // pred_check_branch
    %171 = sbr.rel (0) target = $region153
  $region152: #{resnet_forward.1} parent=0 // pred_region
    _
  $region153: #{resnet_forward.1} parent=0 // pred_fallthru
    _
  // Predicated region
  $region154: #{resnet_forward.1} parent=0 // pred_check
    _
  $region155: #{resnet_forward.1} parent=0 // pred_check_branch
    %173 = sbr.rel (0) target = $region157
  $region156: #{resnet_forward.1} parent=0 // pred_region
    _
  $region157: #{resnet_forward.1} parent=0 // pred_fallthru
    _
  // Predicated region
  $region158: #{resnet_forward.1} parent=0 // pred_check
    _
  $region159: #{resnet_forward.1} parent=0 // pred_check_branch
    %175 = sbr.rel (0) target = $region161
  $region160: #{resnet_forward.1} parent=0 // pred_region
    _
  $region161: #{resnet_forward.1} parent=0 // pred_fallthru
    _
  // Predicated region
  $region162: #{resnet_forward.1} parent=0 // pred_check
    _
  $region163: #{resnet_forward.1} parent=0 // pred_check_branch
    %177 = sbr.rel (0) target = $region165
  $region164: #{resnet_forward.1} parent=0 // pred_region
    _
  $region165: #{resnet_forward.1} parent=0 // pred_fallthru
    _
  // Predicated region
  $region166: #{resnet_forward.1} parent=0 // pred_check
    _
  $region167: #{resnet_forward.1} parent=0 // pred_check_branch
    %179 = sbr.rel (0) target = $region169
  $region168: #{resnet_forward.1} parent=0 // pred_region
    _
  $region169: #{resnet_forward.1} parent=0 // pred_fallthru
    _
  // Predicated region
  $region170: #{resnet_forward.1} parent=0 // pred_check
    _
  $region171: #{resnet_forward.1} parent=0 // pred_check_branch
    %181 = sbr.rel (0) target = $region173
  $region172: #{resnet_forward.1} parent=0 // pred_region
    _
  $region173: #{resnet_forward.1} parent=0 // pred_fallthru
    _
  // Predicated region
  $region174: #{resnet_forward.1} parent=0 // pred_check
    _
  $region175: #{resnet_forward.1} parent=0 // pred_check_branch
    %183 = sbr.rel (0) target = $region177
  $region176: #{resnet_forward.1} parent=0 // pred_region
    _
  $region177: #{resnet_forward.1} parent=0 // pred_fallthru
    _
  // Predicated region
  $region178: #{resnet_forward.1} parent=0 // pred_check
    _
  $region179: #{resnet_forward.1} parent=0 // pred_check_branch
    %185 = sbr.rel (0) target = $region181
  $region180: #{resnet_forward.1} parent=0 // pred_region
    _
  $region181: #{resnet_forward.1} parent=0 // pred_fallthru
    _
  %v186 = vld [vmem:[%s1] sm:$0xff]
  %v187 = vld [vmem:[%s1 + $0x8] sm:$0xff]
  %v188 = vld [vmem:[%s1 + $0x10] sm:$0xff]
  %v189 = vld [vmem:[%s1 + $0x18] sm:$0xff]
  %v190 = vld [vmem:[%s1 + $0x20] sm:$0xff]
  %v191 = vld [vmem:[%s1 + $0x28] sm:$0xff]
  %v192 = vld [vmem:[%s1 + $0x30] sm:$0xff]
  %v193 = vld [vmem:[%s1 + $0x38] sm:$0xff]
  %v194 = vld [vmem:[%s1 + $0x40] sm:$0xff]
  %v195 = vld [vmem:[%s1 + $0x48] sm:$0xff]
  %v196 = vld [vmem:[%s1 + $0x50] sm:$0xff]
  %v197 = vld [vmem:[%s1 + $0x58] sm:$0xff]
  %v198 = vld [vmem:[%s1 + $0x60] sm:$0xff]
  %v199 = vld [vmem:[%s1 + $0x68] sm:$0xff]
  %v200 = vld [vmem:[%s1 + $0x70] sm:$0xff]
  %v201 = vld [vmem:[%s1 + $0x78] sm:$0xff]
  %v202 = vld [vmem:[%s1 + $0x80] sm:$0xff]
  %v203 = vld [vmem:[%s1 + $0x88] sm:$0xff]
  %v204 = vld [vmem:[%s1 + $0x90] sm:$0xff]
  %v205 = vld [vmem:[%s1 + $0x98] sm:$0xff]
  %v206 = vld [vmem:[%s1 + $0xa0] sm:$0xff]
  %v207 = vld [vmem:[%s1 + $0xa8] sm:$0xff]
  %v208 = vld [vmem:[%s1 + $0xb0] sm:$0xff]
  %v209 = vld [vmem:[%s1 + $0xb8] sm:$0xff]
  %v210 = vld [vmem:[%s1 + $0xc0] sm:$0xff]
  %v211 = vld [vmem:[%s1 + $0xc8] sm:$0xff]
  %v212 = vld [vmem:[%s1 + $0xd0] sm:$0xff]
  %v213 = vld [vmem:[%s1 + $0xd8] sm:$0xff]
  %v214 = vld [vmem:[%s1 + $0xe0] sm:$0xff]
  %v215 = vld [vmem:[%s1 + $0xe8] sm:$0xff]
  %v216 = vld [vmem:[%s1 + $0xf0] sm:$0xff]
  %v217 = vld [vmem:[%s1 + $0xf8] sm:$0xff]
  %v218 = vld [vmem:[%s1 + $0x100] sm:$0xff]
  %v219 = vld [vmem:[%s1 + $0x108] sm:$0xff]
  %v220 = vld [vmem:[%s1 + $0x110] sm:$0xff]
  %v221 = vld [vmem:[%s1 + $0x118] sm:$0xff]
  %v222 = vld [vmem:[%s1 + $0x120] sm:$0xff]
  %v223 = vld [vmem:[%s1 + $0x128] sm:$0xff]
  %v224 = vld [vmem:[%s1 + $0x130] sm:$0xff]
  %v225 = vld [vmem:[%s1 + $0x138] sm:$0xff]
  %v226 = vlaneseq
  %v227 = vand.u32 %v226, 127
  %v228 = vadd.s32 %v227, 128
  %v229 = vadd.s32 %v227, 256
  %v230 = vadd.s32 %v227, 384
  %v231 = vadd.s32 %v227, 512
  %v232 = vadd.s32 %v227, 640
  %v233 = vadd.s32 %v227, 768
  %v234 = vadd.s32 %v227, 896
  %vm235 = vcmp.lt.s32.totalorder %v227, 0
  %v236 = vsub.s32 0, %v227
  %v237 = vsel %vm235, %v236, %v227
  %v238 = vshrl.u32 %v237, 9
  %v239 = vand.u32 %v237, 511
  %v240 = vsub.s32 0, %v239
  %v241 = vsel %vm235, %v240, %v239
  %vm242 = vcmp.lt.s32.totalorder %v228, 0
  %v243 = vsub.s32 0, %v228
  %v244 = vsel %vm242, %v243, %v228
  %v245 = vshrl.u32 %v244, 9
  %v246 = vand.u32 %v244, 511
  %v247 = vsub.s32 0, %v246
  %v248 = vsel %vm242, %v247, %v246
  %vm249 = vcmp.lt.s32.totalorder %v229, 0
  %v250 = vsub.s32 0, %v229
  %v251 = vsel %vm249, %v250, %v229
  %v252 = vshrl.u32 %v251, 9
  %v253 = vand.u32 %v251, 511
  %v254 = vsub.s32 0, %v253
  %v255 = vsel %vm249, %v254, %v253
  %vm256 = vcmp.lt.s32.totalorder %v230, 0
  %v257 = vsub.s32 0, %v230
  %v258 = vsel %vm256, %v257, %v230
  %v259 = vshrl.u32 %v258, 9
  %v260 = vand.u32 %v258, 511
  %v261 = vsub.s32 0, %v260
  %v262 = vsel %vm256, %v261, %v260
  %vm263 = vcmp.lt.s32.totalorder %v231, 0
  %v264 = vsub.s32 0, %v231
  %v265 = vsel %vm263, %v264, %v231
  %v266 = vshrl.u32 %v265, 9
  %v267 = vand.u32 %v265, 511
  %v268 = vsub.s32 0, %v267
  %v269 = vsel %vm263, %v268, %v267
  %vm270 = vcmp.lt.s32.totalorder %v232, 0
  %v271 = vsub.s32 0, %v232
  %v272 = vsel %vm270, %v271, %v232
  %v273 = vshrl.u32 %v272, 9
  %v274 = vand.u32 %v272, 511
  %v275 = vsub.s32 0, %v274
  %v276 = vsel %vm270, %v275, %v274
  %vm277 = vcmp.lt.s32.totalorder %v233, 0
  %v278 = vsub.s32 0, %v233
  %v279 = vsel %vm277, %v278, %v233
  %v280 = vshrl.u32 %v279, 9
  %v281 = vand.u32 %v279, 511
  %v282 = vsub.s32 0, %v281
  %v283 = vsel %vm277, %v282, %v281
  %vm284 = vcmp.lt.s32.totalorder %v234, 0
  %v285 = vsub.s32 0, %v234
  %v286 = vsel %vm284, %v285, %v234
  %v287 = vshrl.u32 %v286, 9
  %v288 = vand.u32 %v286, 511
  %v289 = vsub.s32 0, %v288
  %v290 = vsel %vm284, %v289, %v288
  %vm291 = vcmp.ne.s32.totalorder %v241, 0
  %vm292 = vcmp.ne.s32.totalorder %v248, 0
  %vm293 = vcmp.ne.s32.totalorder %v255, 0
  %vm294 = vcmp.ne.s32.totalorder %v262, 0
  %vm295 = vcmp.ne.s32.totalorder %v269, 0
  %vm296 = vcmp.ne.s32.totalorder %v276, 0
  %vm297 = vcmp.ne.s32.totalorder %v283, 0
  %vm298 = vcmp.ne.s32.totalorder %v290, 0
  %vm299 = vcmp.lt.s32.totalorder %v241, 0
  %vm300 = vcmp.lt.s32.totalorder %v248, 0
  %vm301 = vcmp.lt.s32.totalorder %v255, 0
  %vm302 = vcmp.lt.s32.totalorder %v262, 0
  %vm303 = vcmp.lt.s32.totalorder %v269, 0
  %vm304 = vcmp.lt.s32.totalorder %v276, 0
  %vm305 = vcmp.lt.s32.totalorder %v283, 0
  %vm306 = vcmp.lt.s32.totalorder %v290, 0
  %vm307 = vmand %vm299, %vm291
  %vm308 = vmand %vm300, %vm292
  %vm309 = vmand %vm301, %vm293
  %vm310 = vmand %vm302, %vm294
  %vm311 = vmand %vm303, %vm295
  %vm312 = vmand %vm304, %vm296
  %vm313 = vmand %vm305, %vm297
  %vm314 = vmand %vm306, %vm298
  %v315 = vadd.s32 %v241, 512
  %v316 = vadd.s32 %v248, 512
  %v317 = vadd.s32 %v255, 512
  %v318 = vadd.s32 %v262, 512
  %v319 = vadd.s32 %v269, 512
  %v320 = vadd.s32 %v276, 512
  %v321 = vadd.s32 %v283, 512
  %v322 = vadd.s32 %v290, 512
  %v323 = vsel %vm307, %v315, %v241
  %v324 = vsel %vm308, %v316, %v248
  %v325 = vsel %vm309, %v317, %v255
  %v326 = vsel %vm310, %v318, %v262
  %v327 = vsel %vm311, %v319, %v269
  %v328 = vsel %vm312, %v320, %v276
  %v329 = vsel %vm313, %v321, %v283
  %v330 = vsel %vm314, %v322, %v290
  %331 = vrot.lane.b32.xlu0 %v186, 1
  %v332 = vpop.permute.xlu0 %331
  %333 = vrot.lane.b32.xlu0 %v194, 1
  %v334 = vpop.permute.xlu0 %333
  %335 = vrot.lane.b32.xlu0 %v202, 1
  %v336 = vpop.permute.xlu0 %335
  %337 = vrot.lane.b32.xlu0 %v210, 1
  %v338 = vpop.permute.xlu0 %337
  %339 = vrot.lane.b32.xlu0 %v218, 1
  %v340 = vpop.permute.xlu0 %339
  %341 = vrot.lane.b32.xlu0 %v187, 1
  %v342 = vpop.permute.xlu0 %341
  %343 = vrot.lane.b32.xlu0 %v195, 1
  %v344 = vpop.permute.xlu0 %343
  %345 = vrot.lane.b32.xlu0 %v203, 1
  %v346 = vpop.permute.xlu0 %345
  %347 = vrot.lane.b32.xlu0 %v211, 1
  %v348 = vpop.permute.xlu0 %347
  %349 = vrot.lane.b32.xlu0 %v219, 1
  %v350 = vpop.permute.xlu0 %349
  %351 = vrot.lane.b32.xlu0 %v188, 1
  %v352 = vpop.permute.xlu0 %351
  %353 = vrot.lane.b32.xlu0 %v196, 1
  %v354 = vpop.permute.xlu0 %353
  %355 = vrot.lane.b32.xlu0 %v204, 1
  %v356 = vpop.permute.xlu0 %355
  %357 = vrot.lane.b32.xlu0 %v212, 1
  %v358 = vpop.permute.xlu0 %357
  %359 = vrot.lane.b32.xlu0 %v220, 1
  %v360 = vpop.permute.xlu0 %359
  %361 = vrot.lane.b32.xlu0 %v189, 1
  %v362 = vpop.permute.xlu0 %361
  %363 = vrot.lane.b32.xlu0 %v197, 1
  %v364 = vpop.permute.xlu0 %363
  %365 = vrot.lane.b32.xlu0 %v205, 1
  %v366 = vpop.permute.xlu0 %365
  %367 = vrot.lane.b32.xlu0 %v213, 1
  %v368 = vpop.permute.xlu0 %367
  %369 = vrot.lane.b32.xlu0 %v221, 1
  %v370 = vpop.permute.xlu0 %369
  %371 = vrot.lane.b32.xlu0 %v190, 1
  %v372 = vpop.permute.xlu0 %371
  %373 = vrot.lane.b32.xlu0 %v198, 1
  %v374 = vpop.permute.xlu0 %373
  %375 = vrot.lane.b32.xlu0 %v206, 1
  %v376 = vpop.permute.xlu0 %375
  %377 = vrot.lane.b32.xlu0 %v214, 1
  %v378 = vpop.permute.xlu0 %377
  %379 = vrot.lane.b32.xlu0 %v222, 1
  %v380 = vpop.permute.xlu0 %379
  %381 = vrot.lane.b32.xlu0 %v191, 1
  %v382 = vpop.permute.xlu0 %381
  %383 = vrot.lane.b32.xlu0 %v199, 1
  %v384 = vpop.permute.xlu0 %383
  %385 = vrot.lane.b32.xlu0 %v207, 1
  %v386 = vpop.permute.xlu0 %385
  %387 = vrot.lane.b32.xlu0 %v215, 1
  %v388 = vpop.permute.xlu0 %387
  %389 = vrot.lane.b32.xlu0 %v223, 1
  %v390 = vpop.permute.xlu0 %389
  %391 = vrot.lane.b32.xlu0 %v192, 1
  %v392 = vpop.permute.xlu0 %391
  %393 = vrot.lane.b32.xlu0 %v200, 1
  %v394 = vpop.permute.xlu0 %393
  %395 = vrot.lane.b32.xlu0 %v208, 1
  %v396 = vpop.permute.xlu0 %395
  %397 = vrot.lane.b32.xlu0 %v216, 1
  %v398 = vpop.permute.xlu0 %397
  %399 = vrot.lane.b32.xlu0 %v224, 1
  %v400 = vpop.permute.xlu0 %399
  %401 = vrot.lane.b32.xlu0 %v193, 1
  %v402 = vpop.permute.xlu0 %401
  %403 = vrot.lane.b32.xlu0 %v201, 1
  %v404 = vpop.permute.xlu0 %403
  %405 = vrot.lane.b32.xlu0 %v209, 1
  %v406 = vpop.permute.xlu0 %405
  %407 = vrot.lane.b32.xlu0 %v217, 1
  %v408 = vpop.permute.xlu0 %407
  %409 = vrot.lane.b32.xlu0 %v225, 1
  %v410 = vpop.permute.xlu0 %409
  %vm411 = vcmp.lt.s32.totalorder %v227, 1
  %v412 = vsel %vm411, %v392, %v402
  %v413 = vsel %vm411, %v394, %v404
  %v414 = vsel %vm411, %v396, %v406
  %v415 = vsel %vm411, %v398, %v408
  %v416 = vsel %vm411, %v400, %v410
  %v417 = vsel %vm411, %v382, %v392
  %v418 = vsel %vm411, %v384, %v394
  %v419 = vsel %vm411, %v386, %v396
  %v420 = vsel %vm411, %v388, %v398
  %v421 = vsel %vm411, %v390, %v400
  %v422 = vsel %vm411, %v372, %v382
  %v423 = vsel %vm411, %v374, %v384
  %v424 = vsel %vm411, %v376, %v386
  %v425 = vsel %vm411, %v378, %v388
  %v426 = vsel %vm411, %v380, %v390
  %v427 = vsel %vm411, %v362, %v372
  %v428 = vsel %vm411, %v364, %v374
  %v429 = vsel %vm411, %v366, %v376
  %v430 = vsel %vm411, %v368, %v378
  %v431 = vsel %vm411, %v370, %v380
  %v432 = vsel %vm411, %v352, %v362
  %v433 = vsel %vm411, %v354, %v364
  %v434 = vsel %vm411, %v356, %v366
  %v435 = vsel %vm411, %v358, %v368
  %v436 = vsel %vm411, %v360, %v370
  %v437 = vsel %vm411, %v342, %v352
  %v438 = vsel %vm411, %v344, %v354
  %v439 = vsel %vm411, %v346, %v356
  %v440 = vsel %vm411, %v348, %v358
  %v441 = vsel %vm411, %v350, %v360
  %v442 = vsel %vm411, %v332, %v342
  %v443 = vsel %vm411, %v334, %v344
  %v444 = vsel %vm411, %v336, %v346
  %v445 = vsel %vm411, %v338, %v348
  %v446 = vsel %vm411, %v340, %v350
  %v447 = vsel %vm411, %v402, %v332
  %v448 = vsel %vm411, %v404, %v334
  %v449 = vsel %vm411, %v406, %v336
  %v450 = vsel %vm411, %v408, %v338
  %v451 = vsel %vm411, %v410, %v340
  %vm452 = vcmp.ne.s32.totalorder %v323, 0
  %vm453 = vcmp.ne.s32.totalorder %v324, 0
  %vm454 = vcmp.ne.s32.totalorder %v325, 0
  %vm455 = vcmp.ne.s32.totalorder %v326, 0
  %vm456 = vcmp.ne.s32.totalorder %v327, 0
  %vm457 = vcmp.ne.s32.totalorder %v328, 0
  %vm458 = vcmp.ne.s32.totalorder %v329, 0
  %vm459 = vcmp.ne.s32.totalorder %v330, 0
  %v460 = vsel %vm452, 1, 0
  %v461 = vsel %vm453, 1, 0
  %v462 = vsel %vm454, 1, 0
  %v463 = vsel %vm455, 1, 0
  %v464 = vsel %vm456, 1, 0
  %v465 = vsel %vm457, 1, 0
  %v466 = vsel %vm458, 1, 0
  %v467 = vsel %vm459, 1, 0
  %v468 = vcvt.s32.f32 %v460
  %v469 = vcvt.s32.f32 %v461
  %v470 = vcvt.s32.f32 %v462
  %v471 = vcvt.s32.f32 %v463
  %v472 = vcvt.s32.f32 %v464
  %v473 = vcvt.s32.f32 %v465
  %v474 = vcvt.s32.f32 %v466
  %v475 = vcvt.s32.f32 %v467
  %v476 = vmul.f32 %v447, %v468
  %v477 = vmul.f32 %v442, %v469
  %v478 = vmul.f32 %v437, %v470
  %v479 = vmul.f32 %v432, %v471
  %v480 = vmul.f32 %v427, %v472
  %v481 = vmul.f32 %v422, %v473
  %v482 = vmul.f32 %v417, %v474
  %v483 = vmul.f32 %v412, %v475
  %v484 = vmul.f32 %v448, %v468
  %v485 = vmul.f32 %v443, %v469
  %v486 = vmul.f32 %v438, %v470
  %v487 = vmul.f32 %v433, %v471
  %v488 = vmul.f32 %v428, %v472
  %v489 = vmul.f32 %v423, %v473
  %v490 = vmul.f32 %v418, %v474
  %v491 = vmul.f32 %v413, %v475
  %v492 = vmul.f32 %v449, %v468
  %v493 = vmul.f32 %v444, %v469
  %v494 = vmul.f32 %v439, %v470
  %v495 = vmul.f32 %v434, %v471
  %v496 = vmul.f32 %v429, %v472
  %v497 = vmul.f32 %v424, %v473
  %v498 = vmul.f32 %v419, %v474
  %v499 = vmul.f32 %v414, %v475
  %v500 = vmul.f32 %v450, %v468
  %v501 = vmul.f32 %v445, %v469
  %v502 = vmul.f32 %v440, %v470
  %v503 = vmul.f32 %v435, %v471
  %v504 = vmul.f32 %v430, %v472
  %v505 = vmul.f32 %v425, %v473
  %v506 = vmul.f32 %v420, %v474
  %v507 = vmul.f32 %v415, %v475
  %v508 = vmul.f32 %v451, %v468
  %v509 = vmul.f32 %v446, %v469
  %v510 = vmul.f32 %v441, %v470
  %v511 = vmul.f32 %v436, %v471
  %v512 = vmul.f32 %v431, %v472
  %v513 = vmul.f32 %v426, %v473
  %v514 = vmul.f32 %v421, %v474
  %v515 = vmul.f32 %v416, %v475
  %516 = vrot.lane.b32.xlu0 %v186, 127
  %v517 = vpop.permute.xlu0 %516
  %518 = vrot.lane.b32.xlu0 %v194, 127
  %v519 = vpop.permute.xlu0 %518
  %520 = vrot.lane.b32.xlu0 %v202, 127
  %v521 = vpop.permute.xlu0 %520
  %522 = vrot.lane.b32.xlu0 %v210, 127
  %v523 = vpop.permute.xlu0 %522
  %524 = vrot.lane.b32.xlu0 %v218, 127
  %v525 = vpop.permute.xlu0 %524
  %526 = vrot.lane.b32.xlu0 %v187, 127
  %v527 = vpop.permute.xlu0 %526
  %528 = vrot.lane.b32.xlu0 %v195, 127
  %v529 = vpop.permute.xlu0 %528
  %530 = vrot.lane.b32.xlu0 %v203, 127
  %v531 = vpop.permute.xlu0 %530
  %532 = vrot.lane.b32.xlu0 %v211, 127
  %v533 = vpop.permute.xlu0 %532
  %534 = vrot.lane.b32.xlu0 %v219, 127
  %v535 = vpop.permute.xlu0 %534
  %536 = vrot.lane.b32.xlu0 %v188, 127
  %v537 = vpop.permute.xlu0 %536
  %538 = vrot.lane.b32.xlu0 %v196, 127
  %v539 = vpop.permute.xlu0 %538
  %540 = vrot.lane.b32.xlu0 %v204, 127
  %v541 = vpop.permute.xlu0 %540
  %542 = vrot.lane.b32.xlu0 %v212, 127
  %v543 = vpop.permute.xlu0 %542
  %544 = vrot.lane.b32.xlu0 %v220, 127
  %v545 = vpop.permute.xlu0 %544
  %546 = vrot.lane.b32.xlu0 %v189, 127
  %v547 = vpop.permute.xlu0 %546
  %548 = vrot.lane.b32.xlu0 %v197, 127
  %v549 = vpop.permute.xlu0 %548
  %550 = vrot.lane.b32.xlu0 %v205, 127
  %v551 = vpop.permute.xlu0 %550
  %552 = vrot.lane.b32.xlu0 %v213, 127
  %v553 = vpop.permute.xlu0 %552
  %554 = vrot.lane.b32.xlu0 %v221, 127
  %v555 = vpop.permute.xlu0 %554
  %556 = vrot.lane.b32.xlu0 %v190, 127
  %v557 = vpop.permute.xlu0 %556
  %558 = vrot.lane.b32.xlu0 %v198, 127
  %v559 = vpop.permute.xlu0 %558
  %560 = vrot.lane.b32.xlu0 %v206, 127
  %v561 = vpop.permute.xlu0 %560
  %562 = vrot.lane.b32.xlu0 %v214, 127
  %v563 = vpop.permute.xlu0 %562
  %564 = vrot.lane.b32.xlu0 %v222, 127
  %v565 = vpop.permute.xlu0 %564
  %566 = vrot.lane.b32.xlu0 %v191, 127
  %v567 = vpop.permute.xlu0 %566
  %568 = vrot.lane.b32.xlu0 %v199, 127
  %v569 = vpop.permute.xlu0 %568
  %570 = vrot.lane.b32.xlu0 %v207, 127
  %v571 = vpop.permute.xlu0 %570
  %572 = vrot.lane.b32.xlu0 %v215, 127
  %v573 = vpop.permute.xlu0 %572
  %574 = vrot.lane.b32.xlu0 %v223, 127
  %v575 = vpop.permute.xlu0 %574
  %576 = vrot.lane.b32.xlu0 %v192, 127
  %v577 = vpop.permute.xlu0 %576
  %578 = vrot.lane.b32.xlu0 %v200, 127
  %v579 = vpop.permute.xlu0 %578
  %580 = vrot.lane.b32.xlu0 %v208, 127
  %v581 = vpop.permute.xlu0 %580
  %582 = vrot.lane.b32.xlu0 %v216, 127
  %v583 = vpop.permute.xlu0 %582
  %584 = vrot.lane.b32.xlu0 %v224, 127
  %v585 = vpop.permute.xlu0 %584
  %586 = vrot.lane.b32.xlu0 %v193, 127
  %v587 = vpop.permute.xlu0 %586
  %588 = vrot.lane.b32.xlu0 %v201, 127
  %v589 = vpop.permute.xlu0 %588
  %590 = vrot.lane.b32.xlu0 %v209, 127
  %v591 = vpop.permute.xlu0 %590
  %592 = vrot.lane.b32.xlu0 %v217, 127
  %v593 = vpop.permute.xlu0 %592
  %594 = vrot.lane.b32.xlu0 %v225, 127
  %v595 = vpop.permute.xlu0 %594
  %vm596 = vcmp.lt.s32.totalorder %v227, 127
  %v597 = vsel %vm596, %v577, %v587
  %v598 = vsel %vm596, %v579, %v589
  %v599 = vsel %vm596, %v581, %v591
  %v600 = vsel %vm596, %v583, %v593
  %v601 = vsel %vm596, %v585, %v595
  %v602 = vsel %vm596, %v567, %v577
  %v603 = vsel %vm596, %v569, %v579
  %v604 = vsel %vm596, %v571, %v581
  %v605 = vsel %vm596, %v573, %v583
  %v606 = vsel %vm596, %v575, %v585
  %v607 = vsel %vm596, %v557, %v567
  %v608 = vsel %vm596, %v559, %v569
  %v609 = vsel %vm596, %v561, %v571
  %v610 = vsel %vm596, %v563, %v573
  %v611 = vsel %vm596, %v565, %v575
  %v612 = vsel %vm596, %v547, %v557
  %v613 = vsel %vm596, %v549, %v559
  %v614 = vsel %vm596, %v551, %v561
  %v615 = vsel %vm596, %v553, %v563
  %v616 = vsel %vm596, %v555, %v565
  %v617 = vsel %vm596, %v537, %v547
  %v618 = vsel %vm596, %v539, %v549
  %v619 = vsel %vm596, %v541, %v551
  %v620 = vsel %vm596, %v543, %v553
  %v621 = vsel %vm596, %v545, %v555
  %v622 = vsel %vm596, %v527, %v537
  %v623 = vsel %vm596, %v529, %v539
  %v624 = vsel %vm596, %v531, %v541
  %v625 = vsel %vm596, %v533, %v543
  %v626 = vsel %vm596, %v535, %v545
  %v627 = vsel %vm596, %v517, %v527
  %v628 = vsel %vm596, %v519, %v529
  %v629 = vsel %vm596, %v521, %v531
  %v630 = vsel %vm596, %v523, %v533
  %v631 = vsel %vm596, %v525, %v535
  %v632 = vsel %vm596, %v587, %v517
  %v633 = vsel %vm596, %v589, %v519
  %v634 = vsel %vm596, %v591, %v521
  %v635 = vsel %vm596, %v593, %v523
  %v636 = vsel %vm596, %v595, %v525
  %vm637 = vcmp.ne.s32.totalorder %v323, 511
  %vm638 = vcmp.ne.s32.totalorder %v324, 511
  %vm639 = vcmp.ne.s32.totalorder %v325, 511
  %vm640 = vcmp.ne.s32.totalorder %v326, 511
  %vm641 = vcmp.ne.s32.totalorder %v327, 511
  %vm642 = vcmp.ne.s32.totalorder %v328, 511
  %vm643 = vcmp.ne.s32.totalorder %v329, 511
  %vm644 = vcmp.ne.s32.totalorder %v330, 511
  %v645 = vsel %vm637, 1, 0
  %v646 = vsel %vm638, 1, 0
  %v647 = vsel %vm639, 1, 0
  %v648 = vsel %vm640, 1, 0
  %v649 = vsel %vm641, 1, 0
  %v650 = vsel %vm642, 1, 0
  %v651 = vsel %vm643, 1, 0
  %v652 = vsel %vm644, 1, 0
  %v653 = vcvt.s32.f32 %v645
  %v654 = vcvt.s32.f32 %v646
  %v655 = vcvt.s32.f32 %v647
  %v656 = vcvt.s32.f32 %v648
  %v657 = vcvt.s32.f32 %v649
  %v658 = vcvt.s32.f32 %v650
  %v659 = vcvt.s32.f32 %v651
  %v660 = vcvt.s32.f32 %v652
  %v661 = vmul.f32 %v627, %v653
  %v662 = vmul.f32 %v622, %v654
  %v663 = vmul.f32 %v617, %v655
  %v664 = vmul.f32 %v612, %v656
  %v665 = vmul.f32 %v607, %v657
  %v666 = vmul.f32 %v602, %v658
  %v667 = vmul.f32 %v597, %v659
  %v668 = vmul.f32 %v632, %v660
  %v669 = vmul.f32 %v628, %v653
  %v670 = vmul.f32 %v623, %v654
  %v671 = vmul.f32 %v618, %v655
  %v672 = vmul.f32 %v613, %v656
  %v673 = vmul.f32 %v608, %v657
  %v674 = vmul.f32 %v603, %v658
  %v675 = vmul.f32 %v598, %v659
  %v676 = vmul.f32 %v633, %v660
  %v677 = vmul.f32 %v629, %v653
  %v678 = vmul.f32 %v624, %v654
  %v679 = vmul.f32 %v619, %v655
  %v680 = vmul.f32 %v614, %v656
  %v681 = vmul.f32 %v609, %v657
  %v682 = vmul.f32 %v604, %v658
  %v683 = vmul.f32 %v599, %v659
  %v684 = vmul.f32 %v634, %v660
  %v685 = vmul.f32 %v630, %v653
  %v686 = vmul.f32 %v625, %v654
  %v687 = vmul.f32 %v620, %v655
  %v688 = vmul.f32 %v615, %v656
  %v689 = vmul.f32 %v610, %v657
  %v690 = vmul.f32 %v605, %v658
  %v691 = vmul.f32 %v600, %v659
  %v692 = vmul.f32 %v635, %v660
  %v693 = vmul.f32 %v631, %v653
  %v694 = vmul.f32 %v626, %v654
  %v695 = vmul.f32 %v621, %v655
  %v696 = vmul.f32 %v616, %v656
  %v697 = vmul.f32 %v611, %v657
  %v698 = vmul.f32 %v606, %v658
  %v699 = vmul.f32 %v601, %v659
  %v700 = vmul.f32 %v636, %v660
  %v701 = vld [vmem:[%s11] sm:$0xff]
  %v702 = vld [vmem:[%s11 + $0x8] sm:$0xff]
  %v703 = vld [vmem:[%s13] sm:$0xff]
  %v704 = vld [vmem:[%s13 + $0x8] sm:$0xff]
  %706 = vset.pattern.permute.xlu0 0
  %707 = vperm.xlu0 %706, %v703
  %v708 = vpop.permute.xlu0 %707
  %711 = vset.pattern.permute.xlu0 0
  %712 = vperm.xlu0 %711, %v704
  %v713 = vpop.permute.xlu0 %712
  %vm715 = vcmask 982016
  %v717 = vsel %vm715, %v701, 0
  %v720 = vsel %vm715, %v702, 0
  %722 = vmatpush.msra.mxu0 0.0
  %723 = vmatpush.msra.mxu0 %v693
  %724 = vmatpush.msra.mxu0 %v685
  %725 = vmatpush.msra.mxu0 %v677
  %726 = vmatpush.msra.mxu0 %v669
  %727 = vmatpush.msra.mxu0 %v661
  %728 = vmatpush.msra.mxu0 %v218
  %729 = vmatpush.msra.mxu0 %v210
  %730 = vmatpush.msra.mxu0 %v202
  %731 = vmatpush.msra.mxu0 %v194
  %732 = vmatpush.msra.mxu0 %v186
  %733 = vmatpush.msra.mxu0 %v508
  %734 = vmatpush.msra.mxu0 %v500
  %735 = vmatpush.msra.mxu0 %v492
  %736 = vmatpush.msra.mxu0 %v484
  %737 = vmatpush.msra.mxu0 %v476
  %738 = vmatmul.f32.gmra.mxu0 %v717
  %v739 = vpop.f32.mrf.mxu0
  %v740 = vadd.f32 %v708, %v739
  %741 = vmatmul.f32.gmra.mxu0 %v720
  %v742 = vpop.f32.mrf.mxu0
  %v743 = vadd.f32 %v713, %v742
  %744 = vdwg.mxu0
  %745 = vmatpush.msra.mxu0 0.0
  %746 = vmatpush.msra.mxu0 %v694
  %747 = vmatpush.msra.mxu0 %v686
  %748 = vmatpush.msra.mxu0 %v678
  %749 = vmatpush.msra.mxu0 %v670
  %750 = vmatpush.msra.mxu0 %v662
  %751 = vmatpush.msra.mxu0 %v219
  %752 = vmatpush.msra.mxu0 %v211
  %753 = vmatpush.msra.mxu0 %v203
  %754 = vmatpush.msra.mxu0 %v195
  %755 = vmatpush.msra.mxu0 %v187
  %756 = vmatpush.msra.mxu0 %v509
  %757 = vmatpush.msra.mxu0 %v501
  %758 = vmatpush.msra.mxu0 %v493
  %759 = vmatpush.msra.mxu0 %v485
  %760 = vmatpush.msra.mxu0 %v477
  %761 = vmatmul.f32.gmra.mxu0 %v717
  %v762 = vpop.f32.mrf.mxu0
  %v763 = vadd.f32 %v708, %v762
  %764 = vmatmul.f32.gmra.mxu0 %v720
  %v765 = vpop.f32.mrf.mxu0
  %v766 = vadd.f32 %v713, %v765
  %767 = vdwg.mxu0
  %768 = vmatpush.msra.mxu0 0.0
  %769 = vmatpush.msra.mxu0 %v695
  %770 = vmatpush.msra.mxu0 %v687
  %771 = vmatpush.msra.mxu0 %v679
  %772 = vmatpush.msra.mxu0 %v671
  %773 = vmatpush.msra.mxu0 %v663
  %774 = vmatpush.msra.mxu0 %v220
  %775 = vmatpush.msra.mxu0 %v212
  %776 = vmatpush.msra.mxu0 %v204
  %777 = vmatpush.msra.mxu0 %v196
  %778 = vmatpush.msra.mxu0 %v188
  %779 = vmatpush.msra.mxu0 %v510
  %780 = vmatpush.msra.mxu0 %v502
  %781 = vmatpush.msra.mxu0 %v494
  %782 = vmatpush.msra.mxu0 %v486
  %783 = vmatpush.msra.mxu0 %v478
  %784 = vmatmul.f32.gmra.mxu0 %v717
  %v785 = vpop.f32.mrf.mxu0
  %v786 = vadd.f32 %v708, %v785
  %787 = vmatmul.f32.gmra.mxu0 %v720
  %v788 = vpop.f32.mrf.mxu0
  %v789 = vadd.f32 %v713, %v788
  %790 = vdwg.mxu0
  %791 = vmatpush.msra.mxu0 0.0
  %792 = vmatpush.msra.mxu0 %v696
  %793 = vmatpush.msra.mxu0 %v688
  %794 = vmatpush.msra.mxu0 %v680
  %795 = vmatpush.msra.mxu0 %v672
  %796 = vmatpush.msra.mxu0 %v664
  %797 = vmatpush.msra.mxu0 %v221
  %798 = vmatpush.msra.mxu0 %v213
  %799 = vmatpush.msra.mxu0 %v205
  %800 = vmatpush.msra.mxu0 %v197
  %801 = vmatpush.msra.mxu0 %v189
  %802 = vmatpush.msra.mxu0 %v511
  %803 = vmatpush.msra.mxu0 %v503
  %804 = vmatpush.msra.mxu0 %v495
  %805 = vmatpush.msra.mxu0 %v487
  %806 = vmatpush.msra.mxu0 %v479
  %807 = vmatmul.f32.gmra.mxu0 %v717
  %v808 = vpop.f32.mrf.mxu0
  %v809 = vadd.f32 %v708, %v808
  %810 = vmatmul.f32.gmra.mxu0 %v720
  %v811 = vpop.f32.mrf.mxu0
  %v812 = vadd.f32 %v713, %v811
  %813 = vdwg.mxu0
  %814 = vmatpush.msra.mxu0 0.0
  %815 = vmatpush.msra.mxu0 %v697
  %816 = vmatpush.msra.mxu0 %v689
  %817 = vmatpush.msra.mxu0 %v681
  %818 = vmatpush.msra.mxu0 %v673
  %819 = vmatpush.msra.mxu0 %v665
  %820 = vmatpush.msra.mxu0 %v222
  %821 = vmatpush.msra.mxu0 %v214
  %822 = vmatpush.msra.mxu0 %v206
  %823 = vmatpush.msra.mxu0 %v198
  %824 = vmatpush.msra.mxu0 %v190
  %825 = vmatpush.msra.mxu0 %v512
  %826 = vmatpush.msra.mxu0 %v504
  %827 = vmatpush.msra.mxu0 %v496
  %828 = vmatpush.msra.mxu0 %v488
  %829 = vmatpush.msra.mxu0 %v480
  %830 = vmatmul.f32.gmra.mxu0 %v717
  %v831 = vpop.f32.mrf.mxu0
  %v832 = vadd.f32 %v708, %v831
  %833 = vmatmul.f32.gmra.mxu0 %v720
  %v834 = vpop.f32.mrf.mxu0
  %v835 = vadd.f32 %v713, %v834
  %836 = vdwg.mxu0
  %837 = vmatpush.msra.mxu0 0.0
  %838 = vmatpush.msra.mxu0 %v698
  %839 = vmatpush.msra.mxu0 %v690
  %840 = vmatpush.msra.mxu0 %v682
  %841 = vmatpush.msra.mxu0 %v674
  %842 = vmatpush.msra.mxu0 %v666
  %843 = vmatpush.msra.mxu0 %v223
  %844 = vmatpush.msra.mxu0 %v215
  %845 = vmatpush.msra.mxu0 %v207
  %846 = vmatpush.msra.mxu0 %v199
  %847 = vmatpush.msra.mxu0 %v191
  %848 = vmatpush.msra.mxu0 %v513
  %849 = vmatpush.msra.mxu0 %v505
  %850 = vmatpush.msra.mxu0 %v497
  %851 = vmatpush.msra.mxu0 %v489
  %852 = vmatpush.msra.mxu0 %v481
  %853 = vmatmul.f32.gmra.mxu0 %v717
  %v854 = vpop.f32.mrf.mxu0
  %v855 = vadd.f32 %v708, %v854
  %856 = vmatmul.f32.gmra.mxu0 %v720
  %v857 = vpop.f32.mrf.mxu0
  %v858 = vadd.f32 %v713, %v857
  %859 = vdwg.mxu0
  %860 = vmatpush.msra.mxu0 0.0
  %861 = vmatpush.msra.mxu0 %v699
  %862 = vmatpush.msra.mxu0 %v691
  %863 = vmatpush.msra.mxu0 %v683
  %864 = vmatpush.msra.mxu0 %v675
  %865 = vmatpush.msra.mxu0 %v667
  %866 = vmatpush.msra.mxu0 %v224
  %867 = vmatpush.msra.mxu0 %v216
  %868 = vmatpush.msra.mxu0 %v208
  %869 = vmatpush.msra.mxu0 %v200
  %870 = vmatpush.msra.mxu0 %v192
  %871 = vmatpush.msra.mxu0 %v514
  %872 = vmatpush.msra.mxu0 %v506
  %873 = vmatpush.msra.mxu0 %v498
  %874 = vmatpush.msra.mxu0 %v490
  %875 = vmatpush.msra.mxu0 %v482
  %876 = vmatmul.f32.gmra.mxu0 %v717
  %v877 = vpop.f32.mrf.mxu0
  %v878 = vadd.f32 %v708, %v877
  %879 = vmatmul.f32.gmra.mxu0 %v720
  %v880 = vpop.f32.mrf.mxu0
  %v881 = vadd.f32 %v713, %v880
  %882 = vdwg.mxu0
  %883 = vmatpush.msra.mxu0 0.0
  %884 = vmatpush.msra.mxu0 %v700
  %885 = vmatpush.msra.mxu0 %v692
  %886 = vmatpush.msra.mxu0 %v684
  %887 = vmatpush.msra.mxu0 %v676
  %888 = vmatpush.msra.mxu0 %v668
  %889 = vmatpush.msra.mxu0 %v225
  %890 = vmatpush.msra.mxu0 %v217
  %891 = vmatpush.msra.mxu0 %v209
  %892 = vmatpush.msra.mxu0 %v201
  %893 = vmatpush.msra.mxu0 %v193
  %894 = vmatpush.msra.mxu0 %v515
  %895 = vmatpush.msra.mxu0 %v507
  %896 = vmatpush.msra.mxu0 %v499
  %897 = vmatpush.msra.mxu0 %v491
  %898 = vmatpush.msra.mxu0 %v483
  %899 = vmatmul.f32.gmra.mxu0 %v717
  %v900 = vpop.f32.mrf.mxu0
  %v901 = vadd.f32 %v708, %v900
  %902 = vmatmul.f32.gmra.mxu0 %v720
  %v903 = vpop.f32.mrf.mxu0
  %v904 = vadd.f32 %v713, %v903
  %905 = vdwg.mxu0
  %906 = vrot.lane.b32.xlu0 %v740, 1
  %v907 = vpop.permute.xlu0 %906
  %908 = vrot.lane.b32.xlu0 %v743, 1
  %v909 = vpop.permute.xlu0 %908
  %910 = vrot.lane.b32.xlu0 %v763, 1
  %v911 = vpop.permute.xlu0 %910
  %912 = vrot.lane.b32.xlu0 %v766, 1
  %v913 = vpop.permute.xlu0 %912
  %914 = vrot.lane.b32.xlu0 %v786, 1
  %v915 = vpop.permute.xlu0 %914
  %916 = vrot.lane.b32.xlu0 %v789, 1
  %v917 = vpop.permute.xlu0 %916
  %918 = vrot.lane.b32.xlu0 %v809, 1
  %v919 = vpop.permute.xlu0 %918
  %920 = vrot.lane.b32.xlu0 %v812, 1
  %v921 = vpop.permute.xlu0 %920
  %922 = vrot.lane.b32.xlu0 %v832, 1
  %v923 = vpop.permute.xlu0 %922
  %924 = vrot.lane.b32.xlu0 %v835, 1
  %v925 = vpop.permute.xlu0 %924
  %926 = vrot.lane.b32.xlu0 %v855, 1
  %v927 = vpop.permute.xlu0 %926
  %928 = vrot.lane.b32.xlu0 %v858, 1
  %v929 = vpop.permute.xlu0 %928
  %930 = vrot.lane.b32.xlu0 %v878, 1
  %v931 = vpop.permute.xlu0 %930
  %932 = vrot.lane.b32.xlu0 %v881, 1
  %v933 = vpop.permute.xlu0 %932
  %934 = vrot.lane.b32.xlu0 %v901, 1
  %v935 = vpop.permute.xlu0 %934
  %936 = vrot.lane.b32.xlu0 %v904, 1
  %v937 = vpop.permute.xlu0 %936
  %v938 = vsel %vm411, %v931, %v935
  %v939 = vsel %vm411, %v933, %v937
  %v940 = vsel %vm411, %v927, %v931
  %v941 = vsel %vm411, %v929, %v933
  %v942 = vsel %vm411, %v923, %v927
  %v943 = vsel %vm411, %v925, %v929
  %v944 = vsel %vm411, %v919, %v923
  %v945 = vsel %vm411, %v921, %v925
  %v946 = vsel %vm411, %v915, %v919
  %v947 = vsel %vm411, %v917, %v921
  %v948 = vsel %vm411, %v911, %v915
  %v949 = vsel %vm411, %v913, %v917
  %v950 = vsel %vm411, %v907, %v911
  %v951 = vsel %vm411, %v909, %v913
  %v952 = vsel %vm411, %v935, %v907
  %v953 = vsel %vm411, %v937, %v909
  %v954 = vmul.f32 %v952, %v468
  %v955 = vmul.f32 %v950, %v469
  %v956 = vmul.f32 %v948, %v470
  %v957 = vmul.f32 %v946, %v471
  %v958 = vmul.f32 %v944, %v472
  %v959 = vmul.f32 %v942, %v473
  %v960 = vmul.f32 %v940, %v474
  %v961 = vmul.f32 %v938, %v475
  %v962 = vmul.f32 %v953, %v468
  %v963 = vmul.f32 %v951, %v469
  %v964 = vmul.f32 %v949, %v470
  %v965 = vmul.f32 %v947, %v471
  %v966 = vmul.f32 %v945, %v472
  %v967 = vmul.f32 %v943, %v473
  %v968 = vmul.f32 %v941, %v474
  %v969 = vmul.f32 %v939, %v475
  %970 = vrot.lane.b32.xlu0 %v740, 127
  %v971 = vpop.permute.xlu0 %970
  %972 = vrot.lane.b32.xlu0 %v743, 127
  %v973 = vpop.permute.xlu0 %972
  %974 = vrot.lane.b32.xlu0 %v763, 127
  %v975 = vpop.permute.xlu0 %974
  %976 = vrot.lane.b32.xlu0 %v766, 127
  %v977 = vpop.permute.xlu0 %976
  %978 = vrot.lane.b32.xlu0 %v786, 127
  %v979 = vpop.permute.xlu0 %978
  %980 = vrot.lane.b32.xlu0 %v789, 127
  %v981 = vpop.permute.xlu0 %980
  %982 = vrot.lane.b32.xlu0 %v809, 127
  %v983 = vpop.permute.xlu0 %982
  %984 = vrot.lane.b32.xlu0 %v812, 127
  %v985 = vpop.permute.xlu0 %984
  %986 = vrot.lane.b32.xlu0 %v832, 127
  %v987 = vpop.permute.xlu0 %986
  %988 = vrot.lane.b32.xlu0 %v835, 127
  %v989 = vpop.permute.xlu0 %988
  %990 = vrot.lane.b32.xlu0 %v855, 127
  %v991 = vpop.permute.xlu0 %990
  %992 = vrot.lane.b32.xlu0 %v858, 127
  %v993 = vpop.permute.xlu0 %992
  %994 = vrot.lane.b32.xlu0 %v878, 127
  %v995 = vpop.permute.xlu0 %994
  %996 = vrot.lane.b32.xlu0 %v881, 127
  %v997 = vpop.permute.xlu0 %996
  %998 = vrot.lane.b32.xlu0 %v901, 127
  %v999 = vpop.permute.xlu0 %998
  %1000 = vrot.lane.b32.xlu0 %v904, 127
  %v1001 = vpop.permute.xlu0 %1000
  %v1002 = vsel %vm596, %v995, %v999
  %v1003 = vsel %vm596, %v997, %v1001
  %v1004 = vsel %vm596, %v991, %v995
  %v1005 = vsel %vm596, %v993, %v997
  %v1006 = vsel %vm596, %v987, %v991
  %v1007 = vsel %vm596, %v989, %v993
  %v1008 = vsel %vm596, %v983, %v987
  %v1009 = vsel %vm596, %v985, %v989
  %v1010 = vsel %vm596, %v979, %v983
  %v1011 = vsel %vm596, %v981, %v985
  %v1012 = vsel %vm596, %v975, %v979
  %v1013 = vsel %vm596, %v977, %v981
  %v1014 = vsel %vm596, %v971, %v975
  %v1015 = vsel %vm596, %v973, %v977
  %v1016 = vsel %vm596, %v999, %v971
  %v1017 = vsel %vm596, %v1001, %v973
  %v1018 = vmul.f32 %v1014, %v653
  %v1019 = vmul.f32 %v1012, %v654
  %v1020 = vmul.f32 %v1010, %v655
  %v1021 = vmul.f32 %v1008, %v656
  %v1022 = vmul.f32 %v1006, %v657
  %v1023 = vmul.f32 %v1004, %v658
  %v1024 = vmul.f32 %v1002, %v659
  %v1025 = vmul.f32 %v1016, %v660
  %v1026 = vmul.f32 %v1015, %v653
  %v1027 = vmul.f32 %v1013, %v654
  %v1028 = vmul.f32 %v1011, %v655
  %v1029 = vmul.f32 %v1009, %v656
  %v1030 = vmul.f32 %v1007, %v657
  %v1031 = vmul.f32 %v1005, %v658
  %v1032 = vmul.f32 %v1003, %v659
  %v1033 = vmul.f32 %v1017, %v660
  %v1034 = vld [vmem:[%s15] sm:$0xff]
  %v1035 = vld [vmem:[%s15 + $0x8] sm:$0xff]
  %v1036 = vld [vmem:[%s17] sm:$0xff]
  %v1037 = vld [vmem:[%s17 + $0x8] sm:$0xff]
  %1039 = vset.pattern.permute.xlu0 0
  %1040 = vperm.xlu0 %1039, %v1036
  %v1041 = vpop.permute.xlu0 %1040
  %1044 = vset.pattern.permute.xlu0 0
  %1045 = vperm.xlu0 %1044, %v1037
  %v1046 = vpop.permute.xlu0 %1045
  %vm1048 = vcmask 392192
  %v1050 = vsel %vm1048, %v1034, 0
  %v1053 = vsel %vm1048, %v1035, 0
  %1055 = vmatpush.msra.mxu0 0.0
  %1056 = vmatpush.msra.mxu0 0.0
  %1057 = vmatpush.msra.mxu0 0.0
  %1058 = vmatpush.msra.mxu0 0.0
  %1059 = vmatpush.msra.mxu0 0.0
  %1060 = vmatpush.msra.mxu0 0.0
  %1061 = vmatpush.msra.mxu0 0.0
  %1062 = vmatpush.msra.mxu0 0.0
  %1063 = vmatpush.msra.mxu0 0.0
  %1064 = vmatpush.msra.mxu0 0.0
  %1065 = vmatpush.msra.mxu0 %v1026
  %1066 = vmatpush.msra.mxu0 %v1018
  %1067 = vmatpush.msra.mxu0 %v743
  %1068 = vmatpush.msra.mxu0 %v740
  %1069 = vmatpush.msra.mxu0 %v962
  %1070 = vmatpush.msra.mxu0 %v954
  %1071 = vmatmul.f32.gmra.mxu0 %v1050
  %v1072 = vpop.f32.mrf.mxu0
  %v1073 = vadd.f32 %v1041, %v1072
  %1074 = vmatmul.f32.gmra.mxu0 %v1053
  %v1075 = vpop.f32.mrf.mxu0
  %v1076 = vadd.f32 %v1046, %v1075
  %1077 = vdwg.mxu0
  %1078 = vmatpush.msra.mxu0 0.0
  %1079 = vmatpush.msra.mxu0 0.0
  %1080 = vmatpush.msra.mxu0 0.0
  %1081 = vmatpush.msra.mxu0 0.0
  %1082 = vmatpush.msra.mxu0 0.0
  %1083 = vmatpush.msra.mxu0 0.0
  %1084 = vmatpush.msra.mxu0 0.0
  %1085 = vmatpush.msra.mxu0 0.0
  %1086 = vmatpush.msra.mxu0 0.0
  %1087 = vmatpush.msra.mxu0 0.0
  %1088 = vmatpush.msra.mxu0 %v1027
  %1089 = vmatpush.msra.mxu0 %v1019
  %1090 = vmatpush.msra.mxu0 %v766
  %1091 = vmatpush.msra.mxu0 %v763
  %1092 = vmatpush.msra.mxu0 %v963
  %1093 = vmatpush.msra.mxu0 %v955
  %1094 = vmatmul.f32.gmra.mxu0 %v1050
  %v1095 = vpop.f32.mrf.mxu0
  %v1096 = vadd.f32 %v1041, %v1095
  %1097 = vmatmul.f32.gmra.mxu0 %v1053
  %v1098 = vpop.f32.mrf.mxu0
  %v1099 = vadd.f32 %v1046, %v1098
  %1100 = vdwg.mxu0
  %1101 = vmatpush.msra.mxu0 0.0
  %1102 = vmatpush.msra.mxu0 0.0
  %1103 = vmatpush.msra.mxu0 0.0
  %1104 = vmatpush.msra.mxu0 0.0
  %1105 = vmatpush.msra.mxu0 0.0
  %1106 = vmatpush.msra.mxu0 0.0
  %1107 = vmatpush.msra.mxu0 0.0
  %1108 = vmatpush.msra.mxu0 0.0
  %1109 = vmatpush.msra.mxu0 0.0
  %1110 = vmatpush.msra.mxu0 0.0
  %1111 = vmatpush.msra.mxu0 %v1028
  %1112 = vmatpush.msra.mxu0 %v1020
  %1113 = vmatpush.msra.mxu0 %v789
  %1114 = vmatpush.msra.mxu0 %v786
  %1115 = vmatpush.msra.mxu0 %v964
  %1116 = vmatpush.msra.mxu0 %v956
  %1117 = vmatmul.f32.gmra.mxu0 %v1050
  %v1118 = vpop.f32.mrf.mxu0
  %v1119 = vadd.f32 %v1041, %v1118
  %1120 = vmatmul.f32.gmra.mxu0 %v1053
  %v1121 = vpop.f32.mrf.mxu0
  %v1122 = vadd.f32 %v1046, %v1121
  %1123 = vdwg.mxu0
  %1124 = vmatpush.msra.mxu0 0.0
  %1125 = vmatpush.msra.mxu0 0.0
  %1126 = vmatpush.msra.mxu0 0.0
  %1127 = vmatpush.msra.mxu0 0.0
  %1128 = vmatpush.msra.mxu0 0.0
  %1129 = vmatpush.msra.mxu0 0.0
  %1130 = vmatpush.msra.mxu0 0.0
  %1131 = vmatpush.msra.mxu0 0.0
  %1132 = vmatpush.msra.mxu0 0.0
  %1133 = vmatpush.msra.mxu0 0.0
  %1134 = vmatpush.msra.mxu0 %v1029
  %1135 = vmatpush.msra.mxu0 %v1021
  %1136 = vmatpush.msra.mxu0 %v812
  %1137 = vmatpush.msra.mxu0 %v809
  %1138 = vmatpush.msra.mxu0 %v965
  %1139 = vmatpush.msra.mxu0 %v957
  %1140 = vmatmul.f32.gmra.mxu0 %v1050
  %v1141 = vpop.f32.mrf.mxu0
  %v1142 = vadd.f32 %v1041, %v1141
  %1143 = vmatmul.f32.gmra.mxu0 %v1053
  %v1144 = vpop.f32.mrf.mxu0
  %v1145 = vadd.f32 %v1046, %v1144
  %1146 = vdwg.mxu0
  %1147 = vmatpush.msra.mxu0 0.0
  %1148 = vmatpush.msra.mxu0 0.0
  %1149 = vmatpush.msra.mxu0 0.0
  %1150 = vmatpush.msra.mxu0 0.0
  %1151 = vmatpush.msra.mxu0 0.0
  %1152 = vmatpush.msra.mxu0 0.0
  %1153 = vmatpush.msra.mxu0 0.0
  %1154 = vmatpush.msra.mxu0 0.0
  %1155 = vmatpush.msra.mxu0 0.0
  %1156 = vmatpush.msra.mxu0 0.0
  %1157 = vmatpush.msra.mxu0 %v1030
  %1158 = vmatpush.msra.mxu0 %v1022
  %1159 = vmatpush.msra.mxu0 %v835
  %1160 = vmatpush.msra.mxu0 %v832
  %1161 = vmatpush.msra.mxu0 %v966
  %1162 = vmatpush.msra.mxu0 %v958
  %1163 = vmatmul.f32.gmra.mxu0 %v1050
  %v1164 = vpop.f32.mrf.mxu0
  %v1165 = vadd.f32 %v1041, %v1164
  %1166 = vmatmul.f32.gmra.mxu0 %v1053
  %v1167 = vpop.f32.mrf.mxu0
  %v1168 = vadd.f32 %v1046, %v1167
  %1169 = vdwg.mxu0
  %1170 = vmatpush.msra.mxu0 0.0
  %1171 = vmatpush.msra.mxu0 0.0
  %1172 = vmatpush.msra.mxu0 0.0
  %1173 = vmatpush.msra.mxu0 0.0
  %1174 = vmatpush.msra.mxu0 0.0
  %1175 = vmatpush.msra.mxu0 0.0
  %1176 = vmatpush.msra.mxu0 0.0
  %1177 = vmatpush.msra.mxu0 0.0
  %1178 = vmatpush.msra.mxu0 0.0
  %1179 = vmatpush.msra.mxu0 0.0
  %1180 = vmatpush.msra.mxu0 %v1031
  %1181 = vmatpush.msra.mxu0 %v1023
  %1182 = vmatpush.msra.mxu0 %v858
  %1183 = vmatpush.msra.mxu0 %v855
  %1184 = vmatpush.msra.mxu0 %v967
  %1185 = vmatpush.msra.mxu0 %v959
  %1186 = vmatmul.f32.gmra.mxu0 %v1050
  %v1187 = vpop.f32.mrf.mxu0
  %v1188 = vadd.f32 %v1041, %v1187
  %1189 = vmatmul.f32.gmra.mxu0 %v1053
  %v1190 = vpop.f32.mrf.mxu0
  %v1191 = vadd.f32 %v1046, %v1190
  %1192 = vdwg.mxu0
  %1193 = vmatpush.msra.mxu0 0.0
  %1194 = vmatpush.msra.mxu0 0.0
  %1195 = vmatpush.msra.mxu0 0.0
  %1196 = vmatpush.msra.mxu0 0.0
  %1197 = vmatpush.msra.mxu0 0.0
  %1198 = vmatpush.msra.mxu0 0.0
  %1199 = vmatpush.msra.mxu0 0.0
  %1200 = vmatpush.msra.mxu0 0.0
  %1201 = vmatpush.msra.mxu0 0.0
  %1202 = vmatpush.msra.mxu0 0.0
  %1203 = vmatpush.msra.mxu0 %v1032
  %1204 = vmatpush.msra.mxu0 %v1024
  %1205 = vmatpush.msra.mxu0 %v881
  %1206 = vmatpush.msra.mxu0 %v878
  %1207 = vmatpush.msra.mxu0 %v968
  %1208 = vmatpush.msra.mxu0 %v960
  %1209 = vmatmul.f32.gmra.mxu0 %v1050
  %v1210 = vpop.f32.mrf.mxu0
  %v1211 = vadd.f32 %v1041, %v1210
  %1212 = vmatmul.f32.gmra.mxu0 %v1053
  %v1213 = vpop.f32.mrf.mxu0
  %v1214 = vadd.f32 %v1046, %v1213
  %1215 = vdwg.mxu0
  %1216 = vmatpush.msra.mxu0 0.0
  %1217 = vmatpush.msra.mxu0 0.0
  %1218 = vmatpush.msra.mxu0 0.0
  %1219 = vmatpush.msra.mxu0 0.0
  %1220 = vmatpush.msra.mxu0 0.0
  %1221 = vmatpush.msra.mxu0 0.0
  %1222 = vmatpush.msra.mxu0 0.0
  %1223 = vmatpush.msra.mxu0 0.0
  %1224 = vmatpush.msra.mxu0 0.0
  %1225 = vmatpush.msra.mxu0 0.0
  %1226 = vmatpush.msra.mxu0 %v1033
  %1227 = vmatpush.msra.mxu0 %v1025
  %1228 = vmatpush.msra.mxu0 %v904
  %1229 = vmatpush.msra.mxu0 %v901
  %1230 = vmatpush.msra.mxu0 %v969
  %1231 = vmatpush.msra.mxu0 %v961
  %1232 = vmatmul.f32.gmra.mxu0 %v1050
  %v1233 = vpop.f32.mrf.mxu0
  %v1234 = vadd.f32 %v1041, %v1233
  %1235 = vmatmul.f32.gmra.mxu0 %v1053
  %v1236 = vpop.f32.mrf.mxu0
  %v1237 = vadd.f32 %v1046, %v1236
  %1238 = vdwg.mxu0
  %v1239 = vld [vmem:[%s3] sm:$0xff]
  %v1240 = vld [vmem:[%s3 + $0x8] sm:$0xff]
  %v1241 = vld [vmem:[%s3 + $0x10] sm:$0xff]
  %v1242 = vld [vmem:[%s3 + $0x18] sm:$0xff]
  %v1243 = vld [vmem:[%s3 + $0x20] sm:$0xff]
  %v1244 = vld [vmem:[%s3 + $0x28] sm:$0xff]
  %v1245 = vld [vmem:[%s3 + $0x30] sm:$0xff]
  %v1246 = vld [vmem:[%s3 + $0x38] sm:$0xff]
  %v1247 = vld [vmem:[%s3 + $0x40] sm:$0xff]
  %v1248 = vld [vmem:[%s3 + $0x48] sm:$0xff]
  %v1249 = vld [vmem:[%s3 + $0x50] sm:$0xff]
  %v1250 = vld [vmem:[%s3 + $0x58] sm:$0xff]
  %v1251 = vld [vmem:[%s3 + $0x60] sm:$0xff]
  %v1252 = vld [vmem:[%s3 + $0x68] sm:$0xff]
  %v1253 = vld [vmem:[%s3 + $0x70] sm:$0xff]
  %v1254 = vld [vmem:[%s3 + $0x78] sm:$0xff]
  %v1255 = vld [vmem:[%s3 + $0x80] sm:$0xff]
  %v1256 = vld [vmem:[%s3 + $0x88] sm:$0xff]
  %v1257 = vld [vmem:[%s3 + $0x90] sm:$0xff]
  %v1258 = vld [vmem:[%s3 + $0x98] sm:$0xff]
  %v1259 = vld [vmem:[%s3 + $0xa0] sm:$0xff]
  %v1260 = vld [vmem:[%s3 + $0xa8] sm:$0xff]
  %v1261 = vld [vmem:[%s3 + $0xb0] sm:$0xff]
  %v1262 = vld [vmem:[%s3 + $0xb8] sm:$0xff]
  %v1263 = vld [vmem:[%s3 + $0xc0] sm:$0xff]
  %v1264 = vld [vmem:[%s3 + $0xc8] sm:$0xff]
  %v1265 = vld [vmem:[%s3 + $0xd0] sm:$0xff]
  %v1266 = vld [vmem:[%s3 + $0xd8] sm:$0xff]
  %v1267 = vld [vmem:[%s3 + $0xe0] sm:$0xff]
  %v1268 = vld [vmem:[%s3 + $0xe8] sm:$0xff]
  %v1269 = vld [vmem:[%s3 + $0xf0] sm:$0xff]
  %v1270 = vld [vmem:[%s3 + $0xf8] sm:$0xff]
  %v1271 = vld [vmem:[%s3 + $0x100] sm:$0xff]
  %v1272 = vld [vmem:[%s3 + $0x108] sm:$0xff]
  %v1273 = vld [vmem:[%s3 + $0x110] sm:$0xff]
  %v1274 = vld [vmem:[%s3 + $0x118] sm:$0xff]
  %v1275 = vld [vmem:[%s3 + $0x120] sm:$0xff]
  %v1276 = vld [vmem:[%s3 + $0x128] sm:$0xff]
  %v1277 = vld [vmem:[%s3 + $0x130] sm:$0xff]
  %v1278 = vld [vmem:[%s3 + $0x138] sm:$0xff]
  %v1279 = vld [vmem:[%s3 + $0x140] sm:$0xff]
  %v1280 = vld [vmem:[%s3 + $0x148] sm:$0xff]
  %v1281 = vld [vmem:[%s3 + $0x150] sm:$0xff]
  %v1282 = vld [vmem:[%s3 + $0x158] sm:$0xff]
  %v1283 = vld [vmem:[%s3 + $0x160] sm:$0xff]
  %v1284 = vld [vmem:[%s3 + $0x168] sm:$0xff]
  %v1285 = vld [vmem:[%s3 + $0x170] sm:$0xff]
  %v1286 = vld [vmem:[%s3 + $0x178] sm:$0xff]
  %v1287 = vld [vmem:[%s3 + $0x180] sm:$0xff]
  %v1288 = vld [vmem:[%s3 + $0x188] sm:$0xff]
  %v1289 = vld [vmem:[%s3 + $0x190] sm:$0xff]
  %v1290 = vld [vmem:[%s3 + $0x198] sm:$0xff]
  %v1291 = vld [vmem:[%s3 + $0x1a0] sm:$0xff]
  %v1292 = vld [vmem:[%s3 + $0x1a8] sm:$0xff]
  %v1293 = vld [vmem:[%s3 + $0x1b0] sm:$0xff]
  %v1294 = vld [vmem:[%s3 + $0x1b8] sm:$0xff]
  %v1295 = vld [vmem:[%s3 + $0x1c0] sm:$0xff]
  %v1296 = vld [vmem:[%s3 + $0x1c8] sm:$0xff]
  %v1297 = vld [vmem:[%s3 + $0x1d0] sm:$0xff]
  %v1298 = vld [vmem:[%s3 + $0x1d8] sm:$0xff]
  %v1299 = vld [vmem:[%s3 + $0x1e0] sm:$0xff]
  %v1300 = vld [vmem:[%s3 + $0x1e8] sm:$0xff]
  %v1301 = vld [vmem:[%s3 + $0x1f0] sm:$0xff]
  %v1302 = vld [vmem:[%s3 + $0x1f8] sm:$0xff]
  %v1303 = vld [vmem:[%s3 + $0x200] sm:$0xff]
  %v1304 = vld [vmem:[%s3 + $0x208] sm:$0xff]
  %v1305 = vld [vmem:[%s3 + $0x210] sm:$0xff]
  %v1306 = vld [vmem:[%s3 + $0x218] sm:$0xff]
  %v1307 = vld [vmem:[%s3 + $0x220] sm:$0xff]
  %v1308 = vld [vmem:[%s3 + $0x228] sm:$0xff]
  %v1309 = vld [vmem:[%s3 + $0x230] sm:$0xff]
  %v1310 = vld [vmem:[%s3 + $0x238] sm:$0xff]
  %v1311 = vld [vmem:[%s3 + $0x240] sm:$0xff]
  %v1312 = vld [vmem:[%s3 + $0x248] sm:$0xff]
  %v1313 = vld [vmem:[%s3 + $0x250] sm:$0xff]
  %v1314 = vld [vmem:[%s3 + $0x258] sm:$0xff]
  %v1315 = vld [vmem:[%s3 + $0x260] sm:$0xff]
  %v1316 = vld [vmem:[%s3 + $0x268] sm:$0xff]
  %v1317 = vld [vmem:[%s3 + $0x270] sm:$0xff]
  %v1318 = vld [vmem:[%s3 + $0x278] sm:$0xff]
  %v1319 = vld [vmem:[%s3 + $0x280] sm:$0xff]
  %v1320 = vld [vmem:[%s3 + $0x288] sm:$0xff]
  %v1321 = vld [vmem:[%s3 + $0x290] sm:$0xff]
  %v1322 = vld [vmem:[%s3 + $0x298] sm:$0xff]
  %v1323 = vld [vmem:[%s3 + $0x2a0] sm:$0xff]
  %v1324 = vld [vmem:[%s3 + $0x2a8] sm:$0xff]
  %v1325 = vld [vmem:[%s3 + $0x2b0] sm:$0xff]
  %v1326 = vld [vmem:[%s3 + $0x2b8] sm:$0xff]
  %v1327 = vld [vmem:[%s3 + $0x2c0] sm:$0xff]
  %v1328 = vld [vmem:[%s3 + $0x2c8] sm:$0xff]
  %v1329 = vld [vmem:[%s3 + $0x2d0] sm:$0xff]
  %v1330 = vld [vmem:[%s3 + $0x2d8] sm:$0xff]
  %v1331 = vld [vmem:[%s3 + $0x2e0] sm:$0xff]
  %v1332 = vld [vmem:[%s3 + $0x2e8] sm:$0xff]
  %v1333 = vld [vmem:[%s3 + $0x2f0] sm:$0xff]
  %v1334 = vld [vmem:[%s3 + $0x2f8] sm:$0xff]
  %v1335 = vld [vmem:[%s3 + $0x300] sm:$0xff]
  %v1336 = vld [vmem:[%s3 + $0x308] sm:$0xff]
  %v1337 = vld [vmem:[%s3 + $0x310] sm:$0xff]
  %v1338 = vld [vmem:[%s3 + $0x318] sm:$0xff]
  %v1339 = vld [vmem:[%s3 + $0x320] sm:$0xff]
  %v1340 = vld [vmem:[%s3 + $0x328] sm:$0xff]
  %v1341 = vld [vmem:[%s3 + $0x330] sm:$0xff]
  %v1342 = vld [vmem:[%s3 + $0x338] sm:$0xff]
  %v1343 = vld [vmem:[%s3 + $0x340] sm:$0xff]
  %v1344 = vld [vmem:[%s3 + $0x348] sm:$0xff]
  %v1345 = vld [vmem:[%s3 + $0x350] sm:$0xff]
  %v1346 = vld [vmem:[%s3 + $0x358] sm:$0xff]
  %v1347 = vld [vmem:[%s3 + $0x360] sm:$0xff]
  %v1348 = vld [vmem:[%s3 + $0x368] sm:$0xff]
  %v1349 = vld [vmem:[%s3 + $0x370] sm:$0xff]
  %v1350 = vld [vmem:[%s3 + $0x378] sm:$0xff]
  %v1351 = vld [vmem:[%s3 + $0x380] sm:$0xff]
  %v1352 = vld [vmem:[%s3 + $0x388] sm:$0xff]
  %v1353 = vld [vmem:[%s3 + $0x390] sm:$0xff]
  %v1354 = vld [vmem:[%s3 + $0x398] sm:$0xff]
  %v1355 = vld [vmem:[%s3 + $0x3a0] sm:$0xff]
  %v1356 = vld [vmem:[%s3 + $0x3a8] sm:$0xff]
  %v1357 = vld [vmem:[%s3 + $0x3b0] sm:$0xff]
  %v1358 = vld [vmem:[%s3 + $0x3b8] sm:$0xff]
  %v1359 = vld [vmem:[%s3 + $0x3c0] sm:$0xff]
  %v1360 = vld [vmem:[%s3 + $0x3c8] sm:$0xff]
  %v1361 = vld [vmem:[%s3 + $0x3d0] sm:$0xff]
  %v1362 = vld [vmem:[%s3 + $0x3d8] sm:$0xff]
  %v1363 = vld [vmem:[%s3 + $0x3e0] sm:$0xff]
  %v1364 = vld [vmem:[%s3 + $0x3e8] sm:$0xff]
  %v1365 = vld [vmem:[%s3 + $0x3f0] sm:$0xff]
  %v1366 = vld [vmem:[%s3 + $0x3f8] sm:$0xff]
  %v1367 = vld [vmem:[%s3 + $0x400] sm:$0xff]
  %v1368 = vld [vmem:[%s3 + $0x408] sm:$0xff]
  %v1369 = vld [vmem:[%s3 + $0x410] sm:$0xff]
  %v1370 = vld [vmem:[%s3 + $0x418] sm:$0xff]
  %v1371 = vld [vmem:[%s3 + $0x420] sm:$0xff]
  %v1372 = vld [vmem:[%s3 + $0x428] sm:$0xff]
  %v1373 = vld [vmem:[%s3 + $0x430] sm:$0xff]
  %v1374 = vld [vmem:[%s3 + $0x438] sm:$0xff]
  %v1375 = vld [vmem:[%s3 + $0x440] sm:$0xff]
  %v1376 = vld [vmem:[%s3 + $0x448] sm:$0xff]
  %v1377 = vld [vmem:[%s3 + $0x450] sm:$0xff]
  %v1378 = vld [vmem:[%s3 + $0x458] sm:$0xff]
  %v1379 = vld [vmem:[%s3 + $0x460] sm:$0xff]
  %v1380 = vld [vmem:[%s3 + $0x468] sm:$0xff]
  %v1381 = vld [vmem:[%s3 + $0x470] sm:$0xff]
  %v1382 = vld [vmem:[%s3 + $0x478] sm:$0xff]
  %v1383 = vld [vmem:[%s3 + $0x480] sm:$0xff]
  %v1384 = vld [vmem:[%s3 + $0x488] sm:$0xff]
  %v1385 = vld [vmem:[%s3 + $0x490] sm:$0xff]
  %v1386 = vld [vmem:[%s3 + $0x498] sm:$0xff]
  %v1387 = vld [vmem:[%s3 + $0x4a0] sm:$0xff]
  %v1388 = vld [vmem:[%s3 + $0x4a8] sm:$0xff]
  %v1389 = vld [vmem:[%s3 + $0x4b0] sm:$0xff]
  %v1390 = vld [vmem:[%s3 + $0x4b8] sm:$0xff]
  %v1391 = vld [vmem:[%s3 + $0x4c0] sm:$0xff]
  %v1392 = vld [vmem:[%s3 + $0x4c8] sm:$0xff]
  %v1393 = vld [vmem:[%s3 + $0x4d0] sm:$0xff]
  %v1394 = vld [vmem:[%s3 + $0x4d8] sm:$0xff]
  %v1395 = vld [vmem:[%s3 + $0x4e0] sm:$0xff]
  %v1396 = vld [vmem:[%s3 + $0x4e8] sm:$0xff]
  %v1397 = vld [vmem:[%s3 + $0x4f0] sm:$0xff]
  %v1398 = vld [vmem:[%s3 + $0x4f8] sm:$0xff]
  %v1399 = vld [vmem:[%s3 + $0x500] sm:$0xff]
  %v1400 = vld [vmem:[%s3 + $0x508] sm:$0xff]
  %v1401 = vld [vmem:[%s3 + $0x510] sm:$0xff]
  %v1402 = vld [vmem:[%s3 + $0x518] sm:$0xff]
  %v1403 = vld [vmem:[%s3 + $0x520] sm:$0xff]
  %v1404 = vld [vmem:[%s3 + $0x528] sm:$0xff]
  %v1405 = vld [vmem:[%s3 + $0x530] sm:$0xff]
  %v1406 = vld [vmem:[%s3 + $0x538] sm:$0xff]
  %v1407 = vld [vmem:[%s3 + $0x540] sm:$0xff]
  %v1408 = vld [vmem:[%s3 + $0x548] sm:$0xff]
  %v1409 = vld [vmem:[%s3 + $0x550] sm:$0xff]
  %v1410 = vld [vmem:[%s3 + $0x558] sm:$0xff]
  %v1411 = vld [vmem:[%s3 + $0x560] sm:$0xff]
  %v1412 = vld [vmem:[%s3 + $0x568] sm:$0xff]
  %v1413 = vld [vmem:[%s3 + $0x570] sm:$0xff]
  %v1414 = vld [vmem:[%s3 + $0x578] sm:$0xff]
  %v1415 = vld [vmem:[%s3 + $0x580] sm:$0xff]
  %v1416 = vld [vmem:[%s3 + $0x588] sm:$0xff]
  %v1417 = vld [vmem:[%s3 + $0x590] sm:$0xff]
  %v1418 = vld [vmem:[%s3 + $0x598] sm:$0xff]
  %v1419 = vld [vmem:[%s3 + $0x5a0] sm:$0xff]
  %v1420 = vld [vmem:[%s3 + $0x5a8] sm:$0xff]
  %v1421 = vld [vmem:[%s3 + $0x5b0] sm:$0xff]
  %v1422 = vld [vmem:[%s3 + $0x5b8] sm:$0xff]
  %v1423 = vld [vmem:[%s3 + $0x5c0] sm:$0xff]
  %v1424 = vld [vmem:[%s3 + $0x5c8] sm:$0xff]
  %v1425 = vld [vmem:[%s3 + $0x5d0] sm:$0xff]
  %v1426 = vld [vmem:[%s3 + $0x5d8] sm:$0xff]
  %v1427 = vld [vmem:[%s3 + $0x5e0] sm:$0xff]
  %v1428 = vld [vmem:[%s3 + $0x5e8] sm:$0xff]
  %v1429 = vld [vmem:[%s3 + $0x5f0] sm:$0xff]
  %v1430 = vld [vmem:[%s3 + $0x5f8] sm:$0xff]
  %v1431 = vld [vmem:[%s3 + $0x600] sm:$0xff]
  %v1432 = vld [vmem:[%s3 + $0x608] sm:$0xff]
  %v1433 = vld [vmem:[%s3 + $0x610] sm:$0xff]
  %v1434 = vld [vmem:[%s3 + $0x618] sm:$0xff]
  %v1435 = vld [vmem:[%s3 + $0x620] sm:$0xff]
  %v1436 = vld [vmem:[%s3 + $0x628] sm:$0xff]
  %v1437 = vld [vmem:[%s3 + $0x630] sm:$0xff]
  %v1438 = vld [vmem:[%s3 + $0x638] sm:$0xff]
  %v1439 = vld [vmem:[%s3 + $0x640] sm:$0xff]
  %v1440 = vld [vmem:[%s3 + $0x648] sm:$0xff]
  %v1441 = vld [vmem:[%s3 + $0x650] sm:$0xff]
  %v1442 = vld [vmem:[%s3 + $0x658] sm:$0xff]
  %v1443 = vld [vmem:[%s3 + $0x660] sm:$0xff]
  %v1444 = vld [vmem:[%s3 + $0x668] sm:$0xff]
  %v1445 = vld [vmem:[%s3 + $0x670] sm:$0xff]
  %v1446 = vld [vmem:[%s3 + $0x678] sm:$0xff]
  %v1447 = vld [vmem:[%s3 + $0x680] sm:$0xff]
  %v1448 = vld [vmem:[%s3 + $0x688] sm:$0xff]
  %v1449 = vld [vmem:[%s3 + $0x690] sm:$0xff]
  %v1450 = vld [vmem:[%s3 + $0x698] sm:$0xff]
  %v1451 = vld [vmem:[%s3 + $0x6a0] sm:$0xff]
  %v1452 = vld [vmem:[%s3 + $0x6a8] sm:$0xff]
  %v1453 = vld [vmem:[%s3 + $0x6b0] sm:$0xff]
  %v1454 = vld [vmem:[%s3 + $0x6b8] sm:$0xff]
  %v1455 = vld [vmem:[%s3 + $0x6c0] sm:$0xff]
  %v1456 = vld [vmem:[%s3 + $0x6c8] sm:$0xff]
  %v1457 = vld [vmem:[%s3 + $0x6d0] sm:$0xff]
  %v1458 = vld [vmem:[%s3 + $0x6d8] sm:$0xff]
  %v1459 = vld [vmem:[%s3 + $0x6e0] sm:$0xff]
  %v1460 = vld [vmem:[%s3 + $0x6e8] sm:$0xff]
  %v1461 = vld [vmem:[%s3 + $0x6f0] sm:$0xff]
  %v1462 = vld [vmem:[%s3 + $0x6f8] sm:$0xff]
  %v1463 = vld [vmem:[%s3 + $0x700] sm:$0xff]
  %v1464 = vld [vmem:[%s3 + $0x708] sm:$0xff]
  %v1465 = vld [vmem:[%s3 + $0x710] sm:$0xff]
  %v1466 = vld [vmem:[%s3 + $0x718] sm:$0xff]
  %v1467 = vld [vmem:[%s3 + $0x720] sm:$0xff]
  %v1468 = vld [vmem:[%s3 + $0x728] sm:$0xff]
  %v1469 = vld [vmem:[%s3 + $0x730] sm:$0xff]
  %v1470 = vld [vmem:[%s3 + $0x738] sm:$0xff]
  %v1471 = vld [vmem:[%s3 + $0x740] sm:$0xff]
  %v1472 = vld [vmem:[%s3 + $0x748] sm:$0xff]
  %v1473 = vld [vmem:[%s3 + $0x750] sm:$0xff]
  %v1474 = vld [vmem:[%s3 + $0x758] sm:$0xff]
  %v1475 = vld [vmem:[%s3 + $0x760] sm:$0xff]
  %v1476 = vld [vmem:[%s3 + $0x768] sm:$0xff]
  %v1477 = vld [vmem:[%s3 + $0x770] sm:$0xff]
  %v1478 = vld [vmem:[%s3 + $0x778] sm:$0xff]
  %v1479 = vld [vmem:[%s3 + $0x780] sm:$0xff]
  %v1480 = vld [vmem:[%s3 + $0x788] sm:$0xff]
  %v1481 = vld [vmem:[%s3 + $0x790] sm:$0xff]
  %v1482 = vld [vmem:[%s3 + $0x798] sm:$0xff]
  %v1483 = vld [vmem:[%s3 + $0x7a0] sm:$0xff]
  %v1484 = vld [vmem:[%s3 + $0x7a8] sm:$0xff]
  %v1485 = vld [vmem:[%s3 + $0x7b0] sm:$0xff]
  %v1486 = vld [vmem:[%s3 + $0x7b8] sm:$0xff]
  %v1487 = vld [vmem:[%s3 + $0x7c0] sm:$0xff]
  %v1488 = vld [vmem:[%s3 + $0x7c8] sm:$0xff]
  %v1489 = vld [vmem:[%s3 + $0x7d0] sm:$0xff]
  %v1490 = vld [vmem:[%s3 + $0x7d8] sm:$0xff]
  %v1491 = vld [vmem:[%s3 + $0x7e0] sm:$0xff]
  %v1492 = vld [vmem:[%s3 + $0x7e8] sm:$0xff]
  %v1493 = vld [vmem:[%s3 + $0x7f0] sm:$0xff]
  %v1494 = vld [vmem:[%s3 + $0x7f8] sm:$0xff]
  %v1495 = vld [vmem:[%s3 + $0x800] sm:$0xff]
  %v1496 = vld [vmem:[%s3 + $0x808] sm:$0xff]
  %v1497 = vld [vmem:[%s3 + $0x810] sm:$0xff]
  %v1498 = vld [vmem:[%s3 + $0x818] sm:$0xff]
  %v1499 = vld [vmem:[%s3 + $0x820] sm:$0xff]
  %v1500 = vld [vmem:[%s3 + $0x828] sm:$0xff]
  %v1501 = vld [vmem:[%s3 + $0x830] sm:$0xff]
  %v1502 = vld [vmem:[%s3 + $0x838] sm:$0xff]
  %v1503 = vld [vmem:[%s3 + $0x840] sm:$0xff]
  %v1504 = vld [vmem:[%s3 + $0x848] sm:$0xff]
  %v1505 = vld [vmem:[%s3 + $0x850] sm:$0xff]
  %v1506 = vld [vmem:[%s3 + $0x858] sm:$0xff]
  %v1507 = vld [vmem:[%s3 + $0x860] sm:$0xff]
  %v1508 = vld [vmem:[%s3 + $0x868] sm:$0xff]
  %v1509 = vld [vmem:[%s3 + $0x870] sm:$0xff]
  %v1510 = vld [vmem:[%s3 + $0x878] sm:$0xff]
  %v1511 = vld [vmem:[%s3 + $0x880] sm:$0xff]
  %v1512 = vld [vmem:[%s3 + $0x888] sm:$0xff]
  %v1513 = vld [vmem:[%s3 + $0x890] sm:$0xff]
  %v1514 = vld [vmem:[%s3 + $0x898] sm:$0xff]
  %v1515 = vld [vmem:[%s3 + $0x8a0] sm:$0xff]
  %v1516 = vld [vmem:[%s3 + $0x8a8] sm:$0xff]
  %v1517 = vld [vmem:[%s3 + $0x8b0] sm:$0xff]
  %v1518 = vld [vmem:[%s3 + $0x8b8] sm:$0xff]
  %v1519 = vld [vmem:[%s3 + $0x8c0] sm:$0xff]
  %v1520 = vld [vmem:[%s3 + $0x8c8] sm:$0xff]
  %v1521 = vld [vmem:[%s3 + $0x8d0] sm:$0xff]
  %v1522 = vld [vmem:[%s3 + $0x8d8] sm:$0xff]
  %v1523 = vld [vmem:[%s3 + $0x8e0] sm:$0xff]
  %v1524 = vld [vmem:[%s3 + $0x8e8] sm:$0xff]
  %v1525 = vld [vmem:[%s3 + $0x8f0] sm:$0xff]
  %v1526 = vld [vmem:[%s3 + $0x8f8] sm:$0xff]
  %v1527 = vld [vmem:[%s3 + $0x900] sm:$0xff]
  %v1528 = vld [vmem:[%s3 + $0x908] sm:$0xff]
  %v1529 = vld [vmem:[%s3 + $0x910] sm:$0xff]
  %v1530 = vld [vmem:[%s3 + $0x918] sm:$0xff]
  %v1531 = vld [vmem:[%s3 + $0x920] sm:$0xff]
  %v1532 = vld [vmem:[%s3 + $0x928] sm:$0xff]
  %v1533 = vld [vmem:[%s3 + $0x930] sm:$0xff]
  %v1534 = vld [vmem:[%s3 + $0x938] sm:$0xff]
  %v1535 = vld [vmem:[%s3 + $0x940] sm:$0xff]
  %v1536 = vld [vmem:[%s3 + $0x948] sm:$0xff]
  %v1537 = vld [vmem:[%s3 + $0x950] sm:$0xff]
  %v1538 = vld [vmem:[%s3 + $0x958] sm:$0xff]
  %v1539 = vld [vmem:[%s3 + $0x960] sm:$0xff]
  %v1540 = vld [vmem:[%s3 + $0x968] sm:$0xff]
  %v1541 = vld [vmem:[%s3 + $0x970] sm:$0xff]
  %v1542 = vld [vmem:[%s3 + $0x978] sm:$0xff]
  %v1543 = vld [vmem:[%s3 + $0x980] sm:$0xff]
  %v1544 = vld [vmem:[%s3 + $0x988] sm:$0xff]
  %v1545 = vld [vmem:[%s3 + $0x990] sm:$0xff]
  %v1546 = vld [vmem:[%s3 + $0x998] sm:$0xff]
  %v1547 = vld [vmem:[%s3 + $0x9a0] sm:$0xff]
  %v1548 = vld [vmem:[%s3 + $0x9a8] sm:$0xff]
  %v1549 = vld [vmem:[%s3 + $0x9b0] sm:$0xff]
  %v1550 = vld [vmem:[%s3 + $0x9b8] sm:$0xff]
  %v1551 = vld [vmem:[%s3 + $0x9c0] sm:$0xff]
  %v1552 = vld [vmem:[%s3 + $0x9c8] sm:$0xff]
  %v1553 = vld [vmem:[%s3 + $0x9d0] sm:$0xff]
  %v1554 = vld [vmem:[%s3 + $0x9d8] sm:$0xff]
  %v1555 = vld [vmem:[%s3 + $0x9e0] sm:$0xff]
  %v1556 = vld [vmem:[%s3 + $0x9e8] sm:$0xff]
  %v1557 = vld [vmem:[%s3 + $0x9f0] sm:$0xff]
  %v1558 = vld [vmem:[%s3 + $0x9f8] sm:$0xff]
  %v1559 = vld [vmem:[%s3 + $0xa00] sm:$0xff]
  %v1560 = vld [vmem:[%s3 + $0xa08] sm:$0xff]
  %v1561 = vld [vmem:[%s3 + $0xa10] sm:$0xff]
  %v1562 = vld [vmem:[%s3 + $0xa18] sm:$0xff]
  %v1563 = vld [vmem:[%s3 + $0xa20] sm:$0xff]
  %v1564 = vld [vmem:[%s3 + $0xa28] sm:$0xff]
  %v1565 = vld [vmem:[%s3 + $0xa30] sm:$0xff]
  %v1566 = vld [vmem:[%s3 + $0xa38] sm:$0xff]
  %v1567 = vld [vmem:[%s3 + $0xa40] sm:$0xff]
  %v1568 = vld [vmem:[%s3 + $0xa48] sm:$0xff]
  %v1569 = vld [vmem:[%s3 + $0xa50] sm:$0xff]
  %v1570 = vld [vmem:[%s3 + $0xa58] sm:$0xff]
  %v1571 = vld [vmem:[%s3 + $0xa60] sm:$0xff]
  %v1572 = vld [vmem:[%s3 + $0xa68] sm:$0xff]
  %v1573 = vld [vmem:[%s3 + $0xa70] sm:$0xff]
  %v1574 = vld [vmem:[%s3 + $0xa78] sm:$0xff]
  %v1575 = vld [vmem:[%s3 + $0xa80] sm:$0xff]
  %v1576 = vld [vmem:[%s3 + $0xa88] sm:$0xff]
  %v1577 = vld [vmem:[%s3 + $0xa90] sm:$0xff]
  %v1578 = vld [vmem:[%s3 + $0xa98] sm:$0xff]
  %v1579 = vld [vmem:[%s3 + $0xaa0] sm:$0xff]
  %v1580 = vld [vmem:[%s3 + $0xaa8] sm:$0xff]
  %v1581 = vld [vmem:[%s3 + $0xab0] sm:$0xff]
  %v1582 = vld [vmem:[%s3 + $0xab8] sm:$0xff]
  %v1583 = vld [vmem:[%s3 + $0xac0] sm:$0xff]
  %v1584 = vld [vmem:[%s3 + $0xac8] sm:$0xff]
  %v1585 = vld [vmem:[%s3 + $0xad0] sm:$0xff]
  %v1586 = vld [vmem:[%s3 + $0xad8] sm:$0xff]
  %v1587 = vld [vmem:[%s3 + $0xae0] sm:$0xff]
  %v1588 = vld [vmem:[%s3 + $0xae8] sm:$0xff]
  %v1589 = vld [vmem:[%s3 + $0xaf0] sm:$0xff]
  %v1590 = vld [vmem:[%s3 + $0xaf8] sm:$0xff]
  %v1591 = vld [vmem:[%s3 + $0xb00] sm:$0xff]
  %v1592 = vld [vmem:[%s3 + $0xb08] sm:$0xff]
  %v1593 = vld [vmem:[%s3 + $0xb10] sm:$0xff]
  %v1594 = vld [vmem:[%s3 + $0xb18] sm:$0xff]
  %v1595 = vld [vmem:[%s3 + $0xb20] sm:$0xff]
  %v1596 = vld [vmem:[%s3 + $0xb28] sm:$0xff]
  %v1597 = vld [vmem:[%s3 + $0xb30] sm:$0xff]
  %v1598 = vld [vmem:[%s3 + $0xb38] sm:$0xff]
  %v1599 = vld [vmem:[%s3 + $0xb40] sm:$0xff]
  %v1600 = vld [vmem:[%s3 + $0xb48] sm:$0xff]
  %v1601 = vld [vmem:[%s3 + $0xb50] sm:$0xff]
  %v1602 = vld [vmem:[%s3 + $0xb58] sm:$0xff]
  %v1603 = vld [vmem:[%s3 + $0xb60] sm:$0xff]
  %v1604 = vld [vmem:[%s3 + $0xb68] sm:$0xff]
  %v1605 = vld [vmem:[%s3 + $0xb70] sm:$0xff]
  %v1606 = vld [vmem:[%s3 + $0xb78] sm:$0xff]
  %v1607 = vld [vmem:[%s3 + $0xb80] sm:$0xff]
  %v1608 = vld [vmem:[%s3 + $0xb88] sm:$0xff]
  %v1609 = vld [vmem:[%s3 + $0xb90] sm:$0xff]
  %v1610 = vld [vmem:[%s3 + $0xb98] sm:$0xff]
  %v1611 = vld [vmem:[%s3 + $0xba0] sm:$0xff]
  %v1612 = vld [vmem:[%s3 + $0xba8] sm:$0xff]
  %v1613 = vld [vmem:[%s3 + $0xbb0] sm:$0xff]
  %v1614 = vld [vmem:[%s3 + $0xbb8] sm:$0xff]
  %v1615 = vld [vmem:[%s3 + $0xbc0] sm:$0xff]
  %v1616 = vld [vmem:[%s3 + $0xbc8] sm:$0xff]
  %v1617 = vld [vmem:[%s3 + $0xbd0] sm:$0xff]
  %v1618 = vld [vmem:[%s3 + $0xbd8] sm:$0xff]
  %v1619 = vld [vmem:[%s3 + $0xbe0] sm:$0xff]
  %v1620 = vld [vmem:[%s3 + $0xbe8] sm:$0xff]
  %v1621 = vld [vmem:[%s3 + $0xbf0] sm:$0xff]
  %v1622 = vld [vmem:[%s3 + $0xbf8] sm:$0xff]
  %v1623 = vld [vmem:[%s3 + $0xc00] sm:$0xff]
  %v1624 = vld [vmem:[%s3 + $0xc08] sm:$0xff]
  %v1625 = vld [vmem:[%s3 + $0xc10] sm:$0xff]
  %v1626 = vld [vmem:[%s3 + $0xc18] sm:$0xff]
  %v1627 = vld [vmem:[%s3 + $0xc20] sm:$0xff]
  %v1628 = vld [vmem:[%s3 + $0xc28] sm:$0xff]
  %v1629 = vld [vmem:[%s3 + $0xc30] sm:$0xff]
  %v1630 = vld [vmem:[%s3 + $0xc38] sm:$0xff]
  %v1631 = vld [vmem:[%s3 + $0xc40] sm:$0xff]
  %v1632 = vld [vmem:[%s3 + $0xc48] sm:$0xff]
  %v1633 = vld [vmem:[%s3 + $0xc50] sm:$0xff]
  %v1634 = vld [vmem:[%s3 + $0xc58] sm:$0xff]
  %v1635 = vld [vmem:[%s3 + $0xc60] sm:$0xff]
  %v1636 = vld [vmem:[%s3 + $0xc68] sm:$0xff]
  %v1637 = vld [vmem:[%s3 + $0xc70] sm:$0xff]
  %v1638 = vld [vmem:[%s3 + $0xc78] sm:$0xff]
  %v1639 = vld [vmem:[%s3 + $0xc80] sm:$0xff]
  %v1640 = vld [vmem:[%s3 + $0xc88] sm:$0xff]
  %v1641 = vld [vmem:[%s3 + $0xc90] sm:$0xff]
  %v1642 = vld [vmem:[%s3 + $0xc98] sm:$0xff]
  %v1643 = vld [vmem:[%s3 + $0xca0] sm:$0xff]
  %v1644 = vld [vmem:[%s3 + $0xca8] sm:$0xff]
  %v1645 = vld [vmem:[%s3 + $0xcb0] sm:$0xff]
  %v1646 = vld [vmem:[%s3 + $0xcb8] sm:$0xff]
  %v1647 = vld [vmem:[%s3 + $0xcc0] sm:$0xff]
  %v1648 = vld [vmem:[%s3 + $0xcc8] sm:$0xff]
  %v1649 = vld [vmem:[%s3 + $0xcd0] sm:$0xff]
  %v1650 = vld [vmem:[%s3 + $0xcd8] sm:$0xff]
  %v1651 = vld [vmem:[%s3 + $0xce0] sm:$0xff]
  %v1652 = vld [vmem:[%s3 + $0xce8] sm:$0xff]
  %v1653 = vld [vmem:[%s3 + $0xcf0] sm:$0xff]
  %v1654 = vld [vmem:[%s3 + $0xcf8] sm:$0xff]
  %v1655 = vld [vmem:[%s3 + $0xd00] sm:$0xff]
  %v1656 = vld [vmem:[%s3 + $0xd08] sm:$0xff]
  %v1657 = vld [vmem:[%s3 + $0xd10] sm:$0xff]
  %v1658 = vld [vmem:[%s3 + $0xd18] sm:$0xff]
  %v1659 = vld [vmem:[%s3 + $0xd20] sm:$0xff]
  %v1660 = vld [vmem:[%s3 + $0xd28] sm:$0xff]
  %v1661 = vld [vmem:[%s3 + $0xd30] sm:$0xff]
  %v1662 = vld [vmem:[%s3 + $0xd38] sm:$0xff]
  %v1663 = vld [vmem:[%s3 + $0xd40] sm:$0xff]
  %v1664 = vld [vmem:[%s3 + $0xd48] sm:$0xff]
  %v1665 = vld [vmem:[%s3 + $0xd50] sm:$0xff]
  %v1666 = vld [vmem:[%s3 + $0xd58] sm:$0xff]
  %v1667 = vld [vmem:[%s3 + $0xd60] sm:$0xff]
  %v1668 = vld [vmem:[%s3 + $0xd68] sm:$0xff]
  %v1669 = vld [vmem:[%s3 + $0xd70] sm:$0xff]
  %v1670 = vld [vmem:[%s3 + $0xd78] sm:$0xff]
  %v1671 = vld [vmem:[%s3 + $0xd80] sm:$0xff]
  %v1672 = vld [vmem:[%s3 + $0xd88] sm:$0xff]
  %v1673 = vld [vmem:[%s3 + $0xd90] sm:$0xff]
  %v1674 = vld [vmem:[%s3 + $0xd98] sm:$0xff]
  %v1675 = vld [vmem:[%s3 + $0xda0] sm:$0xff]
  %v1676 = vld [vmem:[%s3 + $0xda8] sm:$0xff]
  %v1677 = vld [vmem:[%s3 + $0xdb0] sm:$0xff]
  %v1678 = vld [vmem:[%s3 + $0xdb8] sm:$0xff]
  %v1679 = vld [vmem:[%s3 + $0xdc0] sm:$0xff]
  %v1680 = vld [vmem:[%s3 + $0xdc8] sm:$0xff]
  %v1681 = vld [vmem:[%s3 + $0xdd0] sm:$0xff]
  %v1682 = vld [vmem:[%s3 + $0xdd8] sm:$0xff]
  %v1683 = vld [vmem:[%s3 + $0xde0] sm:$0xff]
  %v1684 = vld [vmem:[%s3 + $0xde8] sm:$0xff]
  %v1685 = vld [vmem:[%s3 + $0xdf0] sm:$0xff]
  %v1686 = vld [vmem:[%s3 + $0xdf8] sm:$0xff]
  %v1687 = vld [vmem:[%s3 + $0xe00] sm:$0xff]
  %v1688 = vld [vmem:[%s3 + $0xe08] sm:$0xff]
  %v1689 = vld [vmem:[%s3 + $0xe10] sm:$0xff]
  %v1690 = vld [vmem:[%s3 + $0xe18] sm:$0xff]
  %v1691 = vld [vmem:[%s3 + $0xe20] sm:$0xff]
  %v1692 = vld [vmem:[%s3 + $0xe28] sm:$0xff]
  %v1693 = vld [vmem:[%s3 + $0xe30] sm:$0xff]
  %v1694 = vld [vmem:[%s3 + $0xe38] sm:$0xff]
  %v1695 = vld [vmem:[%s3 + $0xe40] sm:$0xff]
  %v1696 = vld [vmem:[%s3 + $0xe48] sm:$0xff]
  %v1697 = vld [vmem:[%s3 + $0xe50] sm:$0xff]
  %v1698 = vld [vmem:[%s3 + $0xe58] sm:$0xff]
  %v1699 = vld [vmem:[%s3 + $0xe60] sm:$0xff]
  %v1700 = vld [vmem:[%s3 + $0xe68] sm:$0xff]
  %v1701 = vld [vmem:[%s3 + $0xe70] sm:$0xff]
  %v1702 = vld [vmem:[%s3 + $0xe78] sm:$0xff]
  %v1703 = vld [vmem:[%s3 + $0xe80] sm:$0xff]
  %v1704 = vld [vmem:[%s3 + $0xe88] sm:$0xff]
  %v1705 = vld [vmem:[%s3 + $0xe90] sm:$0xff]
  %v1706 = vld [vmem:[%s3 + $0xe98] sm:$0xff]
  %v1707 = vld [vmem:[%s3 + $0xea0] sm:$0xff]
  %v1708 = vld [vmem:[%s3 + $0xea8] sm:$0xff]
  %v1709 = vld [vmem:[%s3 + $0xeb0] sm:$0xff]
  %v1710 = vld [vmem:[%s3 + $0xeb8] sm:$0xff]
  %v1711 = vld [vmem:[%s3 + $0xec0] sm:$0xff]
  %v1712 = vld [vmem:[%s3 + $0xec8] sm:$0xff]
  %v1713 = vld [vmem:[%s3 + $0xed0] sm:$0xff]
  %v1714 = vld [vmem:[%s3 + $0xed8] sm:$0xff]
  %v1715 = vld [vmem:[%s3 + $0xee0] sm:$0xff]
  %v1716 = vld [vmem:[%s3 + $0xee8] sm:$0xff]
  %v1717 = vld [vmem:[%s3 + $0xef0] sm:$0xff]
  %v1718 = vld [vmem:[%s3 + $0xef8] sm:$0xff]
  %v1719 = vld [vmem:[%s3 + $0xf00] sm:$0xff]
  %v1720 = vld [vmem:[%s3 + $0xf08] sm:$0xff]
  %v1721 = vld [vmem:[%s3 + $0xf10] sm:$0xff]
  %v1722 = vld [vmem:[%s3 + $0xf18] sm:$0xff]
  %v1723 = vld [vmem:[%s3 + $0xf20] sm:$0xff]
  %v1724 = vld [vmem:[%s3 + $0xf28] sm:$0xff]
  %v1725 = vld [vmem:[%s3 + $0xf30] sm:$0xff]
  %v1726 = vld [vmem:[%s3 + $0xf38] sm:$0xff]
  %v1727 = vld [vmem:[%s3 + $0xf40] sm:$0xff]
  %v1728 = vld [vmem:[%s3 + $0xf48] sm:$0xff]
  %v1729 = vld [vmem:[%s3 + $0xf50] sm:$0xff]
  %v1730 = vld [vmem:[%s3 + $0xf58] sm:$0xff]
  %v1731 = vld [vmem:[%s3 + $0xf60] sm:$0xff]
  %v1732 = vld [vmem:[%s3 + $0xf68] sm:$0xff]
  %v1733 = vld [vmem:[%s3 + $0xf70] sm:$0xff]
  %v1734 = vld [vmem:[%s3 + $0xf78] sm:$0xff]
  %v1735 = vld [vmem:[%s3 + $0xf80] sm:$0xff]
  %v1736 = vld [vmem:[%s3 + $0xf88] sm:$0xff]
  %v1737 = vld [vmem:[%s3 + $0xf90] sm:$0xff]
  %v1738 = vld [vmem:[%s3 + $0xf98] sm:$0xff]
  %v1739 = vld [vmem:[%s3 + $0xfa0] sm:$0xff]
  %v1740 = vld [vmem:[%s3 + $0xfa8] sm:$0xff]
  %v1741 = vld [vmem:[%s3 + $0xfb0] sm:$0xff]
  %v1742 = vld [vmem:[%s3 + $0xfb8] sm:$0xff]
  %v1743 = vld [vmem:[%s3 + $0xfc0] sm:$0xff]
  %v1744 = vld [vmem:[%s3 + $0xfc8] sm:$0xff]
  %v1745 = vld [vmem:[%s3 + $0xfd0] sm:$0xff]
  %v1746 = vld [vmem:[%s3 + $0xfd8] sm:$0xff]
  %v1747 = vld [vmem:[%s3 + $0xfe0] sm:$0xff]
  %v1748 = vld [vmem:[%s3 + $0xfe8] sm:$0xff]
  %v1749 = vld [vmem:[%s3 + $0xff0] sm:$0xff]
  %v1750 = vld [vmem:[%s3 + $0xff8] sm:$0xff]
  %1751 = vmatpush.msra.mxu0 %v1299
  %1752 = vmatpush.msra.mxu0 %v1295
  %1753 = vmatpush.msra.mxu0 %v1291
  %1754 = vmatpush.msra.mxu0 %v1287
  %1755 = vmatpush.msra.mxu0 %v1283
  %1756 = vmatpush.msra.mxu0 %v1279
  %1757 = vmatpush.msra.mxu0 %v1275
  %1758 = vmatpush.msra.mxu0 %v1271
  %1759 = vmatpush.msra.mxu0 %v1267
  %1760 = vmatpush.msra.mxu0 %v1263
  %1761 = vmatpush.msra.mxu0 %v1259
  %1762 = vmatpush.msra.mxu0 %v1255
  %1763 = vmatpush.msra.mxu0 %v1251
  %1764 = vmatpush.msra.mxu0 %v1247
  %1765 = vmatpush.msra.mxu0 %v1243
  %1766 = vmatpush.msra.mxu0 %v1239
  %1767 = vmatmul.f32.gmra.mxu0 %v1073
  %v1768 = vpop.f32.mrf.mxu0
  %v1769 = vadd.f32 0.0, %v1768
  %1770 = vmatmul.f32.gmra.mxu0 %v1076
  %v1771 = vpop.f32.mrf.mxu0
  %v1772 = vadd.f32 0.0, %v1771
  %1773 = vmatmul.f32.gmra.mxu0 %v740
  %v1774 = vpop.f32.mrf.mxu0
  %v1775 = vadd.f32 0.0, %v1774
  %1776 = vmatmul.f32.gmra.mxu0 %v743
  %v1777 = vpop.f32.mrf.mxu0
  %v1778 = vadd.f32 0.0, %v1777
  %1779 = vdwg.mxu0
  %1780 = vmatpush.msra.mxu0 %v1363
  %1781 = vmatpush.msra.mxu0 %v1359
  %1782 = vmatpush.msra.mxu0 %v1355
  %1783 = vmatpush.msra.mxu0 %v1351
  %1784 = vmatpush.msra.mxu0 %v1347
  %1785 = vmatpush.msra.mxu0 %v1343
  %1786 = vmatpush.msra.mxu0 %v1339
  %1787 = vmatpush.msra.mxu0 %v1335
  %1788 = vmatpush.msra.mxu0 %v1331
  %1789 = vmatpush.msra.mxu0 %v1327
  %1790 = vmatpush.msra.mxu0 %v1323
  %1791 = vmatpush.msra.mxu0 %v1319
  %1792 = vmatpush.msra.mxu0 %v1315
  %1793 = vmatpush.msra.mxu0 %v1311
  %1794 = vmatpush.msra.mxu0 %v1307
  %1795 = vmatpush.msra.mxu0 %v1303
  %1796 = vmatmul.f32.gmra.mxu0 %v1096
  %v1797 = vpop.f32.mrf.mxu0
  %v1798 = vadd.f32 %v1769, %v1797
  %1799 = vmatmul.f32.gmra.mxu0 %v1099
  %v1800 = vpop.f32.mrf.mxu0
  %v1801 = vadd.f32 %v1772, %v1800
  %1802 = vmatmul.f32.gmra.mxu0 %v763
  %v1803 = vpop.f32.mrf.mxu0
  %v1804 = vadd.f32 %v1775, %v1803
  %1805 = vmatmul.f32.gmra.mxu0 %v766
  %v1806 = vpop.f32.mrf.mxu0
  %v1807 = vadd.f32 %v1778, %v1806
  %1808 = vdwg.mxu0
  %1809 = vmatpush.msra.mxu0 %v1427
  %1810 = vmatpush.msra.mxu0 %v1423
  %1811 = vmatpush.msra.mxu0 %v1419
  %1812 = vmatpush.msra.mxu0 %v1415
  %1813 = vmatpush.msra.mxu0 %v1411
  %1814 = vmatpush.msra.mxu0 %v1407
  %1815 = vmatpush.msra.mxu0 %v1403
  %1816 = vmatpush.msra.mxu0 %v1399
  %1817 = vmatpush.msra.mxu0 %v1395
  %1818 = vmatpush.msra.mxu0 %v1391
  %1819 = vmatpush.msra.mxu0 %v1387
  %1820 = vmatpush.msra.mxu0 %v1383
  %1821 = vmatpush.msra.mxu0 %v1379
  %1822 = vmatpush.msra.mxu0 %v1375
  %1823 = vmatpush.msra.mxu0 %v1371
  %1824 = vmatpush.msra.mxu0 %v1367
  %1825 = vmatmul.f32.gmra.mxu0 %v1119
  %v1826 = vpop.f32.mrf.mxu0
  %v1827 = vadd.f32 %v1798, %v1826
  %1828 = vmatmul.f32.gmra.mxu0 %v1122
  %v1829 = vpop.f32.mrf.mxu0
  %v1830 = vadd.f32 %v1801, %v1829
  %1831 = vmatmul.f32.gmra.mxu0 %v786
  %v1832 = vpop.f32.mrf.mxu0
  %v1833 = vadd.f32 %v1804, %v1832
  %1834 = vmatmul.f32.gmra.mxu0 %v789
  %v1835 = vpop.f32.mrf.mxu0
  %v1836 = vadd.f32 %v1807, %v1835
  %1837 = vdwg.mxu0
  %1838 = vmatpush.msra.mxu0 %v1491
  %1839 = vmatpush.msra.mxu0 %v1487
  %1840 = vmatpush.msra.mxu0 %v1483
  %1841 = vmatpush.msra.mxu0 %v1479
  %1842 = vmatpush.msra.mxu0 %v1475
  %1843 = vmatpush.msra.mxu0 %v1471
  %1844 = vmatpush.msra.mxu0 %v1467
  %1845 = vmatpush.msra.mxu0 %v1463
  %1846 = vmatpush.msra.mxu0 %v1459
  %1847 = vmatpush.msra.mxu0 %v1455
  %1848 = vmatpush.msra.mxu0 %v1451
  %1849 = vmatpush.msra.mxu0 %v1447
  %1850 = vmatpush.msra.mxu0 %v1443
  %1851 = vmatpush.msra.mxu0 %v1439
  %1852 = vmatpush.msra.mxu0 %v1435
  %1853 = vmatpush.msra.mxu0 %v1431
  %1854 = vmatmul.f32.gmra.mxu0 %v1142
  %v1855 = vpop.f32.mrf.mxu0
  %v1856 = vadd.f32 %v1827, %v1855
  %1857 = vmatmul.f32.gmra.mxu0 %v1145
  %v1858 = vpop.f32.mrf.mxu0
  %v1859 = vadd.f32 %v1830, %v1858
  %1860 = vmatmul.f32.gmra.mxu0 %v809
  %v1861 = vpop.f32.mrf.mxu0
  %v1862 = vadd.f32 %v1833, %v1861
  %1863 = vmatmul.f32.gmra.mxu0 %v812
  %v1864 = vpop.f32.mrf.mxu0
  %v1865 = vadd.f32 %v1836, %v1864
  %1866 = vdwg.mxu0
  %1867 = vmatpush.msra.mxu0 %v1555
  %1868 = vmatpush.msra.mxu0 %v1551
  %1869 = vmatpush.msra.mxu0 %v1547
  %1870 = vmatpush.msra.mxu0 %v1543
  %1871 = vmatpush.msra.mxu0 %v1539
  %1872 = vmatpush.msra.mxu0 %v1535
  %1873 = vmatpush.msra.mxu0 %v1531
  %1874 = vmatpush.msra.mxu0 %v1527
  %1875 = vmatpush.msra.mxu0 %v1523
  %1876 = vmatpush.msra.mxu0 %v1519
  %1877 = vmatpush.msra.mxu0 %v1515
  %1878 = vmatpush.msra.mxu0 %v1511
  %1879 = vmatpush.msra.mxu0 %v1507
  %1880 = vmatpush.msra.mxu0 %v1503
  %1881 = vmatpush.msra.mxu0 %v1499
  %1882 = vmatpush.msra.mxu0 %v1495
  %1883 = vmatmul.f32.gmra.mxu0 %v1165
  %v1884 = vpop.f32.mrf.mxu0
  %v1885 = vadd.f32 %v1856, %v1884
  %1886 = vmatmul.f32.gmra.mxu0 %v1168
  %v1887 = vpop.f32.mrf.mxu0
  %v1888 = vadd.f32 %v1859, %v1887
  %1889 = vmatmul.f32.gmra.mxu0 %v832
  %v1890 = vpop.f32.mrf.mxu0
  %v1891 = vadd.f32 %v1862, %v1890
  %1892 = vmatmul.f32.gmra.mxu0 %v835
  %v1893 = vpop.f32.mrf.mxu0
  %v1894 = vadd.f32 %v1865, %v1893
  %1895 = vdwg.mxu0
  %1896 = vmatpush.msra.mxu0 %v1619
  %1897 = vmatpush.msra.mxu0 %v1615
  %1898 = vmatpush.msra.mxu0 %v1611
  %1899 = vmatpush.msra.mxu0 %v1607
  %1900 = vmatpush.msra.mxu0 %v1603
  %1901 = vmatpush.msra.mxu0 %v1599
  %1902 = vmatpush.msra.mxu0 %v1595
  %1903 = vmatpush.msra.mxu0 %v1591
  %1904 = vmatpush.msra.mxu0 %v1587
  %1905 = vmatpush.msra.mxu0 %v1583
  %1906 = vmatpush.msra.mxu0 %v1579
  %1907 = vmatpush.msra.mxu0 %v1575
  %1908 = vmatpush.msra.mxu0 %v1571
  %1909 = vmatpush.msra.mxu0 %v1567
  %1910 = vmatpush.msra.mxu0 %v1563
  %1911 = vmatpush.msra.mxu0 %v1559
  %1912 = vmatmul.f32.gmra.mxu0 %v1188
  %v1913 = vpop.f32.mrf.mxu0
  %v1914 = vadd.f32 %v1885, %v1913
  %1915 = vmatmul.f32.gmra.mxu0 %v1191
  %v1916 = vpop.f32.mrf.mxu0
  %v1917 = vadd.f32 %v1888, %v1916
  %1918 = vmatmul.f32.gmra.mxu0 %v855
  %v1919 = vpop.f32.mrf.mxu0
  %v1920 = vadd.f32 %v1891, %v1919
  %1921 = vmatmul.f32.gmra.mxu0 %v858
  %v1922 = vpop.f32.mrf.mxu0
  %v1923 = vadd.f32 %v1894, %v1922
  %1924 = vdwg.mxu0
  %1925 = vmatpush.msra.mxu0 %v1683
  %1926 = vmatpush.msra.mxu0 %v1679
  %1927 = vmatpush.msra.mxu0 %v1675
  %1928 = vmatpush.msra.mxu0 %v1671
  %1929 = vmatpush.msra.mxu0 %v1667
  %1930 = vmatpush.msra.mxu0 %v1663
  %1931 = vmatpush.msra.mxu0 %v1659
  %1932 = vmatpush.msra.mxu0 %v1655
  %1933 = vmatpush.msra.mxu0 %v1651
  %1934 = vmatpush.msra.mxu0 %v1647
  %1935 = vmatpush.msra.mxu0 %v1643
  %1936 = vmatpush.msra.mxu0 %v1639
  %1937 = vmatpush.msra.mxu0 %v1635
  %1938 = vmatpush.msra.mxu0 %v1631
  %1939 = vmatpush.msra.mxu0 %v1627
  %1940 = vmatpush.msra.mxu0 %v1623
  %1941 = vmatmul.f32.gmra.mxu0 %v1211
  %v1942 = vpop.f32.mrf.mxu0
  %v1943 = vadd.f32 %v1914, %v1942
  %1944 = vmatmul.f32.gmra.mxu0 %v1214
  %v1945 = vpop.f32.mrf.mxu0
  %v1946 = vadd.f32 %v1917, %v1945
  %1947 = vmatmul.f32.gmra.mxu0 %v878
  %v1948 = vpop.f32.mrf.mxu0
  %v1949 = vadd.f32 %v1920, %v1948
  %1950 = vmatmul.f32.gmra.mxu0 %v881
  %v1951 = vpop.f32.mrf.mxu0
  %v1952 = vadd.f32 %v1923, %v1951
  %1953 = vdwg.mxu0
  %1954 = vmatpush.msra.mxu0 %v1747
  %1955 = vmatpush.msra.mxu0 %v1743
  %1956 = vmatpush.msra.mxu0 %v1739
  %1957 = vmatpush.msra.mxu0 %v1735
  %1958 = vmatpush.msra.mxu0 %v1731
  %1959 = vmatpush.msra.mxu0 %v1727
  %1960 = vmatpush.msra.mxu0 %v1723
  %1961 = vmatpush.msra.mxu0 %v1719
  %1962 = vmatpush.msra.mxu0 %v1715
  %1963 = vmatpush.msra.mxu0 %v1711
  %1964 = vmatpush.msra.mxu0 %v1707
  %1965 = vmatpush.msra.mxu0 %v1703
  %1966 = vmatpush.msra.mxu0 %v1699
  %1967 = vmatpush.msra.mxu0 %v1695
  %1968 = vmatpush.msra.mxu0 %v1691
  %1969 = vmatpush.msra.mxu0 %v1687
  %1970 = vmatmul.f32.gmra.mxu0 %v1234
  %v1971 = vpop.f32.mrf.mxu0
  %v1972 = vadd.f32 %v1943, %v1971
  %1973 = vmatmul.f32.gmra.mxu0 %v1237
  %v1974 = vpop.f32.mrf.mxu0
  %v1975 = vadd.f32 %v1946, %v1974
  %1976 = vmatmul.f32.gmra.mxu0 %v901
  %v1977 = vpop.f32.mrf.mxu0
  %v1978 = vadd.f32 %v1949, %v1977
  %1979 = vmatmul.f32.gmra.mxu0 %v904
  %v1980 = vpop.f32.mrf.mxu0
  %v1981 = vadd.f32 %v1952, %v1980
  %1982 = vdwg.mxu0
  %1983 = vmatpush.msra.mxu0 %v1300
  %1984 = vmatpush.msra.mxu0 %v1296
  %1985 = vmatpush.msra.mxu0 %v1292
  %1986 = vmatpush.msra.mxu0 %v1288
  %1987 = vmatpush.msra.mxu0 %v1284
  %1988 = vmatpush.msra.mxu0 %v1280
  %1989 = vmatpush.msra.mxu0 %v1276
  %1990 = vmatpush.msra.mxu0 %v1272
  %1991 = vmatpush.msra.mxu0 %v1268
  %1992 = vmatpush.msra.mxu0 %v1264
  %1993 = vmatpush.msra.mxu0 %v1260
  %1994 = vmatpush.msra.mxu0 %v1256
  %1995 = vmatpush.msra.mxu0 %v1252
  %1996 = vmatpush.msra.mxu0 %v1248
  %1997 = vmatpush.msra.mxu0 %v1244
  %1998 = vmatpush.msra.mxu0 %v1240
  %1999 = vmatmul.f32.gmra.mxu0 %v1073
  %v2000 = vpop.f32.mrf.mxu0
  %v2001 = vadd.f32 0.0, %v2000
  %2002 = vmatmul.f32.gmra.mxu0 %v1076
  %v2003 = vpop.f32.mrf.mxu0
  %v2004 = vadd.f32 0.0, %v2003
  %2005 = vmatmul.f32.gmra.mxu0 %v740
  %v2006 = vpop.f32.mrf.mxu0
  %v2007 = vadd.f32 0.0, %v2006
  %2008 = vmatmul.f32.gmra.mxu0 %v743
  %v2009 = vpop.f32.mrf.mxu0
  %v2010 = vadd.f32 0.0, %v2009
  %2011 = vdwg.mxu0
  %2012 = vmatpush.msra.mxu0 %v1364
  %2013 = vmatpush.msra.mxu0 %v1360
  %2014 = vmatpush.msra.mxu0 %v1356
  %2015 = vmatpush.msra.mxu0 %v1352
  %2016 = vmatpush.msra.mxu0 %v1348
  %2017 = vmatpush.msra.mxu0 %v1344
  %2018 = vmatpush.msra.mxu0 %v1340
  %2019 = vmatpush.msra.mxu0 %v1336
  %2020 = vmatpush.msra.mxu0 %v1332
  %2021 = vmatpush.msra.mxu0 %v1328
  %2022 = vmatpush.msra.mxu0 %v1324
  %2023 = vmatpush.msra.mxu0 %v1320
  %2024 = vmatpush.msra.mxu0 %v1316
  %2025 = vmatpush.msra.mxu0 %v1312
  %2026 = vmatpush.msra.mxu0 %v1308
  %2027 = vmatpush.msra.mxu0 %v1304
  %2028 = vmatmul.f32.gmra.mxu0 %v1096
  %v2029 = vpop.f32.mrf.mxu0
  %v2030 = vadd.f32 %v2001, %v2029
  %2031 = vmatmul.f32.gmra.mxu0 %v1099
  %v2032 = vpop.f32.mrf.mxu0
  %v2033 = vadd.f32 %v2004, %v2032
  %2034 = vmatmul.f32.gmra.mxu0 %v763
  %v2035 = vpop.f32.mrf.mxu0
  %v2036 = vadd.f32 %v2007, %v2035
  %2037 = vmatmul.f32.gmra.mxu0 %v766
  %v2038 = vpop.f32.mrf.mxu0
  %v2039 = vadd.f32 %v2010, %v2038
  %2040 = vdwg.mxu0
  %2041 = vmatpush.msra.mxu0 %v1428
  %2042 = vmatpush.msra.mxu0 %v1424
  %2043 = vmatpush.msra.mxu0 %v1420
  %2044 = vmatpush.msra.mxu0 %v1416
  %2045 = vmatpush.msra.mxu0 %v1412
  %2046 = vmatpush.msra.mxu0 %v1408
  %2047 = vmatpush.msra.mxu0 %v1404
  %2048 = vmatpush.msra.mxu0 %v1400
  %2049 = vmatpush.msra.mxu0 %v1396
  %2050 = vmatpush.msra.mxu0 %v1392
  %2051 = vmatpush.msra.mxu0 %v1388
  %2052 = vmatpush.msra.mxu0 %v1384
  %2053 = vmatpush.msra.mxu0 %v1380
  %2054 = vmatpush.msra.mxu0 %v1376
  %2055 = vmatpush.msra.mxu0 %v1372
  %2056 = vmatpush.msra.mxu0 %v1368
  %2057 = vmatmul.f32.gmra.mxu0 %v1119
  %v2058 = vpop.f32.mrf.mxu0
  %v2059 = vadd.f32 %v2030, %v2058
  %2060 = vmatmul.f32.gmra.mxu0 %v1122
  %v2061 = vpop.f32.mrf.mxu0
  %v2062 = vadd.f32 %v2033, %v2061
  %2063 = vmatmul.f32.gmra.mxu0 %v786
  %v2064 = vpop.f32.mrf.mxu0
  %v2065 = vadd.f32 %v2036, %v2064
  %2066 = vmatmul.f32.gmra.mxu0 %v789
  %v2067 = vpop.f32.mrf.mxu0
  %v2068 = vadd.f32 %v2039, %v2067
  %2069 = vdwg.mxu0
  %2070 = vmatpush.msra.mxu0 %v1492
  %2071 = vmatpush.msra.mxu0 %v1488
  %2072 = vmatpush.msra.mxu0 %v1484
  %2073 = vmatpush.msra.mxu0 %v1480
  %2074 = vmatpush.msra.mxu0 %v1476
  %2075 = vmatpush.msra.mxu0 %v1472
  %2076 = vmatpush.msra.mxu0 %v1468
  %2077 = vmatpush.msra.mxu0 %v1464
  %2078 = vmatpush.msra.mxu0 %v1460
  %2079 = vmatpush.msra.mxu0 %v1456
  %2080 = vmatpush.msra.mxu0 %v1452
  %2081 = vmatpush.msra.mxu0 %v1448
  %2082 = vmatpush.msra.mxu0 %v1444
  %2083 = vmatpush.msra.mxu0 %v1440
  %2084 = vmatpush.msra.mxu0 %v1436
  %2085 = vmatpush.msra.mxu0 %v1432
  %2086 = vmatmul.f32.gmra.mxu0 %v1142
  %v2087 = vpop.f32.mrf.mxu0
  %v2088 = vadd.f32 %v2059, %v2087
  %2089 = vmatmul.f32.gmra.mxu0 %v1145
  %v2090 = vpop.f32.mrf.mxu0
  %v2091 = vadd.f32 %v2062, %v2090
  %2092 = vmatmul.f32.gmra.mxu0 %v809
  %v2093 = vpop.f32.mrf.mxu0
  %v2094 = vadd.f32 %v2065, %v2093
  %2095 = vmatmul.f32.gmra.mxu0 %v812
  %v2096 = vpop.f32.mrf.mxu0
  %v2097 = vadd.f32 %v2068, %v2096
  %2098 = vdwg.mxu0
  %2099 = vmatpush.msra.mxu0 %v1556
  %2100 = vmatpush.msra.mxu0 %v1552
  %2101 = vmatpush.msra.mxu0 %v1548
  %2102 = vmatpush.msra.mxu0 %v1544
  %2103 = vmatpush.msra.mxu0 %v1540
  %2104 = vmatpush.msra.mxu0 %v1536
  %2105 = vmatpush.msra.mxu0 %v1532
  %2106 = vmatpush.msra.mxu0 %v1528
  %2107 = vmatpush.msra.mxu0 %v1524
  %2108 = vmatpush.msra.mxu0 %v1520
  %2109 = vmatpush.msra.mxu0 %v1516
  %2110 = vmatpush.msra.mxu0 %v1512
  %2111 = vmatpush.msra.mxu0 %v1508
  %2112 = vmatpush.msra.mxu0 %v1504
  %2113 = vmatpush.msra.mxu0 %v1500
  %2114 = vmatpush.msra.mxu0 %v1496
  %2115 = vmatmul.f32.gmra.mxu0 %v1165
  %v2116 = vpop.f32.mrf.mxu0
  %v2117 = vadd.f32 %v2088, %v2116
  %2118 = vmatmul.f32.gmra.mxu0 %v1168
  %v2119 = vpop.f32.mrf.mxu0
  %v2120 = vadd.f32 %v2091, %v2119
  %2121 = vmatmul.f32.gmra.mxu0 %v832
  %v2122 = vpop.f32.mrf.mxu0
  %v2123 = vadd.f32 %v2094, %v2122
  %2124 = vmatmul.f32.gmra.mxu0 %v835
  %v2125 = vpop.f32.mrf.mxu0
  %v2126 = vadd.f32 %v2097, %v2125
  %2127 = vdwg.mxu0
  %2128 = vmatpush.msra.mxu0 %v1620
  %2129 = vmatpush.msra.mxu0 %v1616
  %2130 = vmatpush.msra.mxu0 %v1612
  %2131 = vmatpush.msra.mxu0 %v1608
  %2132 = vmatpush.msra.mxu0 %v1604
  %2133 = vmatpush.msra.mxu0 %v1600
  %2134 = vmatpush.msra.mxu0 %v1596
  %2135 = vmatpush.msra.mxu0 %v1592
  %2136 = vmatpush.msra.mxu0 %v1588
  %2137 = vmatpush.msra.mxu0 %v1584
  %2138 = vmatpush.msra.mxu0 %v1580
  %2139 = vmatpush.msra.mxu0 %v1576
  %2140 = vmatpush.msra.mxu0 %v1572
  %2141 = vmatpush.msra.mxu0 %v1568
  %2142 = vmatpush.msra.mxu0 %v1564
  %2143 = vmatpush.msra.mxu0 %v1560
  %2144 = vmatmul.f32.gmra.mxu0 %v1188
  %v2145 = vpop.f32.mrf.mxu0
  %v2146 = vadd.f32 %v2117, %v2145
  %2147 = vmatmul.f32.gmra.mxu0 %v1191
  %v2148 = vpop.f32.mrf.mxu0
  %v2149 = vadd.f32 %v2120, %v2148
  %2150 = vmatmul.f32.gmra.mxu0 %v855
  %v2151 = vpop.f32.mrf.mxu0
  %v2152 = vadd.f32 %v2123, %v2151
  %2153 = vmatmul.f32.gmra.mxu0 %v858
  %v2154 = vpop.f32.mrf.mxu0
  %v2155 = vadd.f32 %v2126, %v2154
  %2156 = vdwg.mxu0
  %2157 = vmatpush.msra.mxu0 %v1684
  %2158 = vmatpush.msra.mxu0 %v1680
  %2159 = vmatpush.msra.mxu0 %v1676
  %2160 = vmatpush.msra.mxu0 %v1672
  %2161 = vmatpush.msra.mxu0 %v1668
  %2162 = vmatpush.msra.mxu0 %v1664
  %2163 = vmatpush.msra.mxu0 %v1660
  %2164 = vmatpush.msra.mxu0 %v1656
  %2165 = vmatpush.msra.mxu0 %v1652
  %2166 = vmatpush.msra.mxu0 %v1648
  %2167 = vmatpush.msra.mxu0 %v1644
  %2168 = vmatpush.msra.mxu0 %v1640
  %2169 = vmatpush.msra.mxu0 %v1636
  %2170 = vmatpush.msra.mxu0 %v1632
  %2171 = vmatpush.msra.mxu0 %v1628
  %2172 = vmatpush.msra.mxu0 %v1624
  %2173 = vmatmul.f32.gmra.mxu0 %v1211
  %v2174 = vpop.f32.mrf.mxu0
  %v2175 = vadd.f32 %v2146, %v2174
  %2176 = vmatmul.f32.gmra.mxu0 %v1214
  %v2177 = vpop.f32.mrf.mxu0
  %v2178 = vadd.f32 %v2149, %v2177
  %2179 = vmatmul.f32.gmra.mxu0 %v878
  %v2180 = vpop.f32.mrf.mxu0
  %v2181 = vadd.f32 %v2152, %v2180
  %2182 = vmatmul.f32.gmra.mxu0 %v881
  %v2183 = vpop.f32.mrf.mxu0
  %v2184 = vadd.f32 %v2155, %v2183
  %2185 = vdwg.mxu0
  %2186 = vmatpush.msra.mxu0 %v1748
  %2187 = vmatpush.msra.mxu0 %v1744
  %2188 = vmatpush.msra.mxu0 %v1740
  %2189 = vmatpush.msra.mxu0 %v1736
  %2190 = vmatpush.msra.mxu0 %v1732
  %2191 = vmatpush.msra.mxu0 %v1728
  %2192 = vmatpush.msra.mxu0 %v1724
  %2193 = vmatpush.msra.mxu0 %v1720
  %2194 = vmatpush.msra.mxu0 %v1716
  %2195 = vmatpush.msra.mxu0 %v1712
  %2196 = vmatpush.msra.mxu0 %v1708
  %2197 = vmatpush.msra.mxu0 %v1704
  %2198 = vmatpush.msra.mxu0 %v1700
  %2199 = vmatpush.msra.mxu0 %v1696
  %2200 = vmatpush.msra.mxu0 %v1692
  %2201 = vmatpush.msra.mxu0 %v1688
  %2202 = vmatmul.f32.gmra.mxu0 %v1234
  %v2203 = vpop.f32.mrf.mxu0
  %v2204 = vadd.f32 %v2175, %v2203
  %2205 = vmatmul.f32.gmra.mxu0 %v1237
  %v2206 = vpop.f32.mrf.mxu0
  %v2207 = vadd.f32 %v2178, %v2206
  %2208 = vmatmul.f32.gmra.mxu0 %v901
  %v2209 = vpop.f32.mrf.mxu0
  %v2210 = vadd.f32 %v2181, %v2209
  %2211 = vmatmul.f32.gmra.mxu0 %v904
  %v2212 = vpop.f32.mrf.mxu0
  %v2213 = vadd.f32 %v2184, %v2212
  %2214 = vdwg.mxu0
  %2215 = vmatpush.msra.mxu0 %v1301
  %2216 = vmatpush.msra.mxu0 %v1297
  %2217 = vmatpush.msra.mxu0 %v1293
  %2218 = vmatpush.msra.mxu0 %v1289
  %2219 = vmatpush.msra.mxu0 %v1285
  %2220 = vmatpush.msra.mxu0 %v1281
  %2221 = vmatpush.msra.mxu0 %v1277
  %2222 = vmatpush.msra.mxu0 %v1273
  %2223 = vmatpush.msra.mxu0 %v1269
  %2224 = vmatpush.msra.mxu0 %v1265
  %2225 = vmatpush.msra.mxu0 %v1261
  %2226 = vmatpush.msra.mxu0 %v1257
  %2227 = vmatpush.msra.mxu0 %v1253
  %2228 = vmatpush.msra.mxu0 %v1249
  %2229 = vmatpush.msra.mxu0 %v1245
  %2230 = vmatpush.msra.mxu0 %v1241
  %2231 = vmatmul.f32.gmra.mxu0 %v1073
  %v2232 = vpop.f32.mrf.mxu0
  %v2233 = vadd.f32 0.0, %v2232
  %2234 = vmatmul.f32.gmra.mxu0 %v1076
  %v2235 = vpop.f32.mrf.mxu0
  %v2236 = vadd.f32 0.0, %v2235
  %2237 = vmatmul.f32.gmra.mxu0 %v740
  %v2238 = vpop.f32.mrf.mxu0
  %v2239 = vadd.f32 0.0, %v2238
  %2240 = vmatmul.f32.gmra.mxu0 %v743
  %v2241 = vpop.f32.mrf.mxu0
  %v2242 = vadd.f32 0.0, %v2241
  %2243 = vdwg.mxu0
  %2244 = vmatpush.msra.mxu0 %v1365
  %2245 = vmatpush.msra.mxu0 %v1361
  %2246 = vmatpush.msra.mxu0 %v1357
  %2247 = vmatpush.msra.mxu0 %v1353
  %2248 = vmatpush.msra.mxu0 %v1349
  %2249 = vmatpush.msra.mxu0 %v1345
  %2250 = vmatpush.msra.mxu0 %v1341
  %2251 = vmatpush.msra.mxu0 %v1337
  %2252 = vmatpush.msra.mxu0 %v1333
  %2253 = vmatpush.msra.mxu0 %v1329
  %2254 = vmatpush.msra.mxu0 %v1325
  %2255 = vmatpush.msra.mxu0 %v1321
  %2256 = vmatpush.msra.mxu0 %v1317
  %2257 = vmatpush.msra.mxu0 %v1313
  %2258 = vmatpush.msra.mxu0 %v1309
  %2259 = vmatpush.msra.mxu0 %v1305
  %2260 = vmatmul.f32.gmra.mxu0 %v1096
  %v2261 = vpop.f32.mrf.mxu0
  %v2262 = vadd.f32 %v2233, %v2261
  %2263 = vmatmul.f32.gmra.mxu0 %v1099
  %v2264 = vpop.f32.mrf.mxu0
  %v2265 = vadd.f32 %v2236, %v2264
  %2266 = vmatmul.f32.gmra.mxu0 %v763
  %v2267 = vpop.f32.mrf.mxu0
  %v2268 = vadd.f32 %v2239, %v2267
  %2269 = vmatmul.f32.gmra.mxu0 %v766
  %v2270 = vpop.f32.mrf.mxu0
  %v2271 = vadd.f32 %v2242, %v2270
  %2272 = vdwg.mxu0
  %2273 = vmatpush.msra.mxu0 %v1429
  %2274 = vmatpush.msra.mxu0 %v1425
  %2275 = vmatpush.msra.mxu0 %v1421
  %2276 = vmatpush.msra.mxu0 %v1417
  %2277 = vmatpush.msra.mxu0 %v1413
  %2278 = vmatpush.msra.mxu0 %v1409
  %2279 = vmatpush.msra.mxu0 %v1405
  %2280 = vmatpush.msra.mxu0 %v1401
  %2281 = vmatpush.msra.mxu0 %v1397
  %2282 = vmatpush.msra.mxu0 %v1393
  %2283 = vmatpush.msra.mxu0 %v1389
  %2284 = vmatpush.msra.mxu0 %v1385
  %2285 = vmatpush.msra.mxu0 %v1381
  %2286 = vmatpush.msra.mxu0 %v1377
  %2287 = vmatpush.msra.mxu0 %v1373
  %2288 = vmatpush.msra.mxu0 %v1369
  %2289 = vmatmul.f32.gmra.mxu0 %v1119
  %v2290 = vpop.f32.mrf.mxu0
  %v2291 = vadd.f32 %v2262, %v2290
  %2292 = vmatmul.f32.gmra.mxu0 %v1122
  %v2293 = vpop.f32.mrf.mxu0
  %v2294 = vadd.f32 %v2265, %v2293
  %2295 = vmatmul.f32.gmra.mxu0 %v786
  %v2296 = vpop.f32.mrf.mxu0
  %v2297 = vadd.f32 %v2268, %v2296
  %2298 = vmatmul.f32.gmra.mxu0 %v789
  %v2299 = vpop.f32.mrf.mxu0
  %v2300 = vadd.f32 %v2271, %v2299
  %2301 = vdwg.mxu0
  %2302 = vmatpush.msra.mxu0 %v1493
  %2303 = vmatpush.msra.mxu0 %v1489
  %2304 = vmatpush.msra.mxu0 %v1485
  %2305 = vmatpush.msra.mxu0 %v1481
  %2306 = vmatpush.msra.mxu0 %v1477
  %2307 = vmatpush.msra.mxu0 %v1473
  %2308 = vmatpush.msra.mxu0 %v1469
  %2309 = vmatpush.msra.mxu0 %v1465
  %2310 = vmatpush.msra.mxu0 %v1461
  %2311 = vmatpush.msra.mxu0 %v1457
  %2312 = vmatpush.msra.mxu0 %v1453
  %2313 = vmatpush.msra.mxu0 %v1449
  %2314 = vmatpush.msra.mxu0 %v1445
  %2315 = vmatpush.msra.mxu0 %v1441
  %2316 = vmatpush.msra.mxu0 %v1437
  %2317 = vmatpush.msra.mxu0 %v1433
  %2318 = vmatmul.f32.gmra.mxu0 %v1142
  %v2319 = vpop.f32.mrf.mxu0
  %v2320 = vadd.f32 %v2291, %v2319
  %2321 = vmatmul.f32.gmra.mxu0 %v1145
  %v2322 = vpop.f32.mrf.mxu0
  %v2323 = vadd.f32 %v2294, %v2322
  %2324 = vmatmul.f32.gmra.mxu0 %v809
  %v2325 = vpop.f32.mrf.mxu0
  %v2326 = vadd.f32 %v2297, %v2325
  %2327 = vmatmul.f32.gmra.mxu0 %v812
  %v2328 = vpop.f32.mrf.mxu0
  %v2329 = vadd.f32 %v2300, %v2328
  %2330 = vdwg.mxu0
  %2331 = vmatpush.msra.mxu0 %v1557
  %2332 = vmatpush.msra.mxu0 %v1553
  %2333 = vmatpush.msra.mxu0 %v1549
  %2334 = vmatpush.msra.mxu0 %v1545
  %2335 = vmatpush.msra.mxu0 %v1541
  %2336 = vmatpush.msra.mxu0 %v1537
  %2337 = vmatpush.msra.mxu0 %v1533
  %2338 = vmatpush.msra.mxu0 %v1529
  %2339 = vmatpush.msra.mxu0 %v1525
  %2340 = vmatpush.msra.mxu0 %v1521
  %2341 = vmatpush.msra.mxu0 %v1517
  %2342 = vmatpush.msra.mxu0 %v1513
  %2343 = vmatpush.msra.mxu0 %v1509
  %2344 = vmatpush.msra.mxu0 %v1505
  %2345 = vmatpush.msra.mxu0 %v1501
  %2346 = vmatpush.msra.mxu0 %v1497
  %2347 = vmatmul.f32.gmra.mxu0 %v1165
  %v2348 = vpop.f32.mrf.mxu0
  %v2349 = vadd.f32 %v2320, %v2348
  %2350 = vmatmul.f32.gmra.mxu0 %v1168
  %v2351 = vpop.f32.mrf.mxu0
  %v2352 = vadd.f32 %v2323, %v2351
  %2353 = vmatmul.f32.gmra.mxu0 %v832
  %v2354 = vpop.f32.mrf.mxu0
  %v2355 = vadd.f32 %v2326, %v2354
  %2356 = vmatmul.f32.gmra.mxu0 %v835
  %v2357 = vpop.f32.mrf.mxu0
  %v2358 = vadd.f32 %v2329, %v2357
  %2359 = vdwg.mxu0
  %2360 = vmatpush.msra.mxu0 %v1621
  %2361 = vmatpush.msra.mxu0 %v1617
  %2362 = vmatpush.msra.mxu0 %v1613
  %2363 = vmatpush.msra.mxu0 %v1609
  %2364 = vmatpush.msra.mxu0 %v1605
  %2365 = vmatpush.msra.mxu0 %v1601
  %2366 = vmatpush.msra.mxu0 %v1597
  %2367 = vmatpush.msra.mxu0 %v1593
  %2368 = vmatpush.msra.mxu0 %v1589
  %2369 = vmatpush.msra.mxu0 %v1585
  %2370 = vmatpush.msra.mxu0 %v1581
  %2371 = vmatpush.msra.mxu0 %v1577
  %2372 = vmatpush.msra.mxu0 %v1573
  %2373 = vmatpush.msra.mxu0 %v1569
  %2374 = vmatpush.msra.mxu0 %v1565
  %2375 = vmatpush.msra.mxu0 %v1561
  %2376 = vmatmul.f32.gmra.mxu0 %v1188
  %v2377 = vpop.f32.mrf.mxu0
  %v2378 = vadd.f32 %v2349, %v2377
  %2379 = vmatmul.f32.gmra.mxu0 %v1191
  %v2380 = vpop.f32.mrf.mxu0
  %v2381 = vadd.f32 %v2352, %v2380
  %2382 = vmatmul.f32.gmra.mxu0 %v855
  %v2383 = vpop.f32.mrf.mxu0
  %v2384 = vadd.f32 %v2355, %v2383
  %2385 = vmatmul.f32.gmra.mxu0 %v858
  %v2386 = vpop.f32.mrf.mxu0
  %v2387 = vadd.f32 %v2358, %v2386
  %2388 = vdwg.mxu0
  %2389 = vmatpush.msra.mxu0 %v1685
  %2390 = vmatpush.msra.mxu0 %v1681
  %2391 = vmatpush.msra.mxu0 %v1677
  %2392 = vmatpush.msra.mxu0 %v1673
  %2393 = vmatpush.msra.mxu0 %v1669
  %2394 = vmatpush.msra.mxu0 %v1665
  %2395 = vmatpush.msra.mxu0 %v1661
  %2396 = vmatpush.msra.mxu0 %v1657
  %2397 = vmatpush.msra.mxu0 %v1653
  %2398 = vmatpush.msra.mxu0 %v1649
  %2399 = vmatpush.msra.mxu0 %v1645
  %2400 = vmatpush.msra.mxu0 %v1641
  %2401 = vmatpush.msra.mxu0 %v1637
  %2402 = vmatpush.msra.mxu0 %v1633
  %2403 = vmatpush.msra.mxu0 %v1629
  %2404 = vmatpush.msra.mxu0 %v1625
  %2405 = vmatmul.f32.gmra.mxu0 %v1211
  %v2406 = vpop.f32.mrf.mxu0
  %v2407 = vadd.f32 %v2378, %v2406
  %2408 = vmatmul.f32.gmra.mxu0 %v1214
  %v2409 = vpop.f32.mrf.mxu0
  %v2410 = vadd.f32 %v2381, %v2409
  %2411 = vmatmul.f32.gmra.mxu0 %v878
  %v2412 = vpop.f32.mrf.mxu0
  %v2413 = vadd.f32 %v2384, %v2412
  %2414 = vmatmul.f32.gmra.mxu0 %v881
  %v2415 = vpop.f32.mrf.mxu0
  %v2416 = vadd.f32 %v2387, %v2415
  %2417 = vdwg.mxu0
  %2418 = vmatpush.msra.mxu0 %v1749
  %2419 = vmatpush.msra.mxu0 %v1745
  %2420 = vmatpush.msra.mxu0 %v1741
  %2421 = vmatpush.msra.mxu0 %v1737
  %2422 = vmatpush.msra.mxu0 %v1733
  %2423 = vmatpush.msra.mxu0 %v1729
  %2424 = vmatpush.msra.mxu0 %v1725
  %2425 = vmatpush.msra.mxu0 %v1721
  %2426 = vmatpush.msra.mxu0 %v1717
  %2427 = vmatpush.msra.mxu0 %v1713
  %2428 = vmatpush.msra.mxu0 %v1709
  %2429 = vmatpush.msra.mxu0 %v1705
  %2430 = vmatpush.msra.mxu0 %v1701
  %2431 = vmatpush.msra.mxu0 %v1697
  %2432 = vmatpush.msra.mxu0 %v1693
  %2433 = vmatpush.msra.mxu0 %v1689
  %2434 = vmatmul.f32.gmra.mxu0 %v1234
  %v2435 = vpop.f32.mrf.mxu0
  %v2436 = vadd.f32 %v2407, %v2435
  %2437 = vmatmul.f32.gmra.mxu0 %v1237
  %v2438 = vpop.f32.mrf.mxu0
  %v2439 = vadd.f32 %v2410, %v2438
  %2440 = vmatmul.f32.gmra.mxu0 %v901
  %v2441 = vpop.f32.mrf.mxu0
  %v2442 = vadd.f32 %v2413, %v2441
  %2443 = vmatmul.f32.gmra.mxu0 %v904
  %v2444 = vpop.f32.mrf.mxu0
  %v2445 = vadd.f32 %v2416, %v2444
  %2446 = vdwg.mxu0
  %2447 = vmatpush.msra.mxu0 %v1302
  %2448 = vmatpush.msra.mxu0 %v1298
  %2449 = vmatpush.msra.mxu0 %v1294
  %2450 = vmatpush.msra.mxu0 %v1290
  %2451 = vmatpush.msra.mxu0 %v1286
  %2452 = vmatpush.msra.mxu0 %v1282
  %2453 = vmatpush.msra.mxu0 %v1278
  %2454 = vmatpush.msra.mxu0 %v1274
  %2455 = vmatpush.msra.mxu0 %v1270
  %2456 = vmatpush.msra.mxu0 %v1266
  %2457 = vmatpush.msra.mxu0 %v1262
  %2458 = vmatpush.msra.mxu0 %v1258
  %2459 = vmatpush.msra.mxu0 %v1254
  %2460 = vmatpush.msra.mxu0 %v1250
  %2461 = vmatpush.msra.mxu0 %v1246
  %2462 = vmatpush.msra.mxu0 %v1242
  %2463 = vmatmul.f32.gmra.mxu0 %v1073
  %v2464 = vpop.f32.mrf.mxu0
  %v2465 = vadd.f32 0.0, %v2464
  %2466 = vmatmul.f32.gmra.mxu0 %v1076
  %v2467 = vpop.f32.mrf.mxu0
  %v2468 = vadd.f32 0.0, %v2467
  %2469 = vmatmul.f32.gmra.mxu0 %v740
  %v2470 = vpop.f32.mrf.mxu0
  %v2471 = vadd.f32 0.0, %v2470
  %2472 = vmatmul.f32.gmra.mxu0 %v743
  %v2473 = vpop.f32.mrf.mxu0
  %v2474 = vadd.f32 0.0, %v2473
  %2475 = vdwg.mxu0
  %2476 = vmatpush.msra.mxu0 %v1366
  %2477 = vmatpush.msra.mxu0 %v1362
  %2478 = vmatpush.msra.mxu0 %v1358
  %2479 = vmatpush.msra.mxu0 %v1354
  %2480 = vmatpush.msra.mxu0 %v1350
  %2481 = vmatpush.msra.mxu0 %v1346
  %2482 = vmatpush.msra.mxu0 %v1342
  %2483 = vmatpush.msra.mxu0 %v1338
  %2484 = vmatpush.msra.mxu0 %v1334
  %2485 = vmatpush.msra.mxu0 %v1330
  %2486 = vmatpush.msra.mxu0 %v1326
  %2487 = vmatpush.msra.mxu0 %v1322
  %2488 = vmatpush.msra.mxu0 %v1318
  %2489 = vmatpush.msra.mxu0 %v1314
  %2490 = vmatpush.msra.mxu0 %v1310
  %2491 = vmatpush.msra.mxu0 %v1306
  %2492 = vmatmul.f32.gmra.mxu0 %v1096
  %v2493 = vpop.f32.mrf.mxu0
  %v2494 = vadd.f32 %v2465, %v2493
  %2495 = vmatmul.f32.gmra.mxu0 %v1099
  %v2496 = vpop.f32.mrf.mxu0
  %v2497 = vadd.f32 %v2468, %v2496
  %2498 = vmatmul.f32.gmra.mxu0 %v763
  %v2499 = vpop.f32.mrf.mxu0
  %v2500 = vadd.f32 %v2471, %v2499
  %2501 = vmatmul.f32.gmra.mxu0 %v766
  %v2502 = vpop.f32.mrf.mxu0
  %v2503 = vadd.f32 %v2474, %v2502
  %2504 = vdwg.mxu0
  %2505 = vmatpush.msra.mxu0 %v1430
  %2506 = vmatpush.msra.mxu0 %v1426
  %2507 = vmatpush.msra.mxu0 %v1422
  %2508 = vmatpush.msra.mxu0 %v1418
  %2509 = vmatpush.msra.mxu0 %v1414
  %2510 = vmatpush.msra.mxu0 %v1410
  %2511 = vmatpush.msra.mxu0 %v1406
  %2512 = vmatpush.msra.mxu0 %v1402
  %2513 = vmatpush.msra.mxu0 %v1398
  %2514 = vmatpush.msra.mxu0 %v1394
  %2515 = vmatpush.msra.mxu0 %v1390
  %2516 = vmatpush.msra.mxu0 %v1386
  %2517 = vmatpush.msra.mxu0 %v1382
  %2518 = vmatpush.msra.mxu0 %v1378
  %2519 = vmatpush.msra.mxu0 %v1374
  %2520 = vmatpush.msra.mxu0 %v1370
  %2521 = vmatmul.f32.gmra.mxu0 %v1119
  %v2522 = vpop.f32.mrf.mxu0
  %v2523 = vadd.f32 %v2494, %v2522
  %2524 = vmatmul.f32.gmra.mxu0 %v1122
  %v2525 = vpop.f32.mrf.mxu0
  %v2526 = vadd.f32 %v2497, %v2525
  %2527 = vmatmul.f32.gmra.mxu0 %v786
  %v2528 = vpop.f32.mrf.mxu0
  %v2529 = vadd.f32 %v2500, %v2528
  %2530 = vmatmul.f32.gmra.mxu0 %v789
  %v2531 = vpop.f32.mrf.mxu0
  %v2532 = vadd.f32 %v2503, %v2531
  %2533 = vdwg.mxu0
  %2534 = vmatpush.msra.mxu0 %v1494
  %2535 = vmatpush.msra.mxu0 %v1490
  %2536 = vmatpush.msra.mxu0 %v1486
  %2537 = vmatpush.msra.mxu0 %v1482
  %2538 = vmatpush.msra.mxu0 %v1478
  %2539 = vmatpush.msra.mxu0 %v1474
  %2540 = vmatpush.msra.mxu0 %v1470
  %2541 = vmatpush.msra.mxu0 %v1466
  %2542 = vmatpush.msra.mxu0 %v1462
  %2543 = vmatpush.msra.mxu0 %v1458
  %2544 = vmatpush.msra.mxu0 %v1454
  %2545 = vmatpush.msra.mxu0 %v1450
  %2546 = vmatpush.msra.mxu0 %v1446
  %2547 = vmatpush.msra.mxu0 %v1442
  %2548 = vmatpush.msra.mxu0 %v1438
  %2549 = vmatpush.msra.mxu0 %v1434
  %2550 = vmatmul.f32.gmra.mxu0 %v1142
  %v2551 = vpop.f32.mrf.mxu0
  %v2552 = vadd.f32 %v2523, %v2551
  %2553 = vmatmul.f32.gmra.mxu0 %v1145
  %v2554 = vpop.f32.mrf.mxu0
  %v2555 = vadd.f32 %v2526, %v2554
  %2556 = vmatmul.f32.gmra.mxu0 %v809
  %v2557 = vpop.f32.mrf.mxu0
  %v2558 = vadd.f32 %v2529, %v2557
  %2559 = vmatmul.f32.gmra.mxu0 %v812
  %v2560 = vpop.f32.mrf.mxu0
  %v2561 = vadd.f32 %v2532, %v2560
  %2562 = vdwg.mxu0
  %2563 = vmatpush.msra.mxu0 %v1558
  %2564 = vmatpush.msra.mxu0 %v1554
  %2565 = vmatpush.msra.mxu0 %v1550
  %2566 = vmatpush.msra.mxu0 %v1546
  %2567 = vmatpush.msra.mxu0 %v1542
  %2568 = vmatpush.msra.mxu0 %v1538
  %2569 = vmatpush.msra.mxu0 %v1534
  %2570 = vmatpush.msra.mxu0 %v1530
  %2571 = vmatpush.msra.mxu0 %v1526
  %2572 = vmatpush.msra.mxu0 %v1522
  %2573 = vmatpush.msra.mxu0 %v1518
  %2574 = vmatpush.msra.mxu0 %v1514
  %2575 = vmatpush.msra.mxu0 %v1510
  %2576 = vmatpush.msra.mxu0 %v1506
  %2577 = vmatpush.msra.mxu0 %v1502
  %2578 = vmatpush.msra.mxu0 %v1498
  %2579 = vmatmul.f32.gmra.mxu0 %v1165
  %v2580 = vpop.f32.mrf.mxu0
  %v2581 = vadd.f32 %v2552, %v2580
  %2582 = vmatmul.f32.gmra.mxu0 %v1168
  %v2583 = vpop.f32.mrf.mxu0
  %v2584 = vadd.f32 %v2555, %v2583
  %2585 = vmatmul.f32.gmra.mxu0 %v832
  %v2586 = vpop.f32.mrf.mxu0
  %v2587 = vadd.f32 %v2558, %v2586
  %2588 = vmatmul.f32.gmra.mxu0 %v835
  %v2589 = vpop.f32.mrf.mxu0
  %v2590 = vadd.f32 %v2561, %v2589
  %2591 = vdwg.mxu0
  %2592 = vmatpush.msra.mxu0 %v1622
  %2593 = vmatpush.msra.mxu0 %v1618
  %2594 = vmatpush.msra.mxu0 %v1614
  %2595 = vmatpush.msra.mxu0 %v1610
  %2596 = vmatpush.msra.mxu0 %v1606
  %2597 = vmatpush.msra.mxu0 %v1602
  %2598 = vmatpush.msra.mxu0 %v1598
  %2599 = vmatpush.msra.mxu0 %v1594
  %2600 = vmatpush.msra.mxu0 %v1590
  %2601 = vmatpush.msra.mxu0 %v1586
  %2602 = vmatpush.msra.mxu0 %v1582
  %2603 = vmatpush.msra.mxu0 %v1578
  %2604 = vmatpush.msra.mxu0 %v1574
  %2605 = vmatpush.msra.mxu0 %v1570
  %2606 = vmatpush.msra.mxu0 %v1566
  %2607 = vmatpush.msra.mxu0 %v1562
  %2608 = vmatmul.f32.gmra.mxu0 %v1188
  %v2609 = vpop.f32.mrf.mxu0
  %v2610 = vadd.f32 %v2581, %v2609
  %2611 = vmatmul.f32.gmra.mxu0 %v1191
  %v2612 = vpop.f32.mrf.mxu0
  %v2613 = vadd.f32 %v2584, %v2612
  %2614 = vmatmul.f32.gmra.mxu0 %v855
  %v2615 = vpop.f32.mrf.mxu0
  %v2616 = vadd.f32 %v2587, %v2615
  %2617 = vmatmul.f32.gmra.mxu0 %v858
  %v2618 = vpop.f32.mrf.mxu0
  %v2619 = vadd.f32 %v2590, %v2618
  %2620 = vdwg.mxu0
  %2621 = vmatpush.msra.mxu0 %v1686
  %2622 = vmatpush.msra.mxu0 %v1682
  %2623 = vmatpush.msra.mxu0 %v1678
  %2624 = vmatpush.msra.mxu0 %v1674
  %2625 = vmatpush.msra.mxu0 %v1670
  %2626 = vmatpush.msra.mxu0 %v1666
  %2627 = vmatpush.msra.mxu0 %v1662
  %2628 = vmatpush.msra.mxu0 %v1658
  %2629 = vmatpush.msra.mxu0 %v1654
  %2630 = vmatpush.msra.mxu0 %v1650
  %2631 = vmatpush.msra.mxu0 %v1646
  %2632 = vmatpush.msra.mxu0 %v1642
  %2633 = vmatpush.msra.mxu0 %v1638
  %2634 = vmatpush.msra.mxu0 %v1634
  %2635 = vmatpush.msra.mxu0 %v1630
  %2636 = vmatpush.msra.mxu0 %v1626
  %2637 = vmatmul.f32.gmra.mxu0 %v1211
  %v2638 = vpop.f32.mrf.mxu0
  %v2639 = vadd.f32 %v2610, %v2638
  %2640 = vmatmul.f32.gmra.mxu0 %v1214
  %v2641 = vpop.f32.mrf.mxu0
  %v2642 = vadd.f32 %v2613, %v2641
  %2643 = vmatmul.f32.gmra.mxu0 %v878
  %v2644 = vpop.f32.mrf.mxu0
  %v2645 = vadd.f32 %v2616, %v2644
  %2646 = vmatmul.f32.gmra.mxu0 %v881
  %v2647 = vpop.f32.mrf.mxu0
  %v2648 = vadd.f32 %v2619, %v2647
  %2649 = vdwg.mxu0
  %2650 = vmatpush.msra.mxu0 %v1750
  %2651 = vmatpush.msra.mxu0 %v1746
  %2652 = vmatpush.msra.mxu0 %v1742
  %2653 = vmatpush.msra.mxu0 %v1738
  %2654 = vmatpush.msra.mxu0 %v1734
  %2655 = vmatpush.msra.mxu0 %v1730
  %2656 = vmatpush.msra.mxu0 %v1726
  %2657 = vmatpush.msra.mxu0 %v1722
  %2658 = vmatpush.msra.mxu0 %v1718
  %2659 = vmatpush.msra.mxu0 %v1714
  %2660 = vmatpush.msra.mxu0 %v1710
  %2661 = vmatpush.msra.mxu0 %v1706
  %2662 = vmatpush.msra.mxu0 %v1702
  %2663 = vmatpush.msra.mxu0 %v1698
  %2664 = vmatpush.msra.mxu0 %v1694
  %2665 = vmatpush.msra.mxu0 %v1690
  %2666 = vmatmul.f32.gmra.mxu0 %v1234
  %v2667 = vpop.f32.mrf.mxu0
  %v2668 = vadd.f32 %v2639, %v2667
  %2669 = vmatmul.f32.gmra.mxu0 %v1237
  %v2670 = vpop.f32.mrf.mxu0
  %v2671 = vadd.f32 %v2642, %v2670
  %2672 = vmatmul.f32.gmra.mxu0 %v901
  %v2673 = vpop.f32.mrf.mxu0
  %v2674 = vadd.f32 %v2645, %v2673
  %2675 = vmatmul.f32.gmra.mxu0 %v904
  %v2676 = vpop.f32.mrf.mxu0
  %v2677 = vadd.f32 %v2648, %v2676
  %2678 = vdwg.mxu0
  %vm2679 = vcmp.lt.s32.totalorder %v227, 0
  %v2680 = vsub.s32 0, %v227
  %v2681 = vsel %vm2679, %v2680, %v227
  %v2682 = vshrl.u32 %v2681, 8
  %v2683 = vand.u32 %v2681, 255
  %v2684 = vsub.s32 0, %v2683
  %v2685 = vsel %vm2679, %v2684, %v2683
  %vm2686 = vcmp.lt.s32.totalorder %v228, 0
  %v2687 = vsub.s32 0, %v228
  %v2688 = vsel %vm2686, %v2687, %v228
  %v2689 = vshrl.u32 %v2688, 8
  %v2690 = vand.u32 %v2688, 255
  %v2691 = vsub.s32 0, %v2690
  %v2692 = vsel %vm2686, %v2691, %v2690
  %vm2693 = vcmp.lt.s32.totalorder %v229, 0
  %v2694 = vsub.s32 0, %v229
  %v2695 = vsel %vm2693, %v2694, %v229
  %v2696 = vshrl.u32 %v2695, 8
  %v2697 = vand.u32 %v2695, 255
  %v2698 = vsub.s32 0, %v2697
  %v2699 = vsel %vm2693, %v2698, %v2697
  %vm2700 = vcmp.lt.s32.totalorder %v230, 0
  %v2701 = vsub.s32 0, %v230
  %v2702 = vsel %vm2700, %v2701, %v230
  %v2703 = vshrl.u32 %v2702, 8
  %v2704 = vand.u32 %v2702, 255
  %v2705 = vsub.s32 0, %v2704
  %v2706 = vsel %vm2700, %v2705, %v2704
  %vm2707 = vcmp.ne.s32.totalorder %v2685, 0
  %vm2708 = vcmp.ne.s32.totalorder %v2692, 0
  %vm2709 = vcmp.ne.s32.totalorder %v2699, 0
  %vm2710 = vcmp.ne.s32.totalorder %v2706, 0
  %vm2711 = vcmp.lt.s32.totalorder %v2685, 0
  %vm2712 = vcmp.lt.s32.totalorder %v2692, 0
  %vm2713 = vcmp.lt.s32.totalorder %v2699, 0
  %vm2714 = vcmp.lt.s32.totalorder %v2706, 0
  %vm2715 = vmand %vm2711, %vm2707
  %vm2716 = vmand %vm2712, %vm2708
  %vm2717 = vmand %vm2713, %vm2709
  %vm2718 = vmand %vm2714, %vm2710
  %v2719 = vadd.s32 %v2685, 256
  %v2720 = vadd.s32 %v2692, 256
  %v2721 = vadd.s32 %v2699, 256
  %v2722 = vadd.s32 %v2706, 256
  %v2723 = vsel %vm2715, %v2719, %v2685
  %v2724 = vsel %vm2716, %v2720, %v2692
  %v2725 = vsel %vm2717, %v2721, %v2699
  %v2726 = vsel %vm2718, %v2722, %v2706
  %2727 = vrot.lane.b32.xlu0 %v1972, 1
  %v2728 = vpop.permute.xlu0 %2727
  %2729 = vrot.lane.b32.xlu0 %v1975, 1
  %v2730 = vpop.permute.xlu0 %2729
  %2731 = vrot.lane.b32.xlu0 %v2204, 1
  %v2732 = vpop.permute.xlu0 %2731
  %2733 = vrot.lane.b32.xlu0 %v2207, 1
  %v2734 = vpop.permute.xlu0 %2733
  %2735 = vrot.lane.b32.xlu0 %v2436, 1
  %v2736 = vpop.permute.xlu0 %2735
  %2737 = vrot.lane.b32.xlu0 %v2439, 1
  %v2738 = vpop.permute.xlu0 %2737
  %2739 = vrot.lane.b32.xlu0 %v2668, 1
  %v2740 = vpop.permute.xlu0 %2739
  %2741 = vrot.lane.b32.xlu0 %v2671, 1
  %v2742 = vpop.permute.xlu0 %2741
  %v2743 = vsel %vm411, %v2736, %v2740
  %v2744 = vsel %vm411, %v2738, %v2742
  %v2745 = vsel %vm411, %v2732, %v2736
  %v2746 = vsel %vm411, %v2734, %v2738
  %v2747 = vsel %vm411, %v2728, %v2732
  %v2748 = vsel %vm411, %v2730, %v2734
  %v2749 = vsel %vm411, %v2740, %v2728
  %v2750 = vsel %vm411, %v2742, %v2730
  %vm2751 = vcmp.ne.s32.totalorder %v2723, 0
  %vm2752 = vcmp.ne.s32.totalorder %v2724, 0
  %vm2753 = vcmp.ne.s32.totalorder %v2725, 0
  %vm2754 = vcmp.ne.s32.totalorder %v2726, 0
  %v2755 = vsel %vm2751, 1, 0
  %v2756 = vsel %vm2752, 1, 0
  %v2757 = vsel %vm2753, 1, 0
  %v2758 = vsel %vm2754, 1, 0
  %v2759 = vcvt.s32.f32 %v2755
  %v2760 = vcvt.s32.f32 %v2756
  %v2761 = vcvt.s32.f32 %v2757
  %v2762 = vcvt.s32.f32 %v2758
  %v2763 = vmul.f32 %v2749, %v2759
  %v2764 = vmul.f32 %v2747, %v2760
  %v2765 = vmul.f32 %v2745, %v2761
  %v2766 = vmul.f32 %v2743, %v2762
  %v2767 = vmul.f32 %v2750, %v2759
  %v2768 = vmul.f32 %v2748, %v2760
  %v2769 = vmul.f32 %v2746, %v2761
  %v2770 = vmul.f32 %v2744, %v2762
  %2771 = vrot.lane.b32.xlu0 %v1972, 127
  %v2772 = vpop.permute.xlu0 %2771
  %2773 = vrot.lane.b32.xlu0 %v1975, 127
  %v2774 = vpop.permute.xlu0 %2773
  %2775 = vrot.lane.b32.xlu0 %v2204, 127
  %v2776 = vpop.permute.xlu0 %2775
  %2777 = vrot.lane.b32.xlu0 %v2207, 127
  %v2778 = vpop.permute.xlu0 %2777
  %2779 = vrot.lane.b32.xlu0 %v2436, 127
  %v2780 = vpop.permute.xlu0 %2779
  %2781 = vrot.lane.b32.xlu0 %v2439, 127
  %v2782 = vpop.permute.xlu0 %2781
  %2783 = vrot.lane.b32.xlu0 %v2668, 127
  %v2784 = vpop.permute.xlu0 %2783
  %2785 = vrot.lane.b32.xlu0 %v2671, 127
  %v2786 = vpop.permute.xlu0 %2785
  %v2787 = vsel %vm596, %v2780, %v2784
  %v2788 = vsel %vm596, %v2782, %v2786
  %v2789 = vsel %vm596, %v2776, %v2780
  %v2790 = vsel %vm596, %v2778, %v2782
  %v2791 = vsel %vm596, %v2772, %v2776
  %v2792 = vsel %vm596, %v2774, %v2778
  %v2793 = vsel %vm596, %v2784, %v2772
  %v2794 = vsel %vm596, %v2786, %v2774
  %vm2795 = vcmp.ne.s32.totalorder %v2723, 255
  %vm2796 = vcmp.ne.s32.totalorder %v2724, 255
  %vm2797 = vcmp.ne.s32.totalorder %v2725, 255
  %vm2798 = vcmp.ne.s32.totalorder %v2726, 255
  %v2799 = vsel %vm2795, 1, 0
  %v2800 = vsel %vm2796, 1, 0
  %v2801 = vsel %vm2797, 1, 0
  %v2802 = vsel %vm2798, 1, 0
  %v2803 = vcvt.s32.f32 %v2799
  %v2804 = vcvt.s32.f32 %v2800
  %v2805 = vcvt.s32.f32 %v2801
  %v2806 = vcvt.s32.f32 %v2802
  %v2807 = vmul.f32 %v2791, %v2803
  %v2808 = vmul.f32 %v2789, %v2804
  %v2809 = vmul.f32 %v2787, %v2805
  %v2810 = vmul.f32 %v2793, %v2806
  %v2811 = vmul.f32 %v2792, %v2803
  %v2812 = vmul.f32 %v2790, %v2804
  %v2813 = vmul.f32 %v2788, %v2805
  %v2814 = vmul.f32 %v2794, %v2806
  %v2815 = vld [vmem:[%s19] sm:$0xff]
  %v2816 = vld [vmem:[%s19 + $0x8] sm:$0xff]
  %v2817 = vld [vmem:[%s21] sm:$0xff]
  %v2818 = vld [vmem:[%s21 + $0x8] sm:$0xff]
  %2820 = vset.pattern.permute.xlu0 0
  %2821 = vperm.xlu0 %2820, %v2817
  %v2822 = vpop.permute.xlu0 %2821
  %2825 = vset.pattern.permute.xlu0 0
  %2826 = vperm.xlu0 %2825, %v2818
  %v2827 = vpop.permute.xlu0 %2826
  %v2830 = vsel %vm1048, %v2815, 0
  %v2833 = vsel %vm1048, %v2816, 0
  %2835 = vmatpush.msra.mxu0 0.0
  %2836 = vmatpush.msra.mxu0 0.0
  %2837 = vmatpush.msra.mxu0 0.0
  %2838 = vmatpush.msra.mxu0 0.0
  %2839 = vmatpush.msra.mxu0 0.0
  %2840 = vmatpush.msra.mxu0 0.0
  %2841 = vmatpush.msra.mxu0 0.0
  %2842 = vmatpush.msra.mxu0 0.0
  %2843 = vmatpush.msra.mxu0 0.0
  %2844 = vmatpush.msra.mxu0 0.0
  %2845 = vmatpush.msra.mxu0 %v2811
  %2846 = vmatpush.msra.mxu0 %v2807
  %2847 = vmatpush.msra.mxu0 %v1975
  %2848 = vmatpush.msra.mxu0 %v1972
  %2849 = vmatpush.msra.mxu0 %v2767
  %2850 = vmatpush.msra.mxu0 %v2763
  %2851 = vmatmul.f32.gmra.mxu0 %v2830
  %v2852 = vpop.f32.mrf.mxu0
  %v2853 = vadd.f32 %v2822, %v2852
  %2854 = vmatmul.f32.gmra.mxu0 %v2833
  %v2855 = vpop.f32.mrf.mxu0
  %v2856 = vadd.f32 %v2827, %v2855
  %2857 = vdwg.mxu0
  %2858 = vmatpush.msra.mxu0 0.0
  %2859 = vmatpush.msra.mxu0 0.0
  %2860 = vmatpush.msra.mxu0 0.0
  %2861 = vmatpush.msra.mxu0 0.0
  %2862 = vmatpush.msra.mxu0 0.0
  %2863 = vmatpush.msra.mxu0 0.0
  %2864 = vmatpush.msra.mxu0 0.0
  %2865 = vmatpush.msra.mxu0 0.0
  %2866 = vmatpush.msra.mxu0 0.0
  %2867 = vmatpush.msra.mxu0 0.0
  %2868 = vmatpush.msra.mxu0 %v2812
  %2869 = vmatpush.msra.mxu0 %v2808
  %2870 = vmatpush.msra.mxu0 %v2207
  %2871 = vmatpush.msra.mxu0 %v2204
  %2872 = vmatpush.msra.mxu0 %v2768
  %2873 = vmatpush.msra.mxu0 %v2764
  %2874 = vmatmul.f32.gmra.mxu0 %v2830
  %v2875 = vpop.f32.mrf.mxu0
  %v2876 = vadd.f32 %v2822, %v2875
  %2877 = vmatmul.f32.gmra.mxu0 %v2833
  %v2878 = vpop.f32.mrf.mxu0
  %v2879 = vadd.f32 %v2827, %v2878
  %2880 = vdwg.mxu0
  %2881 = vmatpush.msra.mxu0 0.0
  %2882 = vmatpush.msra.mxu0 0.0
  %2883 = vmatpush.msra.mxu0 0.0
  %2884 = vmatpush.msra.mxu0 0.0
  %2885 = vmatpush.msra.mxu0 0.0
  %2886 = vmatpush.msra.mxu0 0.0
  %2887 = vmatpush.msra.mxu0 0.0
  %2888 = vmatpush.msra.mxu0 0.0
  %2889 = vmatpush.msra.mxu0 0.0
  %2890 = vmatpush.msra.mxu0 0.0
  %2891 = vmatpush.msra.mxu0 %v2813
  %2892 = vmatpush.msra.mxu0 %v2809
  %2893 = vmatpush.msra.mxu0 %v2439
  %2894 = vmatpush.msra.mxu0 %v2436
  %2895 = vmatpush.msra.mxu0 %v2769
  %2896 = vmatpush.msra.mxu0 %v2765
  %2897 = vmatmul.f32.gmra.mxu0 %v2830
  %v2898 = vpop.f32.mrf.mxu0
  %v2899 = vadd.f32 %v2822, %v2898
  %2900 = vmatmul.f32.gmra.mxu0 %v2833
  %v2901 = vpop.f32.mrf.mxu0
  %v2902 = vadd.f32 %v2827, %v2901
  %2903 = vdwg.mxu0
  %2904 = vmatpush.msra.mxu0 0.0
  %2905 = vmatpush.msra.mxu0 0.0
  %2906 = vmatpush.msra.mxu0 0.0
  %2907 = vmatpush.msra.mxu0 0.0
  %2908 = vmatpush.msra.mxu0 0.0
  %2909 = vmatpush.msra.mxu0 0.0
  %2910 = vmatpush.msra.mxu0 0.0
  %2911 = vmatpush.msra.mxu0 0.0
  %2912 = vmatpush.msra.mxu0 0.0
  %2913 = vmatpush.msra.mxu0 0.0
  %2914 = vmatpush.msra.mxu0 %v2814
  %2915 = vmatpush.msra.mxu0 %v2810
  %2916 = vmatpush.msra.mxu0 %v2671
  %2917 = vmatpush.msra.mxu0 %v2668
  %2918 = vmatpush.msra.mxu0 %v2770
  %2919 = vmatpush.msra.mxu0 %v2766
  %2920 = vmatmul.f32.gmra.mxu0 %v2830
  %v2921 = vpop.f32.mrf.mxu0
  %v2922 = vadd.f32 %v2822, %v2921
  %2923 = vmatmul.f32.gmra.mxu0 %v2833
  %v2924 = vpop.f32.mrf.mxu0
  %v2925 = vadd.f32 %v2827, %v2924
  %2926 = vdwg.mxu0
  %v2927 = vld [vmem:[%s23] sm:$0xff]
  %v2928 = vld [vmem:[%s23 + $0x8] sm:$0xff]
  %v2929 = vld [vmem:[%s25] sm:$0xff]
  %v2930 = vld [vmem:[%s25 + $0x8] sm:$0xff]
  %2932 = vset.pattern.permute.xlu0 0
  %2933 = vperm.xlu0 %2932, %v2929
  %v2934 = vpop.permute.xlu0 %2933
  %2937 = vset.pattern.permute.xlu0 0
  %2938 = vperm.xlu0 %2937, %v2930
  %v2939 = vpop.permute.xlu0 %2938
  %vm2941 = vcmask 130048
  %v2943 = vsel %vm2941, %v2927, 0
  %v2946 = vsel %vm2941, %v2928, 0
  %2948 = vmatpush.msra.mxu0 0.0
  %2949 = vmatpush.msra.mxu0 0.0
  %2950 = vmatpush.msra.mxu0 0.0
  %2951 = vmatpush.msra.mxu0 0.0
  %2952 = vmatpush.msra.mxu0 0.0
  %2953 = vmatpush.msra.mxu0 0.0
  %2954 = vmatpush.msra.mxu0 0.0
  %2955 = vmatpush.msra.mxu0 0.0
  %2956 = vmatpush.msra.mxu0 0.0
  %2957 = vmatpush.msra.mxu0 0.0
  %2958 = vmatpush.msra.mxu0 0.0
  %2959 = vmatpush.msra.mxu0 0.0
  %2960 = vmatpush.msra.mxu0 0.0
  %2961 = vmatpush.msra.mxu0 0.0
  %2962 = vmatpush.msra.mxu0 %v1981
  %2963 = vmatpush.msra.mxu0 %v1978
  %2964 = vmatmul.f32.gmra.mxu0 %v2943
  %v2965 = vpop.f32.mrf.mxu0
  %v2966 = vadd.f32 %v2934, %v2965
  %2967 = vmatmul.f32.gmra.mxu0 %v2946
  %v2968 = vpop.f32.mrf.mxu0
  %v2969 = vadd.f32 %v2939, %v2968
  %2970 = vdwg.mxu0
  %2971 = vmatpush.msra.mxu0 0.0
  %2972 = vmatpush.msra.mxu0 0.0
  %2973 = vmatpush.msra.mxu0 0.0
  %2974 = vmatpush.msra.mxu0 0.0
  %2975 = vmatpush.msra.mxu0 0.0
  %2976 = vmatpush.msra.mxu0 0.0
  %2977 = vmatpush.msra.mxu0 0.0
  %2978 = vmatpush.msra.mxu0 0.0
  %2979 = vmatpush.msra.mxu0 0.0
  %2980 = vmatpush.msra.mxu0 0.0
  %2981 = vmatpush.msra.mxu0 0.0
  %2982 = vmatpush.msra.mxu0 0.0
  %2983 = vmatpush.msra.mxu0 0.0
  %2984 = vmatpush.msra.mxu0 0.0
  %2985 = vmatpush.msra.mxu0 %v2213
  %2986 = vmatpush.msra.mxu0 %v2210
  %2987 = vmatmul.f32.gmra.mxu0 %v2943
  %v2988 = vpop.f32.mrf.mxu0
  %v2989 = vadd.f32 %v2934, %v2988
  %2990 = vmatmul.f32.gmra.mxu0 %v2946
  %v2991 = vpop.f32.mrf.mxu0
  %v2992 = vadd.f32 %v2939, %v2991
  %2993 = vdwg.mxu0
  %2994 = vmatpush.msra.mxu0 0.0
  %2995 = vmatpush.msra.mxu0 0.0
  %2996 = vmatpush.msra.mxu0 0.0
  %2997 = vmatpush.msra.mxu0 0.0
  %2998 = vmatpush.msra.mxu0 0.0
  %2999 = vmatpush.msra.mxu0 0.0
  %3000 = vmatpush.msra.mxu0 0.0
  %3001 = vmatpush.msra.mxu0 0.0
  %3002 = vmatpush.msra.mxu0 0.0
  %3003 = vmatpush.msra.mxu0 0.0
  %3004 = vmatpush.msra.mxu0 0.0
  %3005 = vmatpush.msra.mxu0 0.0
  %3006 = vmatpush.msra.mxu0 0.0
  %3007 = vmatpush.msra.mxu0 0.0
  %3008 = vmatpush.msra.mxu0 %v2445
  %3009 = vmatpush.msra.mxu0 %v2442
  %3010 = vmatmul.f32.gmra.mxu0 %v2943
  %v3011 = vpop.f32.mrf.mxu0
  %v3012 = vadd.f32 %v2934, %v3011
  %3013 = vmatmul.f32.gmra.mxu0 %v2946
  %v3014 = vpop.f32.mrf.mxu0
  %v3015 = vadd.f32 %v2939, %v3014
  %3016 = vdwg.mxu0
  %3017 = vmatpush.msra.mxu0 0.0
  %3018 = vmatpush.msra.mxu0 0.0
  %3019 = vmatpush.msra.mxu0 0.0
  %3020 = vmatpush.msra.mxu0 0.0
  %3021 = vmatpush.msra.mxu0 0.0
  %3022 = vmatpush.msra.mxu0 0.0
  %3023 = vmatpush.msra.mxu0 0.0
  %3024 = vmatpush.msra.mxu0 0.0
  %3025 = vmatpush.msra.mxu0 0.0
  %3026 = vmatpush.msra.mxu0 0.0
  %3027 = vmatpush.msra.mxu0 0.0
  %3028 = vmatpush.msra.mxu0 0.0
  %3029 = vmatpush.msra.mxu0 0.0
  %3030 = vmatpush.msra.mxu0 0.0
  %3031 = vmatpush.msra.mxu0 %v2677
  %3032 = vmatpush.msra.mxu0 %v2674
  %3033 = vmatmul.f32.gmra.mxu0 %v2943
  %v3034 = vpop.f32.mrf.mxu0
  %v3035 = vadd.f32 %v2934, %v3034
  %3036 = vmatmul.f32.gmra.mxu0 %v2946
  %v3037 = vpop.f32.mrf.mxu0
  %v3038 = vadd.f32 %v2939, %v3037
  %3039 = vdwg.mxu0
  %v3040 = vadd.f32 %v2853, %v2966
  %v3041 = vadd.f32 %v2876, %v2989
  %v3042 = vadd.f32 %v2899, %v3012
  %v3043 = vadd.f32 %v2922, %v3035
  %v3044 = vadd.f32 %v2856, %v2969
  %v3045 = vadd.f32 %v2879, %v2992
  %v3046 = vadd.f32 %v2902, %v3015
  %v3047 = vadd.f32 %v2925, %v3038
  %vm3048 = vcmp.gt.f32.partialorder %v3040, 0.0
  %vm3049 = vcmp.gt.f32.partialorder %v3041, 0.0
  %vm3050 = vcmp.gt.f32.partialorder %v3042, 0.0
  %vm3051 = vcmp.gt.f32.partialorder %v3043, 0.0
  %vm3052 = vcmp.gt.f32.partialorder %v3044, 0.0
  %vm3053 = vcmp.gt.f32.partialorder %v3045, 0.0
  %vm3054 = vcmp.gt.f32.partialorder %v3046, 0.0
  %vm3055 = vcmp.gt.f32.partialorder %v3047, 0.0
  %v3056 = vmin.f32 %v3040, 0.0
  %v3057 = vmin.f32 %v3041, 0.0
  %v3058 = vmin.f32 %v3042, 0.0
  %v3059 = vmin.f32 %v3043, 0.0
  %v3060 = vmin.f32 %v3044, 0.0
  %v3061 = vmin.f32 %v3045, 0.0
  %v3062 = vmin.f32 %v3046, 0.0
  %v3063 = vmin.f32 %v3047, 0.0
  %v3064 = vmul.f32 %v3056, 1.442695
  %v3065 = vpow.pop %v3064
  %v3066 = vmul.f32 %v3057, 1.442695
  %v3067 = vpow.pop %v3066
  %v3068 = vmul.f32 %v3058, 1.442695
  %v3069 = vpow.pop %v3068
  %v3070 = vmul.f32 %v3059, 1.442695
  %v3071 = vpow.pop %v3070
  %v3072 = vmul.f32 %v3060, 1.442695
  %v3073 = vpow.pop %v3072
  %v3074 = vmul.f32 %v3061, 1.442695
  %v3075 = vpow.pop %v3074
  %v3076 = vmul.f32 %v3062, 1.442695
  %v3077 = vpow.pop %v3076
  %v3078 = vmul.f32 %v3063, 1.442695
  %v3079 = vpow.pop %v3078
  %v3080 = vsub.f32 %v3065, 1.0
  %v3081 = vsub.f32 %v3067, 1.0
  %v3082 = vsub.f32 %v3069, 1.0
  %v3083 = vsub.f32 %v3071, 1.0
  %v3084 = vsub.f32 %v3073, 1.0
  %v3085 = vsub.f32 %v3075, 1.0
  %v3086 = vsub.f32 %v3077, 1.0
  %v3087 = vsub.f32 %v3079, 1.0
  %v3088 = vsel %vm3048, %v3040, %v3080
  %v3089 = vsel %vm3049, %v3041, %v3081
  %v3090 = vsel %vm3050, %v3042, %v3082
  %v3091 = vsel %vm3051, %v3043, %v3083
  %v3092 = vsel %vm3052, %v3044, %v3084
  %v3093 = vsel %vm3053, %v3045, %v3085
  %v3094 = vsel %vm3054, %v3046, %v3086
  %v3095 = vsel %vm3055, %v3047, %v3087
  %3096 = vrot.lane.b32.xlu0 %v3088, 1
  %v3097 = vpop.permute.xlu0 %3096
  %3098 = vrot.lane.b32.xlu0 %v3092, 1
  %v3099 = vpop.permute.xlu0 %3098
  %3100 = vrot.lane.b32.xlu0 %v3089, 1
  %v3101 = vpop.permute.xlu0 %3100
  %3102 = vrot.lane.b32.xlu0 %v3093, 1
  %v3103 = vpop.permute.xlu0 %3102
  %3104 = vrot.lane.b32.xlu0 %v3090, 1
  %v3105 = vpop.permute.xlu0 %3104
  %3106 = vrot.lane.b32.xlu0 %v3094, 1
  %v3107 = vpop.permute.xlu0 %3106
  %3108 = vrot.lane.b32.xlu0 %v3091, 1
  %v3109 = vpop.permute.xlu0 %3108
  %3110 = vrot.lane.b32.xlu0 %v3095, 1
  %v3111 = vpop.permute.xlu0 %3110
  %v3112 = vsel %vm411, %v3105, %v3109
  %v3113 = vsel %vm411, %v3107, %v3111
  %v3114 = vsel %vm411, %v3101, %v3105
  %v3115 = vsel %vm411, %v3103, %v3107
  %v3116 = vsel %vm411, %v3097, %v3101
  %v3117 = vsel %vm411, %v3099, %v3103
  %v3118 = vsel %vm411, %v3109, %v3097
  %v3119 = vsel %vm411, %v3111, %v3099
  %v3120 = vmul.f32 %v3118, %v2759
  %v3121 = vmul.f32 %v3116, %v2760
  %v3122 = vmul.f32 %v3114, %v2761
  %v3123 = vmul.f32 %v3112, %v2762
  %v3124 = vmul.f32 %v3119, %v2759
  %v3125 = vmul.f32 %v3117, %v2760
  %v3126 = vmul.f32 %v3115, %v2761
  %v3127 = vmul.f32 %v3113, %v2762
  %3128 = vrot.lane.b32.xlu0 %v3088, 127
  %v3129 = vpop.permute.xlu0 %3128
  %3130 = vrot.lane.b32.xlu0 %v3092, 127
  %v3131 = vpop.permute.xlu0 %3130
  %3132 = vrot.lane.b32.xlu0 %v3089, 127
  %v3133 = vpop.permute.xlu0 %3132
  %3134 = vrot.lane.b32.xlu0 %v3093, 127
  %v3135 = vpop.permute.xlu0 %3134
  %3136 = vrot.lane.b32.xlu0 %v3090, 127
  %v3137 = vpop.permute.xlu0 %3136
  %3138 = vrot.lane.b32.xlu0 %v3094, 127
  %v3139 = vpop.permute.xlu0 %3138
  %3140 = vrot.lane.b32.xlu0 %v3091, 127
  %v3141 = vpop.permute.xlu0 %3140
  %3142 = vrot.lane.b32.xlu0 %v3095, 127
  %v3143 = vpop.permute.xlu0 %3142
  %v3144 = vsel %vm596, %v3137, %v3141
  %v3145 = vsel %vm596, %v3139, %v3143
  %v3146 = vsel %vm596, %v3133, %v3137
  %v3147 = vsel %vm596, %v3135, %v3139
  %v3148 = vsel %vm596, %v3129, %v3133
  %v3149 = vsel %vm596, %v3131, %v3135
  %v3150 = vsel %vm596, %v3141, %v3129
  %v3151 = vsel %vm596, %v3143, %v3131
  %v3152 = vmul.f32 %v3148, %v2803
  %v3153 = vmul.f32 %v3146, %v2804
  %v3154 = vmul.f32 %v3144, %v2805
  %v3155 = vmul.f32 %v3150, %v2806
  %v3156 = vmul.f32 %v3149, %v2803
  %v3157 = vmul.f32 %v3147, %v2804
  %v3158 = vmul.f32 %v3145, %v2805
  %v3159 = vmul.f32 %v3151, %v2806
  %v3160 = vld [vmem:[%s27] sm:$0xff]
  %v3161 = vld [vmem:[%s27 + $0x8] sm:$0xff]
  %v3162 = vld [vmem:[%s29] sm:$0xff]
  %v3163 = vld [vmem:[%s29 + $0x8] sm:$0xff]
  %3165 = vset.pattern.permute.xlu0 0
  %3166 = vperm.xlu0 %3165, %v3162
  %v3167 = vpop.permute.xlu0 %3166
  %3170 = vset.pattern.permute.xlu0 0
  %3171 = vperm.xlu0 %3170, %v3163
  %v3172 = vpop.permute.xlu0 %3171
  %v3175 = vsel %vm1048, %v3160, 0
  %v3178 = vsel %vm1048, %v3161, 0
  %3180 = vmatpush.msra.mxu0 0.0
  %3181 = vmatpush.msra.mxu0 0.0
  %3182 = vmatpush.msra.mxu0 0.0
  %3183 = vmatpush.msra.mxu0 0.0
  %3184 = vmatpush.msra.mxu0 0.0
  %3185 = vmatpush.msra.mxu0 0.0
  %3186 = vmatpush.msra.mxu0 0.0
  %3187 = vmatpush.msra.mxu0 0.0
  %3188 = vmatpush.msra.mxu0 0.0
  %3189 = vmatpush.msra.mxu0 0.0
  %3190 = vmatpush.msra.mxu0 %v3156
  %3191 = vmatpush.msra.mxu0 %v3152
  %3192 = vmatpush.msra.mxu0 %v3092
  %3193 = vmatpush.msra.mxu0 %v3088
  %3194 = vmatpush.msra.mxu0 %v3124
  %3195 = vmatpush.msra.mxu0 %v3120
  %3196 = vmatmul.f32.gmra.mxu0 %v3175
  %v3197 = vpop.f32.mrf.mxu0
  %v3198 = vadd.f32 %v3167, %v3197
  %3199 = vmatmul.f32.gmra.mxu0 %v3178
  %v3200 = vpop.f32.mrf.mxu0
  %v3201 = vadd.f32 %v3172, %v3200
  %3202 = vdwg.mxu0
  %3203 = vmatpush.msra.mxu0 0.0
  %3204 = vmatpush.msra.mxu0 0.0
  %3205 = vmatpush.msra.mxu0 0.0
  %3206 = vmatpush.msra.mxu0 0.0
  %3207 = vmatpush.msra.mxu0 0.0
  %3208 = vmatpush.msra.mxu0 0.0
  %3209 = vmatpush.msra.mxu0 0.0
  %3210 = vmatpush.msra.mxu0 0.0
  %3211 = vmatpush.msra.mxu0 0.0
  %3212 = vmatpush.msra.mxu0 0.0
  %3213 = vmatpush.msra.mxu0 %v3157
  %3214 = vmatpush.msra.mxu0 %v3153
  %3215 = vmatpush.msra.mxu0 %v3093
  %3216 = vmatpush.msra.mxu0 %v3089
  %3217 = vmatpush.msra.mxu0 %v3125
  %3218 = vmatpush.msra.mxu0 %v3121
  %3219 = vmatmul.f32.gmra.mxu0 %v3175
  %v3220 = vpop.f32.mrf.mxu0
  %v3221 = vadd.f32 %v3167, %v3220
  %3222 = vmatmul.f32.gmra.mxu0 %v3178
  %v3223 = vpop.f32.mrf.mxu0
  %v3224 = vadd.f32 %v3172, %v3223
  %3225 = vdwg.mxu0
  %3226 = vmatpush.msra.mxu0 0.0
  %3227 = vmatpush.msra.mxu0 0.0
  %3228 = vmatpush.msra.mxu0 0.0
  %3229 = vmatpush.msra.mxu0 0.0
  %3230 = vmatpush.msra.mxu0 0.0
  %3231 = vmatpush.msra.mxu0 0.0
  %3232 = vmatpush.msra.mxu0 0.0
  %3233 = vmatpush.msra.mxu0 0.0
  %3234 = vmatpush.msra.mxu0 0.0
  %3235 = vmatpush.msra.mxu0 0.0
  %3236 = vmatpush.msra.mxu0 %v3158
  %3237 = vmatpush.msra.mxu0 %v3154
  %3238 = vmatpush.msra.mxu0 %v3094
  %3239 = vmatpush.msra.mxu0 %v3090
  %3240 = vmatpush.msra.mxu0 %v3126
  %3241 = vmatpush.msra.mxu0 %v3122
  %3242 = vmatmul.f32.gmra.mxu0 %v3175
  %v3243 = vpop.f32.mrf.mxu0
  %v3244 = vadd.f32 %v3167, %v3243
  %3245 = vmatmul.f32.gmra.mxu0 %v3178
  %v3246 = vpop.f32.mrf.mxu0
  %v3247 = vadd.f32 %v3172, %v3246
  %3248 = vdwg.mxu0
  %3249 = vmatpush.msra.mxu0 0.0
  %3250 = vmatpush.msra.mxu0 0.0
  %3251 = vmatpush.msra.mxu0 0.0
  %3252 = vmatpush.msra.mxu0 0.0
  %3253 = vmatpush.msra.mxu0 0.0
  %3254 = vmatpush.msra.mxu0 0.0
  %3255 = vmatpush.msra.mxu0 0.0
  %3256 = vmatpush.msra.mxu0 0.0
  %3257 = vmatpush.msra.mxu0 0.0
  %3258 = vmatpush.msra.mxu0 0.0
  %3259 = vmatpush.msra.mxu0 %v3159
  %3260 = vmatpush.msra.mxu0 %v3155
  %3261 = vmatpush.msra.mxu0 %v3095
  %3262 = vmatpush.msra.mxu0 %v3091
  %3263 = vmatpush.msra.mxu0 %v3127
  %3264 = vmatpush.msra.mxu0 %v3123
  %3265 = vmatmul.f32.gmra.mxu0 %v3175
  %v3266 = vpop.f32.mrf.mxu0
  %v3267 = vadd.f32 %v3167, %v3266
  %3268 = vmatmul.f32.gmra.mxu0 %v3178
  %v3269 = vpop.f32.mrf.mxu0
  %v3270 = vadd.f32 %v3172, %v3269
  %3271 = vdwg.mxu0
  %v3272 = vld [vmem:[%s3] sm:$0xff]
  %v3273 = vld [vmem:[%s3 + $0x8] sm:$0xff]
  %v3274 = vld [vmem:[%s3 + $0x20] sm:$0xff]
  %v3275 = vld [vmem:[%s3 + $0x28] sm:$0xff]
  %v3276 = vld [vmem:[%s3 + $0x40] sm:$0xff]
  %v3277 = vld [vmem:[%s3 + $0x48] sm:$0xff]
  %v3278 = vld [vmem:[%s3 + $0x60] sm:$0xff]
  %v3279 = vld [vmem:[%s3 + $0x68] sm:$0xff]
  %v3280 = vld [vmem:[%s3 + $0x80] sm:$0xff]
  %v3281 = vld [vmem:[%s3 + $0x88] sm:$0xff]
  %v3282 = vld [vmem:[%s3 + $0xa0] sm:$0xff]
  %v3283 = vld [vmem:[%s3 + $0xa8] sm:$0xff]
  %v3284 = vld [vmem:[%s3 + $0xc0] sm:$0xff]
  %v3285 = vld [vmem:[%s3 + $0xc8] sm:$0xff]
  %v3286 = vld [vmem:[%s3 + $0xe0] sm:$0xff]
  %v3287 = vld [vmem:[%s3 + $0xe8] sm:$0xff]
  %v3288 = vld [vmem:[%s3 + $0x100] sm:$0xff]
  %v3289 = vld [vmem:[%s3 + $0x108] sm:$0xff]
  %v3290 = vld [vmem:[%s3 + $0x120] sm:$0xff]
  %v3291 = vld [vmem:[%s3 + $0x128] sm:$0xff]
  %v3292 = vld [vmem:[%s3 + $0x140] sm:$0xff]
  %v3293 = vld [vmem:[%s3 + $0x148] sm:$0xff]
  %v3294 = vld [vmem:[%s3 + $0x160] sm:$0xff]
  %v3295 = vld [vmem:[%s3 + $0x168] sm:$0xff]
  %v3296 = vld [vmem:[%s3 + $0x180] sm:$0xff]
  %v3297 = vld [vmem:[%s3 + $0x188] sm:$0xff]
  %v3298 = vld [vmem:[%s3 + $0x1a0] sm:$0xff]
  %v3299 = vld [vmem:[%s3 + $0x1a8] sm:$0xff]
  %v3300 = vld [vmem:[%s3 + $0x1c0] sm:$0xff]
  %v3301 = vld [vmem:[%s3 + $0x1c8] sm:$0xff]
  %v3302 = vld [vmem:[%s3 + $0x1e0] sm:$0xff]
  %v3303 = vld [vmem:[%s3 + $0x1e8] sm:$0xff]
  %v3304 = vld [vmem:[%s3 + $0x200] sm:$0xff]
  %v3305 = vld [vmem:[%s3 + $0x208] sm:$0xff]
  %v3306 = vld [vmem:[%s3 + $0x220] sm:$0xff]
  %v3307 = vld [vmem:[%s3 + $0x228] sm:$0xff]
  %v3308 = vld [vmem:[%s3 + $0x240] sm:$0xff]
  %v3309 = vld [vmem:[%s3 + $0x248] sm:$0xff]
  %v3310 = vld [vmem:[%s3 + $0x260] sm:$0xff]
  %v3311 = vld [vmem:[%s3 + $0x268] sm:$0xff]
  %v3312 = vld [vmem:[%s3 + $0x280] sm:$0xff]
  %v3313 = vld [vmem:[%s3 + $0x288] sm:$0xff]
  %v3314 = vld [vmem:[%s3 + $0x2a0] sm:$0xff]
  %v3315 = vld [vmem:[%s3 + $0x2a8] sm:$0xff]
  %v3316 = vld [vmem:[%s3 + $0x2c0] sm:$0xff]
  %v3317 = vld [vmem:[%s3 + $0x2c8] sm:$0xff]
  %v3318 = vld [vmem:[%s3 + $0x2e0] sm:$0xff]
  %v3319 = vld [vmem:[%s3 + $0x2e8] sm:$0xff]
  %v3320 = vld [vmem:[%s3 + $0x300] sm:$0xff]
  %v3321 = vld [vmem:[%s3 + $0x308] sm:$0xff]
  %v3322 = vld [vmem:[%s3 + $0x320] sm:$0xff]
  %v3323 = vld [vmem:[%s3 + $0x328] sm:$0xff]
  %v3324 = vld [vmem:[%s3 + $0x340] sm:$0xff]
  %v3325 = vld [vmem:[%s3 + $0x348] sm:$0xff]
  %v3326 = vld [vmem:[%s3 + $0x360] sm:$0xff]
  %v3327 = vld [vmem:[%s3 + $0x368] sm:$0xff]
  %v3328 = vld [vmem:[%s3 + $0x380] sm:$0xff]
  %v3329 = vld [vmem:[%s3 + $0x388] sm:$0xff]
  %v3330 = vld [vmem:[%s3 + $0x3a0] sm:$0xff]
  %v3331 = vld [vmem:[%s3 + $0x3a8] sm:$0xff]
  %v3332 = vld [vmem:[%s3 + $0x3c0] sm:$0xff]
  %v3333 = vld [vmem:[%s3 + $0x3c8] sm:$0xff]
  %v3334 = vld [vmem:[%s3 + $0x3e0] sm:$0xff]
  %v3335 = vld [vmem:[%s3 + $0x3e8] sm:$0xff]
  %v3336 = vld [vmem:[%s3 + $0x400] sm:$0xff]
  %v3337 = vld [vmem:[%s3 + $0x408] sm:$0xff]
  %v3338 = vld [vmem:[%s3 + $0x420] sm:$0xff]
  %v3339 = vld [vmem:[%s3 + $0x428] sm:$0xff]
  %v3340 = vld [vmem:[%s3 + $0x440] sm:$0xff]
  %v3341 = vld [vmem:[%s3 + $0x448] sm:$0xff]
  %v3342 = vld [vmem:[%s3 + $0x460] sm:$0xff]
  %v3343 = vld [vmem:[%s3 + $0x468] sm:$0xff]
  %v3344 = vld [vmem:[%s3 + $0x480] sm:$0xff]
  %v3345 = vld [vmem:[%s3 + $0x488] sm:$0xff]
  %v3346 = vld [vmem:[%s3 + $0x4a0] sm:$0xff]
  %v3347 = vld [vmem:[%s3 + $0x4a8] sm:$0xff]
  %v3348 = vld [vmem:[%s3 + $0x4c0] sm:$0xff]
  %v3349 = vld [vmem:[%s3 + $0x4c8] sm:$0xff]
  %v3350 = vld [vmem:[%s3 + $0x4e0] sm:$0xff]
  %v3351 = vld [vmem:[%s3 + $0x4e8] sm:$0xff]
  %v3352 = vld [vmem:[%s3 + $0x500] sm:$0xff]
  %v3353 = vld [vmem:[%s3 + $0x508] sm:$0xff]
  %v3354 = vld [vmem:[%s3 + $0x520] sm:$0xff]
  %v3355 = vld [vmem:[%s3 + $0x528] sm:$0xff]
  %v3356 = vld [vmem:[%s3 + $0x540] sm:$0xff]
  %v3357 = vld [vmem:[%s3 + $0x548] sm:$0xff]
  %v3358 = vld [vmem:[%s3 + $0x560] sm:$0xff]
  %v3359 = vld [vmem:[%s3 + $0x568] sm:$0xff]
  %v3360 = vld [vmem:[%s3 + $0x580] sm:$0xff]
  %v3361 = vld [vmem:[%s3 + $0x588] sm:$0xff]
  %v3362 = vld [vmem:[%s3 + $0x5a0] sm:$0xff]
  %v3363 = vld [vmem:[%s3 + $0x5a8] sm:$0xff]
  %v3364 = vld [vmem:[%s3 + $0x5c0] sm:$0xff]
  %v3365 = vld [vmem:[%s3 + $0x5c8] sm:$0xff]
  %v3366 = vld [vmem:[%s3 + $0x5e0] sm:$0xff]
  %v3367 = vld [vmem:[%s3 + $0x5e8] sm:$0xff]
  %v3368 = vld [vmem:[%s3 + $0x600] sm:$0xff]
  %v3369 = vld [vmem:[%s3 + $0x608] sm:$0xff]
  %v3370 = vld [vmem:[%s3 + $0x620] sm:$0xff]
  %v3371 = vld [vmem:[%s3 + $0x628] sm:$0xff]
  %v3372 = vld [vmem:[%s3 + $0x640] sm:$0xff]
  %v3373 = vld [vmem:[%s3 + $0x648] sm:$0xff]
  %v3374 = vld [vmem:[%s3 + $0x660] sm:$0xff]
  %v3375 = vld [vmem:[%s3 + $0x668] sm:$0xff]
  %v3376 = vld [vmem:[%s3 + $0x680] sm:$0xff]
  %v3377 = vld [vmem:[%s3 + $0x688] sm:$0xff]
  %v3378 = vld [vmem:[%s3 + $0x6a0] sm:$0xff]
  %v3379 = vld [vmem:[%s3 + $0x6a8] sm:$0xff]
  %v3380 = vld [vmem:[%s3 + $0x6c0] sm:$0xff]
  %v3381 = vld [vmem:[%s3 + $0x6c8] sm:$0xff]
  %v3382 = vld [vmem:[%s3 + $0x6e0] sm:$0xff]
  %v3383 = vld [vmem:[%s3 + $0x6e8] sm:$0xff]
  %v3384 = vld [vmem:[%s3 + $0x700] sm:$0xff]
  %v3385 = vld [vmem:[%s3 + $0x708] sm:$0xff]
  %v3386 = vld [vmem:[%s3 + $0x720] sm:$0xff]
  %v3387 = vld [vmem:[%s3 + $0x728] sm:$0xff]
  %v3388 = vld [vmem:[%s3 + $0x740] sm:$0xff]
  %v3389 = vld [vmem:[%s3 + $0x748] sm:$0xff]
  %v3390 = vld [vmem:[%s3 + $0x760] sm:$0xff]
  %v3391 = vld [vmem:[%s3 + $0x768] sm:$0xff]
  %v3392 = vld [vmem:[%s3 + $0x780] sm:$0xff]
  %v3393 = vld [vmem:[%s3 + $0x788] sm:$0xff]
  %v3394 = vld [vmem:[%s3 + $0x7a0] sm:$0xff]
  %v3395 = vld [vmem:[%s3 + $0x7a8] sm:$0xff]
  %v3396 = vld [vmem:[%s3 + $0x7c0] sm:$0xff]
  %v3397 = vld [vmem:[%s3 + $0x7c8] sm:$0xff]
  %v3398 = vld [vmem:[%s3 + $0x7e0] sm:$0xff]
  %v3399 = vld [vmem:[%s3 + $0x7e8] sm:$0xff]
  %3400 = vmatpush.msra.mxu0 %v3302
  %3401 = vmatpush.msra.mxu0 %v3300
  %3402 = vmatpush.msra.mxu0 %v3298
  %3403 = vmatpush.msra.mxu0 %v3296
  %3404 = vmatpush.msra.mxu0 %v3294
  %3405 = vmatpush.msra.mxu0 %v3292
  %3406 = vmatpush.msra.mxu0 %v3290
  %3407 = vmatpush.msra.mxu0 %v3288
  %3408 = vmatpush.msra.mxu0 %v3286
  %3409 = vmatpush.msra.mxu0 %v3284
  %3410 = vmatpush.msra.mxu0 %v3282
  %3411 = vmatpush.msra.mxu0 %v3280
  %3412 = vmatpush.msra.mxu0 %v3278
  %3413 = vmatpush.msra.mxu0 %v3276
  %3414 = vmatpush.msra.mxu0 %v3274
  %3415 = vmatpush.msra.mxu0 %v3272
  %3416 = vmatmul.f32.gmra.mxu0 %v3198
  %v3417 = vpop.f32.mrf.mxu0
  %v3418 = vadd.f32 0.0, %v3417
  %3419 = vmatmul.f32.gmra.mxu0 %v3201
  %v3420 = vpop.f32.mrf.mxu0
  %v3421 = vadd.f32 0.0, %v3420
  %3422 = vmatmul.f32.gmra.mxu0 %v3088
  %v3423 = vpop.f32.mrf.mxu0
  %v3424 = vadd.f32 0.0, %v3423
  %3425 = vmatmul.f32.gmra.mxu0 %v3092
  %v3426 = vpop.f32.mrf.mxu0
  %v3427 = vadd.f32 0.0, %v3426
  %3428 = vdwg.mxu0
  %3429 = vmatpush.msra.mxu0 %v3334
  %3430 = vmatpush.msra.mxu0 %v3332
  %3431 = vmatpush.msra.mxu0 %v3330
  %3432 = vmatpush.msra.mxu0 %v3328
  %3433 = vmatpush.msra.mxu0 %v3326
  %3434 = vmatpush.msra.mxu0 %v3324
  %3435 = vmatpush.msra.mxu0 %v3322
  %3436 = vmatpush.msra.mxu0 %v3320
  %3437 = vmatpush.msra.mxu0 %v3318
  %3438 = vmatpush.msra.mxu0 %v3316
  %3439 = vmatpush.msra.mxu0 %v3314
  %3440 = vmatpush.msra.mxu0 %v3312
  %3441 = vmatpush.msra.mxu0 %v3310
  %3442 = vmatpush.msra.mxu0 %v3308
  %3443 = vmatpush.msra.mxu0 %v3306
  %3444 = vmatpush.msra.mxu0 %v3304
  %3445 = vmatmul.f32.gmra.mxu0 %v3221
  %v3446 = vpop.f32.mrf.mxu0
  %v3447 = vadd.f32 %v3418, %v3446
  %3448 = vmatmul.f32.gmra.mxu0 %v3224
  %v3449 = vpop.f32.mrf.mxu0
  %v3450 = vadd.f32 %v3421, %v3449
  %3451 = vmatmul.f32.gmra.mxu0 %v3089
  %v3452 = vpop.f32.mrf.mxu0
  %v3453 = vadd.f32 %v3424, %v3452
  %3454 = vmatmul.f32.gmra.mxu0 %v3093
  %v3455 = vpop.f32.mrf.mxu0
  %v3456 = vadd.f32 %v3427, %v3455
  %3457 = vdwg.mxu0
  %3458 = vmatpush.msra.mxu0 %v3366
  %3459 = vmatpush.msra.mxu0 %v3364
  %3460 = vmatpush.msra.mxu0 %v3362
  %3461 = vmatpush.msra.mxu0 %v3360
  %3462 = vmatpush.msra.mxu0 %v3358
  %3463 = vmatpush.msra.mxu0 %v3356
  %3464 = vmatpush.msra.mxu0 %v3354
  %3465 = vmatpush.msra.mxu0 %v3352
  %3466 = vmatpush.msra.mxu0 %v3350
  %3467 = vmatpush.msra.mxu0 %v3348
  %3468 = vmatpush.msra.mxu0 %v3346
  %3469 = vmatpush.msra.mxu0 %v3344
  %3470 = vmatpush.msra.mxu0 %v3342
  %3471 = vmatpush.msra.mxu0 %v3340
  %3472 = vmatpush.msra.mxu0 %v3338
  %3473 = vmatpush.msra.mxu0 %v3336
  %3474 = vmatmul.f32.gmra.mxu0 %v3244
  %v3475 = vpop.f32.mrf.mxu0
  %v3476 = vadd.f32 %v3447, %v3475
  %3477 = vmatmul.f32.gmra.mxu0 %v3247
  %v3478 = vpop.f32.mrf.mxu0
  %v3479 = vadd.f32 %v3450, %v3478
  %3480 = vmatmul.f32.gmra.mxu0 %v3090
  %v3481 = vpop.f32.mrf.mxu0
  %v3482 = vadd.f32 %v3453, %v3481
  %3483 = vmatmul.f32.gmra.mxu0 %v3094
  %v3484 = vpop.f32.mrf.mxu0
  %v3485 = vadd.f32 %v3456, %v3484
  %3486 = vdwg.mxu0
  %3487 = vmatpush.msra.mxu0 %v3398
  %3488 = vmatpush.msra.mxu0 %v3396
  %3489 = vmatpush.msra.mxu0 %v3394
  %3490 = vmatpush.msra.mxu0 %v3392
  %3491 = vmatpush.msra.mxu0 %v3390
  %3492 = vmatpush.msra.mxu0 %v3388
  %3493 = vmatpush.msra.mxu0 %v3386
  %3494 = vmatpush.msra.mxu0 %v3384
  %3495 = vmatpush.msra.mxu0 %v3382
  %3496 = vmatpush.msra.mxu0 %v3380
  %3497 = vmatpush.msra.mxu0 %v3378
  %3498 = vmatpush.msra.mxu0 %v3376
  %3499 = vmatpush.msra.mxu0 %v3374
  %3500 = vmatpush.msra.mxu0 %v3372
  %3501 = vmatpush.msra.mxu0 %v3370
  %3502 = vmatpush.msra.mxu0 %v3368
  %3503 = vmatmul.f32.gmra.mxu0 %v3267
  %v3504 = vpop.f32.mrf.mxu0
  %v3505 = vadd.f32 %v3476, %v3504
  %3506 = vmatmul.f32.gmra.mxu0 %v3270
  %v3507 = vpop.f32.mrf.mxu0
  %v3508 = vadd.f32 %v3479, %v3507
  %3509 = vmatmul.f32.gmra.mxu0 %v3091
  %v3510 = vpop.f32.mrf.mxu0
  %v3511 = vadd.f32 %v3482, %v3510
  %3512 = vmatmul.f32.gmra.mxu0 %v3095
  %v3513 = vpop.f32.mrf.mxu0
  %v3514 = vadd.f32 %v3485, %v3513
  %3515 = vdwg.mxu0
  %3516 = vmatpush.msra.mxu0 %v3303
  %3517 = vmatpush.msra.mxu0 %v3301
  %3518 = vmatpush.msra.mxu0 %v3299
  %3519 = vmatpush.msra.mxu0 %v3297
  %3520 = vmatpush.msra.mxu0 %v3295
  %3521 = vmatpush.msra.mxu0 %v3293
  %3522 = vmatpush.msra.mxu0 %v3291
  %3523 = vmatpush.msra.mxu0 %v3289
  %3524 = vmatpush.msra.mxu0 %v3287
  %3525 = vmatpush.msra.mxu0 %v3285
  %3526 = vmatpush.msra.mxu0 %v3283
  %3527 = vmatpush.msra.mxu0 %v3281
  %3528 = vmatpush.msra.mxu0 %v3279
  %3529 = vmatpush.msra.mxu0 %v3277
  %3530 = vmatpush.msra.mxu0 %v3275
  %3531 = vmatpush.msra.mxu0 %v3273
  %3532 = vmatmul.f32.gmra.mxu0 %v3198
  %v3533 = vpop.f32.mrf.mxu0
  %v3534 = vadd.f32 0.0, %v3533
  %3535 = vmatmul.f32.gmra.mxu0 %v3201
  %v3536 = vpop.f32.mrf.mxu0
  %v3537 = vadd.f32 0.0, %v3536
  %3538 = vmatmul.f32.gmra.mxu0 %v3088
  %v3539 = vpop.f32.mrf.mxu0
  %v3540 = vadd.f32 0.0, %v3539
  %3541 = vmatmul.f32.gmra.mxu0 %v3092
  %v3542 = vpop.f32.mrf.mxu0
  %v3543 = vadd.f32 0.0, %v3542
  %3544 = vdwg.mxu0
  %3545 = vmatpush.msra.mxu0 %v3335
  %3546 = vmatpush.msra.mxu0 %v3333
  %3547 = vmatpush.msra.mxu0 %v3331
  %3548 = vmatpush.msra.mxu0 %v3329
  %3549 = vmatpush.msra.mxu0 %v3327
  %3550 = vmatpush.msra.mxu0 %v3325
  %3551 = vmatpush.msra.mxu0 %v3323
  %3552 = vmatpush.msra.mxu0 %v3321
  %3553 = vmatpush.msra.mxu0 %v3319
  %3554 = vmatpush.msra.mxu0 %v3317
  %3555 = vmatpush.msra.mxu0 %v3315
  %3556 = vmatpush.msra.mxu0 %v3313
  %3557 = vmatpush.msra.mxu0 %v3311
  %3558 = vmatpush.msra.mxu0 %v3309
  %3559 = vmatpush.msra.mxu0 %v3307
  %3560 = vmatpush.msra.mxu0 %v3305
  %3561 = vmatmul.f32.gmra.mxu0 %v3221
  %v3562 = vpop.f32.mrf.mxu0
  %v3563 = vadd.f32 %v3534, %v3562
  %3564 = vmatmul.f32.gmra.mxu0 %v3224
  %v3565 = vpop.f32.mrf.mxu0
  %v3566 = vadd.f32 %v3537, %v3565
  %3567 = vmatmul.f32.gmra.mxu0 %v3089
  %v3568 = vpop.f32.mrf.mxu0
  %v3569 = vadd.f32 %v3540, %v3568
  %3570 = vmatmul.f32.gmra.mxu0 %v3093
  %v3571 = vpop.f32.mrf.mxu0
  %v3572 = vadd.f32 %v3543, %v3571
  %3573 = vdwg.mxu0
  %3574 = vmatpush.msra.mxu0 %v3367
  %3575 = vmatpush.msra.mxu0 %v3365
  %3576 = vmatpush.msra.mxu0 %v3363
  %3577 = vmatpush.msra.mxu0 %v3361
  %3578 = vmatpush.msra.mxu0 %v3359
  %3579 = vmatpush.msra.mxu0 %v3357
  %3580 = vmatpush.msra.mxu0 %v3355
  %3581 = vmatpush.msra.mxu0 %v3353
  %3582 = vmatpush.msra.mxu0 %v3351
  %3583 = vmatpush.msra.mxu0 %v3349
  %3584 = vmatpush.msra.mxu0 %v3347
  %3585 = vmatpush.msra.mxu0 %v3345
  %3586 = vmatpush.msra.mxu0 %v3343
  %3587 = vmatpush.msra.mxu0 %v3341
  %3588 = vmatpush.msra.mxu0 %v3339
  %3589 = vmatpush.msra.mxu0 %v3337
  %3590 = vmatmul.f32.gmra.mxu0 %v3244
  %v3591 = vpop.f32.mrf.mxu0
  %v3592 = vadd.f32 %v3563, %v3591
  %3593 = vmatmul.f32.gmra.mxu0 %v3247
  %v3594 = vpop.f32.mrf.mxu0
  %v3595 = vadd.f32 %v3566, %v3594
  %3596 = vmatmul.f32.gmra.mxu0 %v3090
  %v3597 = vpop.f32.mrf.mxu0
  %v3598 = vadd.f32 %v3569, %v3597
  %3599 = vmatmul.f32.gmra.mxu0 %v3094
  %v3600 = vpop.f32.mrf.mxu0
  %v3601 = vadd.f32 %v3572, %v3600
  %3602 = vdwg.mxu0
  %3603 = vmatpush.msra.mxu0 %v3399
  %3604 = vmatpush.msra.mxu0 %v3397
  %3605 = vmatpush.msra.mxu0 %v3395
  %3606 = vmatpush.msra.mxu0 %v3393
  %3607 = vmatpush.msra.mxu0 %v3391
  %3608 = vmatpush.msra.mxu0 %v3389
  %3609 = vmatpush.msra.mxu0 %v3387
  %3610 = vmatpush.msra.mxu0 %v3385
  %3611 = vmatpush.msra.mxu0 %v3383
  %3612 = vmatpush.msra.mxu0 %v3381
  %3613 = vmatpush.msra.mxu0 %v3379
  %3614 = vmatpush.msra.mxu0 %v3377
  %3615 = vmatpush.msra.mxu0 %v3375
  %3616 = vmatpush.msra.mxu0 %v3373
  %3617 = vmatpush.msra.mxu0 %v3371
  %3618 = vmatpush.msra.mxu0 %v3369
  %3619 = vmatmul.f32.gmra.mxu0 %v3267
  %v3620 = vpop.f32.mrf.mxu0
  %v3621 = vadd.f32 %v3592, %v3620
  %3622 = vmatmul.f32.gmra.mxu0 %v3270
  %v3623 = vpop.f32.mrf.mxu0
  %v3624 = vadd.f32 %v3595, %v3623
  %3625 = vmatmul.f32.gmra.mxu0 %v3091
  %v3626 = vpop.f32.mrf.mxu0
  %v3627 = vadd.f32 %v3598, %v3626
  %3628 = vmatmul.f32.gmra.mxu0 %v3095
  %v3629 = vpop.f32.mrf.mxu0
  %v3630 = vadd.f32 %v3601, %v3629
  %3631 = vdwg.mxu0
  %vm3632 = vcmp.lt.s32.totalorder %v227, 0
  %v3633 = vsub.s32 0, %v227
  %v3634 = vsel %vm3632, %v3633, %v227
  %v3635 = vshrl.u32 %v3634, 7
  %v3636 = vand.u32 %v3634, 127
  %v3637 = vsub.s32 0, %v3636
  %v3638 = vsel %vm3632, %v3637, %v3636
  %vm3639 = vcmp.lt.s32.totalorder %v228, 0
  %v3640 = vsub.s32 0, %v228
  %v3641 = vsel %vm3639, %v3640, %v228
  %v3642 = vshrl.u32 %v3641, 7
  %v3643 = vand.u32 %v3641, 127
  %v3644 = vsub.s32 0, %v3643
  %v3645 = vsel %vm3639, %v3644, %v3643
  %vm3646 = vcmp.ne.s32.totalorder %v3638, 0
  %vm3647 = vcmp.ne.s32.totalorder %v3645, 0
  %vm3648 = vcmp.lt.s32.totalorder %v3638, 0
  %vm3649 = vcmp.lt.s32.totalorder %v3645, 0
  %vm3650 = vmand %vm3648, %vm3646
  %vm3651 = vmand %vm3649, %vm3647
  %v3652 = vadd.s32 %v3638, 128
  %v3653 = vadd.s32 %v3645, 128
  %v3654 = vsel %vm3650, %v3652, %v3638
  %v3655 = vsel %vm3651, %v3653, %v3645
  %3656 = vrot.lane.b32.xlu0 %v3505, 1
  %v3657 = vpop.permute.xlu0 %3656
  %3658 = vrot.lane.b32.xlu0 %v3508, 1
  %v3659 = vpop.permute.xlu0 %3658
  %3660 = vrot.lane.b32.xlu0 %v3621, 1
  %v3661 = vpop.permute.xlu0 %3660
  %3662 = vrot.lane.b32.xlu0 %v3624, 1
  %v3663 = vpop.permute.xlu0 %3662
  %v3664 = vsel %vm411, %v3657, %v3661
  %v3665 = vsel %vm411, %v3659, %v3663
  %v3666 = vsel %vm411, %v3661, %v3657
  %v3667 = vsel %vm411, %v3663, %v3659
  %vm3668 = vcmp.ne.s32.totalorder %v3654, 0
  %vm3669 = vcmp.ne.s32.totalorder %v3655, 0
  %v3670 = vsel %vm3668, 1, 0
  %v3671 = vsel %vm3669, 1, 0
  %v3672 = vcvt.s32.f32 %v3670
  %v3673 = vcvt.s32.f32 %v3671
  %v3674 = vmul.f32 %v3666, %v3672
  %v3675 = vmul.f32 %v3664, %v3673
  %v3676 = vmul.f32 %v3667, %v3672
  %v3677 = vmul.f32 %v3665, %v3673
  %3678 = vrot.lane.b32.xlu0 %v3505, 127
  %v3679 = vpop.permute.xlu0 %3678
  %3680 = vrot.lane.b32.xlu0 %v3508, 127
  %v3681 = vpop.permute.xlu0 %3680
  %3682 = vrot.lane.b32.xlu0 %v3621, 127
  %v3683 = vpop.permute.xlu0 %3682
  %3684 = vrot.lane.b32.xlu0 %v3624, 127
  %v3685 = vpop.permute.xlu0 %3684
  %v3686 = vsel %vm596, %v3679, %v3683
  %v3687 = vsel %vm596, %v3681, %v3685
  %v3688 = vsel %vm596, %v3683, %v3679
  %v3689 = vsel %vm596, %v3685, %v3681
  %vm3690 = vcmp.ne.s32.totalorder %v3654, 127
  %vm3691 = vcmp.ne.s32.totalorder %v3655, 127
  %v3692 = vsel %vm3690, 1, 0
  %v3693 = vsel %vm3691, 1, 0
  %v3694 = vcvt.s32.f32 %v3692
  %v3695 = vcvt.s32.f32 %v3693
  %v3696 = vmul.f32 %v3686, %v3694
  %v3697 = vmul.f32 %v3688, %v3695
  %v3698 = vmul.f32 %v3687, %v3694
  %v3699 = vmul.f32 %v3689, %v3695
  %v3700 = vld [vmem:[%s31] sm:$0xff]
  %v3701 = vld [vmem:[%s31 + $0x8] sm:$0xff]
  %v3702 = vld [vmem:[%s33] sm:$0xff]
  %v3703 = vld [vmem:[%s33 + $0x8] sm:$0xff]
  %3705 = vset.pattern.permute.xlu0 0
  %3706 = vperm.xlu0 %3705, %v3702
  %v3707 = vpop.permute.xlu0 %3706
  %3710 = vset.pattern.permute.xlu0 0
  %3711 = vperm.xlu0 %3710, %v3703
  %v3712 = vpop.permute.xlu0 %3711
  %v3715 = vsel %vm1048, %v3700, 0
  %v3718 = vsel %vm1048, %v3701, 0
  %3720 = vmatpush.msra.mxu0 0.0
  %3721 = vmatpush.msra.mxu0 0.0
  %3722 = vmatpush.msra.mxu0 0.0
  %3723 = vmatpush.msra.mxu0 0.0
  %3724 = vmatpush.msra.mxu0 0.0
  %3725 = vmatpush.msra.mxu0 0.0
  %3726 = vmatpush.msra.mxu0 0.0
  %3727 = vmatpush.msra.mxu0 0.0
  %3728 = vmatpush.msra.mxu0 0.0
  %3729 = vmatpush.msra.mxu0 0.0
  %3730 = vmatpush.msra.mxu0 %v3698
  %3731 = vmatpush.msra.mxu0 %v3696
  %3732 = vmatpush.msra.mxu0 %v3508
  %3733 = vmatpush.msra.mxu0 %v3505
  %3734 = vmatpush.msra.mxu0 %v3676
  %3735 = vmatpush.msra.mxu0 %v3674
  %3736 = vmatmul.f32.gmra.mxu0 %v3715
  %v3737 = vpop.f32.mrf.mxu0
  %v3738 = vadd.f32 %v3707, %v3737
  %3739 = vmatmul.f32.gmra.mxu0 %v3718
  %v3740 = vpop.f32.mrf.mxu0
  %v3741 = vadd.f32 %v3712, %v3740
  %3742 = vdwg.mxu0
  %3743 = vmatpush.msra.mxu0 0.0
  %3744 = vmatpush.msra.mxu0 0.0
  %3745 = vmatpush.msra.mxu0 0.0
  %3746 = vmatpush.msra.mxu0 0.0
  %3747 = vmatpush.msra.mxu0 0.0
  %3748 = vmatpush.msra.mxu0 0.0
  %3749 = vmatpush.msra.mxu0 0.0
  %3750 = vmatpush.msra.mxu0 0.0
  %3751 = vmatpush.msra.mxu0 0.0
  %3752 = vmatpush.msra.mxu0 0.0
  %3753 = vmatpush.msra.mxu0 %v3699
  %3754 = vmatpush.msra.mxu0 %v3697
  %3755 = vmatpush.msra.mxu0 %v3624
  %3756 = vmatpush.msra.mxu0 %v3621
  %3757 = vmatpush.msra.mxu0 %v3677
  %3758 = vmatpush.msra.mxu0 %v3675
  %3759 = vmatmul.f32.gmra.mxu0 %v3715
  %v3760 = vpop.f32.mrf.mxu0
  %v3761 = vadd.f32 %v3707, %v3760
  %3762 = vmatmul.f32.gmra.mxu0 %v3718
  %v3763 = vpop.f32.mrf.mxu0
  %v3764 = vadd.f32 %v3712, %v3763
  %3765 = vdwg.mxu0
  %v3766 = vld [vmem:[%s35] sm:$0xff]
  %v3767 = vld [vmem:[%s35 + $0x8] sm:$0xff]
  %v3768 = vld [vmem:[%s37] sm:$0xff]
  %v3769 = vld [vmem:[%s37 + $0x8] sm:$0xff]
  %3771 = vset.pattern.permute.xlu0 0
  %3772 = vperm.xlu0 %3771, %v3768
  %v3773 = vpop.permute.xlu0 %3772
  %3776 = vset.pattern.permute.xlu0 0
  %3777 = vperm.xlu0 %3776, %v3769
  %v3778 = vpop.permute.xlu0 %3777
  %v3781 = vsel %vm2941, %v3766, 0
  %v3784 = vsel %vm2941, %v3767, 0
  %3786 = vmatpush.msra.mxu0 0.0
  %3787 = vmatpush.msra.mxu0 0.0
  %3788 = vmatpush.msra.mxu0 0.0
  %3789 = vmatpush.msra.mxu0 0.0
  %3790 = vmatpush.msra.mxu0 0.0
  %3791 = vmatpush.msra.mxu0 0.0
  %3792 = vmatpush.msra.mxu0 0.0
  %3793 = vmatpush.msra.mxu0 0.0
  %3794 = vmatpush.msra.mxu0 0.0
  %3795 = vmatpush.msra.mxu0 0.0
  %3796 = vmatpush.msra.mxu0 0.0
  %3797 = vmatpush.msra.mxu0 0.0
  %3798 = vmatpush.msra.mxu0 0.0
  %3799 = vmatpush.msra.mxu0 0.0
  %3800 = vmatpush.msra.mxu0 %v3514
  %3801 = vmatpush.msra.mxu0 %v3511
  %3802 = vmatmul.f32.gmra.mxu0 %v3781
  %v3803 = vpop.f32.mrf.mxu0
  %v3804 = vadd.f32 %v3773, %v3803
  %3805 = vmatmul.f32.gmra.mxu0 %v3784
  %v3806 = vpop.f32.mrf.mxu0
  %v3807 = vadd.f32 %v3778, %v3806
  %3808 = vdwg.mxu0
  %3809 = vmatpush.msra.mxu0 0.0
  %3810 = vmatpush.msra.mxu0 0.0
  %3811 = vmatpush.msra.mxu0 0.0
  %3812 = vmatpush.msra.mxu0 0.0
  %3813 = vmatpush.msra.mxu0 0.0
  %3814 = vmatpush.msra.mxu0 0.0
  %3815 = vmatpush.msra.mxu0 0.0
  %3816 = vmatpush.msra.mxu0 0.0
  %3817 = vmatpush.msra.mxu0 0.0
  %3818 = vmatpush.msra.mxu0 0.0
  %3819 = vmatpush.msra.mxu0 0.0
  %3820 = vmatpush.msra.mxu0 0.0
  %3821 = vmatpush.msra.mxu0 0.0
  %3822 = vmatpush.msra.mxu0 0.0
  %3823 = vmatpush.msra.mxu0 %v3630
  %3824 = vmatpush.msra.mxu0 %v3627
  %3825 = vmatmul.f32.gmra.mxu0 %v3781
  %v3826 = vpop.f32.mrf.mxu0
  %v3827 = vadd.f32 %v3773, %v3826
  %3828 = vmatmul.f32.gmra.mxu0 %v3784
  %v3829 = vpop.f32.mrf.mxu0
  %v3830 = vadd.f32 %v3778, %v3829
  %3831 = vdwg.mxu0
  %v3832 = vadd.f32 %v3738, %v3804
  %v3833 = vadd.f32 %v3761, %v3827
  %v3834 = vadd.f32 %v3741, %v3807
  %v3835 = vadd.f32 %v3764, %v3830
  %vm3836 = vcmp.gt.f32.partialorder %v3832, 0.0
  %vm3837 = vcmp.gt.f32.partialorder %v3833, 0.0
  %vm3838 = vcmp.gt.f32.partialorder %v3834, 0.0
  %vm3839 = vcmp.gt.f32.partialorder %v3835, 0.0
  %v3840 = vmin.f32 %v3832, 0.0
  %v3841 = vmin.f32 %v3833, 0.0
  %v3842 = vmin.f32 %v3834, 0.0
  %v3843 = vmin.f32 %v3835, 0.0
  %v3844 = vmul.f32 %v3840, 1.442695
  %v3845 = vpow.pop %v3844
  %v3846 = vmul.f32 %v3841, 1.442695
  %v3847 = vpow.pop %v3846
  %v3848 = vmul.f32 %v3842, 1.442695
  %v3849 = vpow.pop %v3848
  %v3850 = vmul.f32 %v3843, 1.442695
  %v3851 = vpow.pop %v3850
  %v3852 = vsub.f32 %v3845, 1.0
  %v3853 = vsub.f32 %v3847, 1.0
  %v3854 = vsub.f32 %v3849, 1.0
  %v3855 = vsub.f32 %v3851, 1.0
  %v3856 = vsel %vm3836, %v3832, %v3852
  %v3857 = vsel %vm3837, %v3833, %v3853
  %v3858 = vsel %vm3838, %v3834, %v3854
  %v3859 = vsel %vm3839, %v3835, %v3855
  %3860 = vrot.lane.b32.xlu0 %v3856, 1
  %v3861 = vpop.permute.xlu0 %3860
  %3862 = vrot.lane.b32.xlu0 %v3858, 1
  %v3863 = vpop.permute.xlu0 %3862
  %3864 = vrot.lane.b32.xlu0 %v3857, 1
  %v3865 = vpop.permute.xlu0 %3864
  %3866 = vrot.lane.b32.xlu0 %v3859, 1
  %v3867 = vpop.permute.xlu0 %3866
  %v3868 = vsel %vm411, %v3861, %v3865
  %v3869 = vsel %vm411, %v3863, %v3867
  %v3870 = vsel %vm411, %v3865, %v3861
  %v3871 = vsel %vm411, %v3867, %v3863
  %v3872 = vmul.f32 %v3870, %v3672
  %v3873 = vmul.f32 %v3868, %v3673
  %v3874 = vmul.f32 %v3871, %v3672
  %v3875 = vmul.f32 %v3869, %v3673
  %3876 = vrot.lane.b32.xlu0 %v3856, 127
  %v3877 = vpop.permute.xlu0 %3876
  %3878 = vrot.lane.b32.xlu0 %v3858, 127
  %v3879 = vpop.permute.xlu0 %3878
  %3880 = vrot.lane.b32.xlu0 %v3857, 127
  %v3881 = vpop.permute.xlu0 %3880
  %3882 = vrot.lane.b32.xlu0 %v3859, 127
  %v3883 = vpop.permute.xlu0 %3882
  %v3884 = vsel %vm596, %v3877, %v3881
  %v3885 = vsel %vm596, %v3879, %v3883
  %v3886 = vsel %vm596, %v3881, %v3877
  %v3887 = vsel %vm596, %v3883, %v3879
  %v3888 = vmul.f32 %v3884, %v3694
  %v3889 = vmul.f32 %v3886, %v3695
  %v3890 = vmul.f32 %v3885, %v3694
  %v3891 = vmul.f32 %v3887, %v3695
  %v3892 = vld [vmem:[%s39] sm:$0xff]
  %v3893 = vld [vmem:[%s39 + $0x8] sm:$0xff]
  %v3894 = vld [vmem:[%s39 + $0x10] sm:$0xff]
  %v3895 = vld [vmem:[%s39 + $0x18] sm:$0xff]
  %v3896 = vld [vmem:[%s41] sm:$0xff]
  %v3897 = vld [vmem:[%s41 + $0x8] sm:$0xff]
  %v3898 = vld [vmem:[%s41 + $0x10] sm:$0xff]
  %v3899 = vld [vmem:[%s41 + $0x18] sm:$0xff]
  %3901 = vset.pattern.permute.xlu0 0
  %3902 = vperm.xlu0 %3901, %v3896
  %v3903 = vpop.permute.xlu0 %3902
  %3906 = vset.pattern.permute.xlu0 0
  %3907 = vperm.xlu0 %3906, %v3897
  %v3908 = vpop.permute.xlu0 %3907
  %3911 = vset.pattern.permute.xlu0 0
  %3912 = vperm.xlu0 %3911, %v3898
  %v3913 = vpop.permute.xlu0 %3912
  %3916 = vset.pattern.permute.xlu0 0
  %3917 = vperm.xlu0 %3916, %v3899
  %v3918 = vpop.permute.xlu0 %3917
  %v3921 = vsel %vm1048, %v3892, 0
  %v3924 = vsel %vm1048, %v3893, 0
  %v3927 = vsel %vm1048, %v3894, 0
  %v3930 = vsel %vm1048, %v3895, 0
  %3932 = vmatpush.msra.mxu0 0.0
  %3933 = vmatpush.msra.mxu0 0.0
  %3934 = vmatpush.msra.mxu0 0.0
  %3935 = vmatpush.msra.mxu0 0.0
  %3936 = vmatpush.msra.mxu0 0.0
  %3937 = vmatpush.msra.mxu0 0.0
  %3938 = vmatpush.msra.mxu0 0.0
  %3939 = vmatpush.msra.mxu0 0.0
  %3940 = vmatpush.msra.mxu0 0.0
  %3941 = vmatpush.msra.mxu0 0.0
  %3942 = vmatpush.msra.mxu0 %v3890
  %3943 = vmatpush.msra.mxu0 %v3888
  %3944 = vmatpush.msra.mxu0 %v3858
  %3945 = vmatpush.msra.mxu0 %v3856
  %3946 = vmatpush.msra.mxu0 %v3874
  %3947 = vmatpush.msra.mxu0 %v3872
  %3948 = vmatmul.f32.gmra.mxu0 %v3921
  %v3949 = vpop.f32.mrf.mxu0
  %v3950 = vadd.f32 %v3903, %v3949
  %3951 = vmatmul.f32.gmra.mxu0 %v3924
  %v3952 = vpop.f32.mrf.mxu0
  %v3953 = vadd.f32 %v3908, %v3952
  %3954 = vmatmul.f32.gmra.mxu0 %v3927
  %v3955 = vpop.f32.mrf.mxu0
  %v3956 = vadd.f32 %v3913, %v3955
  %3957 = vmatmul.f32.gmra.mxu0 %v3930
  %v3958 = vpop.f32.mrf.mxu0
  %v3959 = vadd.f32 %v3918, %v3958
  %3960 = vdwg.mxu0
  %3961 = vmatpush.msra.mxu0 0.0
  %3962 = vmatpush.msra.mxu0 0.0
  %3963 = vmatpush.msra.mxu0 0.0
  %3964 = vmatpush.msra.mxu0 0.0
  %3965 = vmatpush.msra.mxu0 0.0
  %3966 = vmatpush.msra.mxu0 0.0
  %3967 = vmatpush.msra.mxu0 0.0
  %3968 = vmatpush.msra.mxu0 0.0
  %3969 = vmatpush.msra.mxu0 0.0
  %3970 = vmatpush.msra.mxu0 0.0
  %3971 = vmatpush.msra.mxu0 %v3891
  %3972 = vmatpush.msra.mxu0 %v3889
  %3973 = vmatpush.msra.mxu0 %v3859
  %3974 = vmatpush.msra.mxu0 %v3857
  %3975 = vmatpush.msra.mxu0 %v3875
  %3976 = vmatpush.msra.mxu0 %v3873
  %3977 = vmatmul.f32.gmra.mxu0 %v3921
  %v3978 = vpop.f32.mrf.mxu0
  %v3979 = vadd.f32 %v3903, %v3978
  %3980 = vmatmul.f32.gmra.mxu0 %v3924
  %v3981 = vpop.f32.mrf.mxu0
  %v3982 = vadd.f32 %v3908, %v3981
  %3983 = vmatmul.f32.gmra.mxu0 %v3927
  %v3984 = vpop.f32.mrf.mxu0
  %v3985 = vadd.f32 %v3913, %v3984
  %3986 = vmatmul.f32.gmra.mxu0 %v3930
  %v3987 = vpop.f32.mrf.mxu0
  %v3988 = vadd.f32 %v3918, %v3987
  %3989 = vdwg.mxu0
  %v3990 = vld [vmem:[%s3] sm:$0xff]
  %v3991 = vld [vmem:[%s3 + $0x20] sm:$0xff]
  %v3992 = vld [vmem:[%s3 + $0x40] sm:$0xff]
  %v3993 = vld [vmem:[%s3 + $0x60] sm:$0xff]
  %v3994 = vld [vmem:[%s3 + $0x80] sm:$0xff]
  %v3995 = vld [vmem:[%s3 + $0xa0] sm:$0xff]
  %v3996 = vld [vmem:[%s3 + $0xc0] sm:$0xff]
  %v3997 = vld [vmem:[%s3 + $0xe0] sm:$0xff]
  %v3998 = vld [vmem:[%s3 + $0x100] sm:$0xff]
  %v3999 = vld [vmem:[%s3 + $0x120] sm:$0xff]
  %v4000 = vld [vmem:[%s3 + $0x140] sm:$0xff]
  %v4001 = vld [vmem:[%s3 + $0x160] sm:$0xff]
  %v4002 = vld [vmem:[%s3 + $0x180] sm:$0xff]
  %v4003 = vld [vmem:[%s3 + $0x1a0] sm:$0xff]
  %v4004 = vld [vmem:[%s3 + $0x1c0] sm:$0xff]
  %v4005 = vld [vmem:[%s3 + $0x1e0] sm:$0xff]
  %v4006 = vld [vmem:[%s3 + $0x200] sm:$0xff]
  %v4007 = vld [vmem:[%s3 + $0x220] sm:$0xff]
  %v4008 = vld [vmem:[%s3 + $0x240] sm:$0xff]
  %v4009 = vld [vmem:[%s3 + $0x260] sm:$0xff]
  %v4010 = vld [vmem:[%s3 + $0x280] sm:$0xff]
  %v4011 = vld [vmem:[%s3 + $0x2a0] sm:$0xff]
  %v4012 = vld [vmem:[%s3 + $0x2c0] sm:$0xff]
  %v4013 = vld [vmem:[%s3 + $0x2e0] sm:$0xff]
  %v4014 = vld [vmem:[%s3 + $0x300] sm:$0xff]
  %v4015 = vld [vmem:[%s3 + $0x320] sm:$0xff]
  %v4016 = vld [vmem:[%s3 + $0x340] sm:$0xff]
  %v4017 = vld [vmem:[%s3 + $0x360] sm:$0xff]
  %v4018 = vld [vmem:[%s3 + $0x380] sm:$0xff]
  %v4019 = vld [vmem:[%s3 + $0x3a0] sm:$0xff]
  %v4020 = vld [vmem:[%s3 + $0x3c0] sm:$0xff]
  %v4021 = vld [vmem:[%s3 + $0x3e0] sm:$0xff]
  %4022 = vmatpush.msra.mxu0 %v4005
  %4023 = vmatpush.msra.mxu0 %v4004
  %4024 = vmatpush.msra.mxu0 %v4003
  %4025 = vmatpush.msra.mxu0 %v4002
  %4026 = vmatpush.msra.mxu0 %v4001
  %4027 = vmatpush.msra.mxu0 %v4000
  %4028 = vmatpush.msra.mxu0 %v3999
  %4029 = vmatpush.msra.mxu0 %v3998
  %4030 = vmatpush.msra.mxu0 %v3997
  %4031 = vmatpush.msra.mxu0 %v3996
  %4032 = vmatpush.msra.mxu0 %v3995
  %4033 = vmatpush.msra.mxu0 %v3994
  %4034 = vmatpush.msra.mxu0 %v3993
  %4035 = vmatpush.msra.mxu0 %v3992
  %4036 = vmatpush.msra.mxu0 %v3991
  %4037 = vmatpush.msra.mxu0 %v3990
  %4038 = vmatmul.f32.gmra.mxu0 %v3950
  %v4039 = vpop.f32.mrf.mxu0
  %v4040 = vadd.f32 0.0, %v4039
  %4041 = vmatmul.f32.gmra.mxu0 %v3953
  %v4042 = vpop.f32.mrf.mxu0
  %v4043 = vadd.f32 0.0, %v4042
  %4044 = vmatmul.f32.gmra.mxu0 %v3956
  %v4045 = vpop.f32.mrf.mxu0
  %v4046 = vadd.f32 0.0, %v4045
  %4047 = vmatmul.f32.gmra.mxu0 %v3959
  %v4048 = vpop.f32.mrf.mxu0
  %v4049 = vadd.f32 0.0, %v4048
  %4050 = vmatmul.f32.gmra.mxu0 %v3856
  %v4051 = vpop.f32.mrf.mxu0
  %v4052 = vadd.f32 0.0, %v4051
  %4053 = vmatmul.f32.gmra.mxu0 %v3858
  %v4054 = vpop.f32.mrf.mxu0
  %v4055 = vadd.f32 0.0, %v4054
  %4056 = vdwg.mxu0
  %4057 = vmatpush.msra.mxu0 %v4021
  %4058 = vmatpush.msra.mxu0 %v4020
  %4059 = vmatpush.msra.mxu0 %v4019
  %4060 = vmatpush.msra.mxu0 %v4018
  %4061 = vmatpush.msra.mxu0 %v4017
  %4062 = vmatpush.msra.mxu0 %v4016
  %4063 = vmatpush.msra.mxu0 %v4015
  %4064 = vmatpush.msra.mxu0 %v4014
  %4065 = vmatpush.msra.mxu0 %v4013
  %4066 = vmatpush.msra.mxu0 %v4012
  %4067 = vmatpush.msra.mxu0 %v4011
  %4068 = vmatpush.msra.mxu0 %v4010
  %4069 = vmatpush.msra.mxu0 %v4009
  %4070 = vmatpush.msra.mxu0 %v4008
  %4071 = vmatpush.msra.mxu0 %v4007
  %4072 = vmatpush.msra.mxu0 %v4006
  %4073 = vmatmul.f32.gmra.mxu0 %v3979
  %v4074 = vpop.f32.mrf.mxu0
  %v4075 = vadd.f32 %v4040, %v4074
  %4076 = vmatmul.f32.gmra.mxu0 %v3982
  %v4077 = vpop.f32.mrf.mxu0
  %v4078 = vadd.f32 %v4043, %v4077
  %4079 = vmatmul.f32.gmra.mxu0 %v3985
  %v4080 = vpop.f32.mrf.mxu0
  %v4081 = vadd.f32 %v4046, %v4080
  %4082 = vmatmul.f32.gmra.mxu0 %v3988
  %v4083 = vpop.f32.mrf.mxu0
  %v4084 = vadd.f32 %v4049, %v4083
  %4085 = vmatmul.f32.gmra.mxu0 %v3857
  %v4086 = vpop.f32.mrf.mxu0
  %v4087 = vadd.f32 %v4052, %v4086
  %4088 = vmatmul.f32.gmra.mxu0 %v3859
  %v4089 = vpop.f32.mrf.mxu0
  %v4090 = vadd.f32 %v4055, %v4089
  %4091 = vdwg.mxu0
  %vm4092 = vcmp.lt.s32.totalorder %v227, 0
  %v4093 = vsub.s32 0, %v227
  %v4094 = vsel %vm4092, %v4093, %v227
  %v4095 = vshrl.u32 %v4094, 6
  %v4096 = vand.u32 %v4094, 63
  %v4097 = vsub.s32 0, %v4096
  %v4098 = vsel %vm4092, %v4097, %v4096
  %vm4099 = vcmp.ne.s32.totalorder %v4098, 0
  %vm4100 = vcmp.lt.s32.totalorder %v4098, 0
  %vm4101 = vmand %vm4100, %vm4099
  %v4102 = vadd.s32 %v4098, 64
  %v4103 = vsel %vm4101, %v4102, %v4098
  %4104 = vrot.lane.b32.xlu0 %v4075, 1
  %v4105 = vpop.permute.xlu0 %4104
  %4106 = vrot.lane.b32.xlu0 %v4078, 1
  %v4107 = vpop.permute.xlu0 %4106
  %4108 = vrot.lane.b32.xlu0 %v4081, 1
  %v4109 = vpop.permute.xlu0 %4108
  %4110 = vrot.lane.b32.xlu0 %v4084, 1
  %v4111 = vpop.permute.xlu0 %4110
  %vm4112 = vcmp.ne.s32.totalorder %v4103, 0
  %v4113 = vsel %vm4112, 1, 0
  %v4114 = vcvt.s32.f32 %v4113
  %v4115 = vmul.f32 %v4105, %v4114
  %v4116 = vmul.f32 %v4107, %v4114
  %v4117 = vmul.f32 %v4109, %v4114
  %v4118 = vmul.f32 %v4111, %v4114
  %4119 = vrot.lane.b32.xlu0 %v4075, 127
  %v4120 = vpop.permute.xlu0 %4119
  %4121 = vrot.lane.b32.xlu0 %v4078, 127
  %v4122 = vpop.permute.xlu0 %4121
  %4123 = vrot.lane.b32.xlu0 %v4081, 127
  %v4124 = vpop.permute.xlu0 %4123
  %4125 = vrot.lane.b32.xlu0 %v4084, 127
  %v4126 = vpop.permute.xlu0 %4125
  %vm4127 = vcmp.ne.s32.totalorder %v4103, 63
  %v4128 = vsel %vm4127, 1, 0
  %v4129 = vcvt.s32.f32 %v4128
  %v4130 = vmul.f32 %v4120, %v4129
  %v4131 = vmul.f32 %v4122, %v4129
  %v4132 = vmul.f32 %v4124, %v4129
  %v4133 = vmul.f32 %v4126, %v4129
  %v4134 = vld [vmem:[%s43] sm:$0xff]
  %v4135 = vld [vmem:[%s43 + $0x8] sm:$0xff]
  %v4136 = vld [vmem:[%s43 + $0x10] sm:$0xff]
  %v4137 = vld [vmem:[%s43 + $0x18] sm:$0xff]
  %v4138 = vld [vmem:[%s45] sm:$0xff]
  %v4139 = vld [vmem:[%s45 + $0x8] sm:$0xff]
  %v4140 = vld [vmem:[%s45 + $0x10] sm:$0xff]
  %v4141 = vld [vmem:[%s45 + $0x18] sm:$0xff]
  %4143 = vset.pattern.permute.xlu0 0
  %4144 = vperm.xlu0 %4143, %v4138
  %v4145 = vpop.permute.xlu0 %4144
  %4148 = vset.pattern.permute.xlu0 0
  %4149 = vperm.xlu0 %4148, %v4139
  %v4150 = vpop.permute.xlu0 %4149
  %4153 = vset.pattern.permute.xlu0 0
  %4154 = vperm.xlu0 %4153, %v4140
  %v4155 = vpop.permute.xlu0 %4154
  %4158 = vset.pattern.permute.xlu0 0
  %4159 = vperm.xlu0 %4158, %v4141
  %v4160 = vpop.permute.xlu0 %4159
  %vm4162 = vcmask 785408
  %v4164 = vsel %vm4162, %v4134, 0
  %v4167 = vsel %vm4162, %v4135, 0
  %v4170 = vsel %vm4162, %v4136, 0
  %v4173 = vsel %vm4162, %v4137, 0
  %4175 = vmatpush.msra.mxu0 0.0
  %4176 = vmatpush.msra.mxu0 0.0
  %4177 = vmatpush.msra.mxu0 0.0
  %4178 = vmatpush.msra.mxu0 0.0
  %4179 = vmatpush.msra.mxu0 %v4133
  %4180 = vmatpush.msra.mxu0 %v4132
  %4181 = vmatpush.msra.mxu0 %v4131
  %4182 = vmatpush.msra.mxu0 %v4130
  %4183 = vmatpush.msra.mxu0 %v4084
  %4184 = vmatpush.msra.mxu0 %v4081
  %4185 = vmatpush.msra.mxu0 %v4078
  %4186 = vmatpush.msra.mxu0 %v4075
  %4187 = vmatpush.msra.mxu0 %v4118
  %4188 = vmatpush.msra.mxu0 %v4117
  %4189 = vmatpush.msra.mxu0 %v4116
  %4190 = vmatpush.msra.mxu0 %v4115
  %4191 = vmatmul.f32.gmra.mxu0 %v4164
  %v4192 = vpop.f32.mrf.mxu0
  %v4193 = vadd.f32 %v4145, %v4192
  %4194 = vmatmul.f32.gmra.mxu0 %v4167
  %v4195 = vpop.f32.mrf.mxu0
  %v4196 = vadd.f32 %v4150, %v4195
  %4197 = vmatmul.f32.gmra.mxu0 %v4170
  %v4198 = vpop.f32.mrf.mxu0
  %v4199 = vadd.f32 %v4155, %v4198
  %4200 = vmatmul.f32.gmra.mxu0 %v4173
  %v4201 = vpop.f32.mrf.mxu0
  %v4202 = vadd.f32 %v4160, %v4201
  %4203 = vdwg.mxu0
  %v4204 = vld [vmem:[%s47] sm:$0xff]
  %v4205 = vld [vmem:[%s47 + $0x8] sm:$0xff]
  %v4206 = vld [vmem:[%s47 + $0x10] sm:$0xff]
  %v4207 = vld [vmem:[%s47 + $0x18] sm:$0xff]
  %v4208 = vld [vmem:[%s49] sm:$0xff]
  %v4209 = vld [vmem:[%s49 + $0x8] sm:$0xff]
  %v4210 = vld [vmem:[%s49 + $0x10] sm:$0xff]
  %v4211 = vld [vmem:[%s49 + $0x18] sm:$0xff]
  %4213 = vset.pattern.permute.xlu0 0
  %4214 = vperm.xlu0 %4213, %v4208
  %v4215 = vpop.permute.xlu0 %4214
  %4218 = vset.pattern.permute.xlu0 0
  %4219 = vperm.xlu0 %4218, %v4209
  %v4220 = vpop.permute.xlu0 %4219
  %4223 = vset.pattern.permute.xlu0 0
  %4224 = vperm.xlu0 %4223, %v4210
  %v4225 = vpop.permute.xlu0 %4224
  %4228 = vset.pattern.permute.xlu0 0
  %4229 = vperm.xlu0 %4228, %v4211
  %v4230 = vpop.permute.xlu0 %4229
  %v4233 = vsel %vm2941, %v4204, 0
  %v4236 = vsel %vm2941, %v4205, 0
  %v4239 = vsel %vm2941, %v4206, 0
  %v4242 = vsel %vm2941, %v4207, 0
  %4244 = vmatpush.msra.mxu0 0.0
  %4245 = vmatpush.msra.mxu0 0.0
  %4246 = vmatpush.msra.mxu0 0.0
  %4247 = vmatpush.msra.mxu0 0.0
  %4248 = vmatpush.msra.mxu0 0.0
  %4249 = vmatpush.msra.mxu0 0.0
  %4250 = vmatpush.msra.mxu0 0.0
  %4251 = vmatpush.msra.mxu0 0.0
  %4252 = vmatpush.msra.mxu0 0.0
  %4253 = vmatpush.msra.mxu0 0.0
  %4254 = vmatpush.msra.mxu0 0.0
  %4255 = vmatpush.msra.mxu0 0.0
  %4256 = vmatpush.msra.mxu0 0.0
  %4257 = vmatpush.msra.mxu0 0.0
  %4258 = vmatpush.msra.mxu0 %v4090
  %4259 = vmatpush.msra.mxu0 %v4087
  %4260 = vmatmul.f32.gmra.mxu0 %v4233
  %v4261 = vpop.f32.mrf.mxu0
  %v4262 = vadd.f32 %v4215, %v4261
  %4263 = vmatmul.f32.gmra.mxu0 %v4236
  %v4264 = vpop.f32.mrf.mxu0
  %v4265 = vadd.f32 %v4220, %v4264
  %4266 = vmatmul.f32.gmra.mxu0 %v4239
  %v4267 = vpop.f32.mrf.mxu0
  %v4268 = vadd.f32 %v4225, %v4267
  %4269 = vmatmul.f32.gmra.mxu0 %v4242
  %v4270 = vpop.f32.mrf.mxu0
  %v4271 = vadd.f32 %v4230, %v4270
  %4272 = vdwg.mxu0
  %v4273 = vadd.f32 %v4193, %v4262
  %v4274 = vadd.f32 %v4196, %v4265
  %v4275 = vadd.f32 %v4199, %v4268
  %v4276 = vadd.f32 %v4202, %v4271
  %vm4277 = vcmp.gt.f32.partialorder %v4273, 0.0
  %vm4278 = vcmp.gt.f32.partialorder %v4274, 0.0
  %vm4279 = vcmp.gt.f32.partialorder %v4275, 0.0
  %vm4280 = vcmp.gt.f32.partialorder %v4276, 0.0
  %v4281 = vmin.f32 %v4273, 0.0
  %v4282 = vmin.f32 %v4274, 0.0
  %v4283 = vmin.f32 %v4275, 0.0
  %v4284 = vmin.f32 %v4276, 0.0
  %v4285 = vmul.f32 %v4281, 1.442695
  %v4286 = vpow.pop %v4285
  %v4287 = vmul.f32 %v4282, 1.442695
  %v4288 = vpow.pop %v4287
  %v4289 = vmul.f32 %v4283, 1.442695
  %v4290 = vpow.pop %v4289
  %v4291 = vmul.f32 %v4284, 1.442695
  %v4292 = vpow.pop %v4291
  %v4293 = vsub.f32 %v4286, 1.0
  %v4294 = vsub.f32 %v4288, 1.0
  %v4295 = vsub.f32 %v4290, 1.0
  %v4296 = vsub.f32 %v4292, 1.0
  %v4297 = vsel %vm4277, %v4273, %v4293
  %v4298 = vsel %vm4278, %v4274, %v4294
  %v4299 = vsel %vm4279, %v4275, %v4295
  %v4300 = vsel %vm4280, %v4276, %v4296
  %4301 = vrot.lane.b32.xlu0 %v4297, 1
  %v4302 = vpop.permute.xlu0 %4301
  %4303 = vrot.lane.b32.xlu0 %v4298, 1
  %v4304 = vpop.permute.xlu0 %4303
  %4305 = vrot.lane.b32.xlu0 %v4299, 1
  %v4306 = vpop.permute.xlu0 %4305
  %4307 = vrot.lane.b32.xlu0 %v4300, 1
  %v4308 = vpop.permute.xlu0 %4307
  %v4309 = vmul.f32 %v4302, %v4114
  %v4310 = vmul.f32 %v4304, %v4114
  %v4311 = vmul.f32 %v4306, %v4114
  %v4312 = vmul.f32 %v4308, %v4114
  %4313 = vrot.lane.b32.xlu0 %v4297, 127
  %v4314 = vpop.permute.xlu0 %4313
  %4315 = vrot.lane.b32.xlu0 %v4298, 127
  %v4316 = vpop.permute.xlu0 %4315
  %4317 = vrot.lane.b32.xlu0 %v4299, 127
  %v4318 = vpop.permute.xlu0 %4317
  %4319 = vrot.lane.b32.xlu0 %v4300, 127
  %v4320 = vpop.permute.xlu0 %4319
  %v4321 = vmul.f32 %v4314, %v4129
  %v4322 = vmul.f32 %v4316, %v4129
  %v4323 = vmul.f32 %v4318, %v4129
  %v4324 = vmul.f32 %v4320, %v4129
  %v4325 = vld [vmem:[%s51] sm:$0xff]
  %v4326 = vld [vmem:[%s51 + $0x8] sm:$0xff]
  %v4327 = vld [vmem:[%s51 + $0x10] sm:$0xff]
  %v4328 = vld [vmem:[%s51 + $0x18] sm:$0xff]
  %v4329 = vld [vmem:[%s53] sm:$0xff]
  %v4330 = vld [vmem:[%s53 + $0x8] sm:$0xff]
  %v4331 = vld [vmem:[%s53 + $0x10] sm:$0xff]
  %v4332 = vld [vmem:[%s53 + $0x18] sm:$0xff]
  %4334 = vset.pattern.permute.xlu0 0
  %4335 = vperm.xlu0 %4334, %v4329
  %v4336 = vpop.permute.xlu0 %4335
  %4339 = vset.pattern.permute.xlu0 0
  %4340 = vperm.xlu0 %4339, %v4330
  %v4341 = vpop.permute.xlu0 %4340
  %4344 = vset.pattern.permute.xlu0 0
  %4345 = vperm.xlu0 %4344, %v4331
  %v4346 = vpop.permute.xlu0 %4345
  %4349 = vset.pattern.permute.xlu0 0
  %4350 = vperm.xlu0 %4349, %v4332
  %v4351 = vpop.permute.xlu0 %4350
  %v4354 = vsel %vm4162, %v4325, 0
  %v4357 = vsel %vm4162, %v4326, 0
  %v4360 = vsel %vm4162, %v4327, 0
  %v4363 = vsel %vm4162, %v4328, 0
  %4365 = vmatpush.msra.mxu0 0.0
  %4366 = vmatpush.msra.mxu0 0.0
  %4367 = vmatpush.msra.mxu0 0.0
  %4368 = vmatpush.msra.mxu0 0.0
  %4369 = vmatpush.msra.mxu0 %v4324
  %4370 = vmatpush.msra.mxu0 %v4323
  %4371 = vmatpush.msra.mxu0 %v4322
  %4372 = vmatpush.msra.mxu0 %v4321
  %4373 = vmatpush.msra.mxu0 %v4300
  %4374 = vmatpush.msra.mxu0 %v4299
  %4375 = vmatpush.msra.mxu0 %v4298
  %4376 = vmatpush.msra.mxu0 %v4297
  %4377 = vmatpush.msra.mxu0 %v4312
  %4378 = vmatpush.msra.mxu0 %v4311
  %4379 = vmatpush.msra.mxu0 %v4310
  %4380 = vmatpush.msra.mxu0 %v4309
  %4381 = vmatmul.f32.gmra.mxu0 %v4354
  %v4382 = vpop.f32.mrf.mxu0
  %v4383 = vadd.f32 %v4336, %v4382
  %4384 = vmatmul.f32.gmra.mxu0 %v4357
  %v4385 = vpop.f32.mrf.mxu0
  %v4386 = vadd.f32 %v4341, %v4385
  %4387 = vmatmul.f32.gmra.mxu0 %v4360
  %v4388 = vpop.f32.mrf.mxu0
  %v4389 = vadd.f32 %v4346, %v4388
  %4390 = vmatmul.f32.gmra.mxu0 %v4363
  %v4391 = vpop.f32.mrf.mxu0
  %v4392 = vadd.f32 %v4351, %v4391
  %4393 = vdwg.mxu0
  %v4394 = vld [vmem:[%s3] sm:$0xff]
  %v4395 = vld [vmem:[%s3 + $0x20] sm:$0xff]
  %v4396 = vld [vmem:[%s3 + $0x40] sm:$0xff]
  %v4397 = vld [vmem:[%s3 + $0x60] sm:$0xff]
  %v4398 = vld [vmem:[%s3 + $0x80] sm:$0xff]
  %v4399 = vld [vmem:[%s3 + $0xa0] sm:$0xff]
  %v4400 = vld [vmem:[%s3 + $0xc0] sm:$0xff]
  %v4401 = vld [vmem:[%s3 + $0xe0] sm:$0xff]
  %v4402 = vld [vmem:[%s3 + $0x100] sm:$0xff]
  %v4403 = vld [vmem:[%s3 + $0x120] sm:$0xff]
  %v4404 = vld [vmem:[%s3 + $0x140] sm:$0xff]
  %v4405 = vld [vmem:[%s3 + $0x160] sm:$0xff]
  %v4406 = vld [vmem:[%s3 + $0x180] sm:$0xff]
  %v4407 = vld [vmem:[%s3 + $0x1a0] sm:$0xff]
  %v4408 = vld [vmem:[%s3 + $0x1c0] sm:$0xff]
  %v4409 = vld [vmem:[%s3 + $0x1e0] sm:$0xff]
  %4410 = vmatpush.msra.mxu0 %v4409
  %4411 = vmatpush.msra.mxu0 %v4408
  %4412 = vmatpush.msra.mxu0 %v4407
  %4413 = vmatpush.msra.mxu0 %v4406
  %4414 = vmatpush.msra.mxu0 %v4405
  %4415 = vmatpush.msra.mxu0 %v4404
  %4416 = vmatpush.msra.mxu0 %v4403
  %4417 = vmatpush.msra.mxu0 %v4402
  %4418 = vmatpush.msra.mxu0 %v4401
  %4419 = vmatpush.msra.mxu0 %v4400
  %4420 = vmatpush.msra.mxu0 %v4399
  %4421 = vmatpush.msra.mxu0 %v4398
  %4422 = vmatpush.msra.mxu0 %v4397
  %4423 = vmatpush.msra.mxu0 %v4396
  %4424 = vmatpush.msra.mxu0 %v4395
  %4425 = vmatpush.msra.mxu0 %v4394
  %4426 = vmatmul.f32.gmra.mxu0 %v4383
  %v4427 = vpop.f32.mrf.mxu0
  %v4428 = vadd.f32 0.0, %v4427
  %4429 = vmatmul.f32.gmra.mxu0 %v4386
  %v4430 = vpop.f32.mrf.mxu0
  %v4431 = vadd.f32 0.0, %v4430
  %4432 = vmatmul.f32.gmra.mxu0 %v4389
  %v4433 = vpop.f32.mrf.mxu0
  %v4434 = vadd.f32 0.0, %v4433
  %4435 = vmatmul.f32.gmra.mxu0 %v4392
  %v4436 = vpop.f32.mrf.mxu0
  %v4437 = vadd.f32 0.0, %v4436
  %4438 = vmatmul.f32.gmra.mxu0 %v4297
  %v4439 = vpop.f32.mrf.mxu0
  %v4440 = vadd.f32 0.0, %v4439
  %4441 = vmatmul.f32.gmra.mxu0 %v4298
  %v4442 = vpop.f32.mrf.mxu0
  %v4443 = vadd.f32 0.0, %v4442
  %4444 = vmatmul.f32.gmra.mxu0 %v4299
  %v4445 = vpop.f32.mrf.mxu0
  %v4446 = vadd.f32 0.0, %v4445
  %4447 = vmatmul.f32.gmra.mxu0 %v4300
  %v4448 = vpop.f32.mrf.mxu0
  %v4449 = vadd.f32 0.0, %v4448
  %4450 = vdwg.mxu0
  %vm4451 = vcmp.lt.s32.totalorder %v227, 0
  %v4452 = vsub.s32 0, %v227
  %v4453 = vsel %vm4451, %v4452, %v227
  %v4454 = vshrl.u32 %v4453, 5
  %v4455 = vand.u32 %v4453, 31
  %v4456 = vsub.s32 0, %v4455
  %v4457 = vsel %vm4451, %v4456, %v4455
  %vm4458 = vcmp.ne.s32.totalorder %v4457, 0
  %vm4459 = vcmp.lt.s32.totalorder %v4457, 0
  %vm4460 = vmand %vm4459, %vm4458
  %v4461 = vadd.s32 %v4457, 32
  %v4462 = vsel %vm4460, %v4461, %v4457
  %vm4463 = vcmask 1048064
  %4464 = vrot.lane.b32.xlu0 %v4428, 64
  %v4465 = vpop.permute.xlu0 %4464
  %v4466 = vsel %vm4463, %v4465, %v4428
  %4467 = vrot.lane.b32.xlu0 %v4431, 64
  %v4468 = vpop.permute.xlu0 %4467
  %v4469 = vsel %vm4463, %v4468, %v4431
  %4470 = vrot.lane.b32.xlu0 %v4434, 64
  %v4471 = vpop.permute.xlu0 %4470
  %v4472 = vsel %vm4463, %v4471, %v4434
  %4473 = vrot.lane.b32.xlu0 %v4437, 64
  %v4474 = vpop.permute.xlu0 %4473
  %v4475 = vsel %vm4463, %v4474, %v4437
  %4476 = vrot.lane.b32.xlu0 %v4466, 64
  %v4477 = vpop.permute.xlu0 %4476
  %4478 = vrot.lane.b32.xlu0 %v4469, 64
  %v4479 = vpop.permute.xlu0 %4478
  %4480 = vrot.lane.b32.xlu0 %v4472, 64
  %v4481 = vpop.permute.xlu0 %4480
  %4482 = vrot.lane.b32.xlu0 %v4475, 64
  %v4483 = vpop.permute.xlu0 %4482
  %v4484 = vsel %vm4463, %v4477, %v4428
  %v4485 = vsel %vm4463, %v4479, %v4431
  %v4486 = vsel %vm4463, %v4481, %v4434
  %v4487 = vsel %vm4463, %v4483, %v4437
  %vm4488 = vcmp.ne.s32.totalorder %v4462, 0
  %v4489 = vsel %vm4488, 1, 0
  %v4490 = vcvt.s32.f32 %v4489
  %4492 = vrot.lane.b32.xlu0 %v4490, 63
  %v4493 = vpop.permute.xlu0 %4492
  %v4495 = vmul.f32 %v4484, %v4493
  %v4496 = vmul.f32 %v4485, %v4493
  %v4497 = vmul.f32 %v4486, %v4493
  %v4498 = vmul.f32 %v4487, %v4493
  %vm4499 = vcmp.ne.s32.totalorder %v4462, 31
  %v4500 = vsel %vm4499, 1, 0
  %v4501 = vcvt.s32.f32 %v4500
  %4503 = vrot.lane.b32.xlu0 %v4501, 1
  %v4504 = vpop.permute.xlu0 %4503
  %v4506 = vmul.f32 %v4484, %v4504
  %v4507 = vmul.f32 %v4485, %v4504
  %v4508 = vmul.f32 %v4486, %v4504
  %v4509 = vmul.f32 %v4487, %v4504
  %4514 = vrot.lane.b32.xlu0 %v4428, 63
  %v4515 = vpop.permute.xlu0 %4514
  %4516 = vrot.lane.b32.xlu0 %v4431, 63
  %v4517 = vpop.permute.xlu0 %4516
  %4518 = vrot.lane.b32.xlu0 %v4434, 63
  %v4519 = vpop.permute.xlu0 %4518
  %4520 = vrot.lane.b32.xlu0 %v4437, 63
  %v4521 = vpop.permute.xlu0 %4520
  %4526 = vrot.lane.b32.xlu0 %v4506, 62
  %v4527 = vpop.permute.xlu0 %4526
  %4528 = vrot.lane.b32.xlu0 %v4507, 62
  %v4529 = vpop.permute.xlu0 %4528
  %4530 = vrot.lane.b32.xlu0 %v4508, 62
  %v4531 = vpop.permute.xlu0 %4530
  %4532 = vrot.lane.b32.xlu0 %v4509, 62
  %v4533 = vpop.permute.xlu0 %4532
  %v4534 = vld [vmem:[%s55] sm:$0xff]
  %v4535 = vld [vmem:[%s55 + $0x8] sm:$0xff]
  %v4536 = vld [vmem:[%s55 + $0x10] sm:$0xff]
  %v4537 = vld [vmem:[%s55 + $0x18] sm:$0xff]
  %v4538 = vld [vmem:[%s57] sm:$0xff]
  %v4539 = vld [vmem:[%s57 + $0x8] sm:$0xff]
  %v4540 = vld [vmem:[%s57 + $0x10] sm:$0xff]
  %v4541 = vld [vmem:[%s57 + $0x18] sm:$0xff]
  %4543 = vset.pattern.permute.xlu0 0
  %4544 = vperm.xlu0 %4543, %v4538
  %v4545 = vpop.permute.xlu0 %4544
  %4548 = vset.pattern.permute.xlu0 0
  %4549 = vperm.xlu0 %4548, %v4539
  %v4550 = vpop.permute.xlu0 %4549
  %4553 = vset.pattern.permute.xlu0 0
  %4554 = vperm.xlu0 %4553, %v4540
  %v4555 = vpop.permute.xlu0 %4554
  %4558 = vset.pattern.permute.xlu0 0
  %4559 = vperm.xlu0 %4558, %v4541
  %v4560 = vpop.permute.xlu0 %4559
  %4566 = vrot.lane.b32.xlu0 %v4495, 65
  %v4567 = vpop.permute.xlu0 %4566
  %4568 = vrot.lane.b32.xlu0 %v4496, 65
  %v4569 = vpop.permute.xlu0 %4568
  %4570 = vrot.lane.b32.xlu0 %v4497, 65
  %v4571 = vpop.permute.xlu0 %4570
  %4572 = vrot.lane.b32.xlu0 %v4498, 65
  %v4573 = vpop.permute.xlu0 %4572
  %4574 = vrot.lane.b32.xlu0 %v4515, 65
  %v4575 = vpop.permute.xlu0 %4574
  %4576 = vrot.lane.b32.xlu0 %v4517, 65
  %v4577 = vpop.permute.xlu0 %4576
  %4578 = vrot.lane.b32.xlu0 %v4519, 65
  %v4579 = vpop.permute.xlu0 %4578
  %4580 = vrot.lane.b32.xlu0 %v4521, 65
  %v4581 = vpop.permute.xlu0 %4580
  %4582 = vrot.lane.b32.xlu0 %v4527, 65
  %v4583 = vpop.permute.xlu0 %4582
  %4584 = vrot.lane.b32.xlu0 %v4529, 65
  %v4585 = vpop.permute.xlu0 %4584
  %4586 = vrot.lane.b32.xlu0 %v4531, 65
  %v4587 = vpop.permute.xlu0 %4586
  %4588 = vrot.lane.b32.xlu0 %v4533, 65
  %v4589 = vpop.permute.xlu0 %4588
  %v4603 = vsel %vm4162, %v4534, 0
  %v4606 = vsel %vm4162, %v4535, 0
  %v4609 = vsel %vm4162, %v4536, 0
  %v4612 = vsel %vm4162, %v4537, 0
  %4614 = vmatpush.msra.mxu0 0.0
  %4615 = vmatpush.msra.mxu0 0.0
  %4616 = vmatpush.msra.mxu0 0.0
  %4617 = vmatpush.msra.mxu0 0.0
  %4618 = vmatpush.msra.mxu0 %v4589
  %4619 = vmatpush.msra.mxu0 %v4587
  %4620 = vmatpush.msra.mxu0 %v4585
  %4621 = vmatpush.msra.mxu0 %v4583
  %4622 = vmatpush.msra.mxu0 %v4581
  %4623 = vmatpush.msra.mxu0 %v4579
  %4624 = vmatpush.msra.mxu0 %v4577
  %4625 = vmatpush.msra.mxu0 %v4575
  %4626 = vmatpush.msra.mxu0 %v4573
  %4627 = vmatpush.msra.mxu0 %v4571
  %4628 = vmatpush.msra.mxu0 %v4569
  %4629 = vmatpush.msra.mxu0 %v4567
  %4630 = vmatmul.f32.gmra.mxu0 %v4603
  %v4631 = vpop.f32.mrf.mxu0
  %v4632 = vadd.f32 %v4545, %v4631
  %4633 = vmatmul.f32.gmra.mxu0 %v4606
  %v4634 = vpop.f32.mrf.mxu0
  %v4635 = vadd.f32 %v4550, %v4634
  %4636 = vmatmul.f32.gmra.mxu0 %v4609
  %v4637 = vpop.f32.mrf.mxu0
  %v4638 = vadd.f32 %v4555, %v4637
  %4639 = vmatmul.f32.gmra.mxu0 %v4612
  %v4640 = vpop.f32.mrf.mxu0
  %v4641 = vadd.f32 %v4560, %v4640
  %4642 = vdwg.mxu0
  %v4643 = vld [vmem:[%s59] sm:$0xff]
  %v4644 = vld [vmem:[%s59 + $0x8] sm:$0xff]
  %v4645 = vld [vmem:[%s59 + $0x10] sm:$0xff]
  %v4646 = vld [vmem:[%s59 + $0x18] sm:$0xff]
  %v4647 = vld [vmem:[%s61] sm:$0xff]
  %v4648 = vld [vmem:[%s61 + $0x8] sm:$0xff]
  %v4649 = vld [vmem:[%s61 + $0x10] sm:$0xff]
  %v4650 = vld [vmem:[%s61 + $0x18] sm:$0xff]
  %4652 = vset.pattern.permute.xlu0 0
  %4653 = vperm.xlu0 %4652, %v4647
  %v4654 = vpop.permute.xlu0 %4653
  %4657 = vset.pattern.permute.xlu0 0
  %4658 = vperm.xlu0 %4657, %v4648
  %v4659 = vpop.permute.xlu0 %4658
  %4662 = vset.pattern.permute.xlu0 0
  %4663 = vperm.xlu0 %4662, %v4649
  %v4664 = vpop.permute.xlu0 %4663
  %4667 = vset.pattern.permute.xlu0 0
  %4668 = vperm.xlu0 %4667, %v4650
  %v4669 = vpop.permute.xlu0 %4668
  %vm4671 = vcmask 261120
  %v4673 = vsel %vm4671, %v4643, 0
  %v4676 = vsel %vm4671, %v4644, 0
  %v4679 = vsel %vm4671, %v4645, 0
  %v4682 = vsel %vm4671, %v4646, 0
  %4684 = vmatpush.msra.mxu0 0.0
  %4685 = vmatpush.msra.mxu0 0.0
  %4686 = vmatpush.msra.mxu0 0.0
  %4687 = vmatpush.msra.mxu0 0.0
  %4688 = vmatpush.msra.mxu0 0.0
  %4689 = vmatpush.msra.mxu0 0.0
  %4690 = vmatpush.msra.mxu0 0.0
  %4691 = vmatpush.msra.mxu0 0.0
  %4692 = vmatpush.msra.mxu0 0.0
  %4693 = vmatpush.msra.mxu0 0.0
  %4694 = vmatpush.msra.mxu0 0.0
  %4695 = vmatpush.msra.mxu0 0.0
  %4696 = vmatpush.msra.mxu0 %v4449
  %4697 = vmatpush.msra.mxu0 %v4446
  %4698 = vmatpush.msra.mxu0 %v4443
  %4699 = vmatpush.msra.mxu0 %v4440
  %4700 = vmatmul.f32.gmra.mxu0 %v4673
  %v4701 = vpop.f32.mrf.mxu0
  %v4702 = vadd.f32 %v4654, %v4701
  %4703 = vmatmul.f32.gmra.mxu0 %v4676
  %v4704 = vpop.f32.mrf.mxu0
  %v4705 = vadd.f32 %v4659, %v4704
  %4706 = vmatmul.f32.gmra.mxu0 %v4679
  %v4707 = vpop.f32.mrf.mxu0
  %v4708 = vadd.f32 %v4664, %v4707
  %4709 = vmatmul.f32.gmra.mxu0 %v4682
  %v4710 = vpop.f32.mrf.mxu0
  %v4711 = vadd.f32 %v4669, %v4710
  %4712 = vdwg.mxu0
  %v4713 = vadd.f32 %v4632, %v4702
  %v4714 = vadd.f32 %v4635, %v4705
  %v4715 = vadd.f32 %v4638, %v4708
  %v4716 = vadd.f32 %v4641, %v4711
  %vm4717 = vcmp.gt.f32.partialorder %v4713, 0.0
  %vm4718 = vcmp.gt.f32.partialorder %v4714, 0.0
  %vm4719 = vcmp.gt.f32.partialorder %v4715, 0.0
  %vm4720 = vcmp.gt.f32.partialorder %v4716, 0.0
  %v4721 = vmin.f32 %v4713, 0.0
  %v4722 = vmin.f32 %v4714, 0.0
  %v4723 = vmin.f32 %v4715, 0.0
  %v4724 = vmin.f32 %v4716, 0.0
  %v4725 = vmul.f32 %v4721, 1.442695
  %v4726 = vpow.pop %v4725
  %v4727 = vmul.f32 %v4722, 1.442695
  %v4728 = vpow.pop %v4727
  %v4729 = vmul.f32 %v4723, 1.442695
  %v4730 = vpow.pop %v4729
  %v4731 = vmul.f32 %v4724, 1.442695
  %v4732 = vpow.pop %v4731
  %v4733 = vsub.f32 %v4726, 1.0
  %v4734 = vsub.f32 %v4728, 1.0
  %v4735 = vsub.f32 %v4730, 1.0
  %v4736 = vsub.f32 %v4732, 1.0
  %v4737 = vsel %vm4717, %v4713, %v4733
  %v4738 = vsel %vm4718, %v4714, %v4734
  %v4739 = vsel %vm4719, %v4715, %v4735
  %v4740 = vsel %vm4720, %v4716, %v4736
  %4741 = vrot.lane.b32.xlu0 %v4737, 64
  %v4742 = vpop.permute.xlu0 %4741
  %v4743 = vsel %vm4463, %v4742, %v4737
  %4744 = vrot.lane.b32.xlu0 %v4738, 64
  %v4745 = vpop.permute.xlu0 %4744
  %v4746 = vsel %vm4463, %v4745, %v4738
  %4747 = vrot.lane.b32.xlu0 %v4739, 64
  %v4748 = vpop.permute.xlu0 %4747
  %v4749 = vsel %vm4463, %v4748, %v4739
  %4750 = vrot.lane.b32.xlu0 %v4740, 64
  %v4751 = vpop.permute.xlu0 %4750
  %v4752 = vsel %vm4463, %v4751, %v4740
  %4753 = vrot.lane.b32.xlu0 %v4743, 64
  %v4754 = vpop.permute.xlu0 %4753
  %4755 = vrot.lane.b32.xlu0 %v4746, 64
  %v4756 = vpop.permute.xlu0 %4755
  %4757 = vrot.lane.b32.xlu0 %v4749, 64
  %v4758 = vpop.permute.xlu0 %4757
  %4759 = vrot.lane.b32.xlu0 %v4752, 64
  %v4760 = vpop.permute.xlu0 %4759
  %v4761 = vsel %vm4463, %v4754, %v4737
  %v4762 = vsel %vm4463, %v4756, %v4738
  %v4763 = vsel %vm4463, %v4758, %v4739
  %v4764 = vsel %vm4463, %v4760, %v4740
  %v4765 = vmul.f32 %v4761, %v4493
  %v4766 = vmul.f32 %v4762, %v4493
  %v4767 = vmul.f32 %v4763, %v4493
  %v4768 = vmul.f32 %v4764, %v4493
  %v4769 = vmul.f32 %v4761, %v4504
  %v4770 = vmul.f32 %v4762, %v4504
  %v4771 = vmul.f32 %v4763, %v4504
  %v4772 = vmul.f32 %v4764, %v4504
  %4777 = vrot.lane.b32.xlu0 %v4737, 63
  %v4778 = vpop.permute.xlu0 %4777
  %4779 = vrot.lane.b32.xlu0 %v4738, 63
  %v4780 = vpop.permute.xlu0 %4779
  %4781 = vrot.lane.b32.xlu0 %v4739, 63
  %v4782 = vpop.permute.xlu0 %4781
  %4783 = vrot.lane.b32.xlu0 %v4740, 63
  %v4784 = vpop.permute.xlu0 %4783
  %4789 = vrot.lane.b32.xlu0 %v4769, 62
  %v4790 = vpop.permute.xlu0 %4789
  %4791 = vrot.lane.b32.xlu0 %v4770, 62
  %v4792 = vpop.permute.xlu0 %4791
  %4793 = vrot.lane.b32.xlu0 %v4771, 62
  %v4794 = vpop.permute.xlu0 %4793
  %4795 = vrot.lane.b32.xlu0 %v4772, 62
  %v4796 = vpop.permute.xlu0 %4795
  %v4797 = vld [vmem:[%s63] sm:$0xff]
  %v4798 = vld [vmem:[%s63 + $0x8] sm:$0xff]
  %v4799 = vld [vmem:[%s63 + $0x10] sm:$0xff]
  %v4800 = vld [vmem:[%s63 + $0x18] sm:$0xff]
  %v4801 = vld [vmem:[%s63 + $0x20] sm:$0xff]
  %v4802 = vld [vmem:[%s63 + $0x28] sm:$0xff]
  %v4803 = vld [vmem:[%s63 + $0x30] sm:$0xff]
  %v4804 = vld [vmem:[%s63 + $0x38] sm:$0xff]
  %v4805 = vld [vmem:[%s65] sm:$0xff]
  %v4806 = vld [vmem:[%s65 + $0x8] sm:$0xff]
  %v4807 = vld [vmem:[%s65 + $0x10] sm:$0xff]
  %v4808 = vld [vmem:[%s65 + $0x18] sm:$0xff]
  %v4809 = vld [vmem:[%s65 + $0x20] sm:$0xff]
  %v4810 = vld [vmem:[%s65 + $0x28] sm:$0xff]
  %v4811 = vld [vmem:[%s65 + $0x30] sm:$0xff]
  %v4812 = vld [vmem:[%s65 + $0x38] sm:$0xff]
  %4814 = vset.pattern.permute.xlu0 0
  %4815 = vperm.xlu0 %4814, %v4805
  %v4816 = vpop.permute.xlu0 %4815
  %4819 = vset.pattern.permute.xlu0 0
  %4820 = vperm.xlu0 %4819, %v4806
  %v4821 = vpop.permute.xlu0 %4820
  %4824 = vset.pattern.permute.xlu0 0
  %4825 = vperm.xlu0 %4824, %v4807
  %v4826 = vpop.permute.xlu0 %4825
  %4829 = vset.pattern.permute.xlu0 0
  %4830 = vperm.xlu0 %4829, %v4808
  %v4831 = vpop.permute.xlu0 %4830
  %4834 = vset.pattern.permute.xlu0 0
  %4835 = vperm.xlu0 %4834, %v4809
  %v4836 = vpop.permute.xlu0 %4835
  %4839 = vset.pattern.permute.xlu0 0
  %4840 = vperm.xlu0 %4839, %v4810
  %v4841 = vpop.permute.xlu0 %4840
  %4844 = vset.pattern.permute.xlu0 0
  %4845 = vperm.xlu0 %4844, %v4811
  %v4846 = vpop.permute.xlu0 %4845
  %4849 = vset.pattern.permute.xlu0 0
  %4850 = vperm.xlu0 %4849, %v4812
  %v4851 = vpop.permute.xlu0 %4850
  %4857 = vrot.lane.b32.xlu0 %v4765, 65
  %v4858 = vpop.permute.xlu0 %4857
  %4859 = vrot.lane.b32.xlu0 %v4766, 65
  %v4860 = vpop.permute.xlu0 %4859
  %4861 = vrot.lane.b32.xlu0 %v4767, 65
  %v4862 = vpop.permute.xlu0 %4861
  %4863 = vrot.lane.b32.xlu0 %v4768, 65
  %v4864 = vpop.permute.xlu0 %4863
  %4865 = vrot.lane.b32.xlu0 %v4778, 65
  %v4866 = vpop.permute.xlu0 %4865
  %4867 = vrot.lane.b32.xlu0 %v4780, 65
  %v4868 = vpop.permute.xlu0 %4867
  %4869 = vrot.lane.b32.xlu0 %v4782, 65
  %v4870 = vpop.permute.xlu0 %4869
  %4871 = vrot.lane.b32.xlu0 %v4784, 65
  %v4872 = vpop.permute.xlu0 %4871
  %4873 = vrot.lane.b32.xlu0 %v4790, 65
  %v4874 = vpop.permute.xlu0 %4873
  %4875 = vrot.lane.b32.xlu0 %v4792, 65
  %v4876 = vpop.permute.xlu0 %4875
  %4877 = vrot.lane.b32.xlu0 %v4794, 65
  %v4878 = vpop.permute.xlu0 %4877
  %4879 = vrot.lane.b32.xlu0 %v4796, 65
  %v4880 = vpop.permute.xlu0 %4879
  %v4894 = vsel %vm4162, %v4797, 0
  %v4897 = vsel %vm4162, %v4798, 0
  %v4900 = vsel %vm4162, %v4799, 0
  %v4903 = vsel %vm4162, %v4800, 0
  %v4906 = vsel %vm4162, %v4801, 0
  %v4909 = vsel %vm4162, %v4802, 0
  %v4912 = vsel %vm4162, %v4803, 0
  %v4915 = vsel %vm4162, %v4804, 0
  %4917 = vmatpush.msra.mxu0 0.0
  %4918 = vmatpush.msra.mxu0 0.0
  %4919 = vmatpush.msra.mxu0 0.0
  %4920 = vmatpush.msra.mxu0 0.0
  %4921 = vmatpush.msra.mxu0 %v4880
  %4922 = vmatpush.msra.mxu0 %v4878
  %4923 = vmatpush.msra.mxu0 %v4876
  %4924 = vmatpush.msra.mxu0 %v4874
  %4925 = vmatpush.msra.mxu0 %v4872
  %4926 = vmatpush.msra.mxu0 %v4870
  %4927 = vmatpush.msra.mxu0 %v4868
  %4928 = vmatpush.msra.mxu0 %v4866
  %4929 = vmatpush.msra.mxu0 %v4864
  %4930 = vmatpush.msra.mxu0 %v4862
  %4931 = vmatpush.msra.mxu0 %v4860
  %4932 = vmatpush.msra.mxu0 %v4858
  %4933 = vmatmul.f32.gmra.mxu0 %v4894
  %v4934 = vpop.f32.mrf.mxu0
  %v4935 = vadd.f32 %v4816, %v4934
  %4936 = vmatmul.f32.gmra.mxu0 %v4897
  %v4937 = vpop.f32.mrf.mxu0
  %v4938 = vadd.f32 %v4821, %v4937
  %4939 = vmatmul.f32.gmra.mxu0 %v4900
  %v4940 = vpop.f32.mrf.mxu0
  %v4941 = vadd.f32 %v4826, %v4940
  %4942 = vmatmul.f32.gmra.mxu0 %v4903
  %v4943 = vpop.f32.mrf.mxu0
  %v4944 = vadd.f32 %v4831, %v4943
  %4945 = vmatmul.f32.gmra.mxu0 %v4906
  %v4946 = vpop.f32.mrf.mxu0
  %v4947 = vadd.f32 %v4836, %v4946
  %4948 = vmatmul.f32.gmra.mxu0 %v4909
  %v4949 = vpop.f32.mrf.mxu0
  %v4950 = vadd.f32 %v4841, %v4949
  %4951 = vmatmul.f32.gmra.mxu0 %v4912
  %v4952 = vpop.f32.mrf.mxu0
  %v4953 = vadd.f32 %v4846, %v4952
  %4954 = vmatmul.f32.gmra.mxu0 %v4915
  %v4955 = vpop.f32.mrf.mxu0
  %v4956 = vadd.f32 %v4851, %v4955
  %4957 = vdwg.mxu0
  %v4958 = vld [vmem:[%s3] sm:$0xff]
  %v4959 = vld [vmem:[%s3 + $0x20] sm:$0xff]
  %v4960 = vld [vmem:[%s3 + $0x40] sm:$0xff]
  %v4961 = vld [vmem:[%s3 + $0x60] sm:$0xff]
  %v4962 = vld [vmem:[%s3 + $0x80] sm:$0xff]
  %v4963 = vld [vmem:[%s3 + $0xa0] sm:$0xff]
  %v4964 = vld [vmem:[%s3 + $0xc0] sm:$0xff]
  %v4965 = vld [vmem:[%s3 + $0xe0] sm:$0xff]
  %vm4966 = vcmask 523264
  %v4968 = vsel %vm4966, %v4935, 0
  %v4971 = vsel %vm4966, %v4938, 0
  %v4974 = vsel %vm4966, %v4941, 0
  %v4977 = vsel %vm4966, %v4944, 0
  %v4980 = vsel %vm4966, %v4947, 0
  %v4983 = vsel %vm4966, %v4950, 0
  %v4986 = vsel %vm4966, %v4953, 0
  %v4989 = vsel %vm4966, %v4956, 0
  %v4991 = vsel %vm4966, %v4737, 0
  %v4993 = vsel %vm4966, %v4738, 0
  %v4995 = vsel %vm4966, %v4739, 0
  %v4997 = vsel %vm4966, %v4740, 0
  %4999 = vmatpush.msra.mxu0 0.0
  %5000 = vmatpush.msra.mxu0 0.0
  %5001 = vmatpush.msra.mxu0 0.0
  %5002 = vmatpush.msra.mxu0 0.0
  %5003 = vmatpush.msra.mxu0 0.0
  %5004 = vmatpush.msra.mxu0 0.0
  %5005 = vmatpush.msra.mxu0 0.0
  %5006 = vmatpush.msra.mxu0 0.0
  %5007 = vmatpush.msra.mxu0 %v4965
  %5008 = vmatpush.msra.mxu0 %v4964
  %5009 = vmatpush.msra.mxu0 %v4963
  %5010 = vmatpush.msra.mxu0 %v4962
  %5011 = vmatpush.msra.mxu0 %v4961
  %5012 = vmatpush.msra.mxu0 %v4960
  %5013 = vmatpush.msra.mxu0 %v4959
  %5014 = vmatpush.msra.mxu0 %v4958
  %5015 = vmatmul.f32.gmra.mxu0 %v4968
  %v5016 = vpop.f32.mrf.mxu0
  %v5017 = vadd.f32 0.0, %v5016
  %5018 = vmatmul.f32.gmra.mxu0 %v4971
  %v5019 = vpop.f32.mrf.mxu0
  %v5020 = vadd.f32 0.0, %v5019
  %5021 = vmatmul.f32.gmra.mxu0 %v4974
  %v5022 = vpop.f32.mrf.mxu0
  %v5023 = vadd.f32 0.0, %v5022
  %5024 = vmatmul.f32.gmra.mxu0 %v4977
  %v5025 = vpop.f32.mrf.mxu0
  %v5026 = vadd.f32 0.0, %v5025
  %5027 = vmatmul.f32.gmra.mxu0 %v4980
  %v5028 = vpop.f32.mrf.mxu0
  %v5029 = vadd.f32 0.0, %v5028
  %5030 = vmatmul.f32.gmra.mxu0 %v4983
  %v5031 = vpop.f32.mrf.mxu0
  %v5032 = vadd.f32 0.0, %v5031
  %5033 = vmatmul.f32.gmra.mxu0 %v4986
  %v5034 = vpop.f32.mrf.mxu0
  %v5035 = vadd.f32 0.0, %v5034
  %5036 = vmatmul.f32.gmra.mxu0 %v4989
  %v5037 = vpop.f32.mrf.mxu0
  %v5038 = vadd.f32 0.0, %v5037
  %5039 = vmatmul.f32.gmra.mxu0 %v4991
  %v5040 = vpop.f32.mrf.mxu0
  %v5041 = vadd.f32 0.0, %v5040
  %5042 = vmatmul.f32.gmra.mxu0 %v4993
  %v5043 = vpop.f32.mrf.mxu0
  %v5044 = vadd.f32 0.0, %v5043
  %5045 = vmatmul.f32.gmra.mxu0 %v4995
  %v5046 = vpop.f32.mrf.mxu0
  %v5047 = vadd.f32 0.0, %v5046
  %5048 = vmatmul.f32.gmra.mxu0 %v4997
  %v5049 = vpop.f32.mrf.mxu0
  %v5050 = vadd.f32 0.0, %v5049
  %5051 = vdwg.mxu0
  %vm5052 = vcmp.lt.s32.totalorder %v227, 0
  %v5053 = vsub.s32 0, %v227
  %v5054 = vsel %vm5052, %v5053, %v227
  %v5055 = vshrl.u32 %v5054, 4
  %v5056 = vand.u32 %v5054, 15
  %v5057 = vsub.s32 0, %v5056
  %v5058 = vsel %vm5052, %v5057, %v5056
  %vm5059 = vcmp.ne.s32.totalorder %v5058, 0
  %vm5060 = vcmp.lt.s32.totalorder %v5058, 0
  %vm5061 = vmand %vm5060, %vm5059
  %v5062 = vadd.s32 %v5058, 16
  %v5063 = vsel %vm5061, %v5062, %v5058
  %vm5064 = vcmask 1047808
  %5065 = vrot.lane.b32.xlu0 %v5017, 32
  %v5066 = vpop.permute.xlu0 %5065
  %v5067 = vsel %vm5064, %v5066, %v5017
  %5068 = vrot.lane.b32.xlu0 %v5020, 32
  %v5069 = vpop.permute.xlu0 %5068
  %v5070 = vsel %vm5064, %v5069, %v5020
  %5071 = vrot.lane.b32.xlu0 %v5023, 32
  %v5072 = vpop.permute.xlu0 %5071
  %v5073 = vsel %vm5064, %v5072, %v5023
  %5074 = vrot.lane.b32.xlu0 %v5026, 32
  %v5075 = vpop.permute.xlu0 %5074
  %v5076 = vsel %vm5064, %v5075, %v5026
  %5077 = vrot.lane.b32.xlu0 %v5029, 32
  %v5078 = vpop.permute.xlu0 %5077
  %v5079 = vsel %vm5064, %v5078, %v5029
  %5080 = vrot.lane.b32.xlu0 %v5032, 32
  %v5081 = vpop.permute.xlu0 %5080
  %v5082 = vsel %vm5064, %v5081, %v5032
  %5083 = vrot.lane.b32.xlu0 %v5035, 32
  %v5084 = vpop.permute.xlu0 %5083
  %v5085 = vsel %vm5064, %v5084, %v5035
  %5086 = vrot.lane.b32.xlu0 %v5038, 32
  %v5087 = vpop.permute.xlu0 %5086
  %v5088 = vsel %vm5064, %v5087, %v5038
  %5089 = vrot.lane.b32.xlu0 %v5067, 32
  %v5090 = vpop.permute.xlu0 %5089
  %5091 = vrot.lane.b32.xlu0 %v5070, 32
  %v5092 = vpop.permute.xlu0 %5091
  %5093 = vrot.lane.b32.xlu0 %v5073, 32
  %v5094 = vpop.permute.xlu0 %5093
  %5095 = vrot.lane.b32.xlu0 %v5076, 32
  %v5096 = vpop.permute.xlu0 %5095
  %5097 = vrot.lane.b32.xlu0 %v5079, 32
  %v5098 = vpop.permute.xlu0 %5097
  %5099 = vrot.lane.b32.xlu0 %v5082, 32
  %v5100 = vpop.permute.xlu0 %5099
  %5101 = vrot.lane.b32.xlu0 %v5085, 32
  %v5102 = vpop.permute.xlu0 %5101
  %5103 = vrot.lane.b32.xlu0 %v5088, 32
  %v5104 = vpop.permute.xlu0 %5103
  %v5105 = vsel %vm5064, %v5090, %v5017
  %v5106 = vsel %vm5064, %v5092, %v5020
  %v5107 = vsel %vm5064, %v5094, %v5023
  %v5108 = vsel %vm5064, %v5096, %v5026
  %v5109 = vsel %vm5064, %v5098, %v5029
  %v5110 = vsel %vm5064, %v5100, %v5032
  %v5111 = vsel %vm5064, %v5102, %v5035
  %v5112 = vsel %vm5064, %v5104, %v5038
  %vm5113 = vcmp.ne.s32.totalorder %v5063, 0
  %v5114 = vsel %vm5113, 1, 0
  %v5115 = vcvt.s32.f32 %v5114
  %5117 = vrot.lane.b32.xlu0 %v5115, 31
  %v5118 = vpop.permute.xlu0 %5117
  %v5120 = vmul.f32 %v5105, %v5118
  %v5121 = vmul.f32 %v5106, %v5118
  %v5122 = vmul.f32 %v5107, %v5118
  %v5123 = vmul.f32 %v5108, %v5118
  %v5124 = vmul.f32 %v5109, %v5118
  %v5125 = vmul.f32 %v5110, %v5118
  %v5126 = vmul.f32 %v5111, %v5118
  %v5127 = vmul.f32 %v5112, %v5118
  %vm5128 = vcmp.ne.s32.totalorder %v5063, 15
  %v5129 = vsel %vm5128, 1, 0
  %v5130 = vcvt.s32.f32 %v5129
  %5132 = vrot.lane.b32.xlu0 %v5130, 1
  %v5133 = vpop.permute.xlu0 %5132
  %v5135 = vmul.f32 %v5105, %v5133
  %v5136 = vmul.f32 %v5106, %v5133
  %v5137 = vmul.f32 %v5107, %v5133
  %v5138 = vmul.f32 %v5108, %v5133
  %v5139 = vmul.f32 %v5109, %v5133
  %v5140 = vmul.f32 %v5110, %v5133
  %v5141 = vmul.f32 %v5111, %v5133
  %v5142 = vmul.f32 %v5112, %v5133
  %5151 = vrot.lane.b32.xlu0 %v5017, 31
  %v5152 = vpop.permute.xlu0 %5151
  %5153 = vrot.lane.b32.xlu0 %v5020, 31
  %v5154 = vpop.permute.xlu0 %5153
  %5155 = vrot.lane.b32.xlu0 %v5023, 31
  %v5156 = vpop.permute.xlu0 %5155
  %5157 = vrot.lane.b32.xlu0 %v5026, 31
  %v5158 = vpop.permute.xlu0 %5157
  %5159 = vrot.lane.b32.xlu0 %v5029, 31
  %v5160 = vpop.permute.xlu0 %5159
  %5161 = vrot.lane.b32.xlu0 %v5032, 31
  %v5162 = vpop.permute.xlu0 %5161
  %5163 = vrot.lane.b32.xlu0 %v5035, 31
  %v5164 = vpop.permute.xlu0 %5163
  %5165 = vrot.lane.b32.xlu0 %v5038, 31
  %v5166 = vpop.permute.xlu0 %5165
  %5175 = vrot.lane.b32.xlu0 %v5135, 30
  %v5176 = vpop.permute.xlu0 %5175
  %5177 = vrot.lane.b32.xlu0 %v5136, 30
  %v5178 = vpop.permute.xlu0 %5177
  %5179 = vrot.lane.b32.xlu0 %v5137, 30
  %v5180 = vpop.permute.xlu0 %5179
  %5181 = vrot.lane.b32.xlu0 %v5138, 30
  %v5182 = vpop.permute.xlu0 %5181
  %5183 = vrot.lane.b32.xlu0 %v5139, 30
  %v5184 = vpop.permute.xlu0 %5183
  %5185 = vrot.lane.b32.xlu0 %v5140, 30
  %v5186 = vpop.permute.xlu0 %5185
  %5187 = vrot.lane.b32.xlu0 %v5141, 30
  %v5188 = vpop.permute.xlu0 %5187
  %5189 = vrot.lane.b32.xlu0 %v5142, 30
  %v5190 = vpop.permute.xlu0 %5189
  %v5191 = vld [vmem:[%s67] sm:$0xff]
  %v5192 = vld [vmem:[%s67 + $0x8] sm:$0xff]
  %v5193 = vld [vmem:[%s67 + $0x10] sm:$0xff]
  %v5194 = vld [vmem:[%s67 + $0x18] sm:$0xff]
  %v5195 = vld [vmem:[%s67 + $0x20] sm:$0xff]
  %v5196 = vld [vmem:[%s67 + $0x28] sm:$0xff]
  %v5197 = vld [vmem:[%s67 + $0x30] sm:$0xff]
  %v5198 = vld [vmem:[%s67 + $0x38] sm:$0xff]
  %v5199 = vld [vmem:[%s67 + $0x40] sm:$0xff]
  %v5200 = vld [vmem:[%s67 + $0x48] sm:$0xff]
  %v5201 = vld [vmem:[%s67 + $0x50] sm:$0xff]
  %v5202 = vld [vmem:[%s67 + $0x58] sm:$0xff]
  %v5203 = vld [vmem:[%s67 + $0x60] sm:$0xff]
  %v5204 = vld [vmem:[%s67 + $0x68] sm:$0xff]
  %v5205 = vld [vmem:[%s67 + $0x70] sm:$0xff]
  %v5206 = vld [vmem:[%s67 + $0x78] sm:$0xff]
  %v5207 = vld [vmem:[%s69] sm:$0xff]
  %v5208 = vld [vmem:[%s69 + $0x8] sm:$0xff]
  %v5209 = vld [vmem:[%s69 + $0x10] sm:$0xff]
  %v5210 = vld [vmem:[%s69 + $0x18] sm:$0xff]
  %v5211 = vld [vmem:[%s69 + $0x20] sm:$0xff]
  %v5212 = vld [vmem:[%s69 + $0x28] sm:$0xff]
  %v5213 = vld [vmem:[%s69 + $0x30] sm:$0xff]
  %v5214 = vld [vmem:[%s69 + $0x38] sm:$0xff]
  %5216 = vset.pattern.permute.xlu0 0
  %5217 = vperm.xlu0 %5216, %v5207
  %v5218 = vpop.permute.xlu0 %5217
  %5221 = vset.pattern.permute.xlu0 0
  %5222 = vperm.xlu0 %5221, %v5208
  %v5223 = vpop.permute.xlu0 %5222
  %5226 = vset.pattern.permute.xlu0 0
  %5227 = vperm.xlu0 %5226, %v5209
  %v5228 = vpop.permute.xlu0 %5227
  %5231 = vset.pattern.permute.xlu0 0
  %5232 = vperm.xlu0 %5231, %v5210
  %v5233 = vpop.permute.xlu0 %5232
  %5236 = vset.pattern.permute.xlu0 0
  %5237 = vperm.xlu0 %5236, %v5211
  %v5238 = vpop.permute.xlu0 %5237
  %5241 = vset.pattern.permute.xlu0 0
  %5242 = vperm.xlu0 %5241, %v5212
  %v5243 = vpop.permute.xlu0 %5242
  %5246 = vset.pattern.permute.xlu0 0
  %5247 = vperm.xlu0 %5246, %v5213
  %v5248 = vpop.permute.xlu0 %5247
  %5251 = vset.pattern.permute.xlu0 0
  %5252 = vperm.xlu0 %5251, %v5214
  %v5253 = vpop.permute.xlu0 %5252
  %5263 = vrot.lane.b32.xlu0 %v5120, 97
  %v5264 = vpop.permute.xlu0 %5263
  %5265 = vrot.lane.b32.xlu0 %v5121, 97
  %v5266 = vpop.permute.xlu0 %5265
  %5267 = vrot.lane.b32.xlu0 %v5122, 97
  %v5268 = vpop.permute.xlu0 %5267
  %5269 = vrot.lane.b32.xlu0 %v5123, 97
  %v5270 = vpop.permute.xlu0 %5269
  %5271 = vrot.lane.b32.xlu0 %v5124, 97
  %v5272 = vpop.permute.xlu0 %5271
  %5273 = vrot.lane.b32.xlu0 %v5125, 97
  %v5274 = vpop.permute.xlu0 %5273
  %5275 = vrot.lane.b32.xlu0 %v5126, 97
  %v5276 = vpop.permute.xlu0 %5275
  %5277 = vrot.lane.b32.xlu0 %v5127, 97
  %v5278 = vpop.permute.xlu0 %5277
  %5279 = vrot.lane.b32.xlu0 %v5152, 97
  %v5280 = vpop.permute.xlu0 %5279
  %5281 = vrot.lane.b32.xlu0 %v5154, 97
  %v5282 = vpop.permute.xlu0 %5281
  %5283 = vrot.lane.b32.xlu0 %v5156, 97
  %v5284 = vpop.permute.xlu0 %5283
  %5285 = vrot.lane.b32.xlu0 %v5158, 97
  %v5286 = vpop.permute.xlu0 %5285
  %5287 = vrot.lane.b32.xlu0 %v5160, 97
  %v5288 = vpop.permute.xlu0 %5287
  %5289 = vrot.lane.b32.xlu0 %v5162, 97
  %v5290 = vpop.permute.xlu0 %5289
  %5291 = vrot.lane.b32.xlu0 %v5164, 97
  %v5292 = vpop.permute.xlu0 %5291
  %5293 = vrot.lane.b32.xlu0 %v5166, 97
  %v5294 = vpop.permute.xlu0 %5293
  %5295 = vrot.lane.b32.xlu0 %v5176, 97
  %v5296 = vpop.permute.xlu0 %5295
  %5297 = vrot.lane.b32.xlu0 %v5178, 97
  %v5298 = vpop.permute.xlu0 %5297
  %5299 = vrot.lane.b32.xlu0 %v5180, 97
  %v5300 = vpop.permute.xlu0 %5299
  %5301 = vrot.lane.b32.xlu0 %v5182, 97
  %v5302 = vpop.permute.xlu0 %5301
  %5303 = vrot.lane.b32.xlu0 %v5184, 97
  %v5304 = vpop.permute.xlu0 %5303
  %5305 = vrot.lane.b32.xlu0 %v5186, 97
  %v5306 = vpop.permute.xlu0 %5305
  %5307 = vrot.lane.b32.xlu0 %v5188, 97
  %v5308 = vpop.permute.xlu0 %5307
  %5309 = vrot.lane.b32.xlu0 %v5190, 97
  %v5310 = vpop.permute.xlu0 %5309
  %v5336 = vsel %vm4966, %v5192, 0
  %v5339 = vsel %vm4966, %v5194, 0
  %v5342 = vsel %vm4966, %v5196, 0
  %v5345 = vsel %vm4966, %v5198, 0
  %v5348 = vsel %vm4966, %v5200, 0
  %v5351 = vsel %vm4966, %v5202, 0
  %v5354 = vsel %vm4966, %v5204, 0
  %v5357 = vsel %vm4966, %v5206, 0
  %5359 = vmatpush.msra.mxu0 %v5294
  %5360 = vmatpush.msra.mxu0 %v5292
  %5361 = vmatpush.msra.mxu0 %v5290
  %5362 = vmatpush.msra.mxu0 %v5288
  %5363 = vmatpush.msra.mxu0 %v5286
  %5364 = vmatpush.msra.mxu0 %v5284
  %5365 = vmatpush.msra.mxu0 %v5282
  %5366 = vmatpush.msra.mxu0 %v5280
  %5367 = vmatpush.msra.mxu0 %v5278
  %5368 = vmatpush.msra.mxu0 %v5276
  %5369 = vmatpush.msra.mxu0 %v5274
  %5370 = vmatpush.msra.mxu0 %v5272
  %5371 = vmatpush.msra.mxu0 %v5270
  %5372 = vmatpush.msra.mxu0 %v5268
  %5373 = vmatpush.msra.mxu0 %v5266
  %5374 = vmatpush.msra.mxu0 %v5264
  %5375 = vmatmul.f32.gmra.mxu0 %v5191
  %v5376 = vpop.f32.mrf.mxu0
  %v5377 = vadd.f32 %v5218, %v5376
  %5378 = vmatmul.f32.gmra.mxu0 %v5193
  %v5379 = vpop.f32.mrf.mxu0
  %v5380 = vadd.f32 %v5223, %v5379
  %5381 = vmatmul.f32.gmra.mxu0 %v5195
  %v5382 = vpop.f32.mrf.mxu0
  %v5383 = vadd.f32 %v5228, %v5382
  %5384 = vmatmul.f32.gmra.mxu0 %v5197
  %v5385 = vpop.f32.mrf.mxu0
  %v5386 = vadd.f32 %v5233, %v5385
  %5387 = vmatmul.f32.gmra.mxu0 %v5199
  %v5388 = vpop.f32.mrf.mxu0
  %v5389 = vadd.f32 %v5238, %v5388
  %5390 = vmatmul.f32.gmra.mxu0 %v5201
  %v5391 = vpop.f32.mrf.mxu0
  %v5392 = vadd.f32 %v5243, %v5391
  %5393 = vmatmul.f32.gmra.mxu0 %v5203
  %v5394 = vpop.f32.mrf.mxu0
  %v5395 = vadd.f32 %v5248, %v5394
  %5396 = vmatmul.f32.gmra.mxu0 %v5205
  %v5397 = vpop.f32.mrf.mxu0
  %v5398 = vadd.f32 %v5253, %v5397
  %5399 = vdwg.mxu0
  %5400 = vmatpush.msra.mxu0 0.0
  %5401 = vmatpush.msra.mxu0 0.0
  %5402 = vmatpush.msra.mxu0 0.0
  %5403 = vmatpush.msra.mxu0 0.0
  %5404 = vmatpush.msra.mxu0 0.0
  %5405 = vmatpush.msra.mxu0 0.0
  %5406 = vmatpush.msra.mxu0 0.0
  %5407 = vmatpush.msra.mxu0 0.0
  %5408 = vmatpush.msra.mxu0 %v5310
  %5409 = vmatpush.msra.mxu0 %v5308
  %5410 = vmatpush.msra.mxu0 %v5306
  %5411 = vmatpush.msra.mxu0 %v5304
  %5412 = vmatpush.msra.mxu0 %v5302
  %5413 = vmatpush.msra.mxu0 %v5300
  %5414 = vmatpush.msra.mxu0 %v5298
  %5415 = vmatpush.msra.mxu0 %v5296
  %5416 = vmatmul.f32.gmra.mxu0 %v5336
  %v5417 = vpop.f32.mrf.mxu0
  %v5418 = vadd.f32 %v5377, %v5417
  %5419 = vmatmul.f32.gmra.mxu0 %v5339
  %v5420 = vpop.f32.mrf.mxu0
  %v5421 = vadd.f32 %v5380, %v5420
  %5422 = vmatmul.f32.gmra.mxu0 %v5342
  %v5423 = vpop.f32.mrf.mxu0
  %v5424 = vadd.f32 %v5383, %v5423
  %5425 = vmatmul.f32.gmra.mxu0 %v5345
  %v5426 = vpop.f32.mrf.mxu0
  %v5427 = vadd.f32 %v5386, %v5426
  %5428 = vmatmul.f32.gmra.mxu0 %v5348
  %v5429 = vpop.f32.mrf.mxu0
  %v5430 = vadd.f32 %v5389, %v5429
  %5431 = vmatmul.f32.gmra.mxu0 %v5351
  %v5432 = vpop.f32.mrf.mxu0
  %v5433 = vadd.f32 %v5392, %v5432
  %5434 = vmatmul.f32.gmra.mxu0 %v5354
  %v5435 = vpop.f32.mrf.mxu0
  %v5436 = vadd.f32 %v5395, %v5435
  %5437 = vmatmul.f32.gmra.mxu0 %v5357
  %v5438 = vpop.f32.mrf.mxu0
  %v5439 = vadd.f32 %v5398, %v5438
  %5440 = vdwg.mxu0
  %v5441 = vld [vmem:[%s71] sm:$0xff]
  %v5442 = vld [vmem:[%s71 + $0x8] sm:$0xff]
  %v5443 = vld [vmem:[%s71 + $0x10] sm:$0xff]
  %v5444 = vld [vmem:[%s71 + $0x18] sm:$0xff]
  %v5445 = vld [vmem:[%s71 + $0x20] sm:$0xff]
  %v5446 = vld [vmem:[%s71 + $0x28] sm:$0xff]
  %v5447 = vld [vmem:[%s71 + $0x30] sm:$0xff]
  %v5448 = vld [vmem:[%s71 + $0x38] sm:$0xff]
  %v5449 = vld [vmem:[%s73] sm:$0xff]
  %v5450 = vld [vmem:[%s73 + $0x8] sm:$0xff]
  %v5451 = vld [vmem:[%s73 + $0x10] sm:$0xff]
  %v5452 = vld [vmem:[%s73 + $0x18] sm:$0xff]
  %v5453 = vld [vmem:[%s73 + $0x20] sm:$0xff]
  %v5454 = vld [vmem:[%s73 + $0x28] sm:$0xff]
  %v5455 = vld [vmem:[%s73 + $0x30] sm:$0xff]
  %v5456 = vld [vmem:[%s73 + $0x38] sm:$0xff]
  %5458 = vset.pattern.permute.xlu0 0
  %5459 = vperm.xlu0 %5458, %v5449
  %v5460 = vpop.permute.xlu0 %5459
  %5463 = vset.pattern.permute.xlu0 0
  %5464 = vperm.xlu0 %5463, %v5450
  %v5465 = vpop.permute.xlu0 %5464
  %5468 = vset.pattern.permute.xlu0 0
  %5469 = vperm.xlu0 %5468, %v5451
  %v5470 = vpop.permute.xlu0 %5469
  %5473 = vset.pattern.permute.xlu0 0
  %5474 = vperm.xlu0 %5473, %v5452
  %v5475 = vpop.permute.xlu0 %5474
  %5478 = vset.pattern.permute.xlu0 0
  %5479 = vperm.xlu0 %5478, %v5453
  %v5480 = vpop.permute.xlu0 %5479
  %5483 = vset.pattern.permute.xlu0 0
  %5484 = vperm.xlu0 %5483, %v5454
  %v5485 = vpop.permute.xlu0 %5484
  %5488 = vset.pattern.permute.xlu0 0
  %5489 = vperm.xlu0 %5488, %v5455
  %v5490 = vpop.permute.xlu0 %5489
  %5493 = vset.pattern.permute.xlu0 0
  %5494 = vperm.xlu0 %5493, %v5456
  %v5495 = vpop.permute.xlu0 %5494
  %v5498 = vsel %vm4671, %v5441, 0
  %v5501 = vsel %vm4671, %v5442, 0
  %v5504 = vsel %vm4671, %v5443, 0
  %v5507 = vsel %vm4671, %v5444, 0
  %v5510 = vsel %vm4671, %v5445, 0
  %v5513 = vsel %vm4671, %v5446, 0
  %v5516 = vsel %vm4671, %v5447, 0
  %v5519 = vsel %vm4671, %v5448, 0
  %5521 = vmatpush.msra.mxu0 0.0
  %5522 = vmatpush.msra.mxu0 0.0
  %5523 = vmatpush.msra.mxu0 0.0
  %5524 = vmatpush.msra.mxu0 0.0
  %5525 = vmatpush.msra.mxu0 0.0
  %5526 = vmatpush.msra.mxu0 0.0
  %5527 = vmatpush.msra.mxu0 0.0
  %5528 = vmatpush.msra.mxu0 0.0
  %5529 = vmatpush.msra.mxu0 0.0
  %5530 = vmatpush.msra.mxu0 0.0
  %5531 = vmatpush.msra.mxu0 0.0
  %5532 = vmatpush.msra.mxu0 0.0
  %5533 = vmatpush.msra.mxu0 %v5050
  %5534 = vmatpush.msra.mxu0 %v5047
  %5535 = vmatpush.msra.mxu0 %v5044
  %5536 = vmatpush.msra.mxu0 %v5041
  %5537 = vmatmul.f32.gmra.mxu0 %v5498
  %v5538 = vpop.f32.mrf.mxu0
  %v5539 = vadd.f32 %v5460, %v5538
  %5540 = vmatmul.f32.gmra.mxu0 %v5501
  %v5541 = vpop.f32.mrf.mxu0
  %v5542 = vadd.f32 %v5465, %v5541
  %5543 = vmatmul.f32.gmra.mxu0 %v5504
  %v5544 = vpop.f32.mrf.mxu0
  %v5545 = vadd.f32 %v5470, %v5544
  %5546 = vmatmul.f32.gmra.mxu0 %v5507
  %v5547 = vpop.f32.mrf.mxu0
  %v5548 = vadd.f32 %v5475, %v5547
  %5549 = vmatmul.f32.gmra.mxu0 %v5510
  %v5550 = vpop.f32.mrf.mxu0
  %v5551 = vadd.f32 %v5480, %v5550
  %5552 = vmatmul.f32.gmra.mxu0 %v5513
  %v5553 = vpop.f32.mrf.mxu0
  %v5554 = vadd.f32 %v5485, %v5553
  %5555 = vmatmul.f32.gmra.mxu0 %v5516
  %v5556 = vpop.f32.mrf.mxu0
  %v5557 = vadd.f32 %v5490, %v5556
  %5558 = vmatmul.f32.gmra.mxu0 %v5519
  %v5559 = vpop.f32.mrf.mxu0
  %v5560 = vadd.f32 %v5495, %v5559
  %5561 = vdwg.mxu0
  %v5562 = vadd.f32 %v5418, %v5539
  %v5563 = vadd.f32 %v5421, %v5542
  %v5564 = vadd.f32 %v5424, %v5545
  %v5565 = vadd.f32 %v5427, %v5548
  %v5566 = vadd.f32 %v5430, %v5551
  %v5567 = vadd.f32 %v5433, %v5554
  %v5568 = vadd.f32 %v5436, %v5557
  %v5569 = vadd.f32 %v5439, %v5560
  %vm5570 = vcmp.gt.f32.partialorder %v5562, 0.0
  %vm5571 = vcmp.gt.f32.partialorder %v5563, 0.0
  %vm5572 = vcmp.gt.f32.partialorder %v5564, 0.0
  %vm5573 = vcmp.gt.f32.partialorder %v5565, 0.0
  %vm5574 = vcmp.gt.f32.partialorder %v5566, 0.0
  %vm5575 = vcmp.gt.f32.partialorder %v5567, 0.0
  %vm5576 = vcmp.gt.f32.partialorder %v5568, 0.0
  %vm5577 = vcmp.gt.f32.partialorder %v5569, 0.0
  %v5578 = vmin.f32 %v5562, 0.0
  %v5579 = vmin.f32 %v5563, 0.0
  %v5580 = vmin.f32 %v5564, 0.0
  %v5581 = vmin.f32 %v5565, 0.0
  %v5582 = vmin.f32 %v5566, 0.0
  %v5583 = vmin.f32 %v5567, 0.0
  %v5584 = vmin.f32 %v5568, 0.0
  %v5585 = vmin.f32 %v5569, 0.0
  %v5586 = vmul.f32 %v5578, 1.442695
  %v5587 = vpow.pop %v5586
  %v5588 = vmul.f32 %v5579, 1.442695
  %v5589 = vpow.pop %v5588
  %v5590 = vmul.f32 %v5580, 1.442695
  %v5591 = vpow.pop %v5590
  %v5592 = vmul.f32 %v5581, 1.442695
  %v5593 = vpow.pop %v5592
  %v5594 = vmul.f32 %v5582, 1.442695
  %v5595 = vpow.pop %v5594
  %v5596 = vmul.f32 %v5583, 1.442695
  %v5597 = vpow.pop %v5596
  %v5598 = vmul.f32 %v5584, 1.442695
  %v5599 = vpow.pop %v5598
  %v5600 = vmul.f32 %v5585, 1.442695
  %v5601 = vpow.pop %v5600
  %v5602 = vsub.f32 %v5587, 1.0
  %v5603 = vsub.f32 %v5589, 1.0
  %v5604 = vsub.f32 %v5591, 1.0
  %v5605 = vsub.f32 %v5593, 1.0
  %v5606 = vsub.f32 %v5595, 1.0
  %v5607 = vsub.f32 %v5597, 1.0
  %v5608 = vsub.f32 %v5599, 1.0
  %v5609 = vsub.f32 %v5601, 1.0
  %v5610 = vsel %vm5570, %v5562, %v5602
  %v5611 = vsel %vm5571, %v5563, %v5603
  %v5612 = vsel %vm5572, %v5564, %v5604
  %v5613 = vsel %vm5573, %v5565, %v5605
  %v5614 = vsel %vm5574, %v5566, %v5606
  %v5615 = vsel %vm5575, %v5567, %v5607
  %v5616 = vsel %vm5576, %v5568, %v5608
  %v5617 = vsel %vm5577, %v5569, %v5609
  %5618 = vrot.lane.b32.xlu0 %v5610, 32
  %v5619 = vpop.permute.xlu0 %5618
  %v5620 = vsel %vm5064, %v5619, %v5610
  %5621 = vrot.lane.b32.xlu0 %v5611, 32
  %v5622 = vpop.permute.xlu0 %5621
  %v5623 = vsel %vm5064, %v5622, %v5611
  %5624 = vrot.lane.b32.xlu0 %v5612, 32
  %v5625 = vpop.permute.xlu0 %5624
  %v5626 = vsel %vm5064, %v5625, %v5612
  %5627 = vrot.lane.b32.xlu0 %v5613, 32
  %v5628 = vpop.permute.xlu0 %5627
  %v5629 = vsel %vm5064, %v5628, %v5613
  %5630 = vrot.lane.b32.xlu0 %v5614, 32
  %v5631 = vpop.permute.xlu0 %5630
  %v5632 = vsel %vm5064, %v5631, %v5614
  %5633 = vrot.lane.b32.xlu0 %v5615, 32
  %v5634 = vpop.permute.xlu0 %5633
  %v5635 = vsel %vm5064, %v5634, %v5615
  %5636 = vrot.lane.b32.xlu0 %v5616, 32
  %v5637 = vpop.permute.xlu0 %5636
  %v5638 = vsel %vm5064, %v5637, %v5616
  %5639 = vrot.lane.b32.xlu0 %v5617, 32
  %v5640 = vpop.permute.xlu0 %5639
  %v5641 = vsel %vm5064, %v5640, %v5617
  %5642 = vrot.lane.b32.xlu0 %v5620, 32
  %v5643 = vpop.permute.xlu0 %5642
  %5644 = vrot.lane.b32.xlu0 %v5623, 32
  %v5645 = vpop.permute.xlu0 %5644
  %5646 = vrot.lane.b32.xlu0 %v5626, 32
  %v5647 = vpop.permute.xlu0 %5646
  %5648 = vrot.lane.b32.xlu0 %v5629, 32
  %v5649 = vpop.permute.xlu0 %5648
  %5650 = vrot.lane.b32.xlu0 %v5632, 32
  %v5651 = vpop.permute.xlu0 %5650
  %5652 = vrot.lane.b32.xlu0 %v5635, 32
  %v5653 = vpop.permute.xlu0 %5652
  %5654 = vrot.lane.b32.xlu0 %v5638, 32
  %v5655 = vpop.permute.xlu0 %5654
  %5656 = vrot.lane.b32.xlu0 %v5641, 32
  %v5657 = vpop.permute.xlu0 %5656
  %v5658 = vsel %vm5064, %v5643, %v5610
  %v5659 = vsel %vm5064, %v5645, %v5611
  %v5660 = vsel %vm5064, %v5647, %v5612
  %v5661 = vsel %vm5064, %v5649, %v5613
  %v5662 = vsel %vm5064, %v5651, %v5614
  %v5663 = vsel %vm5064, %v5653, %v5615
  %v5664 = vsel %vm5064, %v5655, %v5616
  %v5665 = vsel %vm5064, %v5657, %v5617
  %v5666 = vmul.f32 %v5658, %v5118
  %v5667 = vmul.f32 %v5659, %v5118
  %v5668 = vmul.f32 %v5660, %v5118
  %v5669 = vmul.f32 %v5661, %v5118
  %v5670 = vmul.f32 %v5662, %v5118
  %v5671 = vmul.f32 %v5663, %v5118
  %v5672 = vmul.f32 %v5664, %v5118
  %v5673 = vmul.f32 %v5665, %v5118
  %v5674 = vmul.f32 %v5658, %v5133
  %v5675 = vmul.f32 %v5659, %v5133
  %v5676 = vmul.f32 %v5660, %v5133
  %v5677 = vmul.f32 %v5661, %v5133
  %v5678 = vmul.f32 %v5662, %v5133
  %v5679 = vmul.f32 %v5663, %v5133
  %v5680 = vmul.f32 %v5664, %v5133
  %v5681 = vmul.f32 %v5665, %v5133
  %5690 = vrot.lane.b32.xlu0 %v5610, 31
  %v5691 = vpop.permute.xlu0 %5690
  %5692 = vrot.lane.b32.xlu0 %v5611, 31
  %v5693 = vpop.permute.xlu0 %5692
  %5694 = vrot.lane.b32.xlu0 %v5612, 31
  %v5695 = vpop.permute.xlu0 %5694
  %5696 = vrot.lane.b32.xlu0 %v5613, 31
  %v5697 = vpop.permute.xlu0 %5696
  %5698 = vrot.lane.b32.xlu0 %v5614, 31
  %v5699 = vpop.permute.xlu0 %5698
  %5700 = vrot.lane.b32.xlu0 %v5615, 31
  %v5701 = vpop.permute.xlu0 %5700
  %5702 = vrot.lane.b32.xlu0 %v5616, 31
  %v5703 = vpop.permute.xlu0 %5702
  %5704 = vrot.lane.b32.xlu0 %v5617, 31
  %v5705 = vpop.permute.xlu0 %5704
  %5714 = vrot.lane.b32.xlu0 %v5674, 30
  %v5715 = vpop.permute.xlu0 %5714
  %5716 = vrot.lane.b32.xlu0 %v5675, 30
  %v5717 = vpop.permute.xlu0 %5716
  %5718 = vrot.lane.b32.xlu0 %v5676, 30
  %v5719 = vpop.permute.xlu0 %5718
  %5720 = vrot.lane.b32.xlu0 %v5677, 30
  %v5721 = vpop.permute.xlu0 %5720
  %5722 = vrot.lane.b32.xlu0 %v5678, 30
  %v5723 = vpop.permute.xlu0 %5722
  %5724 = vrot.lane.b32.xlu0 %v5679, 30
  %v5725 = vpop.permute.xlu0 %5724
  %5726 = vrot.lane.b32.xlu0 %v5680, 30
  %v5727 = vpop.permute.xlu0 %5726
  %5728 = vrot.lane.b32.xlu0 %v5681, 30
  %v5729 = vpop.permute.xlu0 %5728
  %v5730 = vld [vmem:[%s75] sm:$0xff]
  %v5731 = vld [vmem:[%s75 + $0x8] sm:$0xff]
  %v5732 = vld [vmem:[%s75 + $0x10] sm:$0xff]
  %v5733 = vld [vmem:[%s75 + $0x18] sm:$0xff]
  %v5734 = vld [vmem:[%s75 + $0x20] sm:$0xff]
  %v5735 = vld [vmem:[%s75 + $0x28] sm:$0xff]
  %v5736 = vld [vmem:[%s75 + $0x30] sm:$0xff]
  %v5737 = vld [vmem:[%s75 + $0x38] sm:$0xff]
  %v5738 = vld [vmem:[%s75 + $0x40] sm:$0xff]
  %v5739 = vld [vmem:[%s75 + $0x48] sm:$0xff]
  %v5740 = vld [vmem:[%s75 + $0x50] sm:$0xff]
  %v5741 = vld [vmem:[%s75 + $0x58] sm:$0xff]
  %v5742 = vld [vmem:[%s75 + $0x60] sm:$0xff]
  %v5743 = vld [vmem:[%s75 + $0x68] sm:$0xff]
  %v5744 = vld [vmem:[%s75 + $0x70] sm:$0xff]
  %v5745 = vld [vmem:[%s75 + $0x78] sm:$0xff]
  %v5746 = vld [vmem:[%s77] sm:$0xff]
  %v5747 = vld [vmem:[%s77 + $0x8] sm:$0xff]
  %v5748 = vld [vmem:[%s77 + $0x10] sm:$0xff]
  %v5749 = vld [vmem:[%s77 + $0x18] sm:$0xff]
  %v5750 = vld [vmem:[%s77 + $0x20] sm:$0xff]
  %v5751 = vld [vmem:[%s77 + $0x28] sm:$0xff]
  %v5752 = vld [vmem:[%s77 + $0x30] sm:$0xff]
  %v5753 = vld [vmem:[%s77 + $0x38] sm:$0xff]
  %5755 = vset.pattern.permute.xlu0 0
  %5756 = vperm.xlu0 %5755, %v5746
  %v5757 = vpop.permute.xlu0 %5756
  %5760 = vset.pattern.permute.xlu0 0
  %5761 = vperm.xlu0 %5760, %v5747
  %v5762 = vpop.permute.xlu0 %5761
  %5765 = vset.pattern.permute.xlu0 0
  %5766 = vperm.xlu0 %5765, %v5748
  %v5767 = vpop.permute.xlu0 %5766
  %5770 = vset.pattern.permute.xlu0 0
  %5771 = vperm.xlu0 %5770, %v5749
  %v5772 = vpop.permute.xlu0 %5771
  %5775 = vset.pattern.permute.xlu0 0
  %5776 = vperm.xlu0 %5775, %v5750
  %v5777 = vpop.permute.xlu0 %5776
  %5780 = vset.pattern.permute.xlu0 0
  %5781 = vperm.xlu0 %5780, %v5751
  %v5782 = vpop.permute.xlu0 %5781
  %5785 = vset.pattern.permute.xlu0 0
  %5786 = vperm.xlu0 %5785, %v5752
  %v5787 = vpop.permute.xlu0 %5786
  %5790 = vset.pattern.permute.xlu0 0
  %5791 = vperm.xlu0 %5790, %v5753
  %v5792 = vpop.permute.xlu0 %5791
  %5802 = vrot.lane.b32.xlu0 %v5666, 97
  %v5803 = vpop.permute.xlu0 %5802
  %5804 = vrot.lane.b32.xlu0 %v5667, 97
  %v5805 = vpop.permute.xlu0 %5804
  %5806 = vrot.lane.b32.xlu0 %v5668, 97
  %v5807 = vpop.permute.xlu0 %5806
  %5808 = vrot.lane.b32.xlu0 %v5669, 97
  %v5809 = vpop.permute.xlu0 %5808
  %5810 = vrot.lane.b32.xlu0 %v5670, 97
  %v5811 = vpop.permute.xlu0 %5810
  %5812 = vrot.lane.b32.xlu0 %v5671, 97
  %v5813 = vpop.permute.xlu0 %5812
  %5814 = vrot.lane.b32.xlu0 %v5672, 97
  %v5815 = vpop.permute.xlu0 %5814
  %5816 = vrot.lane.b32.xlu0 %v5673, 97
  %v5817 = vpop.permute.xlu0 %5816
  %5818 = vrot.lane.b32.xlu0 %v5691, 97
  %v5819 = vpop.permute.xlu0 %5818
  %5820 = vrot.lane.b32.xlu0 %v5693, 97
  %v5821 = vpop.permute.xlu0 %5820
  %5822 = vrot.lane.b32.xlu0 %v5695, 97
  %v5823 = vpop.permute.xlu0 %5822
  %5824 = vrot.lane.b32.xlu0 %v5697, 97
  %v5825 = vpop.permute.xlu0 %5824
  %5826 = vrot.lane.b32.xlu0 %v5699, 97
  %v5827 = vpop.permute.xlu0 %5826
  %5828 = vrot.lane.b32.xlu0 %v5701, 97
  %v5829 = vpop.permute.xlu0 %5828
  %5830 = vrot.lane.b32.xlu0 %v5703, 97
  %v5831 = vpop.permute.xlu0 %5830
  %5832 = vrot.lane.b32.xlu0 %v5705, 97
  %v5833 = vpop.permute.xlu0 %5832
  %5834 = vrot.lane.b32.xlu0 %v5715, 97
  %v5835 = vpop.permute.xlu0 %5834
  %5836 = vrot.lane.b32.xlu0 %v5717, 97
  %v5837 = vpop.permute.xlu0 %5836
  %5838 = vrot.lane.b32.xlu0 %v5719, 97
  %v5839 = vpop.permute.xlu0 %5838
  %5840 = vrot.lane.b32.xlu0 %v5721, 97
  %v5841 = vpop.permute.xlu0 %5840
  %5842 = vrot.lane.b32.xlu0 %v5723, 97
  %v5843 = vpop.permute.xlu0 %5842
  %5844 = vrot.lane.b32.xlu0 %v5725, 97
  %v5845 = vpop.permute.xlu0 %5844
  %5846 = vrot.lane.b32.xlu0 %v5727, 97
  %v5847 = vpop.permute.xlu0 %5846
  %5848 = vrot.lane.b32.xlu0 %v5729, 97
  %v5849 = vpop.permute.xlu0 %5848
  %v5875 = vsel %vm4966, %v5731, 0
  %v5878 = vsel %vm4966, %v5733, 0
  %v5881 = vsel %vm4966, %v5735, 0
  %v5884 = vsel %vm4966, %v5737, 0
  %v5887 = vsel %vm4966, %v5739, 0
  %v5890 = vsel %vm4966, %v5741, 0
  %v5893 = vsel %vm4966, %v5743, 0
  %v5896 = vsel %vm4966, %v5745, 0
  %5898 = vmatpush.msra.mxu0 %v5833
  %5899 = vmatpush.msra.mxu0 %v5831
  %5900 = vmatpush.msra.mxu0 %v5829
  %5901 = vmatpush.msra.mxu0 %v5827
  %5902 = vmatpush.msra.mxu0 %v5825
  %5903 = vmatpush.msra.mxu0 %v5823
  %5904 = vmatpush.msra.mxu0 %v5821
  %5905 = vmatpush.msra.mxu0 %v5819
  %5906 = vmatpush.msra.mxu0 %v5817
  %5907 = vmatpush.msra.mxu0 %v5815
  %5908 = vmatpush.msra.mxu0 %v5813
  %5909 = vmatpush.msra.mxu0 %v5811
  %5910 = vmatpush.msra.mxu0 %v5809
  %5911 = vmatpush.msra.mxu0 %v5807
  %5912 = vmatpush.msra.mxu0 %v5805
  %5913 = vmatpush.msra.mxu0 %v5803
  %5914 = vmatmul.f32.gmra.mxu0 %v5730
  %v5915 = vpop.f32.mrf.mxu0
  %v5916 = vadd.f32 %v5757, %v5915
  %5917 = vmatmul.f32.gmra.mxu0 %v5732
  %v5918 = vpop.f32.mrf.mxu0
  %v5919 = vadd.f32 %v5762, %v5918
  %5920 = vmatmul.f32.gmra.mxu0 %v5734
  %v5921 = vpop.f32.mrf.mxu0
  %v5922 = vadd.f32 %v5767, %v5921
  %5923 = vmatmul.f32.gmra.mxu0 %v5736
  %v5924 = vpop.f32.mrf.mxu0
  %v5925 = vadd.f32 %v5772, %v5924
  %5926 = vmatmul.f32.gmra.mxu0 %v5738
  %v5927 = vpop.f32.mrf.mxu0
  %v5928 = vadd.f32 %v5777, %v5927
  %5929 = vmatmul.f32.gmra.mxu0 %v5740
  %v5930 = vpop.f32.mrf.mxu0
  %v5931 = vadd.f32 %v5782, %v5930
  %5932 = vmatmul.f32.gmra.mxu0 %v5742
  %v5933 = vpop.f32.mrf.mxu0
  %v5934 = vadd.f32 %v5787, %v5933
  %5935 = vmatmul.f32.gmra.mxu0 %v5744
  %v5936 = vpop.f32.mrf.mxu0
  %v5937 = vadd.f32 %v5792, %v5936
  %5938 = vdwg.mxu0
  %5939 = vmatpush.msra.mxu0 0.0
  %5940 = vmatpush.msra.mxu0 0.0
  %5941 = vmatpush.msra.mxu0 0.0
  %5942 = vmatpush.msra.mxu0 0.0
  %5943 = vmatpush.msra.mxu0 0.0
  %5944 = vmatpush.msra.mxu0 0.0
  %5945 = vmatpush.msra.mxu0 0.0
  %5946 = vmatpush.msra.mxu0 0.0
  %5947 = vmatpush.msra.mxu0 %v5849
  %5948 = vmatpush.msra.mxu0 %v5847
  %5949 = vmatpush.msra.mxu0 %v5845
  %5950 = vmatpush.msra.mxu0 %v5843
  %5951 = vmatpush.msra.mxu0 %v5841
  %5952 = vmatpush.msra.mxu0 %v5839
  %5953 = vmatpush.msra.mxu0 %v5837
  %5954 = vmatpush.msra.mxu0 %v5835
  %5955 = vmatmul.f32.gmra.mxu0 %v5875
  %v5956 = vpop.f32.mrf.mxu0
  %v5957 = vadd.f32 %v5916, %v5956
  %5958 = vmatmul.f32.gmra.mxu0 %v5878
  %v5959 = vpop.f32.mrf.mxu0
  %v5960 = vadd.f32 %v5919, %v5959
  %5961 = vmatmul.f32.gmra.mxu0 %v5881
  %v5962 = vpop.f32.mrf.mxu0
  %v5963 = vadd.f32 %v5922, %v5962
  %5964 = vmatmul.f32.gmra.mxu0 %v5884
  %v5965 = vpop.f32.mrf.mxu0
  %v5966 = vadd.f32 %v5925, %v5965
  %5967 = vmatmul.f32.gmra.mxu0 %v5887
  %v5968 = vpop.f32.mrf.mxu0
  %v5969 = vadd.f32 %v5928, %v5968
  %5970 = vmatmul.f32.gmra.mxu0 %v5890
  %v5971 = vpop.f32.mrf.mxu0
  %v5972 = vadd.f32 %v5931, %v5971
  %5973 = vmatmul.f32.gmra.mxu0 %v5893
  %v5974 = vpop.f32.mrf.mxu0
  %v5975 = vadd.f32 %v5934, %v5974
  %5976 = vmatmul.f32.gmra.mxu0 %v5896
  %v5977 = vpop.f32.mrf.mxu0
  %v5978 = vadd.f32 %v5937, %v5977
  %5979 = vdwg.mxu0
  %v5980 = vld [vmem:[%s3] sm:$0xff]
  %v5981 = vld [vmem:[%s3 + $0x20] sm:$0xff]
  %v5982 = vld [vmem:[%s3 + $0x40] sm:$0xff]
  %v5983 = vld [vmem:[%s3 + $0x60] sm:$0xff]
  %v5985 = vsel %vm4671, %v5957, 0
  %v5988 = vsel %vm4671, %v5960, 0
  %v5991 = vsel %vm4671, %v5963, 0
  %v5994 = vsel %vm4671, %v5966, 0
  %v5997 = vsel %vm4671, %v5969, 0
  %v6000 = vsel %vm4671, %v5972, 0
  %v6003 = vsel %vm4671, %v5975, 0
  %v6006 = vsel %vm4671, %v5978, 0
  %v6008 = vsel %vm4671, %v5610, 0
  %v6010 = vsel %vm4671, %v5611, 0
  %v6012 = vsel %vm4671, %v5612, 0
  %v6014 = vsel %vm4671, %v5613, 0
  %v6016 = vsel %vm4671, %v5614, 0
  %v6018 = vsel %vm4671, %v5615, 0
  %v6020 = vsel %vm4671, %v5616, 0
  %v6022 = vsel %vm4671, %v5617, 0
  %6024 = vmatpush.msra.mxu0 0.0
  %6025 = vmatpush.msra.mxu0 0.0
  %6026 = vmatpush.msra.mxu0 0.0
  %6027 = vmatpush.msra.mxu0 0.0
  %6028 = vmatpush.msra.mxu0 0.0
  %6029 = vmatpush.msra.mxu0 0.0
  %6030 = vmatpush.msra.mxu0 0.0
  %6031 = vmatpush.msra.mxu0 0.0
  %6032 = vmatpush.msra.mxu0 0.0
  %6033 = vmatpush.msra.mxu0 0.0
  %6034 = vmatpush.msra.mxu0 0.0
  %6035 = vmatpush.msra.mxu0 0.0
  %6036 = vmatpush.msra.mxu0 %v5983
  %6037 = vmatpush.msra.mxu0 %v5982
  %6038 = vmatpush.msra.mxu0 %v5981
  %6039 = vmatpush.msra.mxu0 %v5980
  %6040 = vmatmul.f32.gmra.mxu0 %v5985
  %v6041 = vpop.f32.mrf.mxu0
  %v6042 = vadd.f32 0.0, %v6041
  %6043 = vmatmul.f32.gmra.mxu0 %v5988
  %v6044 = vpop.f32.mrf.mxu0
  %v6045 = vadd.f32 0.0, %v6044
  %6046 = vmatmul.f32.gmra.mxu0 %v5991
  %v6047 = vpop.f32.mrf.mxu0
  %v6048 = vadd.f32 0.0, %v6047
  %6049 = vmatmul.f32.gmra.mxu0 %v5994
  %v6050 = vpop.f32.mrf.mxu0
  %v6051 = vadd.f32 0.0, %v6050
  %6052 = vmatmul.f32.gmra.mxu0 %v5997
  %v6053 = vpop.f32.mrf.mxu0
  %v6054 = vadd.f32 0.0, %v6053
  %6055 = vmatmul.f32.gmra.mxu0 %v6000
  %v6056 = vpop.f32.mrf.mxu0
  %v6057 = vadd.f32 0.0, %v6056
  %6058 = vmatmul.f32.gmra.mxu0 %v6003
  %v6059 = vpop.f32.mrf.mxu0
  %v6060 = vadd.f32 0.0, %v6059
  %6061 = vmatmul.f32.gmra.mxu0 %v6006
  %v6062 = vpop.f32.mrf.mxu0
  %v6063 = vadd.f32 0.0, %v6062
  %6064 = vmatmul.f32.gmra.mxu0 %v6008
  %v6065 = vpop.f32.mrf.mxu0
  %v6066 = vadd.f32 0.0, %v6065
  %6067 = vmatmul.f32.gmra.mxu0 %v6010
  %v6068 = vpop.f32.mrf.mxu0
  %v6069 = vadd.f32 0.0, %v6068
  %6070 = vmatmul.f32.gmra.mxu0 %v6012
  %v6071 = vpop.f32.mrf.mxu0
  %v6072 = vadd.f32 0.0, %v6071
  %6073 = vmatmul.f32.gmra.mxu0 %v6014
  %v6074 = vpop.f32.mrf.mxu0
  %v6075 = vadd.f32 0.0, %v6074
  %6076 = vmatmul.f32.gmra.mxu0 %v6016
  %v6077 = vpop.f32.mrf.mxu0
  %v6078 = vadd.f32 0.0, %v6077
  %6079 = vmatmul.f32.gmra.mxu0 %v6018
  %v6080 = vpop.f32.mrf.mxu0
  %v6081 = vadd.f32 0.0, %v6080
  %6082 = vmatmul.f32.gmra.mxu0 %v6020
  %v6083 = vpop.f32.mrf.mxu0
  %v6084 = vadd.f32 0.0, %v6083
  %6085 = vmatmul.f32.gmra.mxu0 %v6022
  %v6086 = vpop.f32.mrf.mxu0
  %v6087 = vadd.f32 0.0, %v6086
  %6088 = vdwg.mxu0
  %vm6089 = vcmp.lt.s32.totalorder %v227, 0
  %v6090 = vsub.s32 0, %v227
  %v6091 = vsel %vm6089, %v6090, %v227
  %v6092 = vshrl.u32 %v6091, 3
  %v6093 = vand.u32 %v6091, 7
  %v6094 = vsub.s32 0, %v6093
  %v6095 = vsel %vm6089, %v6094, %v6093
  %vm6096 = vcmp.ne.s32.totalorder %v6095, 0
  %vm6097 = vcmp.lt.s32.totalorder %v6095, 0
  %vm6098 = vmand %vm6097, %vm6096
  %v6099 = vadd.s32 %v6095, 8
  %v6100 = vsel %vm6098, %v6099, %v6095
  %vm6101 = vcmask 1047680
  %6102 = vrot.lane.b32.xlu0 %v6042, 16
  %v6103 = vpop.permute.xlu0 %6102
  %v6104 = vsel %vm6101, %v6103, %v6042
  %6105 = vrot.lane.b32.xlu0 %v6045, 16
  %v6106 = vpop.permute.xlu0 %6105
  %v6107 = vsel %vm6101, %v6106, %v6045
  %6108 = vrot.lane.b32.xlu0 %v6048, 16
  %v6109 = vpop.permute.xlu0 %6108
  %v6110 = vsel %vm6101, %v6109, %v6048
  %6111 = vrot.lane.b32.xlu0 %v6051, 16
  %v6112 = vpop.permute.xlu0 %6111
  %v6113 = vsel %vm6101, %v6112, %v6051
  %6114 = vrot.lane.b32.xlu0 %v6054, 16
  %v6115 = vpop.permute.xlu0 %6114
  %v6116 = vsel %vm6101, %v6115, %v6054
  %6117 = vrot.lane.b32.xlu0 %v6057, 16
  %v6118 = vpop.permute.xlu0 %6117
  %v6119 = vsel %vm6101, %v6118, %v6057
  %6120 = vrot.lane.b32.xlu0 %v6060, 16
  %v6121 = vpop.permute.xlu0 %6120
  %v6122 = vsel %vm6101, %v6121, %v6060
  %6123 = vrot.lane.b32.xlu0 %v6063, 16
  %v6124 = vpop.permute.xlu0 %6123
  %v6125 = vsel %vm6101, %v6124, %v6063
  %6126 = vrot.lane.b32.xlu0 %v6104, 16
  %v6127 = vpop.permute.xlu0 %6126
  %6128 = vrot.lane.b32.xlu0 %v6107, 16
  %v6129 = vpop.permute.xlu0 %6128
  %6130 = vrot.lane.b32.xlu0 %v6110, 16
  %v6131 = vpop.permute.xlu0 %6130
  %6132 = vrot.lane.b32.xlu0 %v6113, 16
  %v6133 = vpop.permute.xlu0 %6132
  %6134 = vrot.lane.b32.xlu0 %v6116, 16
  %v6135 = vpop.permute.xlu0 %6134
  %6136 = vrot.lane.b32.xlu0 %v6119, 16
  %v6137 = vpop.permute.xlu0 %6136
  %6138 = vrot.lane.b32.xlu0 %v6122, 16
  %v6139 = vpop.permute.xlu0 %6138
  %6140 = vrot.lane.b32.xlu0 %v6125, 16
  %v6141 = vpop.permute.xlu0 %6140
  %v6142 = vsel %vm6101, %v6127, %v6042
  %v6143 = vsel %vm6101, %v6129, %v6045
  %v6144 = vsel %vm6101, %v6131, %v6048
  %v6145 = vsel %vm6101, %v6133, %v6051
  %v6146 = vsel %vm6101, %v6135, %v6054
  %v6147 = vsel %vm6101, %v6137, %v6057
  %v6148 = vsel %vm6101, %v6139, %v6060
  %v6149 = vsel %vm6101, %v6141, %v6063
  %vm6150 = vcmp.ne.s32.totalorder %v6100, 0
  %v6151 = vsel %vm6150, 1, 0
  %v6152 = vcvt.s32.f32 %v6151
  %6154 = vrot.lane.b32.xlu0 %v6152, 15
  %v6155 = vpop.permute.xlu0 %6154
  %v6157 = vmul.f32 %v6142, %v6155
  %v6158 = vmul.f32 %v6143, %v6155
  %v6159 = vmul.f32 %v6144, %v6155
  %v6160 = vmul.f32 %v6145, %v6155
  %v6161 = vmul.f32 %v6146, %v6155
  %v6162 = vmul.f32 %v6147, %v6155
  %v6163 = vmul.f32 %v6148, %v6155
  %v6164 = vmul.f32 %v6149, %v6155
  %vm6165 = vcmp.ne.s32.totalorder %v6100, 7
  %v6166 = vsel %vm6165, 1, 0
  %v6167 = vcvt.s32.f32 %v6166
  %6169 = vrot.lane.b32.xlu0 %v6167, 1
  %v6170 = vpop.permute.xlu0 %6169
  %v6172 = vmul.f32 %v6142, %v6170
  %v6173 = vmul.f32 %v6143, %v6170
  %v6174 = vmul.f32 %v6144, %v6170
  %v6175 = vmul.f32 %v6145, %v6170
  %v6176 = vmul.f32 %v6146, %v6170
  %v6177 = vmul.f32 %v6147, %v6170
  %v6178 = vmul.f32 %v6148, %v6170
  %v6179 = vmul.f32 %v6149, %v6170
  %6188 = vrot.lane.b32.xlu0 %v6042, 15
  %v6189 = vpop.permute.xlu0 %6188
  %6190 = vrot.lane.b32.xlu0 %v6045, 15
  %v6191 = vpop.permute.xlu0 %6190
  %6192 = vrot.lane.b32.xlu0 %v6048, 15
  %v6193 = vpop.permute.xlu0 %6192
  %6194 = vrot.lane.b32.xlu0 %v6051, 15
  %v6195 = vpop.permute.xlu0 %6194
  %6196 = vrot.lane.b32.xlu0 %v6054, 15
  %v6197 = vpop.permute.xlu0 %6196
  %6198 = vrot.lane.b32.xlu0 %v6057, 15
  %v6199 = vpop.permute.xlu0 %6198
  %6200 = vrot.lane.b32.xlu0 %v6060, 15
  %v6201 = vpop.permute.xlu0 %6200
  %6202 = vrot.lane.b32.xlu0 %v6063, 15
  %v6203 = vpop.permute.xlu0 %6202
  %6212 = vrot.lane.b32.xlu0 %v6172, 14
  %v6213 = vpop.permute.xlu0 %6212
  %6214 = vrot.lane.b32.xlu0 %v6173, 14
  %v6215 = vpop.permute.xlu0 %6214
  %6216 = vrot.lane.b32.xlu0 %v6174, 14
  %v6217 = vpop.permute.xlu0 %6216
  %6218 = vrot.lane.b32.xlu0 %v6175, 14
  %v6219 = vpop.permute.xlu0 %6218
  %6220 = vrot.lane.b32.xlu0 %v6176, 14
  %v6221 = vpop.permute.xlu0 %6220
  %6222 = vrot.lane.b32.xlu0 %v6177, 14
  %v6223 = vpop.permute.xlu0 %6222
  %6224 = vrot.lane.b32.xlu0 %v6178, 14
  %v6225 = vpop.permute.xlu0 %6224
  %6226 = vrot.lane.b32.xlu0 %v6179, 14
  %v6227 = vpop.permute.xlu0 %6226
  %v6228 = vld [vmem:[%s79] sm:$0xff]
  %v6229 = vld [vmem:[%s79 + $0x8] sm:$0xff]
  %v6230 = vld [vmem:[%s79 + $0x10] sm:$0xff]
  %v6231 = vld [vmem:[%s79 + $0x18] sm:$0xff]
  %v6232 = vld [vmem:[%s79 + $0x20] sm:$0xff]
  %v6233 = vld [vmem:[%s79 + $0x28] sm:$0xff]
  %v6234 = vld [vmem:[%s79 + $0x30] sm:$0xff]
  %v6235 = vld [vmem:[%s79 + $0x38] sm:$0xff]
  %v6236 = vld [vmem:[%s79 + $0x40] sm:$0xff]
  %v6237 = vld [vmem:[%s79 + $0x48] sm:$0xff]
  %v6238 = vld [vmem:[%s79 + $0x50] sm:$0xff]
  %v6239 = vld [vmem:[%s79 + $0x58] sm:$0xff]
  %v6240 = vld [vmem:[%s79 + $0x60] sm:$0xff]
  %v6241 = vld [vmem:[%s79 + $0x68] sm:$0xff]
  %v6242 = vld [vmem:[%s79 + $0x70] sm:$0xff]
  %v6243 = vld [vmem:[%s79 + $0x78] sm:$0xff]
  %v6244 = vld [vmem:[%s81] sm:$0xff]
  %v6245 = vld [vmem:[%s81 + $0x8] sm:$0xff]
  %v6246 = vld [vmem:[%s81 + $0x10] sm:$0xff]
  %v6247 = vld [vmem:[%s81 + $0x18] sm:$0xff]
  %v6248 = vld [vmem:[%s81 + $0x20] sm:$0xff]
  %v6249 = vld [vmem:[%s81 + $0x28] sm:$0xff]
  %v6250 = vld [vmem:[%s81 + $0x30] sm:$0xff]
  %v6251 = vld [vmem:[%s81 + $0x38] sm:$0xff]
  %6253 = vset.pattern.permute.xlu0 0
  %6254 = vperm.xlu0 %6253, %v6244
  %v6255 = vpop.permute.xlu0 %6254
  %6258 = vset.pattern.permute.xlu0 0
  %6259 = vperm.xlu0 %6258, %v6245
  %v6260 = vpop.permute.xlu0 %6259
  %6263 = vset.pattern.permute.xlu0 0
  %6264 = vperm.xlu0 %6263, %v6246
  %v6265 = vpop.permute.xlu0 %6264
  %6268 = vset.pattern.permute.xlu0 0
  %6269 = vperm.xlu0 %6268, %v6247
  %v6270 = vpop.permute.xlu0 %6269
  %6273 = vset.pattern.permute.xlu0 0
  %6274 = vperm.xlu0 %6273, %v6248
  %v6275 = vpop.permute.xlu0 %6274
  %6278 = vset.pattern.permute.xlu0 0
  %6279 = vperm.xlu0 %6278, %v6249
  %v6280 = vpop.permute.xlu0 %6279
  %6283 = vset.pattern.permute.xlu0 0
  %6284 = vperm.xlu0 %6283, %v6250
  %v6285 = vpop.permute.xlu0 %6284
  %6288 = vset.pattern.permute.xlu0 0
  %6289 = vperm.xlu0 %6288, %v6251
  %v6290 = vpop.permute.xlu0 %6289
  %6300 = vrot.lane.b32.xlu0 %v6157, 113
  %v6301 = vpop.permute.xlu0 %6300
  %6302 = vrot.lane.b32.xlu0 %v6158, 113
  %v6303 = vpop.permute.xlu0 %6302
  %6304 = vrot.lane.b32.xlu0 %v6159, 113
  %v6305 = vpop.permute.xlu0 %6304
  %6306 = vrot.lane.b32.xlu0 %v6160, 113
  %v6307 = vpop.permute.xlu0 %6306
  %6308 = vrot.lane.b32.xlu0 %v6161, 113
  %v6309 = vpop.permute.xlu0 %6308
  %6310 = vrot.lane.b32.xlu0 %v6162, 113
  %v6311 = vpop.permute.xlu0 %6310
  %6312 = vrot.lane.b32.xlu0 %v6163, 113
  %v6313 = vpop.permute.xlu0 %6312
  %6314 = vrot.lane.b32.xlu0 %v6164, 113
  %v6315 = vpop.permute.xlu0 %6314
  %6316 = vrot.lane.b32.xlu0 %v6189, 113
  %v6317 = vpop.permute.xlu0 %6316
  %6318 = vrot.lane.b32.xlu0 %v6191, 113
  %v6319 = vpop.permute.xlu0 %6318
  %6320 = vrot.lane.b32.xlu0 %v6193, 113
  %v6321 = vpop.permute.xlu0 %6320
  %6322 = vrot.lane.b32.xlu0 %v6195, 113
  %v6323 = vpop.permute.xlu0 %6322
  %6324 = vrot.lane.b32.xlu0 %v6197, 113
  %v6325 = vpop.permute.xlu0 %6324
  %6326 = vrot.lane.b32.xlu0 %v6199, 113
  %v6327 = vpop.permute.xlu0 %6326
  %6328 = vrot.lane.b32.xlu0 %v6201, 113
  %v6329 = vpop.permute.xlu0 %6328
  %6330 = vrot.lane.b32.xlu0 %v6203, 113
  %v6331 = vpop.permute.xlu0 %6330
  %6332 = vrot.lane.b32.xlu0 %v6213, 113
  %v6333 = vpop.permute.xlu0 %6332
  %6334 = vrot.lane.b32.xlu0 %v6215, 113
  %v6335 = vpop.permute.xlu0 %6334
  %6336 = vrot.lane.b32.xlu0 %v6217, 113
  %v6337 = vpop.permute.xlu0 %6336
  %6338 = vrot.lane.b32.xlu0 %v6219, 113
  %v6339 = vpop.permute.xlu0 %6338
  %6340 = vrot.lane.b32.xlu0 %v6221, 113
  %v6341 = vpop.permute.xlu0 %6340
  %6342 = vrot.lane.b32.xlu0 %v6223, 113
  %v6343 = vpop.permute.xlu0 %6342
  %6344 = vrot.lane.b32.xlu0 %v6225, 113
  %v6345 = vpop.permute.xlu0 %6344
  %6346 = vrot.lane.b32.xlu0 %v6227, 113
  %v6347 = vpop.permute.xlu0 %6346
  %v6373 = vsel %vm4966, %v6229, 0
  %v6376 = vsel %vm4966, %v6231, 0
  %v6379 = vsel %vm4966, %v6233, 0
  %v6382 = vsel %vm4966, %v6235, 0
  %v6385 = vsel %vm4966, %v6237, 0
  %v6388 = vsel %vm4966, %v6239, 0
  %v6391 = vsel %vm4966, %v6241, 0
  %v6394 = vsel %vm4966, %v6243, 0
  %6396 = vmatpush.msra.mxu0 %v6331
  %6397 = vmatpush.msra.mxu0 %v6329
  %6398 = vmatpush.msra.mxu0 %v6327
  %6399 = vmatpush.msra.mxu0 %v6325
  %6400 = vmatpush.msra.mxu0 %v6323
  %6401 = vmatpush.msra.mxu0 %v6321
  %6402 = vmatpush.msra.mxu0 %v6319
  %6403 = vmatpush.msra.mxu0 %v6317
  %6404 = vmatpush.msra.mxu0 %v6315
  %6405 = vmatpush.msra.mxu0 %v6313
  %6406 = vmatpush.msra.mxu0 %v6311
  %6407 = vmatpush.msra.mxu0 %v6309
  %6408 = vmatpush.msra.mxu0 %v6307
  %6409 = vmatpush.msra.mxu0 %v6305
  %6410 = vmatpush.msra.mxu0 %v6303
  %6411 = vmatpush.msra.mxu0 %v6301
  %6412 = vmatmul.f32.gmra.mxu0 %v6228
  %v6413 = vpop.f32.mrf.mxu0
  %v6414 = vadd.f32 %v6255, %v6413
  %6415 = vmatmul.f32.gmra.mxu0 %v6230
  %v6416 = vpop.f32.mrf.mxu0
  %v6417 = vadd.f32 %v6260, %v6416
  %6418 = vmatmul.f32.gmra.mxu0 %v6232
  %v6419 = vpop.f32.mrf.mxu0
  %v6420 = vadd.f32 %v6265, %v6419
  %6421 = vmatmul.f32.gmra.mxu0 %v6234
  %v6422 = vpop.f32.mrf.mxu0
  %v6423 = vadd.f32 %v6270, %v6422
  %6424 = vmatmul.f32.gmra.mxu0 %v6236
  %v6425 = vpop.f32.mrf.mxu0
  %v6426 = vadd.f32 %v6275, %v6425
  %6427 = vmatmul.f32.gmra.mxu0 %v6238
  %v6428 = vpop.f32.mrf.mxu0
  %v6429 = vadd.f32 %v6280, %v6428
  %6430 = vmatmul.f32.gmra.mxu0 %v6240
  %v6431 = vpop.f32.mrf.mxu0
  %v6432 = vadd.f32 %v6285, %v6431
  %6433 = vmatmul.f32.gmra.mxu0 %v6242
  %v6434 = vpop.f32.mrf.mxu0
  %v6435 = vadd.f32 %v6290, %v6434
  %6436 = vdwg.mxu0
  %6437 = vmatpush.msra.mxu0 0.0
  %6438 = vmatpush.msra.mxu0 0.0
  %6439 = vmatpush.msra.mxu0 0.0
  %6440 = vmatpush.msra.mxu0 0.0
  %6441 = vmatpush.msra.mxu0 0.0
  %6442 = vmatpush.msra.mxu0 0.0
  %6443 = vmatpush.msra.mxu0 0.0
  %6444 = vmatpush.msra.mxu0 0.0
  %6445 = vmatpush.msra.mxu0 %v6347
  %6446 = vmatpush.msra.mxu0 %v6345
  %6447 = vmatpush.msra.mxu0 %v6343
  %6448 = vmatpush.msra.mxu0 %v6341
  %6449 = vmatpush.msra.mxu0 %v6339
  %6450 = vmatpush.msra.mxu0 %v6337
  %6451 = vmatpush.msra.mxu0 %v6335
  %6452 = vmatpush.msra.mxu0 %v6333
  %6453 = vmatmul.f32.gmra.mxu0 %v6373
  %v6454 = vpop.f32.mrf.mxu0
  %v6455 = vadd.f32 %v6414, %v6454
  %6456 = vmatmul.f32.gmra.mxu0 %v6376
  %v6457 = vpop.f32.mrf.mxu0
  %v6458 = vadd.f32 %v6417, %v6457
  %6459 = vmatmul.f32.gmra.mxu0 %v6379
  %v6460 = vpop.f32.mrf.mxu0
  %v6461 = vadd.f32 %v6420, %v6460
  %6462 = vmatmul.f32.gmra.mxu0 %v6382
  %v6463 = vpop.f32.mrf.mxu0
  %v6464 = vadd.f32 %v6423, %v6463
  %6465 = vmatmul.f32.gmra.mxu0 %v6385
  %v6466 = vpop.f32.mrf.mxu0
  %v6467 = vadd.f32 %v6426, %v6466
  %6468 = vmatmul.f32.gmra.mxu0 %v6388
  %v6469 = vpop.f32.mrf.mxu0
  %v6470 = vadd.f32 %v6429, %v6469
  %6471 = vmatmul.f32.gmra.mxu0 %v6391
  %v6472 = vpop.f32.mrf.mxu0
  %v6473 = vadd.f32 %v6432, %v6472
  %6474 = vmatmul.f32.gmra.mxu0 %v6394
  %v6475 = vpop.f32.mrf.mxu0
  %v6476 = vadd.f32 %v6435, %v6475
  %6477 = vdwg.mxu0
  %v6478 = vld [vmem:[%s83] sm:$0xff]
  %v6479 = vld [vmem:[%s83 + $0x8] sm:$0xff]
  %v6480 = vld [vmem:[%s83 + $0x10] sm:$0xff]
  %v6481 = vld [vmem:[%s83 + $0x18] sm:$0xff]
  %v6482 = vld [vmem:[%s83 + $0x20] sm:$0xff]
  %v6483 = vld [vmem:[%s83 + $0x28] sm:$0xff]
  %v6484 = vld [vmem:[%s83 + $0x30] sm:$0xff]
  %v6485 = vld [vmem:[%s83 + $0x38] sm:$0xff]
  %v6486 = vld [vmem:[%s85] sm:$0xff]
  %v6487 = vld [vmem:[%s85 + $0x8] sm:$0xff]
  %v6488 = vld [vmem:[%s85 + $0x10] sm:$0xff]
  %v6489 = vld [vmem:[%s85 + $0x18] sm:$0xff]
  %v6490 = vld [vmem:[%s85 + $0x20] sm:$0xff]
  %v6491 = vld [vmem:[%s85 + $0x28] sm:$0xff]
  %v6492 = vld [vmem:[%s85 + $0x30] sm:$0xff]
  %v6493 = vld [vmem:[%s85 + $0x38] sm:$0xff]
  %6495 = vset.pattern.permute.xlu0 0
  %6496 = vperm.xlu0 %6495, %v6486
  %v6497 = vpop.permute.xlu0 %6496
  %6500 = vset.pattern.permute.xlu0 0
  %6501 = vperm.xlu0 %6500, %v6487
  %v6502 = vpop.permute.xlu0 %6501
  %6505 = vset.pattern.permute.xlu0 0
  %6506 = vperm.xlu0 %6505, %v6488
  %v6507 = vpop.permute.xlu0 %6506
  %6510 = vset.pattern.permute.xlu0 0
  %6511 = vperm.xlu0 %6510, %v6489
  %v6512 = vpop.permute.xlu0 %6511
  %6515 = vset.pattern.permute.xlu0 0
  %6516 = vperm.xlu0 %6515, %v6490
  %v6517 = vpop.permute.xlu0 %6516
  %6520 = vset.pattern.permute.xlu0 0
  %6521 = vperm.xlu0 %6520, %v6491
  %v6522 = vpop.permute.xlu0 %6521
  %6525 = vset.pattern.permute.xlu0 0
  %6526 = vperm.xlu0 %6525, %v6492
  %v6527 = vpop.permute.xlu0 %6526
  %6530 = vset.pattern.permute.xlu0 0
  %6531 = vperm.xlu0 %6530, %v6493
  %v6532 = vpop.permute.xlu0 %6531
  %v6535 = vsel %vm4966, %v6478, 0
  %v6538 = vsel %vm4966, %v6479, 0
  %v6541 = vsel %vm4966, %v6480, 0
  %v6544 = vsel %vm4966, %v6481, 0
  %v6547 = vsel %vm4966, %v6482, 0
  %v6550 = vsel %vm4966, %v6483, 0
  %v6553 = vsel %vm4966, %v6484, 0
  %v6556 = vsel %vm4966, %v6485, 0
  %6558 = vmatpush.msra.mxu0 0.0
  %6559 = vmatpush.msra.mxu0 0.0
  %6560 = vmatpush.msra.mxu0 0.0
  %6561 = vmatpush.msra.mxu0 0.0
  %6562 = vmatpush.msra.mxu0 0.0
  %6563 = vmatpush.msra.mxu0 0.0
  %6564 = vmatpush.msra.mxu0 0.0
  %6565 = vmatpush.msra.mxu0 0.0
  %6566 = vmatpush.msra.mxu0 %v6087
  %6567 = vmatpush.msra.mxu0 %v6084
  %6568 = vmatpush.msra.mxu0 %v6081
  %6569 = vmatpush.msra.mxu0 %v6078
  %6570 = vmatpush.msra.mxu0 %v6075
  %6571 = vmatpush.msra.mxu0 %v6072
  %6572 = vmatpush.msra.mxu0 %v6069
  %6573 = vmatpush.msra.mxu0 %v6066
  %6574 = vmatmul.f32.gmra.mxu0 %v6535
  %v6575 = vpop.f32.mrf.mxu0
  %v6576 = vadd.f32 %v6497, %v6575
  %6577 = vmatmul.f32.gmra.mxu0 %v6538
  %v6578 = vpop.f32.mrf.mxu0
  %v6579 = vadd.f32 %v6502, %v6578
  %6580 = vmatmul.f32.gmra.mxu0 %v6541
  %v6581 = vpop.f32.mrf.mxu0
  %v6582 = vadd.f32 %v6507, %v6581
  %6583 = vmatmul.f32.gmra.mxu0 %v6544
  %v6584 = vpop.f32.mrf.mxu0
  %v6585 = vadd.f32 %v6512, %v6584
  %6586 = vmatmul.f32.gmra.mxu0 %v6547
  %v6587 = vpop.f32.mrf.mxu0
  %v6588 = vadd.f32 %v6517, %v6587
  %6589 = vmatmul.f32.gmra.mxu0 %v6550
  %v6590 = vpop.f32.mrf.mxu0
  %v6591 = vadd.f32 %v6522, %v6590
  %6592 = vmatmul.f32.gmra.mxu0 %v6553
  %v6593 = vpop.f32.mrf.mxu0
  %v6594 = vadd.f32 %v6527, %v6593
  %6595 = vmatmul.f32.gmra.mxu0 %v6556
  %v6596 = vpop.f32.mrf.mxu0
  %v6597 = vadd.f32 %v6532, %v6596
  %6598 = vdwg.mxu0
  %v6599 = vadd.f32 %v6455, %v6576
  %v6600 = vadd.f32 %v6458, %v6579
  %v6601 = vadd.f32 %v6461, %v6582
  %v6602 = vadd.f32 %v6464, %v6585
  %v6603 = vadd.f32 %v6467, %v6588
  %v6604 = vadd.f32 %v6470, %v6591
  %v6605 = vadd.f32 %v6473, %v6594
  %v6606 = vadd.f32 %v6476, %v6597
  %vm6607 = vcmp.gt.f32.partialorder %v6599, 0.0
  %vm6608 = vcmp.gt.f32.partialorder %v6600, 0.0
  %vm6609 = vcmp.gt.f32.partialorder %v6601, 0.0
  %vm6610 = vcmp.gt.f32.partialorder %v6602, 0.0
  %vm6611 = vcmp.gt.f32.partialorder %v6603, 0.0
  %vm6612 = vcmp.gt.f32.partialorder %v6604, 0.0
  %vm6613 = vcmp.gt.f32.partialorder %v6605, 0.0
  %vm6614 = vcmp.gt.f32.partialorder %v6606, 0.0
  %v6615 = vmin.f32 %v6599, 0.0
  %v6616 = vmin.f32 %v6600, 0.0
  %v6617 = vmin.f32 %v6601, 0.0
  %v6618 = vmin.f32 %v6602, 0.0
  %v6619 = vmin.f32 %v6603, 0.0
  %v6620 = vmin.f32 %v6604, 0.0
  %v6621 = vmin.f32 %v6605, 0.0
  %v6622 = vmin.f32 %v6606, 0.0
  %v6623 = vmul.f32 %v6615, 1.442695
  %v6624 = vpow.pop %v6623
  %v6625 = vmul.f32 %v6616, 1.442695
  %v6626 = vpow.pop %v6625
  %v6627 = vmul.f32 %v6617, 1.442695
  %v6628 = vpow.pop %v6627
  %v6629 = vmul.f32 %v6618, 1.442695
  %v6630 = vpow.pop %v6629
  %v6631 = vmul.f32 %v6619, 1.442695
  %v6632 = vpow.pop %v6631
  %v6633 = vmul.f32 %v6620, 1.442695
  %v6634 = vpow.pop %v6633
  %v6635 = vmul.f32 %v6621, 1.442695
  %v6636 = vpow.pop %v6635
  %v6637 = vmul.f32 %v6622, 1.442695
  %v6638 = vpow.pop %v6637
  %v6639 = vsub.f32 %v6624, 1.0
  %v6640 = vsub.f32 %v6626, 1.0
  %v6641 = vsub.f32 %v6628, 1.0
  %v6642 = vsub.f32 %v6630, 1.0
  %v6643 = vsub.f32 %v6632, 1.0
  %v6644 = vsub.f32 %v6634, 1.0
  %v6645 = vsub.f32 %v6636, 1.0
  %v6646 = vsub.f32 %v6638, 1.0
  %v6647 = vsel %vm6607, %v6599, %v6639
  %v6648 = vsel %vm6608, %v6600, %v6640
  %v6649 = vsel %vm6609, %v6601, %v6641
  %v6650 = vsel %vm6610, %v6602, %v6642
  %v6651 = vsel %vm6611, %v6603, %v6643
  %v6652 = vsel %vm6612, %v6604, %v6644
  %v6653 = vsel %vm6613, %v6605, %v6645
  %v6654 = vsel %vm6614, %v6606, %v6646
  %v6655 = vld [vmem:[%s87] sm:$0xff]
  %v6656 = vld [vmem:[%s87 + $0x8] sm:$0xff]
  %v6657 = vld [vmem:[%s87 + $0x10] sm:$0xff]
  %v6658 = vld [vmem:[%s87 + $0x18] sm:$0xff]
  %v6660 = vsel %vm4966, %v6655, 0
  %v6663 = vsel %vm4966, %v6656, 0
  %v6666 = vsel %vm4966, %v6657, 0
  %v6669 = vsel %vm4966, %v6658, 0
  %6671 = vmatpush.msra.mxu0 0.0
  %6672 = vmatpush.msra.mxu0 0.0
  %6673 = vmatpush.msra.mxu0 0.0
  %6674 = vmatpush.msra.mxu0 0.0
  %6675 = vmatpush.msra.mxu0 0.0
  %6676 = vmatpush.msra.mxu0 0.0
  %6677 = vmatpush.msra.mxu0 0.0
  %6678 = vmatpush.msra.mxu0 0.0
  %6679 = vmatpush.msra.mxu0 %v6654
  %6680 = vmatpush.msra.mxu0 %v6653
  %6681 = vmatpush.msra.mxu0 %v6652
  %6682 = vmatpush.msra.mxu0 %v6651
  %6683 = vmatpush.msra.mxu0 %v6650
  %6684 = vmatpush.msra.mxu0 %v6649
  %6685 = vmatpush.msra.mxu0 %v6648
  %6686 = vmatpush.msra.mxu0 %v6647
  %6687 = vmatmul.f32.gmra.mxu0 %v6660
  %v6688 = vpop.f32.mrf.mxu0
  %v6689 = vadd.f32 0.0, %v6688
  %6690 = vmatmul.f32.gmra.mxu0 %v6663
  %v6691 = vpop.f32.mrf.mxu0
  %v6692 = vadd.f32 0.0, %v6691
  %6693 = vmatmul.f32.gmra.mxu0 %v6666
  %v6694 = vpop.f32.mrf.mxu0
  %v6695 = vadd.f32 0.0, %v6694
  %6696 = vmatmul.f32.gmra.mxu0 %v6669
  %v6697 = vpop.f32.mrf.mxu0
  %v6698 = vadd.f32 0.0, %v6697
  %6699 = vdwg.mxu0
  %v6700 = vld [vmem:[%s5] sm:$0xff]
  %v6701 = vld [vmem:[%s5 + $0x8] sm:$0xff]
  %v6702 = vld [vmem:[%s5 + $0x10] sm:$0xff]
  %v6703 = vld [vmem:[%s5 + $0x18] sm:$0xff]
  %v6704 = vmul.f32 %v6689, %v6700
  %v6705 = vmul.f32 %v6692, %v6701
  %v6706 = vmul.f32 %v6695, %v6702
  %v6707 = vmul.f32 %v6698, %v6703
  %v6708 = vld [vmem:[%s7] sm:$0xf]
  %v6710 = vsel %vm4671, %v6708, 0
  %6712 = vmatpush.msra.mxu0 0.0
  %6713 = vmatpush.msra.mxu0 0.0
  %6714 = vmatpush.msra.mxu0 0.0
  %6715 = vmatpush.msra.mxu0 0.0
  %6716 = vmatpush.msra.mxu0 0.0
  %6717 = vmatpush.msra.mxu0 0.0
  %6718 = vmatpush.msra.mxu0 0.0
  %6719 = vmatpush.msra.mxu0 0.0
  %6720 = vmatpush.msra.mxu0 0.0
  %6721 = vmatpush.msra.mxu0 0.0
  %6722 = vmatpush.msra.mxu0 0.0
  %6723 = vmatpush.msra.mxu0 0.0
  %6724 = vmatpush.msra.mxu0 %v6707
  %6725 = vmatpush.msra.mxu0 %v6706
  %6726 = vmatpush.msra.mxu0 %v6705
  %6727 = vmatpush.msra.mxu0 %v6704
  %6728 = vmatmul.f32.gmra.mxu0 %v6710
  %v6729 = vpop.f32.mrf.mxu0
  %v6730 = vadd.f32 0.0, %v6729
  %6731 = vdwg.mxu0
  %v6732 = vld [vmem:[%s9] sm:$0xff]
  %v6733 = vld [vmem:[%s9 + $0x8] sm:$0xff]
  %v6734 = vld [vmem:[%s89] sm:$0xf]
  %6736 = vset.pattern.permute.xlu0 0
  %6737 = vperm.xlu0 %6736, %v6734
  %v6738 = vpop.permute.xlu0 %6737
  %v6741 = vsel %vm2941, %v6730, 0
  %6743 = vmatpush.msra.mxu0 0.0
  %6744 = vmatpush.msra.mxu0 0.0
  %6745 = vmatpush.msra.mxu0 0.0
  %6746 = vmatpush.msra.mxu0 0.0
  %6747 = vmatpush.msra.mxu0 0.0
  %6748 = vmatpush.msra.mxu0 0.0
  %6749 = vmatpush.msra.mxu0 0.0
  %6750 = vmatpush.msra.mxu0 0.0
  %6751 = vmatpush.msra.mxu0 0.0
  %6752 = vmatpush.msra.mxu0 0.0
  %6753 = vmatpush.msra.mxu0 0.0
  %6754 = vmatpush.msra.mxu0 0.0
  %6755 = vmatpush.msra.mxu0 0.0
  %6756 = vmatpush.msra.mxu0 0.0
  %6757 = vmatpush.msra.mxu0 %v6733
  %6758 = vmatpush.msra.mxu0 %v6732
  %6759 = vmatmul.f32.gmra.mxu0 %v6741
  %v6760 = vpop.f32.mrf.mxu0
  %v6761 = vadd.f32 %v6738, %v6760
  %6762 = vdwg.mxu0
  %vm6763 = vcmask 11264
  %6764 = vst.msk [vmem:[%s91] sm:$0xf] %vm6763, %v6761
  // Predicated region
  $region182: #{resnet_forward.1} parent=0 // pred_check
    _
  $region183: #{resnet_forward.1} parent=0 // pred_check_branch
    %6766 = sbr.rel (0) target = $region185
  $region184: #{resnet_forward.1} parent=0 // pred_region
    _
  $region185: #{resnet_forward.1} parent=0 // pred_fallthru
    _
  // Predicated region
  $region186: #{resnet_forward.1} parent=0 // pred_check
    _
  $region187: #{resnet_forward.1} parent=0 // pred_check_branch
    %6768 = sbr.rel (0) target = $region189
  $region188: #{resnet_forward.1} parent=0 // pred_region
    _
  $region189: #{resnet_forward.1} parent=0 // pred_fallthru
    _

</llo_original>
